<compile_context>
chip_gen: v6e
topology: v6e:2x2x1
jax: 0.10.0
libtpu: 0.0.40
codegen_flags: <defaults>
</compile_context>

<pallas_src>
import jax
import jax.numpy as jnp
import numpy as np
from jax.experimental import pallas as pl
from jax.experimental.pallas import tpu as pltpu


def _round_up(n, m):
    return (n + m - 1) // m * m


def _bias_offsets(seg_lens):
    """128-lane-aligned segment offsets for the packed bias buffer."""
    offs, off = [], 0
    for n in seg_lens:
        offs.append(off)
        off = _round_up(off + n, 128)
    return offs, off


# ------------------------------ fused Pallas kernel --------------------------

def _fused_forward_kernel(x_ref, t1_ref, t2_ref, t3_ref, w1_ref, w2_ref, w3_ref,
                          bias_ref, out_ref, a3_scr):
    """Whole forward for one batch block, fully VMEM resident.

    Phase 1 (per image): three 3x3 VALID convs as full-height matmuls against
    block-Toeplitz weights; the three ky-shifted f32 results are summed row-shifted.
    conv1 consumes the raw NCHW block (per-channel row blocks of t1) so no transpose
    is needed anywhere. conv3's width is lane-padded to 128 so its rows store
    lane-aligned into the flattened-activation scratch.
    Phase 2 (whole batch block): fc1 is ONE K=Ho*128 contraction with M=bb; fc2 and
    fc3 (with the folded value head) are likewise batched; one lane-dense output store.
    """
    f32, bf16 = jnp.float32, jnp.bfloat16
    bb, C, H, W = x_ref.shape
    ho1, ho3 = H - 2, H - 6
    n1, n2 = (W - 2) * 32, (W - 4) * 16
    n3 = t3_ref.shape[2]                       # lane-padded conv3 output width
    nh = w2_ref.shape[1]                       # 256
    nout = out_ref.shape[1]                    # lane-padded (num_outputs + 1)

    offs, _ = _bias_offsets((n1, n2, n3, nh, nh, nout))
    cb1 = bias_ref[:, offs[0]:offs[0] + n1]
    cb2 = bias_ref[:, offs[1]:offs[1] + n2]
    cb3 = bias_ref[:, offs[2]:offs[2] + n3]
    b1 = bias_ref[:, offs[3]:offs[3] + nh]
    b2 = bias_ref[:, offs[4]:offs[4] + nh]
    b3 = bias_ref[:, offs[5]:offs[5] + nout]

    def conv3x3(act_bf16, t_ref, brow):
        # Full-height matmuls; shifted f32 result rows are summed.  Avoids slicing
        # packed-bf16 operands and keeps exactly one bf16 cast per layer.
        ho = act_bf16.shape[0] - 2
        y0 = jnp.dot(act_bf16, t_ref[0], preferred_element_type=f32)
        y1 = jnp.dot(act_bf16, t_ref[1], preferred_element_type=f32)
        y2 = jnp.dot(act_bf16, t_ref[2], preferred_element_type=f32)
        return jnp.maximum(y0[0:ho] + y1[1:ho + 1] + y2[2:ho + 2] + brow, 0.0)

    # -------- phase 1: conv stack, statically unrolled over the small batch block
    for bi in range(bb):
        # conv1 straight off the NCHW block: channel c uses row block c*W..(c+1)*W of t1.
        z1 = cb1                                            # (1, n1) -> broadcasts up
        for c in range(C):
            xc = x_ref[bi, c].astype(bf16)                  # (H, W), one cast per channel
            for ky in range(3):
                y = jnp.dot(xc, t1_ref[ky, c * W:(c + 1) * W, :],
                            preferred_element_type=f32)     # (H, n1)
                z1 = z1 + y[ky:ky + ho1]
        a1 = jnp.maximum(z1, 0.0).astype(bf16)              # (H-2, n1)
        a2 = conv3x3(a1, t2_ref, cb2).astype(bf16)          # (H-4, n2)
        a3 = conv3x3(a2, t3_ref, cb3)                       # (H-6, n3) f32, pad lanes = 0
        # Flatten (h, w*c) into one fc1 row via lane-aligned 128-wide row stores.
        for h in range(ho3):
            a3_scr[bi:bi + 1, h * n3:(h + 1) * n3] = a3[h:h + 1, :]

    # -------- phase 2: batched fc head (M = bb), one matmul per layer
    xflat = a3_scr[...].astype(bf16)                        # (bb, ho3*n3)
    h1 = jnp.maximum(jnp.dot(xflat, w1_ref[...], preferred_element_type=f32) + b1, 0.0)
    h2 = jnp.maximum(jnp.dot(h1.astype(bf16), w2_ref[...],
                             preferred_element_type=f32) + b2, 0.0)
    # fc3 + folded value head + zero padding -> one unmasked (bb, nout) store.
    out_ref[...] = jnp.dot(h2.astype(bf16), w3_ref[...],
                           preferred_element_type=f32) + b3


# ------------------------------ one-time weight preprocessing ----------------

def _conv_toeplitz(w_hwio, w_in):
    """3x3 VALID conv -> (3, W_in*Ci, W_out*Co) band matrices; input cols = w*Ci + ci
    (channel innermost, i.e. the natural layout of the previous conv's output)."""
    kh, kw, ci, co = w_hwio.shape
    w_out = w_in - kw + 1
    idx = jnp.arange(w_out)
    mats = []
    for ky in range(kh):
        t = jnp.zeros((w_in, ci, w_out, co), jnp.float32)
        for kx in range(kw):
            t = t.at[idx + kx, :, idx, :].set(w_hwio[ky, kx])
        mats.append(t.reshape(w_in * ci, w_out * co))
    return jnp.stack(mats)


def _conv_toeplitz_nchw(w_hwio, w_in):
    """conv1 variant: the kernel feeds raw per-channel (H, W) planes of the NCHW input,
    so rows are grouped by channel: row index = c*W_in + w."""
    kh, kw, ci, co = w_hwio.shape
    w_out = w_in - kw + 1
    idx = jnp.arange(w_out)
    mats = []
    for ky in range(kh):
        t = jnp.zeros((ci, w_in, w_out, co), jnp.float32)
        for kx in range(kw):
            t = t.at[:, idx + kx, idx, :].set(w_hwio[ky, kx][:, None, :])
        mats.append(t.reshape(ci * w_in, w_out * co))
    return jnp.stack(mats)


def prepare_params(params, obs_shape, num_outputs):
    """One-time weight relayout (free at init): Toeplitz conv factors (conv1 keyed to
    the raw NCHW layout), lane-padded conv3/fc3 widths, torch CHW-flatten folded into
    fc1's row order, value head folded into fc3, bf16 matmul operands, and all six
    bias rows packed into one 128-aligned f32 buffer (one DMA instead of six)."""
    C, H, W = obs_shape
    f32, bf16 = jnp.float32, jnp.bfloat16
    co3 = params["cw3"].shape[-1]
    ho3, wo3 = H - 6, W - 6
    n1, n2 = (W - 2) * 32, (W - 4) * 16
    n3 = _round_up(wo3 * co3, 128)
    nh = params["w2"].shape[1]
    nout = _round_up(num_outputs + 1, 128)

    t1 = _conv_toeplitz_nchw(params["cw1"], W).astype(bf16)             # (3, C*W, n1)
    t2 = _conv_toeplitz(params["cw2"], W - 2).astype(bf16)              # (3, n1, n2)
    t3 = jnp.zeros((3, n2, n3), f32).at[:, :, :wo3 * co3].set(
        _conv_toeplitz(params["cw3"], W - 4)).astype(bf16)              # lane-padded N

    # fc1: torch CHW-flatten -> (h, w*c) row permutation + lane padding -> (ho3*n3, 256)
    w1 = params["w1"].reshape(co3, ho3, wo3, nh).transpose(1, 2, 0, 3)  # (h, w, c, 256)
    w1 = w1.reshape(ho3, wo3 * co3, nh)
    w1 = jnp.zeros((ho3, n3, nh), f32).at[:, :wo3 * co3, :].set(w1)
    w1 = w1.reshape(ho3 * n3, nh).astype(bf16)

    # fc3 + folded value head, lane-padded: [q | v | 0...] = h2 @ w3qv + b3qv
    w3v = params["w3"] @ params["wv"]
    b3v = params["b3"] @ params["wv"] + params["bv"]
    w3qv = jnp.zeros((nh, nout), f32).at[:, :num_outputs + 1].set(
        jnp.concatenate([params["w3"], w3v], axis=1))
    b3qv = jnp.zeros((1, nout), f32).at[:, :num_outputs + 1].set(
        jnp.concatenate([params["b3"], b3v], axis=1))

    # Packed bias buffer (segments start at multiples of 128 lanes).
    cb1 = jnp.tile(params["cb1"], W - 2)
    cb2 = jnp.tile(params["cb2"], W - 4)
    cb3 = jnp.zeros((n3,), f32).at[:wo3 * co3].set(jnp.tile(params["cb3"], wo3))
    offs, total = _bias_offsets((n1, n2, n3, nh, nh, nout))
    bias = jnp.zeros((1, total), f32)
    for off, seg in zip(offs, (cb1, cb2, cb3, params["b1"][0], params["b2"][0], b3qv[0])):
        bias = bias.at[0, off:off + seg.shape[0]].set(seg)

    return {"t1": t1, "t2": t2, "t3": t3, "w1": w1,
            "w2": params["w2"].astype(bf16), "w3": w3qv.astype(bf16),
            "bias": bias, "num_outputs": num_outputs}


# ------------------------------ forward wrapper -------------------------------

def full_visual_q_forward(fused, obs_nchw, state=()):
    """Equivalent of FullVisualQModel.forward: returns ((q_vals, state), v_vals)."""
    B, C, H, W = obs_nchw.shape
    n_q = fused["num_outputs"]
    nout = fused["w3"].shape[1]
    ho3 = H - 6
    n3 = fused["t3"].shape[2]

    # Batch block: the fc head runs with M = bb; the batch-block grid axis is
    # "parallel" so v7x's two TensorCores split large rollout batches.  Blocks of 8
    # keep output/scratch sublanes aligned; tiny batches use one full block.
    bb = B if B <= 8 else 8
    assert B % bb == 0, "pad the batch to a multiple of 8 for large batches"
    grid = (B // bb,)

    qv = pl.pallas_call(
        _fused_forward_kernel,
        out_shape=jax.ShapeDtypeStruct((B, nout), jnp.float32),
        grid=grid,
        in_specs=[
            pl.BlockSpec((bb, C, H, W), lambda i: (i, 0, 0, 0)),   # raw NCHW obs block
            pl.BlockSpec(fused["t1"].shape, lambda i: (0, 0, 0)),
            pl.BlockSpec(fused["t2"].shape, lambda i: (0, 0, 0)),
            pl.BlockSpec(fused["t3"].shape, lambda i: (0, 0, 0)),
            pl.BlockSpec(fused["w1"].shape, lambda i: (0, 0)),
            pl.BlockSpec(fused["w2"].shape, lambda i: (0, 0)),
            pl.BlockSpec(fused["w3"].shape, lambda i: (0, 0)),
            pl.BlockSpec(fused["bias"].shape, lambda i: (0, 0)),
        ],
        out_specs=pl.BlockSpec((bb, nout), lambda i: (i, 0)),
        scratch_shapes=[pltpu.VMEM((bb, ho3 * n3), jnp.float32)],
        compiler_params=pltpu.CompilerParams(dimension_semantics=("parallel",)),
    )(obs_nchw, fused["t1"], fused["t2"], fused["t3"], fused["w1"],
      fused["w2"], fused["w3"], fused["bias"])

    q_vals = qv[:, :n_q]
    v_vals = qv[:, n_q:n_q + 1]
    return (q_vals, state), v_vals


# ------------------------------ deterministic params -------------------------

def init_params(key, in_channels, hw, num_outputs):
    H, W = hw
    ks = jax.random.split(key, 14)

    def nrm(k, shape, scale=0.05):
        return scale * jax.random.normal(k, shape, jnp.float32)

    cnn_out = 8 * (H - 6) * (W - 6)                    # three VALID 3x3 convs, 8 channels
    return {
        # conv weights stored HWIO (= torch (Co,Ci,3,3) transposed to (3,3,Ci,Co))
        "cw1": nrm(ks[0], (3, 3, in_channels, 32)), "cb1": nrm(ks[1], (32,)),
        "cw2": nrm(ks[2], (3, 3, 32, 16)),          "cb2": nrm(ks[3], (16,)),
        "cw3": nrm(ks[4], (3, 3, 16, 8)),           "cb3": nrm(ks[5], (8,)),
        # linear weights stored (in, out) (= torch weight.T)
        "w1": nrm(ks[6], (cnn_out, 256)),       "b1": nrm(ks[7], (1, 256)),
        "w2": nrm(ks[8], (256, 256)),           "b2": nrm(ks[9], (1, 256)),
        "w3": nrm(ks[10], (256, num_outputs)),  "b3": nrm(ks[11], (1, num_outputs)),
        "wv": nrm(ks[12], (num_outputs, 1)),    "bv": nrm(ks[13], (1, 1)),
    }


# ------------------------------ pure-JAX reference ---------------------------

def reference_forward(params, obs_nchw):
    x = jnp.transpose(obs_nchw, (0, 2, 3, 1))
    for wk, bk in (("cw1", "cb1"), ("cw2", "cb2"), ("cw3", "cb3")):
        x = jax.lax.conv_general_dilated(
            x, params[wk], window_strides=(1, 1), padding="VALID",
            dimension_numbers=("NHWC", "HWIO", "NHWC"))
        x = jnp.maximum(x + params[bk], 0.0)
    N = x.shape[0]
    x = jnp.transpose(x, (0, 3, 1, 2)).reshape(N, -1)      # torch.nn.Flatten on NCHW
    h = jnp.maximum(x @ params["w1"] + params["b1"], 0.0)
    h = jnp.maximum(h @ params["w2"] + params["b2"], 0.0)
    q = h @ params["w3"] + params["b3"]
    v = q @ params["wv"] + params["bv"]
    return q, v


# ------------------------------ main ------------------------------------------

if __name__ == "__main__":
    key = jax.random.PRNGKey(0)
    pkey, xkey = jax.random.split(key)

    B, C, H, W = 2, 4, 16, 16          # obs_space.shape = (4, 16, 16), batch = 2
    num_outputs = 8                    # action_space size

    params = init_params(pkey, C, (H, W), num_outputs)
    obs = jax.random.normal(xkey, (B, C, H, W), jnp.float32)   # NCHW like PyTorch

    fused = prepare_params(params, (C, H, W), num_outputs)     # one-time weight prep
    (q_vals, state), v_vals = full_visual_q_forward(fused, obs, state=())
    q_vals = jax.block_until_ready(q_vals)
    v_vals = jax.block_until_ready(v_vals)

    q_ref, v_ref = reference_forward(params, obs)
    np.testing.assert_allclose(np.asarray(q_vals), np.asarray(q_ref), rtol=5e-2, atol=5e-2)
    np.testing.assert_allclose(np.asarray(v_vals), np.asarray(v_ref), rtol=5e-2, atol=5e-2)
    assert q_vals.shape == (B, num_outputs) and v_vals.shape == (B, 1)

    print("KERNEL_OK")
</pallas_src>

<mosaic_0001>
module attributes {stable_mosaic.version = 11 : i64} {
  func.func @_fused_forward_kernel(%arg0: i32, %arg1: memref<2x4x16x16xf32, #tpu.memory_space<vmem>>, %arg2: memref<3x64x448xbf16, #tpu.memory_space<vmem>>, %arg3: memref<3x448x192xbf16, #tpu.memory_space<vmem>>, %arg4: memref<3x192x128xbf16, #tpu.memory_space<vmem>>, %arg5: memref<1280x256xbf16, #tpu.memory_space<vmem>>, %arg6: memref<256x256xbf16, #tpu.memory_space<vmem>>, %arg7: memref<256x128xbf16, #tpu.memory_space<vmem>>, %arg8: memref<1x1536xf32, #tpu.memory_space<vmem>>, %arg9: memref<2x128xf32, #tpu.memory_space<vmem>>, %arg10: memref<2x1280xf32, #tpu.memory_space<vmem>>) attributes {dimension_semantics = [#tpu.dimension_semantics<parallel>], iteration_bounds = array<i64: 1>, scalar_prefetch = 0 : i64, scratch_operands = 1 : i64, tpu.core_type = #tpu.core_type<tc>, window_params = [{transform_indices = @transform_0, window_bounds = array<i64: 2, 4, 16, 16>}, {pipeline_mode = #tpu.pipeline_mode<synchronous>, transform_indices = @transform_1, window_bounds = array<i64: 3, 64, 448>}, {pipeline_mode = #tpu.pipeline_mode<synchronous>, transform_indices = @transform_2, window_bounds = array<i64: 3, 448, 192>}, {pipeline_mode = #tpu.pipeline_mode<synchronous>, transform_indices = @transform_3, window_bounds = array<i64: 3, 192, 128>}, {pipeline_mode = #tpu.pipeline_mode<synchronous>, transform_indices = @transform_4, window_bounds = array<i64: 1280, 256>}, {pipeline_mode = #tpu.pipeline_mode<synchronous>, transform_indices = @transform_5, window_bounds = array<i64: 256, 256>}, {pipeline_mode = #tpu.pipeline_mode<synchronous>, transform_indices = @transform_6, window_bounds = array<i64: 256, 128>}, {pipeline_mode = #tpu.pipeline_mode<synchronous>, transform_indices = @transform_7, window_bounds = array<i64: 1, 1536>}, {transform_indices = @transform_8, window_bounds = array<i64: 2, 128>}]} {
    %c0 = arith.constant 0 : index
    %c0_0 = arith.constant 0 : index
    %0 = vector.load %arg8[%c0, %c0_0] : memref<1x1536xf32, #tpu.memory_space<vmem>>, vector<1x448xf32>
    %c0_1 = arith.constant 0 : index
    %c512 = arith.constant 512 : index
    %1 = vector.load %arg8[%c0_1, %c512] : memref<1x1536xf32, #tpu.memory_space<vmem>>, vector<1x192xf32>
    %c0_2 = arith.constant 0 : index
    %c768 = arith.constant 768 : index
    %2 = vector.load %arg8[%c0_2, %c768] : memref<1x1536xf32, #tpu.memory_space<vmem>>, vector<1x128xf32>
    %c0_3 = arith.constant 0 : index
    %c896 = arith.constant 896 : index
    %3 = vector.load %arg8[%c0_3, %c896] : memref<1x1536xf32, #tpu.memory_space<vmem>>, vector<1x256xf32>
    %c0_4 = arith.constant 0 : index
    %c1152 = arith.constant 1152 : index
    %4 = vector.load %arg8[%c0_4, %c1152] : memref<1x1536xf32, #tpu.memory_space<vmem>>, vector<1x256xf32>
    %c0_5 = arith.constant 0 : index
    %c1408 = arith.constant 1408 : index
    %5 = vector.load %arg8[%c0_5, %c1408] : memref<1x1536xf32, #tpu.memory_space<vmem>>, vector<1x128xf32>
    %c0_6 = arith.constant 0 : index
    %c0_7 = arith.constant 0 : index
    %c0_8 = arith.constant 0 : index
    %c0_9 = arith.constant 0 : index
    %6 = vector.load %arg1[%c0_6, %c0_7, %c0_8, %c0_9] : memref<2x4x16x16xf32, #tpu.memory_space<vmem>>, vector<1x1x16x16xf32>
    %7 = vector.shape_cast %6 : vector<1x1x16x16xf32> to vector<16x16xf32>
    %8 = arith.truncf %7 : vector<16x16xf32> to vector<16x16xbf16>
    %c0_10 = arith.constant 0 : index
    %c0_11 = arith.constant 0 : index
    %c0_12 = arith.constant 0 : index
    %9 = vector.load %arg2[%c0_10, %c0_11, %c0_12] : memref<3x64x448xbf16, #tpu.memory_space<vmem>>, vector<1x16x448xbf16>
    %10 = vector.shape_cast %9 : vector<1x16x448xbf16> to vector<16x448xbf16>
    %cst = arith.constant dense<0.000000e+00> : vector<16x448xf32>
    %11 = tpu.matmul %8, %10, %cst {dimension_numbers = #tpu.dot_dimension_numbers<[1], [0], [0], [1], [0, 0, 1, 1], [], []>} : vector<16x16xbf16>, vector<16x448xbf16>, vector<16x448xf32> -> vector<16x448xf32>
    %12 = vector.extract_strided_slice %11 {offsets = [0, 0], sizes = [14, 448], strides = [1, 1]} : vector<16x448xf32> to vector<14x448xf32>
    %13 = vector.broadcast %0 : vector<1x448xf32> to vector<14x448xf32>
    %14 = arith.addf %13, %12 : vector<14x448xf32>
    %c1 = arith.constant 1 : index
    %c0_13 = arith.constant 0 : index
    %c0_14 = arith.constant 0 : index
    %15 = vector.load %arg2[%c1, %c0_13, %c0_14] : memref<3x64x448xbf16, #tpu.memory_space<vmem>>, vector<1x16x448xbf16>
    %16 = vector.shape_cast %15 : vector<1x16x448xbf16> to vector<16x448xbf16>
    %cst_15 = arith.constant dense<0.000000e+00> : vector<16x448xf32>
    %17 = tpu.matmul %8, %16, %cst_15 {dimension_numbers = #tpu.dot_dimension_numbers<[1], [0], [0], [1], [0, 0, 1, 1], [], []>} : vector<16x16xbf16>, vector<16x448xbf16>, vector<16x448xf32> -> vector<16x448xf32>
    %18 = vector.extract_strided_slice %17 {offsets = [1, 0], sizes = [14, 448], strides = [1, 1]} : vector<16x448xf32> to vector<14x448xf32>
    %19 = arith.addf %14, %18 : vector<14x448xf32>
    %c2 = arith.constant 2 : index
    %c0_16 = arith.constant 0 : index
    %c0_17 = arith.constant 0 : index
    %20 = vector.load %arg2[%c2, %c0_16, %c0_17] : memref<3x64x448xbf16, #tpu.memory_space<vmem>>, vector<1x16x448xbf16>
    %21 = vector.shape_cast %20 : vector<1x16x448xbf16> to vector<16x448xbf16>
    %cst_18 = arith.constant dense<0.000000e+00> : vector<16x448xf32>
    %22 = tpu.matmul %8, %21, %cst_18 {dimension_numbers = #tpu.dot_dimension_numbers<[1], [0], [0], [1], [0, 0, 1, 1], [], []>} : vector<16x16xbf16>, vector<16x448xbf16>, vector<16x448xf32> -> vector<16x448xf32>
    %23 = vector.extract_strided_slice %22 {offsets = [2, 0], sizes = [14, 448], strides = [1, 1]} : vector<16x448xf32> to vector<14x448xf32>
    %24 = arith.addf %19, %23 : vector<14x448xf32>
    %c0_19 = arith.constant 0 : index
    %c1_20 = arith.constant 1 : index
    %c0_21 = arith.constant 0 : index
    %c0_22 = arith.constant 0 : index
    %25 = vector.load %arg1[%c0_19, %c1_20, %c0_21, %c0_22] : memref<2x4x16x16xf32, #tpu.memory_space<vmem>>, vector<1x1x16x16xf32>
    %26 = vector.shape_cast %25 : vector<1x1x16x16xf32> to vector<16x16xf32>
    %27 = arith.truncf %26 : vector<16x16xf32> to vector<16x16xbf16>
    %c0_23 = arith.constant 0 : index
    %c16 = arith.constant 16 : index
    %c0_24 = arith.constant 0 : index
    %28 = vector.load %arg2[%c0_23, %c16, %c0_24] : memref<3x64x448xbf16, #tpu.memory_space<vmem>>, vector<1x16x448xbf16>
    %29 = vector.shape_cast %28 : vector<1x16x448xbf16> to vector<16x448xbf16>
    %cst_25 = arith.constant dense<0.000000e+00> : vector<16x448xf32>
    %30 = tpu.matmul %27, %29, %cst_25 {dimension_numbers = #tpu.dot_dimension_numbers<[1], [0], [0], [1], [0, 0, 1, 1], [], []>} : vector<16x16xbf16>, vector<16x448xbf16>, vector<16x448xf32> -> vector<16x448xf32>
    %31 = vector.extract_strided_slice %30 {offsets = [0, 0], sizes = [14, 448], strides = [1, 1]} : vector<16x448xf32> to vector<14x448xf32>
    %32 = arith.addf %24, %31 : vector<14x448xf32>
    %c1_26 = arith.constant 1 : index
    %c16_27 = arith.constant 16 : index
    %c0_28 = arith.constant 0 : index
    %33 = vector.load %arg2[%c1_26, %c16_27, %c0_28] : memref<3x64x448xbf16, #tpu.memory_space<vmem>>, vector<1x16x448xbf16>
    %34 = vector.shape_cast %33 : vector<1x16x448xbf16> to vector<16x448xbf16>
    %cst_29 = arith.constant dense<0.000000e+00> : vector<16x448xf32>
    %35 = tpu.matmul %27, %34, %cst_29 {dimension_numbers = #tpu.dot_dimension_numbers<[1], [0], [0], [1], [0, 0, 1, 1], [], []>} : vector<16x16xbf16>, vector<16x448xbf16>, vector<16x448xf32> -> vector<16x448xf32>
    %36 = vector.extract_strided_slice %35 {offsets = [1, 0], sizes = [14, 448], strides = [1, 1]} : vector<16x448xf32> to vector<14x448xf32>
    %37 = arith.addf %32, %36 : vector<14x448xf32>
    %c2_30 = arith.constant 2 : index
    %c16_31 = arith.constant 16 : index
    %c0_32 = arith.constant 0 : index
    %38 = vector.load %arg2[%c2_30, %c16_31, %c0_32] : memref<3x64x448xbf16, #tpu.memory_space<vmem>>, vector<1x16x448xbf16>
    %39 = vector.shape_cast %38 : vector<1x16x448xbf16> to vector<16x448xbf16>
    %cst_33 = arith.constant dense<0.000000e+00> : vector<16x448xf32>
    %40 = tpu.matmul %27, %39, %cst_33 {dimension_numbers = #tpu.dot_dimension_numbers<[1], [0], [0], [1], [0, 0, 1, 1], [], []>} : vector<16x16xbf16>, vector<16x448xbf16>, vector<16x448xf32> -> vector<16x448xf32>
    %41 = vector.extract_strided_slice %40 {offsets = [2, 0], sizes = [14, 448], strides = [1, 1]} : vector<16x448xf32> to vector<14x448xf32>
    %42 = arith.addf %37, %41 : vector<14x448xf32>
    %c0_34 = arith.constant 0 : index
    %c2_35 = arith.constant 2 : index
    %c0_36 = arith.constant 0 : index
    %c0_37 = arith.constant 0 : index
    %43 = vector.load %arg1[%c0_34, %c2_35, %c0_36, %c0_37] : memref<2x4x16x16xf32, #tpu.memory_space<vmem>>, vector<1x1x16x16xf32>
    %44 = vector.shape_cast %43 : vector<1x1x16x16xf32> to vector<16x16xf32>
    %45 = arith.truncf %44 : vector<16x16xf32> to vector<16x16xbf16>
    %c0_38 = arith.constant 0 : index
    %c32 = arith.constant 32 : index
    %c0_39 = arith.constant 0 : index
    %46 = vector.load %arg2[%c0_38, %c32, %c0_39] : memref<3x64x448xbf16, #tpu.memory_space<vmem>>, vector<1x16x448xbf16>
    %47 = vector.shape_cast %46 : vector<1x16x448xbf16> to vector<16x448xbf16>
    %cst_40 = arith.constant dense<0.000000e+00> : vector<16x448xf32>
    %48 = tpu.matmul %45, %47, %cst_40 {dimension_numbers = #tpu.dot_dimension_numbers<[1], [0], [0], [1], [0, 0, 1, 1], [], []>} : vector<16x16xbf16>, vector<16x448xbf16>, vector<16x448xf32> -> vector<16x448xf32>
    %49 = vector.extract_strided_slice %48 {offsets = [0, 0], sizes = [14, 448], strides = [1, 1]} : vector<16x448xf32> to vector<14x448xf32>
    %50 = arith.addf %42, %49 : vector<14x448xf32>
    %c1_41 = arith.constant 1 : index
    %c32_42 = arith.constant 32 : index
    %c0_43 = arith.constant 0 : index
    %51 = vector.load %arg2[%c1_41, %c32_42, %c0_43] : memref<3x64x448xbf16, #tpu.memory_space<vmem>>, vector<1x16x448xbf16>
    %52 = vector.shape_cast %51 : vector<1x16x448xbf16> to vector<16x448xbf16>
    %cst_44 = arith.constant dense<0.000000e+00> : vector<16x448xf32>
    %53 = tpu.matmul %45, %52, %cst_44 {dimension_numbers = #tpu.dot_dimension_numbers<[1], [0], [0], [1], [0, 0, 1, 1], [], []>} : vector<16x16xbf16>, vector<16x448xbf16>, vector<16x448xf32> -> vector<16x448xf32>
    %54 = vector.extract_strided_slice %53 {offsets = [1, 0], sizes = [14, 448], strides = [1, 1]} : vector<16x448xf32> to vector<14x448xf32>
    %55 = arith.addf %50, %54 : vector<14x448xf32>
    %c2_45 = arith.constant 2 : index
    %c32_46 = arith.constant 32 : index
    %c0_47 = arith.constant 0 : index
    %56 = vector.load %arg2[%c2_45, %c32_46, %c0_47] : memref<3x64x448xbf16, #tpu.memory_space<vmem>>, vector<1x16x448xbf16>
    %57 = vector.shape_cast %56 : vector<1x16x448xbf16> to vector<16x448xbf16>
    %cst_48 = arith.constant dense<0.000000e+00> : vector<16x448xf32>
    %58 = tpu.matmul %45, %57, %cst_48 {dimension_numbers = #tpu.dot_dimension_numbers<[1], [0], [0], [1], [0, 0, 1, 1], [], []>} : vector<16x16xbf16>, vector<16x448xbf16>, vector<16x448xf32> -> vector<16x448xf32>
    %59 = vector.extract_strided_slice %58 {offsets = [2, 0], sizes = [14, 448], strides = [1, 1]} : vector<16x448xf32> to vector<14x448xf32>
    %60 = arith.addf %55, %59 : vector<14x448xf32>
    %c0_49 = arith.constant 0 : index
    %c3 = arith.constant 3 : index
    %c0_50 = arith.constant 0 : index
    %c0_51 = arith.constant 0 : index
    %61 = vector.load %arg1[%c0_49, %c3, %c0_50, %c0_51] : memref<2x4x16x16xf32, #tpu.memory_space<vmem>>, vector<1x1x16x16xf32>
    %62 = vector.shape_cast %61 : vector<1x1x16x16xf32> to vector<16x16xf32>
    %63 = arith.truncf %62 : vector<16x16xf32> to vector<16x16xbf16>
    %c0_52 = arith.constant 0 : index
    %c48 = arith.constant 48 : index
    %c0_53 = arith.constant 0 : index
    %64 = vector.load %arg2[%c0_52, %c48, %c0_53] : memref<3x64x448xbf16, #tpu.memory_space<vmem>>, vector<1x16x448xbf16>
    %65 = vector.shape_cast %64 : vector<1x16x448xbf16> to vector<16x448xbf16>
    %cst_54 = arith.constant dense<0.000000e+00> : vector<16x448xf32>
    %66 = tpu.matmul %63, %65, %cst_54 {dimension_numbers = #tpu.dot_dimension_numbers<[1], [0], [0], [1], [0, 0, 1, 1], [], []>} : vector<16x16xbf16>, vector<16x448xbf16>, vector<16x448xf32> -> vector<16x448xf32>
    %67 = vector.extract_strided_slice %66 {offsets = [0, 0], sizes = [14, 448], strides = [1, 1]} : vector<16x448xf32> to vector<14x448xf32>
    %68 = arith.addf %60, %67 : vector<14x448xf32>
    %c1_55 = arith.constant 1 : index
    %c48_56 = arith.constant 48 : index
    %c0_57 = arith.constant 0 : index
    %69 = vector.load %arg2[%c1_55, %c48_56, %c0_57] : memref<3x64x448xbf16, #tpu.memory_space<vmem>>, vector<1x16x448xbf16>
    %70 = vector.shape_cast %69 : vector<1x16x448xbf16> to vector<16x448xbf16>
    %cst_58 = arith.constant dense<0.000000e+00> : vector<16x448xf32>
    %71 = tpu.matmul %63, %70, %cst_58 {dimension_numbers = #tpu.dot_dimension_numbers<[1], [0], [0], [1], [0, 0, 1, 1], [], []>} : vector<16x16xbf16>, vector<16x448xbf16>, vector<16x448xf32> -> vector<16x448xf32>
    %72 = vector.extract_strided_slice %71 {offsets = [1, 0], sizes = [14, 448], strides = [1, 1]} : vector<16x448xf32> to vector<14x448xf32>
    %73 = arith.addf %68, %72 : vector<14x448xf32>
    %c2_59 = arith.constant 2 : index
    %c48_60 = arith.constant 48 : index
    %c0_61 = arith.constant 0 : index
    %74 = vector.load %arg2[%c2_59, %c48_60, %c0_61] : memref<3x64x448xbf16, #tpu.memory_space<vmem>>, vector<1x16x448xbf16>
    %75 = vector.shape_cast %74 : vector<1x16x448xbf16> to vector<16x448xbf16>
    %cst_62 = arith.constant dense<0.000000e+00> : vector<16x448xf32>
    %76 = tpu.matmul %63, %75, %cst_62 {dimension_numbers = #tpu.dot_dimension_numbers<[1], [0], [0], [1], [0, 0, 1, 1], [], []>} : vector<16x16xbf16>, vector<16x448xbf16>, vector<16x448xf32> -> vector<16x448xf32>
    %77 = vector.extract_strided_slice %76 {offsets = [2, 0], sizes = [14, 448], strides = [1, 1]} : vector<16x448xf32> to vector<14x448xf32>
    %78 = arith.addf %73, %77 : vector<14x448xf32>
    %cst_63 = arith.constant 0.000000e+00 : f32
    %79 = vector.broadcast %cst_63 : f32 to vector<14x448xf32>
    %80 = arith.maximumf %78, %79 : vector<14x448xf32>
    %81 = arith.truncf %80 : vector<14x448xf32> to vector<14x448xbf16>
    %c0_64 = arith.constant 0 : index
    %c0_65 = arith.constant 0 : index
    %c0_66 = arith.constant 0 : index
    %82 = vector.load %arg3[%c0_64, %c0_65, %c0_66] : memref<3x448x192xbf16, #tpu.memory_space<vmem>>, vector<1x448x192xbf16>
    %83 = vector.shape_cast %82 : vector<1x448x192xbf16> to vector<448x192xbf16>
    %cst_67 = arith.constant dense<0.000000e+00> : vector<14x192xf32>
    %84 = tpu.matmul %81, %83, %cst_67 {dimension_numbers = #tpu.dot_dimension_numbers<[1], [0], [0], [1], [0, 0, 1, 1], [], []>} : vector<14x448xbf16>, vector<448x192xbf16>, vector<14x192xf32> -> vector<14x192xf32>
    %c1_68 = arith.constant 1 : index
    %c0_69 = arith.constant 0 : index
    %c0_70 = arith.constant 0 : index
    %85 = vector.load %arg3[%c1_68, %c0_69, %c0_70] : memref<3x448x192xbf16, #tpu.memory_space<vmem>>, vector<1x448x192xbf16>
    %86 = vector.shape_cast %85 : vector<1x448x192xbf16> to vector<448x192xbf16>
    %cst_71 = arith.constant dense<0.000000e+00> : vector<14x192xf32>
    %87 = tpu.matmul %81, %86, %cst_71 {dimension_numbers = #tpu.dot_dimension_numbers<[1], [0], [0], [1], [0, 0, 1, 1], [], []>} : vector<14x448xbf16>, vector<448x192xbf16>, vector<14x192xf32> -> vector<14x192xf32>
    %c2_72 = arith.constant 2 : index
    %c0_73 = arith.constant 0 : index
    %c0_74 = arith.constant 0 : index
    %88 = vector.load %arg3[%c2_72, %c0_73, %c0_74] : memref<3x448x192xbf16, #tpu.memory_space<vmem>>, vector<1x448x192xbf16>
    %89 = vector.shape_cast %88 : vector<1x448x192xbf16> to vector<448x192xbf16>
    %cst_75 = arith.constant dense<0.000000e+00> : vector<14x192xf32>
    %90 = tpu.matmul %81, %89, %cst_75 {dimension_numbers = #tpu.dot_dimension_numbers<[1], [0], [0], [1], [0, 0, 1, 1], [], []>} : vector<14x448xbf16>, vector<448x192xbf16>, vector<14x192xf32> -> vector<14x192xf32>
    %91 = vector.extract_strided_slice %84 {offsets = [0, 0], sizes = [12, 192], strides = [1, 1]} : vector<14x192xf32> to vector<12x192xf32>
    %92 = vector.extract_strided_slice %87 {offsets = [1, 0], sizes = [12, 192], strides = [1, 1]} : vector<14x192xf32> to vector<12x192xf32>
    %93 = arith.addf %91, %92 : vector<12x192xf32>
    %94 = vector.extract_strided_slice %90 {offsets = [2, 0], sizes = [12, 192], strides = [1, 1]} : vector<14x192xf32> to vector<12x192xf32>
    %95 = arith.addf %93, %94 : vector<12x192xf32>
    %96 = vector.broadcast %1 : vector<1x192xf32> to vector<12x192xf32>
    %97 = arith.addf %95, %96 : vector<12x192xf32>
    %cst_76 = arith.constant 0.000000e+00 : f32
    %98 = vector.broadcast %cst_76 : f32 to vector<12x192xf32>
    %99 = arith.maximumf %97, %98 : vector<12x192xf32>
    %100 = arith.truncf %99 : vector<12x192xf32> to vector<12x192xbf16>
    %c0_77 = arith.constant 0 : index
    %c0_78 = arith.constant 0 : index
    %c0_79 = arith.constant 0 : index
    %101 = vector.load %arg4[%c0_77, %c0_78, %c0_79] : memref<3x192x128xbf16, #tpu.memory_space<vmem>>, vector<1x192x128xbf16>
    %102 = vector.shape_cast %101 : vector<1x192x128xbf16> to vector<192x128xbf16>
    %cst_80 = arith.constant dense<0.000000e+00> : vector<12x128xf32>
    %103 = tpu.matmul %100, %102, %cst_80 {dimension_numbers = #tpu.dot_dimension_numbers<[1], [0], [0], [1], [0, 0, 1, 1], [], []>} : vector<12x192xbf16>, vector<192x128xbf16>, vector<12x128xf32> -> vector<12x128xf32>
    %c1_81 = arith.constant 1 : index
    %c0_82 = arith.constant 0 : index
    %c0_83 = arith.constant 0 : index
    %104 = vector.load %arg4[%c1_81, %c0_82, %c0_83] : memref<3x192x128xbf16, #tpu.memory_space<vmem>>, vector<1x192x128xbf16>
    %105 = vector.shape_cast %104 : vector<1x192x128xbf16> to vector<192x128xbf16>
    %cst_84 = arith.constant dense<0.000000e+00> : vector<12x128xf32>
    %106 = tpu.matmul %100, %105, %cst_84 {dimension_numbers = #tpu.dot_dimension_numbers<[1], [0], [0], [1], [0, 0, 1, 1], [], []>} : vector<12x192xbf16>, vector<192x128xbf16>, vector<12x128xf32> -> vector<12x128xf32>
    %c2_85 = arith.constant 2 : index
    %c0_86 = arith.constant 0 : index
    %c0_87 = arith.constant 0 : index
    %107 = vector.load %arg4[%c2_85, %c0_86, %c0_87] : memref<3x192x128xbf16, #tpu.memory_space<vmem>>, vector<1x192x128xbf16>
    %108 = vector.shape_cast %107 : vector<1x192x128xbf16> to vector<192x128xbf16>
    %cst_88 = arith.constant dense<0.000000e+00> : vector<12x128xf32>
    %109 = tpu.matmul %100, %108, %cst_88 {dimension_numbers = #tpu.dot_dimension_numbers<[1], [0], [0], [1], [0, 0, 1, 1], [], []>} : vector<12x192xbf16>, vector<192x128xbf16>, vector<12x128xf32> -> vector<12x128xf32>
    %110 = vector.extract_strided_slice %103 {offsets = [0, 0], sizes = [10, 128], strides = [1, 1]} : vector<12x128xf32> to vector<10x128xf32>
    %111 = vector.extract_strided_slice %106 {offsets = [1, 0], sizes = [10, 128], strides = [1, 1]} : vector<12x128xf32> to vector<10x128xf32>
    %112 = arith.addf %110, %111 : vector<10x128xf32>
    %113 = vector.extract_strided_slice %109 {offsets = [2, 0], sizes = [10, 128], strides = [1, 1]} : vector<12x128xf32> to vector<10x128xf32>
    %114 = arith.addf %112, %113 : vector<10x128xf32>
    %115 = vector.broadcast %2 : vector<1x128xf32> to vector<10x128xf32>
    %116 = arith.addf %114, %115 : vector<10x128xf32>
    %cst_89 = arith.constant 0.000000e+00 : f32
    %117 = vector.broadcast %cst_89 : f32 to vector<10x128xf32>
    %118 = arith.maximumf %116, %117 : vector<10x128xf32>
    %119 = vector.extract_strided_slice %118 {offsets = [0, 0], sizes = [1, 128], strides = [1, 1]} : vector<10x128xf32> to vector<1x128xf32>
    %c0_90 = arith.constant 0 : index
    %c0_91 = arith.constant 0 : index
    %120 = vector.load %arg10[%c0_90, %c0_91] : memref<2x1280xf32, #tpu.memory_space<vmem>>, vector<1x128xf32>
    tpu.vector_store %arg10[%c0_90, %c0_91], %119 {strides = array<i32>} : memref<2x1280xf32, #tpu.memory_space<vmem>>, vector<1x128xf32>,
    %121 = vector.extract_strided_slice %118 {offsets = [1, 0], sizes = [1, 128], strides = [1, 1]} : vector<10x128xf32> to vector<1x128xf32>
    %c0_92 = arith.constant 0 : index
    %c128 = arith.constant 128 : index
    %122 = vector.load %arg10[%c0_92, %c128] : memref<2x1280xf32, #tpu.memory_space<vmem>>, vector<1x128xf32>
    tpu.vector_store %arg10[%c0_92, %c128], %121 {strides = array<i32>} : memref<2x1280xf32, #tpu.memory_space<vmem>>, vector<1x128xf32>,
    %123 = vector.extract_strided_slice %118 {offsets = [2, 0], sizes = [1, 128], strides = [1, 1]} : vector<10x128xf32> to vector<1x128xf32>
    %c0_93 = arith.constant 0 : index
    %c256 = arith.constant 256 : index
    %124 = vector.load %arg10[%c0_93, %c256] : memref<2x1280xf32, #tpu.memory_space<vmem>>, vector<1x128xf32>
    tpu.vector_store %arg10[%c0_93, %c256], %123 {strides = array<i32>} : memref<2x1280xf32, #tpu.memory_space<vmem>>, vector<1x128xf32>,
    %125 = vector.extract_strided_slice %118 {offsets = [3, 0], sizes = [1, 128], strides = [1, 1]} : vector<10x128xf32> to vector<1x128xf32>
    %c0_94 = arith.constant 0 : index
    %c384 = arith.constant 384 : index
    %126 = vector.load %arg10[%c0_94, %c384] : memref<2x1280xf32, #tpu.memory_space<vmem>>, vector<1x128xf32>
    tpu.vector_store %arg10[%c0_94, %c384], %125 {strides = array<i32>} : memref<2x1280xf32, #tpu.memory_space<vmem>>, vector<1x128xf32>,
    %127 = vector.extract_strided_slice %118 {offsets = [4, 0], sizes = [1, 128], strides = [1, 1]} : vector<10x128xf32> to vector<1x128xf32>
    %c0_95 = arith.constant 0 : index
    %c512_96 = arith.constant 512 : index
    %128 = vector.load %arg10[%c0_95, %c512_96] : memref<2x1280xf32, #tpu.memory_space<vmem>>, vector<1x128xf32>
    tpu.vector_store %arg10[%c0_95, %c512_96], %127 {strides = array<i32>} : memref<2x1280xf32, #tpu.memory_space<vmem>>, vector<1x128xf32>,
    %129 = vector.extract_strided_slice %118 {offsets = [5, 0], sizes = [1, 128], strides = [1, 1]} : vector<10x128xf32> to vector<1x128xf32>
    %c0_97 = arith.constant 0 : index
    %c640 = arith.constant 640 : index
    %130 = vector.load %arg10[%c0_97, %c640] : memref<2x1280xf32, #tpu.memory_space<vmem>>, vector<1x128xf32>
    tpu.vector_store %arg10[%c0_97, %c640], %129 {strides = array<i32>} : memref<2x1280xf32, #tpu.memory_space<vmem>>, vector<1x128xf32>,
    %131 = vector.extract_strided_slice %118 {offsets = [6, 0], sizes = [1, 128], strides = [1, 1]} : vector<10x128xf32> to vector<1x128xf32>
    %c0_98 = arith.constant 0 : index
    %c768_99 = arith.constant 768 : index
    %132 = vector.load %arg10[%c0_98, %c768_99] : memref<2x1280xf32, #tpu.memory_space<vmem>>, vector<1x128xf32>
    tpu.vector_store %arg10[%c0_98, %c768_99], %131 {strides = array<i32>} : memref<2x1280xf32, #tpu.memory_space<vmem>>, vector<1x128xf32>,
    %133 = vector.extract_strided_slice %118 {offsets = [7, 0], sizes = [1, 128], strides = [1, 1]} : vector<10x128xf32> to vector<1x128xf32>
    %c0_100 = arith.constant 0 : index
    %c896_101 = arith.constant 896 : index
    %134 = vector.load %arg10[%c0_100, %c896_101] : memref<2x1280xf32, #tpu.memory_space<vmem>>, vector<1x128xf32>
    tpu.vector_store %arg10[%c0_100, %c896_101], %133 {strides = array<i32>} : memref<2x1280xf32, #tpu.memory_space<vmem>>, vector<1x128xf32>,
    %135 = vector.extract_strided_slice %118 {offsets = [8, 0], sizes = [1, 128], strides = [1, 1]} : vector<10x128xf32> to vector<1x128xf32>
    %c0_102 = arith.constant 0 : index
    %c1024 = arith.constant 1024 : index
    %136 = vector.load %arg10[%c0_102, %c1024] : memref<2x1280xf32, #tpu.memory_space<vmem>>, vector<1x128xf32>
    tpu.vector_store %arg10[%c0_102, %c1024], %135 {strides = array<i32>} : memref<2x1280xf32, #tpu.memory_space<vmem>>, vector<1x128xf32>,
    %137 = vector.extract_strided_slice %118 {offsets = [9, 0], sizes = [1, 128], strides = [1, 1]} : vector<10x128xf32> to vector<1x128xf32>
    %c0_103 = arith.constant 0 : index
    %c1152_104 = arith.constant 1152 : index
    %138 = vector.load %arg10[%c0_103, %c1152_104] : memref<2x1280xf32, #tpu.memory_space<vmem>>, vector<1x128xf32>
    tpu.vector_store %arg10[%c0_103, %c1152_104], %137 {strides = array<i32>} : memref<2x1280xf32, #tpu.memory_space<vmem>>, vector<1x128xf32>,
    %c1_105 = arith.constant 1 : index
    %c0_106 = arith.constant 0 : index
    %c0_107 = arith.constant 0 : index
    %c0_108 = arith.constant 0 : index
    %139 = vector.load %arg1[%c1_105, %c0_106, %c0_107, %c0_108] : memref<2x4x16x16xf32, #tpu.memory_space<vmem>>, vector<1x1x16x16xf32>
    %140 = vector.shape_cast %139 : vector<1x1x16x16xf32> to vector<16x16xf32>
    %141 = arith.truncf %140 : vector<16x16xf32> to vector<16x16xbf16>
    %c0_109 = arith.constant 0 : index
    %c0_110 = arith.constant 0 : index
    %c0_111 = arith.constant 0 : index
    %142 = vector.load %arg2[%c0_109, %c0_110, %c0_111] : memref<3x64x448xbf16, #tpu.memory_space<vmem>>, vector<1x16x448xbf16>
    %143 = vector.shape_cast %142 : vector<1x16x448xbf16> to vector<16x448xbf16>
    %cst_112 = arith.constant dense<0.000000e+00> : vector<16x448xf32>
    %144 = tpu.matmul %141, %143, %cst_112 {dimension_numbers = #tpu.dot_dimension_numbers<[1], [0], [0], [1], [0, 0, 1, 1], [], []>} : vector<16x16xbf16>, vector<16x448xbf16>, vector<16x448xf32> -> vector<16x448xf32>
    %145 = vector.extract_strided_slice %144 {offsets = [0, 0], sizes = [14, 448], strides = [1, 1]} : vector<16x448xf32> to vector<14x448xf32>
    %146 = vector.broadcast %0 : vector<1x448xf32> to vector<14x448xf32>
    %147 = arith.addf %146, %145 : vector<14x448xf32>
    %c1_113 = arith.constant 1 : index
    %c0_114 = arith.constant 0 : index
    %c0_115 = arith.constant 0 : index
    %148 = vector.load %arg2[%c1_113, %c0_114, %c0_115] : memref<3x64x448xbf16, #tpu.memory_space<vmem>>, vector<1x16x448xbf16>
    %149 = vector.shape_cast %148 : vector<1x16x448xbf16> to vector<16x448xbf16>
    %cst_116 = arith.constant dense<0.000000e+00> : vector<16x448xf32>
    %150 = tpu.matmul %141, %149, %cst_116 {dimension_numbers = #tpu.dot_dimension_numbers<[1], [0], [0], [1], [0, 0, 1, 1], [], []>} : vector<16x16xbf16>, vector<16x448xbf16>, vector<16x448xf32> -> vector<16x448xf32>
    %151 = vector.extract_strided_slice %150 {offsets = [1, 0], sizes = [14, 448], strides = [1, 1]} : vector<16x448xf32> to vector<14x448xf32>
    %152 = arith.addf %147, %151 : vector<14x448xf32>
    %c2_117 = arith.constant 2 : index
    %c0_118 = arith.constant 0 : index
    %c0_119 = arith.constant 0 : index
    %153 = vector.load %arg2[%c2_117, %c0_118, %c0_119] : memref<3x64x448xbf16, #tpu.memory_space<vmem>>, vector<1x16x448xbf16>
    %154 = vector.shape_cast %153 : vector<1x16x448xbf16> to vector<16x448xbf16>
    %cst_120 = arith.constant dense<0.000000e+00> : vector<16x448xf32>
    %155 = tpu.matmul %141, %154, %cst_120 {dimension_numbers = #tpu.dot_dimension_numbers<[1], [0], [0], [1], [0, 0, 1, 1], [], []>} : vector<16x16xbf16>, vector<16x448xbf16>, vector<16x448xf32> -> vector<16x448xf32>
    %156 = vector.extract_strided_slice %155 {offsets = [2, 0], sizes = [14, 448], strides = [1, 1]} : vector<16x448xf32> to vector<14x448xf32>
    %157 = arith.addf %152, %156 : vector<14x448xf32>
    %c1_121 = arith.constant 1 : index
    %c1_122 = arith.constant 1 : index
    %c0_123 = arith.constant 0 : index
    %c0_124 = arith.constant 0 : index
    %158 = vector.load %arg1[%c1_121, %c1_122, %c0_123, %c0_124] : memref<2x4x16x16xf32, #tpu.memory_space<vmem>>, vector<1x1x16x16xf32>
    %159 = vector.shape_cast %158 : vector<1x1x16x16xf32> to vector<16x16xf32>
    %160 = arith.truncf %159 : vector<16x16xf32> to vector<16x16xbf16>
    %c0_125 = arith.constant 0 : index
    %c16_126 = arith.constant 16 : index
    %c0_127 = arith.constant 0 : index
    %161 = vector.load %arg2[%c0_125, %c16_126, %c0_127] : memref<3x64x448xbf16, #tpu.memory_space<vmem>>, vector<1x16x448xbf16>
    %162 = vector.shape_cast %161 : vector<1x16x448xbf16> to vector<16x448xbf16>
    %cst_128 = arith.constant dense<0.000000e+00> : vector<16x448xf32>
    %163 = tpu.matmul %160, %162, %cst_128 {dimension_numbers = #tpu.dot_dimension_numbers<[1], [0], [0], [1], [0, 0, 1, 1], [], []>} : vector<16x16xbf16>, vector<16x448xbf16>, vector<16x448xf32> -> vector<16x448xf32>
    %164 = vector.extract_strided_slice %163 {offsets = [0, 0], sizes = [14, 448], strides = [1, 1]} : vector<16x448xf32> to vector<14x448xf32>
    %165 = arith.addf %157, %164 : vector<14x448xf32>
    %c1_129 = arith.constant 1 : index
    %c16_130 = arith.constant 16 : index
    %c0_131 = arith.constant 0 : index
    %166 = vector.load %arg2[%c1_129, %c16_130, %c0_131] : memref<3x64x448xbf16, #tpu.memory_space<vmem>>, vector<1x16x448xbf16>
    %167 = vector.shape_cast %166 : vector<1x16x448xbf16> to vector<16x448xbf16>
    %cst_132 = arith.constant dense<0.000000e+00> : vector<16x448xf32>
    %168 = tpu.matmul %160, %167, %cst_132 {dimension_numbers = #tpu.dot_dimension_numbers<[1], [0], [0], [1], [0, 0, 1, 1], [], []>} : vector<16x16xbf16>, vector<16x448xbf16>, vector<16x448xf32> -> vector<16x448xf32>
    %169 = vector.extract_strided_slice %168 {offsets = [1, 0], sizes = [14, 448], strides = [1, 1]} : vector<16x448xf32> to vector<14x448xf32>
    %170 = arith.addf %165, %169 : vector<14x448xf32>
    %c2_133 = arith.constant 2 : index
    %c16_134 = arith.constant 16 : index
    %c0_135 = arith.constant 0 : index
    %171 = vector.load %arg2[%c2_133, %c16_134, %c0_135] : memref<3x64x448xbf16, #tpu.memory_space<vmem>>, vector<1x16x448xbf16>
    %172 = vector.shape_cast %171 : vector<1x16x448xbf16> to vector<16x448xbf16>
    %cst_136 = arith.constant dense<0.000000e+00> : vector<16x448xf32>
    %173 = tpu.matmul %160, %172, %cst_136 {dimension_numbers = #tpu.dot_dimension_numbers<[1], [0], [0], [1], [0, 0, 1, 1], [], []>} : vector<16x16xbf16>, vector<16x448xbf16>, vector<16x448xf32> -> vector<16x448xf32>
    %174 = vector.extract_strided_slice %173 {offsets = [2, 0], sizes = [14, 448], strides = [1, 1]} : vector<16x448xf32> to vector<14x448xf32>
    %175 = arith.addf %170, %174 : vector<14x448xf32>
    %c1_137 = arith.constant 1 : index
    %c2_138 = arith.constant 2 : index
    %c0_139 = arith.constant 0 : index
    %c0_140 = arith.constant 0 : index
    %176 = vector.load %arg1[%c1_137, %c2_138, %c0_139, %c0_140] : memref<2x4x16x16xf32, #tpu.memory_space<vmem>>, vector<1x1x16x16xf32>
    %177 = vector.shape_cast %176 : vector<1x1x16x16xf32> to vector<16x16xf32>
    %178 = arith.truncf %177 : vector<16x16xf32> to vector<16x16xbf16>
    %c0_141 = arith.constant 0 : index
    %c32_142 = arith.constant 32 : index
    %c0_143 = arith.constant 0 : index
    %179 = vector.load %arg2[%c0_141, %c32_142, %c0_143] : memref<3x64x448xbf16, #tpu.memory_space<vmem>>, vector<1x16x448xbf16>
    %180 = vector.shape_cast %179 : vector<1x16x448xbf16> to vector<16x448xbf16>
    %cst_144 = arith.constant dense<0.000000e+00> : vector<16x448xf32>
    %181 = tpu.matmul %178, %180, %cst_144 {dimension_numbers = #tpu.dot_dimension_numbers<[1], [0], [0], [1], [0, 0, 1, 1], [], []>} : vector<16x16xbf16>, vector<16x448xbf16>, vector<16x448xf32> -> vector<16x448xf32>
    %182 = vector.extract_strided_slice %181 {offsets = [0, 0], sizes = [14, 448], strides = [1, 1]} : vector<16x448xf32> to vector<14x448xf32>
    %183 = arith.addf %175, %182 : vector<14x448xf32>
    %c1_145 = arith.constant 1 : index
    %c32_146 = arith.constant 32 : index
    %c0_147 = arith.constant 0 : index
    %184 = vector.load %arg2[%c1_145, %c32_146, %c0_147] : memref<3x64x448xbf16, #tpu.memory_space<vmem>>, vector<1x16x448xbf16>
    %185 = vector.shape_cast %184 : vector<1x16x448xbf16> to vector<16x448xbf16>
    %cst_148 = arith.constant dense<0.000000e+00> : vector<16x448xf32>
    %186 = tpu.matmul %178, %185, %cst_148 {dimension_numbers = #tpu.dot_dimension_numbers<[1], [0], [0], [1], [0, 0, 1, 1], [], []>} : vector<16x16xbf16>, vector<16x448xbf16>, vector<16x448xf32> -> vector<16x448xf32>
    %187 = vector.extract_strided_slice %186 {offsets = [1, 0], sizes = [14, 448], strides = [1, 1]} : vector<16x448xf32> to vector<14x448xf32>
    %188 = arith.addf %183, %187 : vector<14x448xf32>
    %c2_149 = arith.constant 2 : index
    %c32_150 = arith.constant 32 : index
    %c0_151 = arith.constant 0 : index
    %189 = vector.load %arg2[%c2_149, %c32_150, %c0_151] : memref<3x64x448xbf16, #tpu.memory_space<vmem>>, vector<1x16x448xbf16>
    %190 = vector.shape_cast %189 : vector<1x16x448xbf16> to vector<16x448xbf16>
    %cst_152 = arith.constant dense<0.000000e+00> : vector<16x448xf32>
    %191 = tpu.matmul %178, %190, %cst_152 {dimension_numbers = #tpu.dot_dimension_numbers<[1], [0], [0], [1], [0, 0, 1, 1], [], []>} : vector<16x16xbf16>, vector<16x448xbf16>, vector<16x448xf32> -> vector<16x448xf32>
    %192 = vector.extract_strided_slice %191 {offsets = [2, 0], sizes = [14, 448], strides = [1, 1]} : vector<16x448xf32> to vector<14x448xf32>
    %193 = arith.addf %188, %192 : vector<14x448xf32>
    %c1_153 = arith.constant 1 : index
    %c3_154 = arith.constant 3 : index
    %c0_155 = arith.constant 0 : index
    %c0_156 = arith.constant 0 : index
    %194 = vector.load %arg1[%c1_153, %c3_154, %c0_155, %c0_156] : memref<2x4x16x16xf32, #tpu.memory_space<vmem>>, vector<1x1x16x16xf32>
    %195 = vector.shape_cast %194 : vector<1x1x16x16xf32> to vector<16x16xf32>
    %196 = arith.truncf %195 : vector<16x16xf32> to vector<16x16xbf16>
    %c0_157 = arith.constant 0 : index
    %c48_158 = arith.constant 48 : index
    %c0_159 = arith.constant 0 : index
    %197 = vector.load %arg2[%c0_157, %c48_158, %c0_159] : memref<3x64x448xbf16, #tpu.memory_space<vmem>>, vector<1x16x448xbf16>
    %198 = vector.shape_cast %197 : vector<1x16x448xbf16> to vector<16x448xbf16>
    %cst_160 = arith.constant dense<0.000000e+00> : vector<16x448xf32>
    %199 = tpu.matmul %196, %198, %cst_160 {dimension_numbers = #tpu.dot_dimension_numbers<[1], [0], [0], [1], [0, 0, 1, 1], [], []>} : vector<16x16xbf16>, vector<16x448xbf16>, vector<16x448xf32> -> vector<16x448xf32>
    %200 = vector.extract_strided_slice %199 {offsets = [0, 0], sizes = [14, 448], strides = [1, 1]} : vector<16x448xf32> to vector<14x448xf32>
    %201 = arith.addf %193, %200 : vector<14x448xf32>
    %c1_161 = arith.constant 1 : index
    %c48_162 = arith.constant 48 : index
    %c0_163 = arith.constant 0 : index
    %202 = vector.load %arg2[%c1_161, %c48_162, %c0_163] : memref<3x64x448xbf16, #tpu.memory_space<vmem>>, vector<1x16x448xbf16>
    %203 = vector.shape_cast %202 : vector<1x16x448xbf16> to vector<16x448xbf16>
    %cst_164 = arith.constant dense<0.000000e+00> : vector<16x448xf32>
    %204 = tpu.matmul %196, %203, %cst_164 {dimension_numbers = #tpu.dot_dimension_numbers<[1], [0], [0], [1], [0, 0, 1, 1], [], []>} : vector<16x16xbf16>, vector<16x448xbf16>, vector<16x448xf32> -> vector<16x448xf32>
    %205 = vector.extract_strided_slice %204 {offsets = [1, 0], sizes = [14, 448], strides = [1, 1]} : vector<16x448xf32> to vector<14x448xf32>
    %206 = arith.addf %201, %205 : vector<14x448xf32>
    %c2_165 = arith.constant 2 : index
    %c48_166 = arith.constant 48 : index
    %c0_167 = arith.constant 0 : index
    %207 = vector.load %arg2[%c2_165, %c48_166, %c0_167] : memref<3x64x448xbf16, #tpu.memory_space<vmem>>, vector<1x16x448xbf16>
    %208 = vector.shape_cast %207 : vector<1x16x448xbf16> to vector<16x448xbf16>
    %cst_168 = arith.constant dense<0.000000e+00> : vector<16x448xf32>
    %209 = tpu.matmul %196, %208, %cst_168 {dimension_numbers = #tpu.dot_dimension_numbers<[1], [0], [0], [1], [0, 0, 1, 1], [], []>} : vector<16x16xbf16>, vector<16x448xbf16>, vector<16x448xf32> -> vector<16x448xf32>
    %210 = vector.extract_strided_slice %209 {offsets = [2, 0], sizes = [14, 448], strides = [1, 1]} : vector<16x448xf32> to vector<14x448xf32>
    %211 = arith.addf %206, %210 : vector<14x448xf32>
    %cst_169 = arith.constant 0.000000e+00 : f32
    %212 = vector.broadcast %cst_169 : f32 to vector<14x448xf32>
    %213 = arith.maximumf %211, %212 : vector<14x448xf32>
    %214 = arith.truncf %213 : vector<14x448xf32> to vector<14x448xbf16>
    %c0_170 = arith.constant 0 : index
    %c0_171 = arith.constant 0 : index
    %c0_172 = arith.constant 0 : index
    %215 = vector.load %arg3[%c0_170, %c0_171, %c0_172] : memref<3x448x192xbf16, #tpu.memory_space<vmem>>, vector<1x448x192xbf16>
    %216 = vector.shape_cast %215 : vector<1x448x192xbf16> to vector<448x192xbf16>
    %cst_173 = arith.constant dense<0.000000e+00> : vector<14x192xf32>
    %217 = tpu.matmul %214, %216, %cst_173 {dimension_numbers = #tpu.dot_dimension_numbers<[1], [0], [0], [1], [0, 0, 1, 1], [], []>} : vector<14x448xbf16>, vector<448x192xbf16>, vector<14x192xf32> -> vector<14x192xf32>
    %c1_174 = arith.constant 1 : index
    %c0_175 = arith.constant 0 : index
    %c0_176 = arith.constant 0 : index
    %218 = vector.load %arg3[%c1_174, %c0_175, %c0_176] : memref<3x448x192xbf16, #tpu.memory_space<vmem>>, vector<1x448x192xbf16>
    %219 = vector.shape_cast %218 : vector<1x448x192xbf16> to vector<448x192xbf16>
    %cst_177 = arith.constant dense<0.000000e+00> : vector<14x192xf32>
    %220 = tpu.matmul %214, %219, %cst_177 {dimension_numbers = #tpu.dot_dimension_numbers<[1], [0], [0], [1], [0, 0, 1, 1], [], []>} : vector<14x448xbf16>, vector<448x192xbf16>, vector<14x192xf32> -> vector<14x192xf32>
    %c2_178 = arith.constant 2 : index
    %c0_179 = arith.constant 0 : index
    %c0_180 = arith.constant 0 : index
    %221 = vector.load %arg3[%c2_178, %c0_179, %c0_180] : memref<3x448x192xbf16, #tpu.memory_space<vmem>>, vector<1x448x192xbf16>
    %222 = vector.shape_cast %221 : vector<1x448x192xbf16> to vector<448x192xbf16>
    %cst_181 = arith.constant dense<0.000000e+00> : vector<14x192xf32>
    %223 = tpu.matmul %214, %222, %cst_181 {dimension_numbers = #tpu.dot_dimension_numbers<[1], [0], [0], [1], [0, 0, 1, 1], [], []>} : vector<14x448xbf16>, vector<448x192xbf16>, vector<14x192xf32> -> vector<14x192xf32>
    %224 = vector.extract_strided_slice %217 {offsets = [0, 0], sizes = [12, 192], strides = [1, 1]} : vector<14x192xf32> to vector<12x192xf32>
    %225 = vector.extract_strided_slice %220 {offsets = [1, 0], sizes = [12, 192], strides = [1, 1]} : vector<14x192xf32> to vector<12x192xf32>
    %226 = arith.addf %224, %225 : vector<12x192xf32>
    %227 = vector.extract_strided_slice %223 {offsets = [2, 0], sizes = [12, 192], strides = [1, 1]} : vector<14x192xf32> to vector<12x192xf32>
    %228 = arith.addf %226, %227 : vector<12x192xf32>
    %229 = vector.broadcast %1 : vector<1x192xf32> to vector<12x192xf32>
    %230 = arith.addf %228, %229 : vector<12x192xf32>
    %cst_182 = arith.constant 0.000000e+00 : f32
    %231 = vector.broadcast %cst_182 : f32 to vector<12x192xf32>
    %232 = arith.maximumf %230, %231 : vector<12x192xf32>
    %233 = arith.truncf %232 : vector<12x192xf32> to vector<12x192xbf16>
    %c0_183 = arith.constant 0 : index
    %c0_184 = arith.constant 0 : index
    %c0_185 = arith.constant 0 : index
    %234 = vector.load %arg4[%c0_183, %c0_184, %c0_185] : memref<3x192x128xbf16, #tpu.memory_space<vmem>>, vector<1x192x128xbf16>
    %235 = vector.shape_cast %234 : vector<1x192x128xbf16> to vector<192x128xbf16>
    %cst_186 = arith.constant dense<0.000000e+00> : vector<12x128xf32>
    %236 = tpu.matmul %233, %235, %cst_186 {dimension_numbers = #tpu.dot_dimension_numbers<[1], [0], [0], [1], [0, 0, 1, 1], [], []>} : vector<12x192xbf16>, vector<192x128xbf16>, vector<12x128xf32> -> vector<12x128xf32>
    %c1_187 = arith.constant 1 : index
    %c0_188 = arith.constant 0 : index
    %c0_189 = arith.constant 0 : index
    %237 = vector.load %arg4[%c1_187, %c0_188, %c0_189] : memref<3x192x128xbf16, #tpu.memory_space<vmem>>, vector<1x192x128xbf16>
    %238 = vector.shape_cast %237 : vector<1x192x128xbf16> to vector<192x128xbf16>
    %cst_190 = arith.constant dense<0.000000e+00> : vector<12x128xf32>
    %239 = tpu.matmul %233, %238, %cst_190 {dimension_numbers = #tpu.dot_dimension_numbers<[1], [0], [0], [1], [0, 0, 1, 1], [], []>} : vector<12x192xbf16>, vector<192x128xbf16>, vector<12x128xf32> -> vector<12x128xf32>
    %c2_191 = arith.constant 2 : index
    %c0_192 = arith.constant 0 : index
    %c0_193 = arith.constant 0 : index
    %240 = vector.load %arg4[%c2_191, %c0_192, %c0_193] : memref<3x192x128xbf16, #tpu.memory_space<vmem>>, vector<1x192x128xbf16>
    %241 = vector.shape_cast %240 : vector<1x192x128xbf16> to vector<192x128xbf16>
    %cst_194 = arith.constant dense<0.000000e+00> : vector<12x128xf32>
    %242 = tpu.matmul %233, %241, %cst_194 {dimension_numbers = #tpu.dot_dimension_numbers<[1], [0], [0], [1], [0, 0, 1, 1], [], []>} : vector<12x192xbf16>, vector<192x128xbf16>, vector<12x128xf32> -> vector<12x128xf32>
    %243 = vector.extract_strided_slice %236 {offsets = [0, 0], sizes = [10, 128], strides = [1, 1]} : vector<12x128xf32> to vector<10x128xf32>
    %244 = vector.extract_strided_slice %239 {offsets = [1, 0], sizes = [10, 128], strides = [1, 1]} : vector<12x128xf32> to vector<10x128xf32>
    %245 = arith.addf %243, %244 : vector<10x128xf32>
    %246 = vector.extract_strided_slice %242 {offsets = [2, 0], sizes = [10, 128], strides = [1, 1]} : vector<12x128xf32> to vector<10x128xf32>
    %247 = arith.addf %245, %246 : vector<10x128xf32>
    %248 = vector.broadcast %2 : vector<1x128xf32> to vector<10x128xf32>
    %249 = arith.addf %247, %248 : vector<10x128xf32>
    %cst_195 = arith.constant 0.000000e+00 : f32
    %250 = vector.broadcast %cst_195 : f32 to vector<10x128xf32>
    %251 = arith.maximumf %249, %250 : vector<10x128xf32>
    %252 = vector.extract_strided_slice %251 {offsets = [0, 0], sizes = [1, 128], strides = [1, 1]} : vector<10x128xf32> to vector<1x128xf32>
    %c1_196 = arith.constant 1 : index
    %c0_197 = arith.constant 0 : index
    %253 = vector.load %arg10[%c1_196, %c0_197] : memref<2x1280xf32, #tpu.memory_space<vmem>>, vector<1x128xf32>
    tpu.vector_store %arg10[%c1_196, %c0_197], %252 {strides = array<i32>} : memref<2x1280xf32, #tpu.memory_space<vmem>>, vector<1x128xf32>,
    %254 = vector.extract_strided_slice %251 {offsets = [1, 0], sizes = [1, 128], strides = [1, 1]} : vector<10x128xf32> to vector<1x128xf32>
    %c1_198 = arith.constant 1 : index
    %c128_199 = arith.constant 128 : index
    %255 = vector.load %arg10[%c1_198, %c128_199] : memref<2x1280xf32, #tpu.memory_space<vmem>>, vector<1x128xf32>
    tpu.vector_store %arg10[%c1_198, %c128_199], %254 {strides = array<i32>} : memref<2x1280xf32, #tpu.memory_space<vmem>>, vector<1x128xf32>,
    %256 = vector.extract_strided_slice %251 {offsets = [2, 0], sizes = [1, 128], strides = [1, 1]} : vector<10x128xf32> to vector<1x128xf32>
    %c1_200 = arith.constant 1 : index
    %c256_201 = arith.constant 256 : index
    %257 = vector.load %arg10[%c1_200, %c256_201] : memref<2x1280xf32, #tpu.memory_space<vmem>>, vector<1x128xf32>
    tpu.vector_store %arg10[%c1_200, %c256_201], %256 {strides = array<i32>} : memref<2x1280xf32, #tpu.memory_space<vmem>>, vector<1x128xf32>,
    %258 = vector.extract_strided_slice %251 {offsets = [3, 0], sizes = [1, 128], strides = [1, 1]} : vector<10x128xf32> to vector<1x128xf32>
    %c1_202 = arith.constant 1 : index
    %c384_203 = arith.constant 384 : index
    %259 = vector.load %arg10[%c1_202, %c384_203] : memref<2x1280xf32, #tpu.memory_space<vmem>>, vector<1x128xf32>
    tpu.vector_store %arg10[%c1_202, %c384_203], %258 {strides = array<i32>} : memref<2x1280xf32, #tpu.memory_space<vmem>>, vector<1x128xf32>,
    %260 = vector.extract_strided_slice %251 {offsets = [4, 0], sizes = [1, 128], strides = [1, 1]} : vector<10x128xf32> to vector<1x128xf32>
    %c1_204 = arith.constant 1 : index
    %c512_205 = arith.constant 512 : index
    %261 = vector.load %arg10[%c1_204, %c512_205] : memref<2x1280xf32, #tpu.memory_space<vmem>>, vector<1x128xf32>
    tpu.vector_store %arg10[%c1_204, %c512_205], %260 {strides = array<i32>} : memref<2x1280xf32, #tpu.memory_space<vmem>>, vector<1x128xf32>,
    %262 = vector.extract_strided_slice %251 {offsets = [5, 0], sizes = [1, 128], strides = [1, 1]} : vector<10x128xf32> to vector<1x128xf32>
    %c1_206 = arith.constant 1 : index
    %c640_207 = arith.constant 640 : index
    %263 = vector.load %arg10[%c1_206, %c640_207] : memref<2x1280xf32, #tpu.memory_space<vmem>>, vector<1x128xf32>
    tpu.vector_store %arg10[%c1_206, %c640_207], %262 {strides = array<i32>} : memref<2x1280xf32, #tpu.memory_space<vmem>>, vector<1x128xf32>,
    %264 = vector.extract_strided_slice %251 {offsets = [6, 0], sizes = [1, 128], strides = [1, 1]} : vector<10x128xf32> to vector<1x128xf32>
    %c1_208 = arith.constant 1 : index
    %c768_209 = arith.constant 768 : index
    %265 = vector.load %arg10[%c1_208, %c768_209] : memref<2x1280xf32, #tpu.memory_space<vmem>>, vector<1x128xf32>
    tpu.vector_store %arg10[%c1_208, %c768_209], %264 {strides = array<i32>} : memref<2x1280xf32, #tpu.memory_space<vmem>>, vector<1x128xf32>,
    %266 = vector.extract_strided_slice %251 {offsets = [7, 0], sizes = [1, 128], strides = [1, 1]} : vector<10x128xf32> to vector<1x128xf32>
    %c1_210 = arith.constant 1 : index
    %c896_211 = arith.constant 896 : index
    %267 = vector.load %arg10[%c1_210, %c896_211] : memref<2x1280xf32, #tpu.memory_space<vmem>>, vector<1x128xf32>
    tpu.vector_store %arg10[%c1_210, %c896_211], %266 {strides = array<i32>} : memref<2x1280xf32, #tpu.memory_space<vmem>>, vector<1x128xf32>,
    %268 = vector.extract_strided_slice %251 {offsets = [8, 0], sizes = [1, 128], strides = [1, 1]} : vector<10x128xf32> to vector<1x128xf32>
    %c1_212 = arith.constant 1 : index
    %c1024_213 = arith.constant 1024 : index
    %269 = vector.load %arg10[%c1_212, %c1024_213] : memref<2x1280xf32, #tpu.memory_space<vmem>>, vector<1x128xf32>
    tpu.vector_store %arg10[%c1_212, %c1024_213], %268 {strides = array<i32>} : memref<2x1280xf32, #tpu.memory_space<vmem>>, vector<1x128xf32>,
    %270 = vector.extract_strided_slice %251 {offsets = [9, 0], sizes = [1, 128], strides = [1, 1]} : vector<10x128xf32> to vector<1x128xf32>
    %c1_214 = arith.constant 1 : index
    %c1152_215 = arith.constant 1152 : index
    %271 = vector.load %arg10[%c1_214, %c1152_215] : memref<2x1280xf32, #tpu.memory_space<vmem>>, vector<1x128xf32>
    tpu.vector_store %arg10[%c1_214, %c1152_215], %270 {strides = array<i32>} : memref<2x1280xf32, #tpu.memory_space<vmem>>, vector<1x128xf32>,
    %c0_216 = arith.constant 0 : index
    %c0_217 = arith.constant 0 : index
    %272 = vector.load %arg10[%c0_216, %c0_217] : memref<2x1280xf32, #tpu.memory_space<vmem>>, vector<2x1280xf32>
    %273 = arith.truncf %272 : vector<2x1280xf32> to vector<2x1280xbf16>
    %c0_218 = arith.constant 0 : index
    %c0_219 = arith.constant 0 : index
    %274 = vector.load %arg5[%c0_218, %c0_219] : memref<1280x256xbf16, #tpu.memory_space<vmem>>, vector<1280x256xbf16>
    %cst_220 = arith.constant dense<0.000000e+00> : vector<2x256xf32>
    %275 = tpu.matmul %273, %274, %cst_220 {dimension_numbers = #tpu.dot_dimension_numbers<[1], [0], [0], [1], [0, 0, 1, 1], [], []>} : vector<2x1280xbf16>, vector<1280x256xbf16>, vector<2x256xf32> -> vector<2x256xf32>
    %276 = vector.broadcast %3 : vector<1x256xf32> to vector<2x256xf32>
    %277 = arith.addf %275, %276 : vector<2x256xf32>
    %cst_221 = arith.constant 0.000000e+00 : f32
    %278 = vector.broadcast %cst_221 : f32 to vector<2x256xf32>
    %279 = arith.maximumf %277, %278 : vector<2x256xf32>
    %280 = arith.truncf %279 : vector<2x256xf32> to vector<2x256xbf16>
    %c0_222 = arith.constant 0 : index
    %c0_223 = arith.constant 0 : index
    %281 = vector.load %arg6[%c0_222, %c0_223] : memref<256x256xbf16, #tpu.memory_space<vmem>>, vector<256x256xbf16>
    %cst_224 = arith.constant dense<0.000000e+00> : vector<2x256xf32>
    %282 = tpu.matmul %280, %281, %cst_224 {dimension_numbers = #tpu.dot_dimension_numbers<[1], [0], [0], [1], [0, 0, 1, 1], [], []>} : vector<2x256xbf16>, vector<256x256xbf16>, vector<2x256xf32> -> vector<2x256xf32>
    %283 = vector.broadcast %4 : vector<1x256xf32> to vector<2x256xf32>
    %284 = arith.addf %282, %283 : vector<2x256xf32>
    %cst_225 = arith.constant 0.000000e+00 : f32
    %285 = vector.broadcast %cst_225 : f32 to vector<2x256xf32>
    %286 = arith.maximumf %284, %285 : vector<2x256xf32>
    %287 = arith.truncf %286 : vector<2x256xf32> to vector<2x256xbf16>
    %c0_226 = arith.constant 0 : index
    %c0_227 = arith.constant 0 : index
    %288 = vector.load %arg7[%c0_226, %c0_227] : memref<256x128xbf16, #tpu.memory_space<vmem>>, vector<256x128xbf16>
    %cst_228 = arith.constant dense<0.000000e+00> : vector<2x128xf32>
    %289 = tpu.matmul %287, %288, %cst_228 {dimension_numbers = #tpu.dot_dimension_numbers<[1], [0], [0], [1], [0, 0, 1, 1], [], []>} : vector<2x256xbf16>, vector<256x128xbf16>, vector<2x128xf32> -> vector<2x128xf32>
    %290 = vector.broadcast %5 : vector<1x128xf32> to vector<2x128xf32>
    %291 = arith.addf %289, %290 : vector<2x128xf32>
    %c0_229 = arith.constant 0 : index
    %c0_230 = arith.constant 0 : index
    %292 = vector.load %arg9[%c0_229, %c0_230] : memref<2x128xf32, #tpu.memory_space<vmem>>, vector<2x128xf32>
    tpu.vector_store %arg9[%c0_229, %c0_230], %291 {strides = array<i32>} : memref<2x128xf32, #tpu.memory_space<vmem>>, vector<2x128xf32>,
    return
  }
  func.func @transform_0(%arg0: i32) -> (i32, i32, i32, i32) {
    %c0_i32 = arith.constant 0 : i32
    %c0_i32_0 = arith.constant 0 : i32
    %c0_i32_1 = arith.constant 0 : i32
    %c0_i32_2 = arith.constant 0 : i32
    return %arg0, %c0_i32, %c0_i32_0, %c0_i32_1 : i32, i32, i32, i32
  }
  func.func @transform_1(%arg0: i32) -> (i32, i32, i32) {
    %c0_i32 = arith.constant 0 : i32
    %c0_i32_0 = arith.constant 0 : i32
    %c0_i32_1 = arith.constant 0 : i32
    %c0_i32_2 = arith.constant 0 : i32
    return %c0_i32, %c0_i32_0, %c0_i32_1 : i32, i32, i32
  }
  func.func @transform_2(%arg0: i32) -> (i32, i32, i32) {
    %c0_i32 = arith.constant 0 : i32
    %c0_i32_0 = arith.constant 0 : i32
    %c0_i32_1 = arith.constant 0 : i32
    %c0_i32_2 = arith.constant 0 : i32
    return %c0_i32, %c0_i32_0, %c0_i32_1 : i32, i32, i32
  }
  func.func @transform_3(%arg0: i32) -> (i32, i32, i32) {
    %c0_i32 = arith.constant 0 : i32
    %c0_i32_0 = arith.constant 0 : i32
    %c0_i32_1 = arith.constant 0 : i32
    %c0_i32_2 = arith.constant 0 : i32
    return %c0_i32, %c0_i32_0, %c0_i32_1 : i32, i32, i32
  }
  func.func @transform_4(%arg0: i32) -> (i32, i32) {
    %c0_i32 = arith.constant 0 : i32
    %c0_i32_0 = arith.constant 0 : i32
    %c0_i32_1 = arith.constant 0 : i32
    return %c0_i32, %c0_i32_0 : i32, i32
  }
  func.func @transform_5(%arg0: i32) -> (i32, i32) {
    %c0_i32 = arith.constant 0 : i32
    %c0_i32_0 = arith.constant 0 : i32
    %c0_i32_1 = arith.constant 0 : i32
    return %c0_i32, %c0_i32_0 : i32, i32
  }
  func.func @transform_6(%arg0: i32) -> (i32, i32) {
    %c0_i32 = arith.constant 0 : i32
    %c0_i32_0 = arith.constant 0 : i32
    %c0_i32_1 = arith.constant 0 : i32
    return %c0_i32, %c0_i32_0 : i32, i32
  }
  func.func @transform_7(%arg0: i32) -> (i32, i32) {
    %c0_i32 = arith.constant 0 : i32
    %c0_i32_0 = arith.constant 0 : i32
    %c0_i32_1 = arith.constant 0 : i32
    return %c0_i32, %c0_i32_0 : i32, i32
  }
  func.func @transform_8(%arg0: i32) -> (i32, i32) {
    %c0_i32 = arith.constant 0 : i32
    %c0_i32_0 = arith.constant 0 : i32
    return %arg0, %c0_i32 : i32, i32
  }
}

</mosaic_0001>

<llo_original>
// kernel: tpu_custom_call.1
$region0: #{tpu_custom_call.1}
  #allocation0 [shape = 'u32[]', space=smem, size = 0x4, offset = 0x4, fixed_abs, tag = 'smem constant byte address 0x4 - core index']
  #allocation1 [shape = 'u32[144,128]{1,0:T(1,128)}', space=vmem, size = 0x12000, scoped, tag = 'internal scratch']
  #allocation2 [shape = 'f32[2,1280]{1,0:T(2,128)}', space=vmem, size = 0x2800, scoped, tag = 'scratch operand']
  %s0 = inlined_call_operand.vmem [shape: f32[2,4,16,16], index: 0, kind: input, shape index: {}]
  %s1 = inlined_call_operand.vmem [shape: bf16[3,64,448], index: 1, kind: input, shape index: {}]
  %s2 = inlined_call_operand.vmem [shape: bf16[3,448,192], index: 2, kind: input, shape index: {}]
  %s3 = inlined_call_operand.vmem [shape: bf16[3,192,128], index: 3, kind: input, shape index: {}]
  %s4 = inlined_call_operand.vmem [shape: bf16[1280,256], index: 4, kind: input, shape index: {}]
  %s5 = inlined_call_operand.vmem [shape: bf16[256,256], index: 5, kind: input, shape index: {}]
  %s6 = inlined_call_operand.vmem [shape: bf16[256,128], index: 6, kind: input, shape index: {}]
  %s7 = inlined_call_operand.vmem [shape: f32[1,1536], index: 7, kind: input, shape index: {}]
  %s8 = inlined_call_operand.hbm [shape: f32[2,128], index: 8, kind: output, shape index: {}]
  %s9 = sld [smem:[#allocation0]]
  $region42: #{tpu_custom_call.1} parent=0
    _
  %s11 = ssub.s32 1, %s9
  %s12 = scalar_select 0, %s11, %s9
  $region1: #{tpu_custom_call.1} parent=0
    #allocation3 [shape = 'u8[1024]{0}', space=vmem, size = 0x400, scoped, tag = 'output window, operand 0, single buffered']
    #allocation4 [shape = 's32[1]{0}', space=sflag, size = 0x4, scoped, tag = 'scoped memory for tpu_custom_call.1']
    %13 = vsyncpa [#allocation4], 0
    // Predicated region
    $region2: #{tpu_custom_call.1} parent=1 // pred_check
      _
    $region3: #{tpu_custom_call.1} parent=1 // pred_check_branch
      %15 = sbr.rel (0) target = $region5
    $region4: #{tpu_custom_call.1} parent=1 // pred_region
      _
    $region5: #{tpu_custom_call.1} parent=1 // pred_fallthru
      _
    // Predicated region
    $region6: #{tpu_custom_call.1} parent=1 // pred_check
      _
    $region7: #{tpu_custom_call.1} parent=1 // pred_check_branch
      %17 = sbr.rel (0) target = $region9
    $region8: #{tpu_custom_call.1} parent=1 // pred_region
      _
    $region9: #{tpu_custom_call.1} parent=1 // pred_fallthru
      _
    // Predicated region
    $region10: #{tpu_custom_call.1} parent=1 // pred_check
      _
    $region11: #{tpu_custom_call.1} parent=1 // pred_check_branch
      %19 = sbr.rel (0) target = $region13
    $region12: #{tpu_custom_call.1} parent=1 // pred_region
      _
    $region13: #{tpu_custom_call.1} parent=1 // pred_fallthru
      _
    // Predicated region
    $region14: #{tpu_custom_call.1} parent=1 // pred_check
      _
    $region15: #{tpu_custom_call.1} parent=1 // pred_check_branch
      %21 = sbr.rel (0) target = $region17
    $region16: #{tpu_custom_call.1} parent=1 // pred_region
      _
    $region17: #{tpu_custom_call.1} parent=1 // pred_fallthru
      _
    // Predicated region
    $region18: #{tpu_custom_call.1} parent=1 // pred_check
      _
    $region19: #{tpu_custom_call.1} parent=1 // pred_check_branch
      %23 = sbr.rel (0) target = $region21
    $region20: #{tpu_custom_call.1} parent=1 // pred_region
      _
    $region21: #{tpu_custom_call.1} parent=1 // pred_fallthru
      _
    // Predicated region
    $region22: #{tpu_custom_call.1} parent=1 // pred_check
      _
    $region23: #{tpu_custom_call.1} parent=1 // pred_check_branch
      %25 = sbr.rel (0) target = $region25
    $region24: #{tpu_custom_call.1} parent=1 // pred_region
      _
    $region25: #{tpu_custom_call.1} parent=1 // pred_fallthru
      _
    // Predicated region
    $region26: #{tpu_custom_call.1} parent=1 // pred_check
      _
    $region27: #{tpu_custom_call.1} parent=1 // pred_check_branch
      %27 = sbr.rel (0) target = $region29
    $region28: #{tpu_custom_call.1} parent=1 // pred_region
      _
    $region29: #{tpu_custom_call.1} parent=1 // pred_fallthru
      _
    // Predicated region
    $region30: #{tpu_custom_call.1} parent=1 // pred_check
      _
    $region31: #{tpu_custom_call.1} parent=1 // pred_check_branch
      %29 = sbr.rel (0) target = $region33
    $region32: #{tpu_custom_call.1} parent=1 // pred_region
      _
    $region33: #{tpu_custom_call.1} parent=1 // pred_fallthru
      _
    %v31 = vld [vmem:[%s7] sm:$0xf]
    %v32 = vld [vmem:[%s7 + $0x4] sm:$0x3]
    %v33 = vld [vmem:[%s7 + $0x6] sm:$0x1]
    %v34 = vld [vmem:[%s7 + $0x7] sm:$0x3]
    %v35 = vld [vmem:[%s7 + $0x9] sm:$0x3]
    %v36 = vld [vmem:[%s7 + $0xb] sm:$0x1]
    %v37 = vld [vmem:[%s0] sm:$0xff]
    %v38 = vld [vmem:[%s0 + $0x8] sm:$0xff]
    %v39 = vpack.c.bf16 %v38, %v37
    %v40 = vld [vmem:[%s1] sm:$0xff]
    %v41 = vld [vmem:[%s1 + $0x8] sm:$0xff]
    %v42 = vld [vmem:[%s1 + $0x10] sm:$0xff]
    %v43 = vld [vmem:[%s1 + $0x18] sm:$0xff]
    %v48 = vunpack.c.l.b16 %v40
    %v49 = vunpack.c.h.b16 %v40
    %v50 = vunpack.c.l.b16 %v41
    %v51 = vunpack.c.h.b16 %v41
    %v52 = vunpack.c.l.b16 %v42
    %v53 = vunpack.c.h.b16 %v42
    %v54 = vunpack.c.l.b16 %v43
    %v55 = vunpack.c.h.b16 %v43
    %v56 = vpack.c.b16 %v52, %v48
    %v57 = vpack.c.b16 %v53, %v49
    %v58 = vpack.c.b16 %v54, %v50
    %v59 = vpack.c.b16 %v55, %v51
    %vm64 = vcmask 130048
    %v66 = vsel %vm64, %v39, 0
    %68 = vmatprep.subr.bf16.mxu0 0
    %69 = vmatpush1.bf16.msra.mxu0 0
    %70 = vmatprep.subr.bf16.mxu0 0
    %71 = vmatpush1.bf16.msra.mxu0 0
    %72 = vmatprep.subr.bf16.mxu0 0
    %73 = vmatpush1.bf16.msra.mxu0 0
    %74 = vmatprep.subr.bf16.mxu0 0
    %75 = vmatpush1.bf16.msra.mxu0 0
    %76 = vmatprep.subr.bf16.mxu0 0
    %77 = vmatpush1.bf16.msra.mxu0 0
    %78 = vmatprep.subr.bf16.mxu0 0
    %79 = vmatpush1.bf16.msra.mxu0 0
    %80 = vmatprep.subr.bf16.mxu0 0
    %81 = vmatpush1.bf16.msra.mxu0 0
    %82 = vmatprep.subr.bf16.mxu0 %v57
    %83 = vmatpush1.bf16.msra.mxu0 %v56
    %84 = vmatprep.subr.bf16.mxu0 0
    %85 = vmatpush2.bf16.msra.mxu0 0
    %86 = vmatprep.subr.bf16.mxu0 0
    %87 = vmatpush2.bf16.msra.mxu0 0
    %88 = vmatprep.subr.bf16.mxu0 0
    %89 = vmatpush2.bf16.msra.mxu0 0
    %90 = vmatprep.subr.bf16.mxu0 0
    %91 = vmatpush2.bf16.msra.mxu0 0
    %92 = vmatprep.subr.bf16.mxu0 0
    %93 = vmatpush2.bf16.msra.mxu0 0
    %94 = vmatprep.subr.bf16.mxu0 0
    %95 = vmatpush2.bf16.msra.mxu0 0
    %96 = vmatprep.subr.bf16.mxu0 0
    %97 = vmatpush2.bf16.msra.mxu0 0
    %98 = vmatprep.subr.bf16.mxu0 0
    %99 = vmatpush2.bf16.msra.mxu0 0
    %100 = vmatprep.mubr.bf16.mxu0 0
    %101 = vmatmul.mubr.bf16.gmra.mxu0 %v66
    %v102 = vpop.f32.mrf.mxu0
    %v103 = vadd.f32 0.0, %v102
    %v104 = vpop.f32.mrf.mxu0
    %v105 = vadd.f32 0.0, %v104
    %v106 = vpop.f32.mrf.mxu0
    %v107 = vadd.f32 0.0, %v106
    %v108 = vpop.f32.mrf.mxu0
    %v109 = vadd.f32 0.0, %v108
    %110 = vdwg.mxu0
    %111 = vmatprep.subr.bf16.mxu0 0
    %112 = vmatpush1.bf16.msra.mxu0 0
    %113 = vmatprep.subr.bf16.mxu0 0
    %114 = vmatpush1.bf16.msra.mxu0 0
    %115 = vmatprep.subr.bf16.mxu0 0
    %116 = vmatpush1.bf16.msra.mxu0 0
    %117 = vmatprep.subr.bf16.mxu0 0
    %118 = vmatpush1.bf16.msra.mxu0 0
    %119 = vmatprep.subr.bf16.mxu0 0
    %120 = vmatpush1.bf16.msra.mxu0 0
    %121 = vmatprep.subr.bf16.mxu0 0
    %122 = vmatpush1.bf16.msra.mxu0 0
    %123 = vmatprep.subr.bf16.mxu0 0
    %124 = vmatpush1.bf16.msra.mxu0 0
    %125 = vmatprep.subr.bf16.mxu0 %v59
    %126 = vmatpush1.bf16.msra.mxu0 %v58
    %127 = vmatprep.subr.bf16.mxu0 0
    %128 = vmatpush2.bf16.msra.mxu0 0
    %129 = vmatprep.subr.bf16.mxu0 0
    %130 = vmatpush2.bf16.msra.mxu0 0
    %131 = vmatprep.subr.bf16.mxu0 0
    %132 = vmatpush2.bf16.msra.mxu0 0
    %133 = vmatprep.subr.bf16.mxu0 0
    %134 = vmatpush2.bf16.msra.mxu0 0
    %135 = vmatprep.subr.bf16.mxu0 0
    %136 = vmatpush2.bf16.msra.mxu0 0
    %137 = vmatprep.subr.bf16.mxu0 0
    %138 = vmatpush2.bf16.msra.mxu0 0
    %139 = vmatprep.subr.bf16.mxu0 0
    %140 = vmatpush2.bf16.msra.mxu0 0
    %141 = vmatprep.subr.bf16.mxu0 0
    %142 = vmatpush2.bf16.msra.mxu0 0
    %143 = vmatprep.mubr.bf16.mxu0 0
    %144 = vmatmul.mubr.bf16.gmra.mxu0 %v66
    %v145 = vpop.f32.mrf.mxu0
    %v146 = vadd.f32 0.0, %v145
    %v147 = vpop.f32.mrf.mxu0
    %v148 = vadd.f32 0.0, %v147
    %v149 = vpop.f32.mrf.mxu0
    %v150 = vadd.f32 0.0, %v149
    %v151 = vpop.f32.mrf.mxu0
    %v152 = vadd.f32 0.0, %v151
    %153 = vdwg.mxu0
    %v155 = vlaneseq
    %v156 = vshrl.u32 %v155, 7
    %v157 = vsub.s32 0, %v156
    %v158 = vrot.slane %v31, %v157
    %v159 = vlaneseq
    %v160 = vshrl.u32 %v159, 7
    %v161 = vsub.s32 1, %v160
    %v162 = vrot.slane %v31, %v161
    %v163 = vlaneseq
    %v164 = vshrl.u32 %v163, 7
    %v165 = vsub.s32 2, %v164
    %v166 = vrot.slane %v31, %v165
    %v167 = vlaneseq
    %v168 = vshrl.u32 %v167, 7
    %v169 = vsub.s32 3, %v168
    %v170 = vrot.slane %v31, %v169
    %v175 = vadd.f32 %v158, %v103
    %v176 = vadd.f32 %v162, %v105
    %v177 = vadd.f32 %v166, %v146
    %v178 = vadd.f32 %v170, %v148
    %v179 = vadd.f32 %v158, %v107
    %v180 = vadd.f32 %v162, %v109
    %v181 = vadd.f32 %v166, %v150
    %v182 = vadd.f32 %v170, %v152
    %s183 = scalar_lea.vmem %s1, 128
    %v184 = vld [vmem:[%s183] sm:$0xff]
    %v185 = vld [vmem:[%s183 + $0x8] sm:$0xff]
    %v186 = vld [vmem:[%s183 + $0x10] sm:$0xff]
    %v187 = vld [vmem:[%s183 + $0x18] sm:$0xff]
    %v192 = vunpack.c.l.b16 %v184
    %v193 = vunpack.c.h.b16 %v184
    %v194 = vunpack.c.l.b16 %v185
    %v195 = vunpack.c.h.b16 %v185
    %v196 = vunpack.c.l.b16 %v186
    %v197 = vunpack.c.h.b16 %v186
    %v198 = vunpack.c.l.b16 %v187
    %v199 = vunpack.c.h.b16 %v187
    %v200 = vpack.c.b16 %v196, %v192
    %v201 = vpack.c.b16 %v197, %v193
    %v202 = vpack.c.b16 %v198, %v194
    %v203 = vpack.c.b16 %v199, %v195
    %208 = vmatprep.subr.bf16.mxu0 0
    %209 = vmatpush1.bf16.msra.mxu0 0
    %210 = vmatprep.subr.bf16.mxu0 0
    %211 = vmatpush1.bf16.msra.mxu0 0
    %212 = vmatprep.subr.bf16.mxu0 0
    %213 = vmatpush1.bf16.msra.mxu0 0
    %214 = vmatprep.subr.bf16.mxu0 0
    %215 = vmatpush1.bf16.msra.mxu0 0
    %216 = vmatprep.subr.bf16.mxu0 0
    %217 = vmatpush1.bf16.msra.mxu0 0
    %218 = vmatprep.subr.bf16.mxu0 0
    %219 = vmatpush1.bf16.msra.mxu0 0
    %220 = vmatprep.subr.bf16.mxu0 0
    %221 = vmatpush1.bf16.msra.mxu0 0
    %222 = vmatprep.subr.bf16.mxu0 %v201
    %223 = vmatpush1.bf16.msra.mxu0 %v200
    %224 = vmatprep.subr.bf16.mxu0 0
    %225 = vmatpush2.bf16.msra.mxu0 0
    %226 = vmatprep.subr.bf16.mxu0 0
    %227 = vmatpush2.bf16.msra.mxu0 0
    %228 = vmatprep.subr.bf16.mxu0 0
    %229 = vmatpush2.bf16.msra.mxu0 0
    %230 = vmatprep.subr.bf16.mxu0 0
    %231 = vmatpush2.bf16.msra.mxu0 0
    %232 = vmatprep.subr.bf16.mxu0 0
    %233 = vmatpush2.bf16.msra.mxu0 0
    %234 = vmatprep.subr.bf16.mxu0 0
    %235 = vmatpush2.bf16.msra.mxu0 0
    %236 = vmatprep.subr.bf16.mxu0 0
    %237 = vmatpush2.bf16.msra.mxu0 0
    %238 = vmatprep.subr.bf16.mxu0 0
    %239 = vmatpush2.bf16.msra.mxu0 0
    %240 = vmatprep.mubr.bf16.mxu0 0
    %241 = vmatmul.mubr.bf16.gmra.mxu0 %v66
    %v242 = vpop.f32.mrf.mxu0
    %v243 = vadd.f32 0.0, %v242
    %v244 = vpop.f32.mrf.mxu0
    %v245 = vadd.f32 0.0, %v244
    %v246 = vpop.f32.mrf.mxu0
    %v247 = vadd.f32 0.0, %v246
    %v248 = vpop.f32.mrf.mxu0
    %v249 = vadd.f32 0.0, %v248
    %250 = vdwg.mxu0
    %251 = vmatprep.subr.bf16.mxu0 0
    %252 = vmatpush1.bf16.msra.mxu0 0
    %253 = vmatprep.subr.bf16.mxu0 0
    %254 = vmatpush1.bf16.msra.mxu0 0
    %255 = vmatprep.subr.bf16.mxu0 0
    %256 = vmatpush1.bf16.msra.mxu0 0
    %257 = vmatprep.subr.bf16.mxu0 0
    %258 = vmatpush1.bf16.msra.mxu0 0
    %259 = vmatprep.subr.bf16.mxu0 0
    %260 = vmatpush1.bf16.msra.mxu0 0
    %261 = vmatprep.subr.bf16.mxu0 0
    %262 = vmatpush1.bf16.msra.mxu0 0
    %263 = vmatprep.subr.bf16.mxu0 0
    %264 = vmatpush1.bf16.msra.mxu0 0
    %265 = vmatprep.subr.bf16.mxu0 %v203
    %266 = vmatpush1.bf16.msra.mxu0 %v202
    %267 = vmatprep.subr.bf16.mxu0 0
    %268 = vmatpush2.bf16.msra.mxu0 0
    %269 = vmatprep.subr.bf16.mxu0 0
    %270 = vmatpush2.bf16.msra.mxu0 0
    %271 = vmatprep.subr.bf16.mxu0 0
    %272 = vmatpush2.bf16.msra.mxu0 0
    %273 = vmatprep.subr.bf16.mxu0 0
    %274 = vmatpush2.bf16.msra.mxu0 0
    %275 = vmatprep.subr.bf16.mxu0 0
    %276 = vmatpush2.bf16.msra.mxu0 0
    %277 = vmatprep.subr.bf16.mxu0 0
    %278 = vmatpush2.bf16.msra.mxu0 0
    %279 = vmatprep.subr.bf16.mxu0 0
    %280 = vmatpush2.bf16.msra.mxu0 0
    %281 = vmatprep.subr.bf16.mxu0 0
    %282 = vmatpush2.bf16.msra.mxu0 0
    %283 = vmatprep.mubr.bf16.mxu0 0
    %284 = vmatmul.mubr.bf16.gmra.mxu0 %v66
    %v285 = vpop.f32.mrf.mxu0
    %v286 = vadd.f32 0.0, %v285
    %v287 = vpop.f32.mrf.mxu0
    %v288 = vadd.f32 0.0, %v287
    %v289 = vpop.f32.mrf.mxu0
    %v290 = vadd.f32 0.0, %v289
    %v291 = vpop.f32.mrf.mxu0
    %v292 = vadd.f32 0.0, %v291
    %293 = vdwg.mxu0
    %vm302 = vcmask 1046528
    %v303 = vrot.slane %v243, 1
    %v304 = vrot.slane %v247, 1
    %v305 = vsel %vm302, %v303, %v304
    %v306 = vrot.slane %v245, 1
    %v307 = vrot.slane %v249, 1
    %v308 = vsel %vm302, %v306, %v307
    %v309 = vrot.slane %v286, 1
    %v310 = vrot.slane %v290, 1
    %v311 = vsel %vm302, %v309, %v310
    %v312 = vrot.slane %v288, 1
    %v313 = vrot.slane %v292, 1
    %v314 = vsel %vm302, %v312, %v313
    %v323 = vadd.f32 %v175, %v305
    %v324 = vadd.f32 %v176, %v308
    %v325 = vadd.f32 %v177, %v311
    %v326 = vadd.f32 %v178, %v314
    %v327 = vadd.f32 %v179, %v304
    %v328 = vadd.f32 %v180, %v307
    %v329 = vadd.f32 %v181, %v310
    %v330 = vadd.f32 %v182, %v313
    %s331 = scalar_lea.vmem %s1, 256
    %v332 = vld [vmem:[%s331] sm:$0xff]
    %v333 = vld [vmem:[%s331 + $0x8] sm:$0xff]
    %v334 = vld [vmem:[%s331 + $0x10] sm:$0xff]
    %v335 = vld [vmem:[%s331 + $0x18] sm:$0xff]
    %v340 = vunpack.c.l.b16 %v332
    %v341 = vunpack.c.h.b16 %v332
    %v342 = vunpack.c.l.b16 %v333
    %v343 = vunpack.c.h.b16 %v333
    %v344 = vunpack.c.l.b16 %v334
    %v345 = vunpack.c.h.b16 %v334
    %v346 = vunpack.c.l.b16 %v335
    %v347 = vunpack.c.h.b16 %v335
    %v348 = vpack.c.b16 %v344, %v340
    %v349 = vpack.c.b16 %v345, %v341
    %v350 = vpack.c.b16 %v346, %v342
    %v351 = vpack.c.b16 %v347, %v343
    %356 = vmatprep.subr.bf16.mxu0 0
    %357 = vmatpush1.bf16.msra.mxu0 0
    %358 = vmatprep.subr.bf16.mxu0 0
    %359 = vmatpush1.bf16.msra.mxu0 0
    %360 = vmatprep.subr.bf16.mxu0 0
    %361 = vmatpush1.bf16.msra.mxu0 0
    %362 = vmatprep.subr.bf16.mxu0 0
    %363 = vmatpush1.bf16.msra.mxu0 0
    %364 = vmatprep.subr.bf16.mxu0 0
    %365 = vmatpush1.bf16.msra.mxu0 0
    %366 = vmatprep.subr.bf16.mxu0 0
    %367 = vmatpush1.bf16.msra.mxu0 0
    %368 = vmatprep.subr.bf16.mxu0 0
    %369 = vmatpush1.bf16.msra.mxu0 0
    %370 = vmatprep.subr.bf16.mxu0 %v349
    %371 = vmatpush1.bf16.msra.mxu0 %v348
    %372 = vmatprep.subr.bf16.mxu0 0
    %373 = vmatpush2.bf16.msra.mxu0 0
    %374 = vmatprep.subr.bf16.mxu0 0
    %375 = vmatpush2.bf16.msra.mxu0 0
    %376 = vmatprep.subr.bf16.mxu0 0
    %377 = vmatpush2.bf16.msra.mxu0 0
    %378 = vmatprep.subr.bf16.mxu0 0
    %379 = vmatpush2.bf16.msra.mxu0 0
    %380 = vmatprep.subr.bf16.mxu0 0
    %381 = vmatpush2.bf16.msra.mxu0 0
    %382 = vmatprep.subr.bf16.mxu0 0
    %383 = vmatpush2.bf16.msra.mxu0 0
    %384 = vmatprep.subr.bf16.mxu0 0
    %385 = vmatpush2.bf16.msra.mxu0 0
    %386 = vmatprep.subr.bf16.mxu0 0
    %387 = vmatpush2.bf16.msra.mxu0 0
    %388 = vmatprep.mubr.bf16.mxu0 0
    %389 = vmatmul.mubr.bf16.gmra.mxu0 %v66
    %v390 = vpop.f32.mrf.mxu0
    %v391 = vadd.f32 0.0, %v390
    %v392 = vpop.f32.mrf.mxu0
    %v393 = vadd.f32 0.0, %v392
    %v394 = vpop.f32.mrf.mxu0
    %v395 = vadd.f32 0.0, %v394
    %v396 = vpop.f32.mrf.mxu0
    %v397 = vadd.f32 0.0, %v396
    %398 = vdwg.mxu0
    %399 = vmatprep.subr.bf16.mxu0 0
    %400 = vmatpush1.bf16.msra.mxu0 0
    %401 = vmatprep.subr.bf16.mxu0 0
    %402 = vmatpush1.bf16.msra.mxu0 0
    %403 = vmatprep.subr.bf16.mxu0 0
    %404 = vmatpush1.bf16.msra.mxu0 0
    %405 = vmatprep.subr.bf16.mxu0 0
    %406 = vmatpush1.bf16.msra.mxu0 0
    %407 = vmatprep.subr.bf16.mxu0 0
    %408 = vmatpush1.bf16.msra.mxu0 0
    %409 = vmatprep.subr.bf16.mxu0 0
    %410 = vmatpush1.bf16.msra.mxu0 0
    %411 = vmatprep.subr.bf16.mxu0 0
    %412 = vmatpush1.bf16.msra.mxu0 0
    %413 = vmatprep.subr.bf16.mxu0 %v351
    %414 = vmatpush1.bf16.msra.mxu0 %v350
    %415 = vmatprep.subr.bf16.mxu0 0
    %416 = vmatpush2.bf16.msra.mxu0 0
    %417 = vmatprep.subr.bf16.mxu0 0
    %418 = vmatpush2.bf16.msra.mxu0 0
    %419 = vmatprep.subr.bf16.mxu0 0
    %420 = vmatpush2.bf16.msra.mxu0 0
    %421 = vmatprep.subr.bf16.mxu0 0
    %422 = vmatpush2.bf16.msra.mxu0 0
    %423 = vmatprep.subr.bf16.mxu0 0
    %424 = vmatpush2.bf16.msra.mxu0 0
    %425 = vmatprep.subr.bf16.mxu0 0
    %426 = vmatpush2.bf16.msra.mxu0 0
    %427 = vmatprep.subr.bf16.mxu0 0
    %428 = vmatpush2.bf16.msra.mxu0 0
    %429 = vmatprep.subr.bf16.mxu0 0
    %430 = vmatpush2.bf16.msra.mxu0 0
    %431 = vmatprep.mubr.bf16.mxu0 0
    %432 = vmatmul.mubr.bf16.gmra.mxu0 %v66
    %v433 = vpop.f32.mrf.mxu0
    %v434 = vadd.f32 0.0, %v433
    %v435 = vpop.f32.mrf.mxu0
    %v436 = vadd.f32 0.0, %v435
    %v437 = vpop.f32.mrf.mxu0
    %v438 = vadd.f32 0.0, %v437
    %v439 = vpop.f32.mrf.mxu0
    %v440 = vadd.f32 0.0, %v439
    %441 = vdwg.mxu0
    %vm450 = vcmask 1045504
    %v451 = vrot.slane %v391, 2
    %v452 = vrot.slane %v395, 2
    %v453 = vsel %vm450, %v451, %v452
    %v454 = vrot.slane %v393, 2
    %v455 = vrot.slane %v397, 2
    %v456 = vsel %vm450, %v454, %v455
    %v457 = vrot.slane %v434, 2
    %v458 = vrot.slane %v438, 2
    %v459 = vsel %vm450, %v457, %v458
    %v460 = vrot.slane %v436, 2
    %v461 = vrot.slane %v440, 2
    %v462 = vsel %vm450, %v460, %v461
    %v471 = vadd.f32 %v323, %v453
    %v472 = vadd.f32 %v324, %v456
    %v473 = vadd.f32 %v325, %v459
    %v474 = vadd.f32 %v326, %v462
    %v475 = vadd.f32 %v327, %v452
    %v476 = vadd.f32 %v328, %v455
    %v477 = vadd.f32 %v329, %v458
    %v478 = vadd.f32 %v330, %v461
    %s479 = scalar_lea.vmem %s0, 16
    %v480 = vld [vmem:[%s479] sm:$0xff]
    %v481 = vld [vmem:[%s479 + $0x8] sm:$0xff]
    %v482 = vpack.c.bf16 %v481, %v480
    %v483 = vld [vmem:[%s1 + $0x20] sm:$0xff]
    %v484 = vld [vmem:[%s1 + $0x28] sm:$0xff]
    %v485 = vld [vmem:[%s1 + $0x30] sm:$0xff]
    %v486 = vld [vmem:[%s1 + $0x38] sm:$0xff]
    %v491 = vunpack.c.l.b16 %v483
    %v492 = vunpack.c.h.b16 %v483
    %v493 = vunpack.c.l.b16 %v484
    %v494 = vunpack.c.h.b16 %v484
    %v495 = vunpack.c.l.b16 %v485
    %v496 = vunpack.c.h.b16 %v485
    %v497 = vunpack.c.l.b16 %v486
    %v498 = vunpack.c.h.b16 %v486
    %v499 = vpack.c.b16 %v495, %v491
    %v500 = vpack.c.b16 %v496, %v492
    %v501 = vpack.c.b16 %v497, %v493
    %v502 = vpack.c.b16 %v498, %v494
    %v508 = vsel %vm64, %v482, 0
    %510 = vmatprep.subr.bf16.mxu0 0
    %511 = vmatpush1.bf16.msra.mxu0 0
    %512 = vmatprep.subr.bf16.mxu0 0
    %513 = vmatpush1.bf16.msra.mxu0 0
    %514 = vmatprep.subr.bf16.mxu0 0
    %515 = vmatpush1.bf16.msra.mxu0 0
    %516 = vmatprep.subr.bf16.mxu0 0
    %517 = vmatpush1.bf16.msra.mxu0 0
    %518 = vmatprep.subr.bf16.mxu0 0
    %519 = vmatpush1.bf16.msra.mxu0 0
    %520 = vmatprep.subr.bf16.mxu0 0
    %521 = vmatpush1.bf16.msra.mxu0 0
    %522 = vmatprep.subr.bf16.mxu0 0
    %523 = vmatpush1.bf16.msra.mxu0 0
    %524 = vmatprep.subr.bf16.mxu0 %v500
    %525 = vmatpush1.bf16.msra.mxu0 %v499
    %526 = vmatprep.subr.bf16.mxu0 0
    %527 = vmatpush2.bf16.msra.mxu0 0
    %528 = vmatprep.subr.bf16.mxu0 0
    %529 = vmatpush2.bf16.msra.mxu0 0
    %530 = vmatprep.subr.bf16.mxu0 0
    %531 = vmatpush2.bf16.msra.mxu0 0
    %532 = vmatprep.subr.bf16.mxu0 0
    %533 = vmatpush2.bf16.msra.mxu0 0
    %534 = vmatprep.subr.bf16.mxu0 0
    %535 = vmatpush2.bf16.msra.mxu0 0
    %536 = vmatprep.subr.bf16.mxu0 0
    %537 = vmatpush2.bf16.msra.mxu0 0
    %538 = vmatprep.subr.bf16.mxu0 0
    %539 = vmatpush2.bf16.msra.mxu0 0
    %540 = vmatprep.subr.bf16.mxu0 0
    %541 = vmatpush2.bf16.msra.mxu0 0
    %542 = vmatprep.mubr.bf16.mxu0 0
    %543 = vmatmul.mubr.bf16.gmra.mxu0 %v508
    %v544 = vpop.f32.mrf.mxu0
    %v545 = vadd.f32 0.0, %v544
    %v546 = vpop.f32.mrf.mxu0
    %v547 = vadd.f32 0.0, %v546
    %v548 = vpop.f32.mrf.mxu0
    %v549 = vadd.f32 0.0, %v548
    %v550 = vpop.f32.mrf.mxu0
    %v551 = vadd.f32 0.0, %v550
    %552 = vdwg.mxu0
    %553 = vmatprep.subr.bf16.mxu0 0
    %554 = vmatpush1.bf16.msra.mxu0 0
    %555 = vmatprep.subr.bf16.mxu0 0
    %556 = vmatpush1.bf16.msra.mxu0 0
    %557 = vmatprep.subr.bf16.mxu0 0
    %558 = vmatpush1.bf16.msra.mxu0 0
    %559 = vmatprep.subr.bf16.mxu0 0
    %560 = vmatpush1.bf16.msra.mxu0 0
    %561 = vmatprep.subr.bf16.mxu0 0
    %562 = vmatpush1.bf16.msra.mxu0 0
    %563 = vmatprep.subr.bf16.mxu0 0
    %564 = vmatpush1.bf16.msra.mxu0 0
    %565 = vmatprep.subr.bf16.mxu0 0
    %566 = vmatpush1.bf16.msra.mxu0 0
    %567 = vmatprep.subr.bf16.mxu0 %v502
    %568 = vmatpush1.bf16.msra.mxu0 %v501
    %569 = vmatprep.subr.bf16.mxu0 0
    %570 = vmatpush2.bf16.msra.mxu0 0
    %571 = vmatprep.subr.bf16.mxu0 0
    %572 = vmatpush2.bf16.msra.mxu0 0
    %573 = vmatprep.subr.bf16.mxu0 0
    %574 = vmatpush2.bf16.msra.mxu0 0
    %575 = vmatprep.subr.bf16.mxu0 0
    %576 = vmatpush2.bf16.msra.mxu0 0
    %577 = vmatprep.subr.bf16.mxu0 0
    %578 = vmatpush2.bf16.msra.mxu0 0
    %579 = vmatprep.subr.bf16.mxu0 0
    %580 = vmatpush2.bf16.msra.mxu0 0
    %581 = vmatprep.subr.bf16.mxu0 0
    %582 = vmatpush2.bf16.msra.mxu0 0
    %583 = vmatprep.subr.bf16.mxu0 0
    %584 = vmatpush2.bf16.msra.mxu0 0
    %585 = vmatprep.mubr.bf16.mxu0 0
    %586 = vmatmul.mubr.bf16.gmra.mxu0 %v508
    %v587 = vpop.f32.mrf.mxu0
    %v588 = vadd.f32 0.0, %v587
    %v589 = vpop.f32.mrf.mxu0
    %v590 = vadd.f32 0.0, %v589
    %v591 = vpop.f32.mrf.mxu0
    %v592 = vadd.f32 0.0, %v591
    %v593 = vpop.f32.mrf.mxu0
    %v594 = vadd.f32 0.0, %v593
    %595 = vdwg.mxu0
    %v596 = vadd.f32 %v471, %v545
    %v597 = vadd.f32 %v472, %v547
    %v598 = vadd.f32 %v473, %v588
    %v599 = vadd.f32 %v474, %v590
    %v600 = vadd.f32 %v475, %v549
    %v601 = vadd.f32 %v476, %v551
    %v602 = vadd.f32 %v477, %v592
    %v603 = vadd.f32 %v478, %v594
    %v604 = vld [vmem:[%s183 + $0x20] sm:$0xff]
    %v605 = vld [vmem:[%s183 + $0x28] sm:$0xff]
    %v606 = vld [vmem:[%s183 + $0x30] sm:$0xff]
    %v607 = vld [vmem:[%s183 + $0x38] sm:$0xff]
    %v612 = vunpack.c.l.b16 %v604
    %v613 = vunpack.c.h.b16 %v604
    %v614 = vunpack.c.l.b16 %v605
    %v615 = vunpack.c.h.b16 %v605
    %v616 = vunpack.c.l.b16 %v606
    %v617 = vunpack.c.h.b16 %v606
    %v618 = vunpack.c.l.b16 %v607
    %v619 = vunpack.c.h.b16 %v607
    %v620 = vpack.c.b16 %v616, %v612
    %v621 = vpack.c.b16 %v617, %v613
    %v622 = vpack.c.b16 %v618, %v614
    %v623 = vpack.c.b16 %v619, %v615
    %628 = vmatprep.subr.bf16.mxu0 0
    %629 = vmatpush1.bf16.msra.mxu0 0
    %630 = vmatprep.subr.bf16.mxu0 0
    %631 = vmatpush1.bf16.msra.mxu0 0
    %632 = vmatprep.subr.bf16.mxu0 0
    %633 = vmatpush1.bf16.msra.mxu0 0
    %634 = vmatprep.subr.bf16.mxu0 0
    %635 = vmatpush1.bf16.msra.mxu0 0
    %636 = vmatprep.subr.bf16.mxu0 0
    %637 = vmatpush1.bf16.msra.mxu0 0
    %638 = vmatprep.subr.bf16.mxu0 0
    %639 = vmatpush1.bf16.msra.mxu0 0
    %640 = vmatprep.subr.bf16.mxu0 0
    %641 = vmatpush1.bf16.msra.mxu0 0
    %642 = vmatprep.subr.bf16.mxu0 %v621
    %643 = vmatpush1.bf16.msra.mxu0 %v620
    %644 = vmatprep.subr.bf16.mxu0 0
    %645 = vmatpush2.bf16.msra.mxu0 0
    %646 = vmatprep.subr.bf16.mxu0 0
    %647 = vmatpush2.bf16.msra.mxu0 0
    %648 = vmatprep.subr.bf16.mxu0 0
    %649 = vmatpush2.bf16.msra.mxu0 0
    %650 = vmatprep.subr.bf16.mxu0 0
    %651 = vmatpush2.bf16.msra.mxu0 0
    %652 = vmatprep.subr.bf16.mxu0 0
    %653 = vmatpush2.bf16.msra.mxu0 0
    %654 = vmatprep.subr.bf16.mxu0 0
    %655 = vmatpush2.bf16.msra.mxu0 0
    %656 = vmatprep.subr.bf16.mxu0 0
    %657 = vmatpush2.bf16.msra.mxu0 0
    %658 = vmatprep.subr.bf16.mxu0 0
    %659 = vmatpush2.bf16.msra.mxu0 0
    %660 = vmatprep.mubr.bf16.mxu0 0
    %661 = vmatmul.mubr.bf16.gmra.mxu0 %v508
    %v662 = vpop.f32.mrf.mxu0
    %v663 = vadd.f32 0.0, %v662
    %v664 = vpop.f32.mrf.mxu0
    %v665 = vadd.f32 0.0, %v664
    %v666 = vpop.f32.mrf.mxu0
    %v667 = vadd.f32 0.0, %v666
    %v668 = vpop.f32.mrf.mxu0
    %v669 = vadd.f32 0.0, %v668
    %670 = vdwg.mxu0
    %671 = vmatprep.subr.bf16.mxu0 0
    %672 = vmatpush1.bf16.msra.mxu0 0
    %673 = vmatprep.subr.bf16.mxu0 0
    %674 = vmatpush1.bf16.msra.mxu0 0
    %675 = vmatprep.subr.bf16.mxu0 0
    %676 = vmatpush1.bf16.msra.mxu0 0
    %677 = vmatprep.subr.bf16.mxu0 0
    %678 = vmatpush1.bf16.msra.mxu0 0
    %679 = vmatprep.subr.bf16.mxu0 0
    %680 = vmatpush1.bf16.msra.mxu0 0
    %681 = vmatprep.subr.bf16.mxu0 0
    %682 = vmatpush1.bf16.msra.mxu0 0
    %683 = vmatprep.subr.bf16.mxu0 0
    %684 = vmatpush1.bf16.msra.mxu0 0
    %685 = vmatprep.subr.bf16.mxu0 %v623
    %686 = vmatpush1.bf16.msra.mxu0 %v622
    %687 = vmatprep.subr.bf16.mxu0 0
    %688 = vmatpush2.bf16.msra.mxu0 0
    %689 = vmatprep.subr.bf16.mxu0 0
    %690 = vmatpush2.bf16.msra.mxu0 0
    %691 = vmatprep.subr.bf16.mxu0 0
    %692 = vmatpush2.bf16.msra.mxu0 0
    %693 = vmatprep.subr.bf16.mxu0 0
    %694 = vmatpush2.bf16.msra.mxu0 0
    %695 = vmatprep.subr.bf16.mxu0 0
    %696 = vmatpush2.bf16.msra.mxu0 0
    %697 = vmatprep.subr.bf16.mxu0 0
    %698 = vmatpush2.bf16.msra.mxu0 0
    %699 = vmatprep.subr.bf16.mxu0 0
    %700 = vmatpush2.bf16.msra.mxu0 0
    %701 = vmatprep.subr.bf16.mxu0 0
    %702 = vmatpush2.bf16.msra.mxu0 0
    %703 = vmatprep.mubr.bf16.mxu0 0
    %704 = vmatmul.mubr.bf16.gmra.mxu0 %v508
    %v705 = vpop.f32.mrf.mxu0
    %v706 = vadd.f32 0.0, %v705
    %v707 = vpop.f32.mrf.mxu0
    %v708 = vadd.f32 0.0, %v707
    %v709 = vpop.f32.mrf.mxu0
    %v710 = vadd.f32 0.0, %v709
    %v711 = vpop.f32.mrf.mxu0
    %v712 = vadd.f32 0.0, %v711
    %713 = vdwg.mxu0
    %v722 = vrot.slane %v663, 1
    %v723 = vrot.slane %v667, 1
    %v724 = vsel %vm302, %v722, %v723
    %v725 = vrot.slane %v665, 1
    %v726 = vrot.slane %v669, 1
    %v727 = vsel %vm302, %v725, %v726
    %v728 = vrot.slane %v706, 1
    %v729 = vrot.slane %v710, 1
    %v730 = vsel %vm302, %v728, %v729
    %v731 = vrot.slane %v708, 1
    %v732 = vrot.slane %v712, 1
    %v733 = vsel %vm302, %v731, %v732
    %v742 = vadd.f32 %v596, %v724
    %v743 = vadd.f32 %v597, %v727
    %v744 = vadd.f32 %v598, %v730
    %v745 = vadd.f32 %v599, %v733
    %v746 = vadd.f32 %v600, %v723
    %v747 = vadd.f32 %v601, %v726
    %v748 = vadd.f32 %v602, %v729
    %v749 = vadd.f32 %v603, %v732
    %v750 = vld [vmem:[%s331 + $0x20] sm:$0xff]
    %v751 = vld [vmem:[%s331 + $0x28] sm:$0xff]
    %v752 = vld [vmem:[%s331 + $0x30] sm:$0xff]
    %v753 = vld [vmem:[%s331 + $0x38] sm:$0xff]
    %v758 = vunpack.c.l.b16 %v750
    %v759 = vunpack.c.h.b16 %v750
    %v760 = vunpack.c.l.b16 %v751
    %v761 = vunpack.c.h.b16 %v751
    %v762 = vunpack.c.l.b16 %v752
    %v763 = vunpack.c.h.b16 %v752
    %v764 = vunpack.c.l.b16 %v753
    %v765 = vunpack.c.h.b16 %v753
    %v766 = vpack.c.b16 %v762, %v758
    %v767 = vpack.c.b16 %v763, %v759
    %v768 = vpack.c.b16 %v764, %v760
    %v769 = vpack.c.b16 %v765, %v761
    %774 = vmatprep.subr.bf16.mxu0 0
    %775 = vmatpush1.bf16.msra.mxu0 0
    %776 = vmatprep.subr.bf16.mxu0 0
    %777 = vmatpush1.bf16.msra.mxu0 0
    %778 = vmatprep.subr.bf16.mxu0 0
    %779 = vmatpush1.bf16.msra.mxu0 0
    %780 = vmatprep.subr.bf16.mxu0 0
    %781 = vmatpush1.bf16.msra.mxu0 0
    %782 = vmatprep.subr.bf16.mxu0 0
    %783 = vmatpush1.bf16.msra.mxu0 0
    %784 = vmatprep.subr.bf16.mxu0 0
    %785 = vmatpush1.bf16.msra.mxu0 0
    %786 = vmatprep.subr.bf16.mxu0 0
    %787 = vmatpush1.bf16.msra.mxu0 0
    %788 = vmatprep.subr.bf16.mxu0 %v767
    %789 = vmatpush1.bf16.msra.mxu0 %v766
    %790 = vmatprep.subr.bf16.mxu0 0
    %791 = vmatpush2.bf16.msra.mxu0 0
    %792 = vmatprep.subr.bf16.mxu0 0
    %793 = vmatpush2.bf16.msra.mxu0 0
    %794 = vmatprep.subr.bf16.mxu0 0
    %795 = vmatpush2.bf16.msra.mxu0 0
    %796 = vmatprep.subr.bf16.mxu0 0
    %797 = vmatpush2.bf16.msra.mxu0 0
    %798 = vmatprep.subr.bf16.mxu0 0
    %799 = vmatpush2.bf16.msra.mxu0 0
    %800 = vmatprep.subr.bf16.mxu0 0
    %801 = vmatpush2.bf16.msra.mxu0 0
    %802 = vmatprep.subr.bf16.mxu0 0
    %803 = vmatpush2.bf16.msra.mxu0 0
    %804 = vmatprep.subr.bf16.mxu0 0
    %805 = vmatpush2.bf16.msra.mxu0 0
    %806 = vmatprep.mubr.bf16.mxu0 0
    %807 = vmatmul.mubr.bf16.gmra.mxu0 %v508
    %v808 = vpop.f32.mrf.mxu0
    %v809 = vadd.f32 0.0, %v808
    %v810 = vpop.f32.mrf.mxu0
    %v811 = vadd.f32 0.0, %v810
    %v812 = vpop.f32.mrf.mxu0
    %v813 = vadd.f32 0.0, %v812
    %v814 = vpop.f32.mrf.mxu0
    %v815 = vadd.f32 0.0, %v814
    %816 = vdwg.mxu0
    %817 = vmatprep.subr.bf16.mxu0 0
    %818 = vmatpush1.bf16.msra.mxu0 0
    %819 = vmatprep.subr.bf16.mxu0 0
    %820 = vmatpush1.bf16.msra.mxu0 0
    %821 = vmatprep.subr.bf16.mxu0 0
    %822 = vmatpush1.bf16.msra.mxu0 0
    %823 = vmatprep.subr.bf16.mxu0 0
    %824 = vmatpush1.bf16.msra.mxu0 0
    %825 = vmatprep.subr.bf16.mxu0 0
    %826 = vmatpush1.bf16.msra.mxu0 0
    %827 = vmatprep.subr.bf16.mxu0 0
    %828 = vmatpush1.bf16.msra.mxu0 0
    %829 = vmatprep.subr.bf16.mxu0 0
    %830 = vmatpush1.bf16.msra.mxu0 0
    %831 = vmatprep.subr.bf16.mxu0 %v769
    %832 = vmatpush1.bf16.msra.mxu0 %v768
    %833 = vmatprep.subr.bf16.mxu0 0
    %834 = vmatpush2.bf16.msra.mxu0 0
    %835 = vmatprep.subr.bf16.mxu0 0
    %836 = vmatpush2.bf16.msra.mxu0 0
    %837 = vmatprep.subr.bf16.mxu0 0
    %838 = vmatpush2.bf16.msra.mxu0 0
    %839 = vmatprep.subr.bf16.mxu0 0
    %840 = vmatpush2.bf16.msra.mxu0 0
    %841 = vmatprep.subr.bf16.mxu0 0
    %842 = vmatpush2.bf16.msra.mxu0 0
    %843 = vmatprep.subr.bf16.mxu0 0
    %844 = vmatpush2.bf16.msra.mxu0 0
    %845 = vmatprep.subr.bf16.mxu0 0
    %846 = vmatpush2.bf16.msra.mxu0 0
    %847 = vmatprep.subr.bf16.mxu0 0
    %848 = vmatpush2.bf16.msra.mxu0 0
    %849 = vmatprep.mubr.bf16.mxu0 0
    %850 = vmatmul.mubr.bf16.gmra.mxu0 %v508
    %v851 = vpop.f32.mrf.mxu0
    %v852 = vadd.f32 0.0, %v851
    %v853 = vpop.f32.mrf.mxu0
    %v854 = vadd.f32 0.0, %v853
    %v855 = vpop.f32.mrf.mxu0
    %v856 = vadd.f32 0.0, %v855
    %v857 = vpop.f32.mrf.mxu0
    %v858 = vadd.f32 0.0, %v857
    %859 = vdwg.mxu0
    %v868 = vrot.slane %v809, 2
    %v869 = vrot.slane %v813, 2
    %v870 = vsel %vm450, %v868, %v869
    %v871 = vrot.slane %v811, 2
    %v872 = vrot.slane %v815, 2
    %v873 = vsel %vm450, %v871, %v872
    %v874 = vrot.slane %v852, 2
    %v875 = vrot.slane %v856, 2
    %v876 = vsel %vm450, %v874, %v875
    %v877 = vrot.slane %v854, 2
    %v878 = vrot.slane %v858, 2
    %v879 = vsel %vm450, %v877, %v878
    %v888 = vadd.f32 %v742, %v870
    %v889 = vadd.f32 %v743, %v873
    %v890 = vadd.f32 %v744, %v876
    %v891 = vadd.f32 %v745, %v879
    %v892 = vadd.f32 %v746, %v869
    %v893 = vadd.f32 %v747, %v872
    %v894 = vadd.f32 %v748, %v875
    %v895 = vadd.f32 %v749, %v878
    %s896 = scalar_lea.vmem %s0, 32
    %v897 = vld [vmem:[%s896] sm:$0xff]
    %v898 = vld [vmem:[%s896 + $0x8] sm:$0xff]
    %v899 = vpack.c.bf16 %v898, %v897
    %v900 = vld [vmem:[%s1 + $0x40] sm:$0xff]
    %v901 = vld [vmem:[%s1 + $0x48] sm:$0xff]
    %v902 = vld [vmem:[%s1 + $0x50] sm:$0xff]
    %v903 = vld [vmem:[%s1 + $0x58] sm:$0xff]
    %v908 = vunpack.c.l.b16 %v900
    %v909 = vunpack.c.h.b16 %v900
    %v910 = vunpack.c.l.b16 %v901
    %v911 = vunpack.c.h.b16 %v901
    %v912 = vunpack.c.l.b16 %v902
    %v913 = vunpack.c.h.b16 %v902
    %v914 = vunpack.c.l.b16 %v903
    %v915 = vunpack.c.h.b16 %v903
    %v916 = vpack.c.b16 %v912, %v908
    %v917 = vpack.c.b16 %v913, %v909
    %v918 = vpack.c.b16 %v914, %v910
    %v919 = vpack.c.b16 %v915, %v911
    %v925 = vsel %vm64, %v899, 0
    %927 = vmatprep.subr.bf16.mxu0 0
    %928 = vmatpush1.bf16.msra.mxu0 0
    %929 = vmatprep.subr.bf16.mxu0 0
    %930 = vmatpush1.bf16.msra.mxu0 0
    %931 = vmatprep.subr.bf16.mxu0 0
    %932 = vmatpush1.bf16.msra.mxu0 0
    %933 = vmatprep.subr.bf16.mxu0 0
    %934 = vmatpush1.bf16.msra.mxu0 0
    %935 = vmatprep.subr.bf16.mxu0 0
    %936 = vmatpush1.bf16.msra.mxu0 0
    %937 = vmatprep.subr.bf16.mxu0 0
    %938 = vmatpush1.bf16.msra.mxu0 0
    %939 = vmatprep.subr.bf16.mxu0 0
    %940 = vmatpush1.bf16.msra.mxu0 0
    %941 = vmatprep.subr.bf16.mxu0 %v917
    %942 = vmatpush1.bf16.msra.mxu0 %v916
    %943 = vmatprep.subr.bf16.mxu0 0
    %944 = vmatpush2.bf16.msra.mxu0 0
    %945 = vmatprep.subr.bf16.mxu0 0
    %946 = vmatpush2.bf16.msra.mxu0 0
    %947 = vmatprep.subr.bf16.mxu0 0
    %948 = vmatpush2.bf16.msra.mxu0 0
    %949 = vmatprep.subr.bf16.mxu0 0
    %950 = vmatpush2.bf16.msra.mxu0 0
    %951 = vmatprep.subr.bf16.mxu0 0
    %952 = vmatpush2.bf16.msra.mxu0 0
    %953 = vmatprep.subr.bf16.mxu0 0
    %954 = vmatpush2.bf16.msra.mxu0 0
    %955 = vmatprep.subr.bf16.mxu0 0
    %956 = vmatpush2.bf16.msra.mxu0 0
    %957 = vmatprep.subr.bf16.mxu0 0
    %958 = vmatpush2.bf16.msra.mxu0 0
    %959 = vmatprep.mubr.bf16.mxu0 0
    %960 = vmatmul.mubr.bf16.gmra.mxu0 %v925
    %v961 = vpop.f32.mrf.mxu0
    %v962 = vadd.f32 0.0, %v961
    %v963 = vpop.f32.mrf.mxu0
    %v964 = vadd.f32 0.0, %v963
    %v965 = vpop.f32.mrf.mxu0
    %v966 = vadd.f32 0.0, %v965
    %v967 = vpop.f32.mrf.mxu0
    %v968 = vadd.f32 0.0, %v967
    %969 = vdwg.mxu0
    %970 = vmatprep.subr.bf16.mxu0 0
    %971 = vmatpush1.bf16.msra.mxu0 0
    %972 = vmatprep.subr.bf16.mxu0 0
    %973 = vmatpush1.bf16.msra.mxu0 0
    %974 = vmatprep.subr.bf16.mxu0 0
    %975 = vmatpush1.bf16.msra.mxu0 0
    %976 = vmatprep.subr.bf16.mxu0 0
    %977 = vmatpush1.bf16.msra.mxu0 0
    %978 = vmatprep.subr.bf16.mxu0 0
    %979 = vmatpush1.bf16.msra.mxu0 0
    %980 = vmatprep.subr.bf16.mxu0 0
    %981 = vmatpush1.bf16.msra.mxu0 0
    %982 = vmatprep.subr.bf16.mxu0 0
    %983 = vmatpush1.bf16.msra.mxu0 0
    %984 = vmatprep.subr.bf16.mxu0 %v919
    %985 = vmatpush1.bf16.msra.mxu0 %v918
    %986 = vmatprep.subr.bf16.mxu0 0
    %987 = vmatpush2.bf16.msra.mxu0 0
    %988 = vmatprep.subr.bf16.mxu0 0
    %989 = vmatpush2.bf16.msra.mxu0 0
    %990 = vmatprep.subr.bf16.mxu0 0
    %991 = vmatpush2.bf16.msra.mxu0 0
    %992 = vmatprep.subr.bf16.mxu0 0
    %993 = vmatpush2.bf16.msra.mxu0 0
    %994 = vmatprep.subr.bf16.mxu0 0
    %995 = vmatpush2.bf16.msra.mxu0 0
    %996 = vmatprep.subr.bf16.mxu0 0
    %997 = vmatpush2.bf16.msra.mxu0 0
    %998 = vmatprep.subr.bf16.mxu0 0
    %999 = vmatpush2.bf16.msra.mxu0 0
    %1000 = vmatprep.subr.bf16.mxu0 0
    %1001 = vmatpush2.bf16.msra.mxu0 0
    %1002 = vmatprep.mubr.bf16.mxu0 0
    %1003 = vmatmul.mubr.bf16.gmra.mxu0 %v925
    %v1004 = vpop.f32.mrf.mxu0
    %v1005 = vadd.f32 0.0, %v1004
    %v1006 = vpop.f32.mrf.mxu0
    %v1007 = vadd.f32 0.0, %v1006
    %v1008 = vpop.f32.mrf.mxu0
    %v1009 = vadd.f32 0.0, %v1008
    %v1010 = vpop.f32.mrf.mxu0
    %v1011 = vadd.f32 0.0, %v1010
    %1012 = vdwg.mxu0
    %v1013 = vadd.f32 %v888, %v962
    %v1014 = vadd.f32 %v889, %v964
    %v1015 = vadd.f32 %v890, %v1005
    %v1016 = vadd.f32 %v891, %v1007
    %v1017 = vadd.f32 %v892, %v966
    %v1018 = vadd.f32 %v893, %v968
    %v1019 = vadd.f32 %v894, %v1009
    %v1020 = vadd.f32 %v895, %v1011
    %v1021 = vld [vmem:[%s183 + $0x40] sm:$0xff]
    %v1022 = vld [vmem:[%s183 + $0x48] sm:$0xff]
    %v1023 = vld [vmem:[%s183 + $0x50] sm:$0xff]
    %v1024 = vld [vmem:[%s183 + $0x58] sm:$0xff]
    %v1029 = vunpack.c.l.b16 %v1021
    %v1030 = vunpack.c.h.b16 %v1021
    %v1031 = vunpack.c.l.b16 %v1022
    %v1032 = vunpack.c.h.b16 %v1022
    %v1033 = vunpack.c.l.b16 %v1023
    %v1034 = vunpack.c.h.b16 %v1023
    %v1035 = vunpack.c.l.b16 %v1024
    %v1036 = vunpack.c.h.b16 %v1024
    %v1037 = vpack.c.b16 %v1033, %v1029
    %v1038 = vpack.c.b16 %v1034, %v1030
    %v1039 = vpack.c.b16 %v1035, %v1031
    %v1040 = vpack.c.b16 %v1036, %v1032
    %1045 = vmatprep.subr.bf16.mxu0 0
    %1046 = vmatpush1.bf16.msra.mxu0 0
    %1047 = vmatprep.subr.bf16.mxu0 0
    %1048 = vmatpush1.bf16.msra.mxu0 0
    %1049 = vmatprep.subr.bf16.mxu0 0
    %1050 = vmatpush1.bf16.msra.mxu0 0
    %1051 = vmatprep.subr.bf16.mxu0 0
    %1052 = vmatpush1.bf16.msra.mxu0 0
    %1053 = vmatprep.subr.bf16.mxu0 0
    %1054 = vmatpush1.bf16.msra.mxu0 0
    %1055 = vmatprep.subr.bf16.mxu0 0
    %1056 = vmatpush1.bf16.msra.mxu0 0
    %1057 = vmatprep.subr.bf16.mxu0 0
    %1058 = vmatpush1.bf16.msra.mxu0 0
    %1059 = vmatprep.subr.bf16.mxu0 %v1038
    %1060 = vmatpush1.bf16.msra.mxu0 %v1037
    %1061 = vmatprep.subr.bf16.mxu0 0
    %1062 = vmatpush2.bf16.msra.mxu0 0
    %1063 = vmatprep.subr.bf16.mxu0 0
    %1064 = vmatpush2.bf16.msra.mxu0 0
    %1065 = vmatprep.subr.bf16.mxu0 0
    %1066 = vmatpush2.bf16.msra.mxu0 0
    %1067 = vmatprep.subr.bf16.mxu0 0
    %1068 = vmatpush2.bf16.msra.mxu0 0
    %1069 = vmatprep.subr.bf16.mxu0 0
    %1070 = vmatpush2.bf16.msra.mxu0 0
    %1071 = vmatprep.subr.bf16.mxu0 0
    %1072 = vmatpush2.bf16.msra.mxu0 0
    %1073 = vmatprep.subr.bf16.mxu0 0
    %1074 = vmatpush2.bf16.msra.mxu0 0
    %1075 = vmatprep.subr.bf16.mxu0 0
    %1076 = vmatpush2.bf16.msra.mxu0 0
    %1077 = vmatprep.mubr.bf16.mxu0 0
    %1078 = vmatmul.mubr.bf16.gmra.mxu0 %v925
    %v1079 = vpop.f32.mrf.mxu0
    %v1080 = vadd.f32 0.0, %v1079
    %v1081 = vpop.f32.mrf.mxu0
    %v1082 = vadd.f32 0.0, %v1081
    %v1083 = vpop.f32.mrf.mxu0
    %v1084 = vadd.f32 0.0, %v1083
    %v1085 = vpop.f32.mrf.mxu0
    %v1086 = vadd.f32 0.0, %v1085
    %1087 = vdwg.mxu0
    %1088 = vmatprep.subr.bf16.mxu0 0
    %1089 = vmatpush1.bf16.msra.mxu0 0
    %1090 = vmatprep.subr.bf16.mxu0 0
    %1091 = vmatpush1.bf16.msra.mxu0 0
    %1092 = vmatprep.subr.bf16.mxu0 0
    %1093 = vmatpush1.bf16.msra.mxu0 0
    %1094 = vmatprep.subr.bf16.mxu0 0
    %1095 = vmatpush1.bf16.msra.mxu0 0
    %1096 = vmatprep.subr.bf16.mxu0 0
    %1097 = vmatpush1.bf16.msra.mxu0 0
    %1098 = vmatprep.subr.bf16.mxu0 0
    %1099 = vmatpush1.bf16.msra.mxu0 0
    %1100 = vmatprep.subr.bf16.mxu0 0
    %1101 = vmatpush1.bf16.msra.mxu0 0
    %1102 = vmatprep.subr.bf16.mxu0 %v1040
    %1103 = vmatpush1.bf16.msra.mxu0 %v1039
    %1104 = vmatprep.subr.bf16.mxu0 0
    %1105 = vmatpush2.bf16.msra.mxu0 0
    %1106 = vmatprep.subr.bf16.mxu0 0
    %1107 = vmatpush2.bf16.msra.mxu0 0
    %1108 = vmatprep.subr.bf16.mxu0 0
    %1109 = vmatpush2.bf16.msra.mxu0 0
    %1110 = vmatprep.subr.bf16.mxu0 0
    %1111 = vmatpush2.bf16.msra.mxu0 0
    %1112 = vmatprep.subr.bf16.mxu0 0
    %1113 = vmatpush2.bf16.msra.mxu0 0
    %1114 = vmatprep.subr.bf16.mxu0 0
    %1115 = vmatpush2.bf16.msra.mxu0 0
    %1116 = vmatprep.subr.bf16.mxu0 0
    %1117 = vmatpush2.bf16.msra.mxu0 0
    %1118 = vmatprep.subr.bf16.mxu0 0
    %1119 = vmatpush2.bf16.msra.mxu0 0
    %1120 = vmatprep.mubr.bf16.mxu0 0
    %1121 = vmatmul.mubr.bf16.gmra.mxu0 %v925
    %v1122 = vpop.f32.mrf.mxu0
    %v1123 = vadd.f32 0.0, %v1122
    %v1124 = vpop.f32.mrf.mxu0
    %v1125 = vadd.f32 0.0, %v1124
    %v1126 = vpop.f32.mrf.mxu0
    %v1127 = vadd.f32 0.0, %v1126
    %v1128 = vpop.f32.mrf.mxu0
    %v1129 = vadd.f32 0.0, %v1128
    %1130 = vdwg.mxu0
    %v1139 = vrot.slane %v1080, 1
    %v1140 = vrot.slane %v1084, 1
    %v1141 = vsel %vm302, %v1139, %v1140
    %v1142 = vrot.slane %v1082, 1
    %v1143 = vrot.slane %v1086, 1
    %v1144 = vsel %vm302, %v1142, %v1143
    %v1145 = vrot.slane %v1123, 1
    %v1146 = vrot.slane %v1127, 1
    %v1147 = vsel %vm302, %v1145, %v1146
    %v1148 = vrot.slane %v1125, 1
    %v1149 = vrot.slane %v1129, 1
    %v1150 = vsel %vm302, %v1148, %v1149
    %v1159 = vadd.f32 %v1013, %v1141
    %v1160 = vadd.f32 %v1014, %v1144
    %v1161 = vadd.f32 %v1015, %v1147
    %v1162 = vadd.f32 %v1016, %v1150
    %v1163 = vadd.f32 %v1017, %v1140
    %v1164 = vadd.f32 %v1018, %v1143
    %v1165 = vadd.f32 %v1019, %v1146
    %v1166 = vadd.f32 %v1020, %v1149
    %v1167 = vld [vmem:[%s331 + $0x40] sm:$0xff]
    %v1168 = vld [vmem:[%s331 + $0x48] sm:$0xff]
    %v1169 = vld [vmem:[%s331 + $0x50] sm:$0xff]
    %v1170 = vld [vmem:[%s331 + $0x58] sm:$0xff]
    %v1175 = vunpack.c.l.b16 %v1167
    %v1176 = vunpack.c.h.b16 %v1167
    %v1177 = vunpack.c.l.b16 %v1168
    %v1178 = vunpack.c.h.b16 %v1168
    %v1179 = vunpack.c.l.b16 %v1169
    %v1180 = vunpack.c.h.b16 %v1169
    %v1181 = vunpack.c.l.b16 %v1170
    %v1182 = vunpack.c.h.b16 %v1170
    %v1183 = vpack.c.b16 %v1179, %v1175
    %v1184 = vpack.c.b16 %v1180, %v1176
    %v1185 = vpack.c.b16 %v1181, %v1177
    %v1186 = vpack.c.b16 %v1182, %v1178
    %1191 = vmatprep.subr.bf16.mxu0 0
    %1192 = vmatpush1.bf16.msra.mxu0 0
    %1193 = vmatprep.subr.bf16.mxu0 0
    %1194 = vmatpush1.bf16.msra.mxu0 0
    %1195 = vmatprep.subr.bf16.mxu0 0
    %1196 = vmatpush1.bf16.msra.mxu0 0
    %1197 = vmatprep.subr.bf16.mxu0 0
    %1198 = vmatpush1.bf16.msra.mxu0 0
    %1199 = vmatprep.subr.bf16.mxu0 0
    %1200 = vmatpush1.bf16.msra.mxu0 0
    %1201 = vmatprep.subr.bf16.mxu0 0
    %1202 = vmatpush1.bf16.msra.mxu0 0
    %1203 = vmatprep.subr.bf16.mxu0 0
    %1204 = vmatpush1.bf16.msra.mxu0 0
    %1205 = vmatprep.subr.bf16.mxu0 %v1184
    %1206 = vmatpush1.bf16.msra.mxu0 %v1183
    %1207 = vmatprep.subr.bf16.mxu0 0
    %1208 = vmatpush2.bf16.msra.mxu0 0
    %1209 = vmatprep.subr.bf16.mxu0 0
    %1210 = vmatpush2.bf16.msra.mxu0 0
    %1211 = vmatprep.subr.bf16.mxu0 0
    %1212 = vmatpush2.bf16.msra.mxu0 0
    %1213 = vmatprep.subr.bf16.mxu0 0
    %1214 = vmatpush2.bf16.msra.mxu0 0
    %1215 = vmatprep.subr.bf16.mxu0 0
    %1216 = vmatpush2.bf16.msra.mxu0 0
    %1217 = vmatprep.subr.bf16.mxu0 0
    %1218 = vmatpush2.bf16.msra.mxu0 0
    %1219 = vmatprep.subr.bf16.mxu0 0
    %1220 = vmatpush2.bf16.msra.mxu0 0
    %1221 = vmatprep.subr.bf16.mxu0 0
    %1222 = vmatpush2.bf16.msra.mxu0 0
    %1223 = vmatprep.mubr.bf16.mxu0 0
    %1224 = vmatmul.mubr.bf16.gmra.mxu0 %v925
    %v1225 = vpop.f32.mrf.mxu0
    %v1226 = vadd.f32 0.0, %v1225
    %v1227 = vpop.f32.mrf.mxu0
    %v1228 = vadd.f32 0.0, %v1227
    %v1229 = vpop.f32.mrf.mxu0
    %v1230 = vadd.f32 0.0, %v1229
    %v1231 = vpop.f32.mrf.mxu0
    %v1232 = vadd.f32 0.0, %v1231
    %1233 = vdwg.mxu0
    %1234 = vmatprep.subr.bf16.mxu0 0
    %1235 = vmatpush1.bf16.msra.mxu0 0
    %1236 = vmatprep.subr.bf16.mxu0 0
    %1237 = vmatpush1.bf16.msra.mxu0 0
    %1238 = vmatprep.subr.bf16.mxu0 0
    %1239 = vmatpush1.bf16.msra.mxu0 0
    %1240 = vmatprep.subr.bf16.mxu0 0
    %1241 = vmatpush1.bf16.msra.mxu0 0
    %1242 = vmatprep.subr.bf16.mxu0 0
    %1243 = vmatpush1.bf16.msra.mxu0 0
    %1244 = vmatprep.subr.bf16.mxu0 0
    %1245 = vmatpush1.bf16.msra.mxu0 0
    %1246 = vmatprep.subr.bf16.mxu0 0
    %1247 = vmatpush1.bf16.msra.mxu0 0
    %1248 = vmatprep.subr.bf16.mxu0 %v1186
    %1249 = vmatpush1.bf16.msra.mxu0 %v1185
    %1250 = vmatprep.subr.bf16.mxu0 0
    %1251 = vmatpush2.bf16.msra.mxu0 0
    %1252 = vmatprep.subr.bf16.mxu0 0
    %1253 = vmatpush2.bf16.msra.mxu0 0
    %1254 = vmatprep.subr.bf16.mxu0 0
    %1255 = vmatpush2.bf16.msra.mxu0 0
    %1256 = vmatprep.subr.bf16.mxu0 0
    %1257 = vmatpush2.bf16.msra.mxu0 0
    %1258 = vmatprep.subr.bf16.mxu0 0
    %1259 = vmatpush2.bf16.msra.mxu0 0
    %1260 = vmatprep.subr.bf16.mxu0 0
    %1261 = vmatpush2.bf16.msra.mxu0 0
    %1262 = vmatprep.subr.bf16.mxu0 0
    %1263 = vmatpush2.bf16.msra.mxu0 0
    %1264 = vmatprep.subr.bf16.mxu0 0
    %1265 = vmatpush2.bf16.msra.mxu0 0
    %1266 = vmatprep.mubr.bf16.mxu0 0
    %1267 = vmatmul.mubr.bf16.gmra.mxu0 %v925
    %v1268 = vpop.f32.mrf.mxu0
    %v1269 = vadd.f32 0.0, %v1268
    %v1270 = vpop.f32.mrf.mxu0
    %v1271 = vadd.f32 0.0, %v1270
    %v1272 = vpop.f32.mrf.mxu0
    %v1273 = vadd.f32 0.0, %v1272
    %v1274 = vpop.f32.mrf.mxu0
    %v1275 = vadd.f32 0.0, %v1274
    %1276 = vdwg.mxu0
    %v1285 = vrot.slane %v1226, 2
    %v1286 = vrot.slane %v1230, 2
    %v1287 = vsel %vm450, %v1285, %v1286
    %v1288 = vrot.slane %v1228, 2
    %v1289 = vrot.slane %v1232, 2
    %v1290 = vsel %vm450, %v1288, %v1289
    %v1291 = vrot.slane %v1269, 2
    %v1292 = vrot.slane %v1273, 2
    %v1293 = vsel %vm450, %v1291, %v1292
    %v1294 = vrot.slane %v1271, 2
    %v1295 = vrot.slane %v1275, 2
    %v1296 = vsel %vm450, %v1294, %v1295
    %v1305 = vadd.f32 %v1159, %v1287
    %v1306 = vadd.f32 %v1160, %v1290
    %v1307 = vadd.f32 %v1161, %v1293
    %v1308 = vadd.f32 %v1162, %v1296
    %v1309 = vadd.f32 %v1163, %v1286
    %v1310 = vadd.f32 %v1164, %v1289
    %v1311 = vadd.f32 %v1165, %v1292
    %v1312 = vadd.f32 %v1166, %v1295
    %s1313 = scalar_lea.vmem %s0, 48
    %v1314 = vld [vmem:[%s1313] sm:$0xff]
    %v1315 = vld [vmem:[%s1313 + $0x8] sm:$0xff]
    %v1316 = vpack.c.bf16 %v1315, %v1314
    %v1317 = vld [vmem:[%s1 + $0x60] sm:$0xff]
    %v1318 = vld [vmem:[%s1 + $0x68] sm:$0xff]
    %v1319 = vld [vmem:[%s1 + $0x70] sm:$0xff]
    %v1320 = vld [vmem:[%s1 + $0x78] sm:$0xff]
    %v1325 = vunpack.c.l.b16 %v1317
    %v1326 = vunpack.c.h.b16 %v1317
    %v1327 = vunpack.c.l.b16 %v1318
    %v1328 = vunpack.c.h.b16 %v1318
    %v1329 = vunpack.c.l.b16 %v1319
    %v1330 = vunpack.c.h.b16 %v1319
    %v1331 = vunpack.c.l.b16 %v1320
    %v1332 = vunpack.c.h.b16 %v1320
    %v1333 = vpack.c.b16 %v1329, %v1325
    %v1334 = vpack.c.b16 %v1330, %v1326
    %v1335 = vpack.c.b16 %v1331, %v1327
    %v1336 = vpack.c.b16 %v1332, %v1328
    %v1342 = vsel %vm64, %v1316, 0
    %1344 = vmatprep.subr.bf16.mxu0 0
    %1345 = vmatpush1.bf16.msra.mxu0 0
    %1346 = vmatprep.subr.bf16.mxu0 0
    %1347 = vmatpush1.bf16.msra.mxu0 0
    %1348 = vmatprep.subr.bf16.mxu0 0
    %1349 = vmatpush1.bf16.msra.mxu0 0
    %1350 = vmatprep.subr.bf16.mxu0 0
    %1351 = vmatpush1.bf16.msra.mxu0 0
    %1352 = vmatprep.subr.bf16.mxu0 0
    %1353 = vmatpush1.bf16.msra.mxu0 0
    %1354 = vmatprep.subr.bf16.mxu0 0
    %1355 = vmatpush1.bf16.msra.mxu0 0
    %1356 = vmatprep.subr.bf16.mxu0 0
    %1357 = vmatpush1.bf16.msra.mxu0 0
    %1358 = vmatprep.subr.bf16.mxu0 %v1334
    %1359 = vmatpush1.bf16.msra.mxu0 %v1333
    %1360 = vmatprep.subr.bf16.mxu0 0
    %1361 = vmatpush2.bf16.msra.mxu0 0
    %1362 = vmatprep.subr.bf16.mxu0 0
    %1363 = vmatpush2.bf16.msra.mxu0 0
    %1364 = vmatprep.subr.bf16.mxu0 0
    %1365 = vmatpush2.bf16.msra.mxu0 0
    %1366 = vmatprep.subr.bf16.mxu0 0
    %1367 = vmatpush2.bf16.msra.mxu0 0
    %1368 = vmatprep.subr.bf16.mxu0 0
    %1369 = vmatpush2.bf16.msra.mxu0 0
    %1370 = vmatprep.subr.bf16.mxu0 0
    %1371 = vmatpush2.bf16.msra.mxu0 0
    %1372 = vmatprep.subr.bf16.mxu0 0
    %1373 = vmatpush2.bf16.msra.mxu0 0
    %1374 = vmatprep.subr.bf16.mxu0 0
    %1375 = vmatpush2.bf16.msra.mxu0 0
    %1376 = vmatprep.mubr.bf16.mxu0 0
    %1377 = vmatmul.mubr.bf16.gmra.mxu0 %v1342
    %v1378 = vpop.f32.mrf.mxu0
    %v1379 = vadd.f32 0.0, %v1378
    %v1380 = vpop.f32.mrf.mxu0
    %v1381 = vadd.f32 0.0, %v1380
    %v1382 = vpop.f32.mrf.mxu0
    %v1383 = vadd.f32 0.0, %v1382
    %v1384 = vpop.f32.mrf.mxu0
    %v1385 = vadd.f32 0.0, %v1384
    %1386 = vdwg.mxu0
    %1387 = vmatprep.subr.bf16.mxu0 0
    %1388 = vmatpush1.bf16.msra.mxu0 0
    %1389 = vmatprep.subr.bf16.mxu0 0
    %1390 = vmatpush1.bf16.msra.mxu0 0
    %1391 = vmatprep.subr.bf16.mxu0 0
    %1392 = vmatpush1.bf16.msra.mxu0 0
    %1393 = vmatprep.subr.bf16.mxu0 0
    %1394 = vmatpush1.bf16.msra.mxu0 0
    %1395 = vmatprep.subr.bf16.mxu0 0
    %1396 = vmatpush1.bf16.msra.mxu0 0
    %1397 = vmatprep.subr.bf16.mxu0 0
    %1398 = vmatpush1.bf16.msra.mxu0 0
    %1399 = vmatprep.subr.bf16.mxu0 0
    %1400 = vmatpush1.bf16.msra.mxu0 0
    %1401 = vmatprep.subr.bf16.mxu0 %v1336
    %1402 = vmatpush1.bf16.msra.mxu0 %v1335
    %1403 = vmatprep.subr.bf16.mxu0 0
    %1404 = vmatpush2.bf16.msra.mxu0 0
    %1405 = vmatprep.subr.bf16.mxu0 0
    %1406 = vmatpush2.bf16.msra.mxu0 0
    %1407 = vmatprep.subr.bf16.mxu0 0
    %1408 = vmatpush2.bf16.msra.mxu0 0
    %1409 = vmatprep.subr.bf16.mxu0 0
    %1410 = vmatpush2.bf16.msra.mxu0 0
    %1411 = vmatprep.subr.bf16.mxu0 0
    %1412 = vmatpush2.bf16.msra.mxu0 0
    %1413 = vmatprep.subr.bf16.mxu0 0
    %1414 = vmatpush2.bf16.msra.mxu0 0
    %1415 = vmatprep.subr.bf16.mxu0 0
    %1416 = vmatpush2.bf16.msra.mxu0 0
    %1417 = vmatprep.subr.bf16.mxu0 0
    %1418 = vmatpush2.bf16.msra.mxu0 0
    %1419 = vmatprep.mubr.bf16.mxu0 0
    %1420 = vmatmul.mubr.bf16.gmra.mxu0 %v1342
    %v1421 = vpop.f32.mrf.mxu0
    %v1422 = vadd.f32 0.0, %v1421
    %v1423 = vpop.f32.mrf.mxu0
    %v1424 = vadd.f32 0.0, %v1423
    %v1425 = vpop.f32.mrf.mxu0
    %v1426 = vadd.f32 0.0, %v1425
    %v1427 = vpop.f32.mrf.mxu0
    %v1428 = vadd.f32 0.0, %v1427
    %1429 = vdwg.mxu0
    %v1430 = vadd.f32 %v1305, %v1379
    %v1431 = vadd.f32 %v1306, %v1381
    %v1432 = vadd.f32 %v1307, %v1422
    %v1433 = vadd.f32 %v1308, %v1424
    %v1434 = vadd.f32 %v1309, %v1383
    %v1435 = vadd.f32 %v1310, %v1385
    %v1436 = vadd.f32 %v1311, %v1426
    %v1437 = vadd.f32 %v1312, %v1428
    %v1438 = vld [vmem:[%s183 + $0x60] sm:$0xff]
    %v1439 = vld [vmem:[%s183 + $0x68] sm:$0xff]
    %v1440 = vld [vmem:[%s183 + $0x70] sm:$0xff]
    %v1441 = vld [vmem:[%s183 + $0x78] sm:$0xff]
    %v1446 = vunpack.c.l.b16 %v1438
    %v1447 = vunpack.c.h.b16 %v1438
    %v1448 = vunpack.c.l.b16 %v1439
    %v1449 = vunpack.c.h.b16 %v1439
    %v1450 = vunpack.c.l.b16 %v1440
    %v1451 = vunpack.c.h.b16 %v1440
    %v1452 = vunpack.c.l.b16 %v1441
    %v1453 = vunpack.c.h.b16 %v1441
    %v1454 = vpack.c.b16 %v1450, %v1446
    %v1455 = vpack.c.b16 %v1451, %v1447
    %v1456 = vpack.c.b16 %v1452, %v1448
    %v1457 = vpack.c.b16 %v1453, %v1449
    %1462 = vmatprep.subr.bf16.mxu0 0
    %1463 = vmatpush1.bf16.msra.mxu0 0
    %1464 = vmatprep.subr.bf16.mxu0 0
    %1465 = vmatpush1.bf16.msra.mxu0 0
    %1466 = vmatprep.subr.bf16.mxu0 0
    %1467 = vmatpush1.bf16.msra.mxu0 0
    %1468 = vmatprep.subr.bf16.mxu0 0
    %1469 = vmatpush1.bf16.msra.mxu0 0
    %1470 = vmatprep.subr.bf16.mxu0 0
    %1471 = vmatpush1.bf16.msra.mxu0 0
    %1472 = vmatprep.subr.bf16.mxu0 0
    %1473 = vmatpush1.bf16.msra.mxu0 0
    %1474 = vmatprep.subr.bf16.mxu0 0
    %1475 = vmatpush1.bf16.msra.mxu0 0
    %1476 = vmatprep.subr.bf16.mxu0 %v1455
    %1477 = vmatpush1.bf16.msra.mxu0 %v1454
    %1478 = vmatprep.subr.bf16.mxu0 0
    %1479 = vmatpush2.bf16.msra.mxu0 0
    %1480 = vmatprep.subr.bf16.mxu0 0
    %1481 = vmatpush2.bf16.msra.mxu0 0
    %1482 = vmatprep.subr.bf16.mxu0 0
    %1483 = vmatpush2.bf16.msra.mxu0 0
    %1484 = vmatprep.subr.bf16.mxu0 0
    %1485 = vmatpush2.bf16.msra.mxu0 0
    %1486 = vmatprep.subr.bf16.mxu0 0
    %1487 = vmatpush2.bf16.msra.mxu0 0
    %1488 = vmatprep.subr.bf16.mxu0 0
    %1489 = vmatpush2.bf16.msra.mxu0 0
    %1490 = vmatprep.subr.bf16.mxu0 0
    %1491 = vmatpush2.bf16.msra.mxu0 0
    %1492 = vmatprep.subr.bf16.mxu0 0
    %1493 = vmatpush2.bf16.msra.mxu0 0
    %1494 = vmatprep.mubr.bf16.mxu0 0
    %1495 = vmatmul.mubr.bf16.gmra.mxu0 %v1342
    %v1496 = vpop.f32.mrf.mxu0
    %v1497 = vadd.f32 0.0, %v1496
    %v1498 = vpop.f32.mrf.mxu0
    %v1499 = vadd.f32 0.0, %v1498
    %v1500 = vpop.f32.mrf.mxu0
    %v1501 = vadd.f32 0.0, %v1500
    %v1502 = vpop.f32.mrf.mxu0
    %v1503 = vadd.f32 0.0, %v1502
    %1504 = vdwg.mxu0
    %1505 = vmatprep.subr.bf16.mxu0 0
    %1506 = vmatpush1.bf16.msra.mxu0 0
    %1507 = vmatprep.subr.bf16.mxu0 0
    %1508 = vmatpush1.bf16.msra.mxu0 0
    %1509 = vmatprep.subr.bf16.mxu0 0
    %1510 = vmatpush1.bf16.msra.mxu0 0
    %1511 = vmatprep.subr.bf16.mxu0 0
    %1512 = vmatpush1.bf16.msra.mxu0 0
    %1513 = vmatprep.subr.bf16.mxu0 0
    %1514 = vmatpush1.bf16.msra.mxu0 0
    %1515 = vmatprep.subr.bf16.mxu0 0
    %1516 = vmatpush1.bf16.msra.mxu0 0
    %1517 = vmatprep.subr.bf16.mxu0 0
    %1518 = vmatpush1.bf16.msra.mxu0 0
    %1519 = vmatprep.subr.bf16.mxu0 %v1457
    %1520 = vmatpush1.bf16.msra.mxu0 %v1456
    %1521 = vmatprep.subr.bf16.mxu0 0
    %1522 = vmatpush2.bf16.msra.mxu0 0
    %1523 = vmatprep.subr.bf16.mxu0 0
    %1524 = vmatpush2.bf16.msra.mxu0 0
    %1525 = vmatprep.subr.bf16.mxu0 0
    %1526 = vmatpush2.bf16.msra.mxu0 0
    %1527 = vmatprep.subr.bf16.mxu0 0
    %1528 = vmatpush2.bf16.msra.mxu0 0
    %1529 = vmatprep.subr.bf16.mxu0 0
    %1530 = vmatpush2.bf16.msra.mxu0 0
    %1531 = vmatprep.subr.bf16.mxu0 0
    %1532 = vmatpush2.bf16.msra.mxu0 0
    %1533 = vmatprep.subr.bf16.mxu0 0
    %1534 = vmatpush2.bf16.msra.mxu0 0
    %1535 = vmatprep.subr.bf16.mxu0 0
    %1536 = vmatpush2.bf16.msra.mxu0 0
    %1537 = vmatprep.mubr.bf16.mxu0 0
    %1538 = vmatmul.mubr.bf16.gmra.mxu0 %v1342
    %v1539 = vpop.f32.mrf.mxu0
    %v1540 = vadd.f32 0.0, %v1539
    %v1541 = vpop.f32.mrf.mxu0
    %v1542 = vadd.f32 0.0, %v1541
    %v1543 = vpop.f32.mrf.mxu0
    %v1544 = vadd.f32 0.0, %v1543
    %v1545 = vpop.f32.mrf.mxu0
    %v1546 = vadd.f32 0.0, %v1545
    %1547 = vdwg.mxu0
    %v1556 = vrot.slane %v1497, 1
    %v1557 = vrot.slane %v1501, 1
    %v1558 = vsel %vm302, %v1556, %v1557
    %v1559 = vrot.slane %v1499, 1
    %v1560 = vrot.slane %v1503, 1
    %v1561 = vsel %vm302, %v1559, %v1560
    %v1562 = vrot.slane %v1540, 1
    %v1563 = vrot.slane %v1544, 1
    %v1564 = vsel %vm302, %v1562, %v1563
    %v1565 = vrot.slane %v1542, 1
    %v1566 = vrot.slane %v1546, 1
    %v1567 = vsel %vm302, %v1565, %v1566
    %v1576 = vadd.f32 %v1430, %v1558
    %v1577 = vadd.f32 %v1431, %v1561
    %v1578 = vadd.f32 %v1432, %v1564
    %v1579 = vadd.f32 %v1433, %v1567
    %v1580 = vadd.f32 %v1434, %v1557
    %v1581 = vadd.f32 %v1435, %v1560
    %v1582 = vadd.f32 %v1436, %v1563
    %v1583 = vadd.f32 %v1437, %v1566
    %v1584 = vld [vmem:[%s331 + $0x60] sm:$0xff]
    %v1585 = vld [vmem:[%s331 + $0x68] sm:$0xff]
    %v1586 = vld [vmem:[%s331 + $0x70] sm:$0xff]
    %v1587 = vld [vmem:[%s331 + $0x78] sm:$0xff]
    %v1592 = vunpack.c.l.b16 %v1584
    %v1593 = vunpack.c.h.b16 %v1584
    %v1594 = vunpack.c.l.b16 %v1585
    %v1595 = vunpack.c.h.b16 %v1585
    %v1596 = vunpack.c.l.b16 %v1586
    %v1597 = vunpack.c.h.b16 %v1586
    %v1598 = vunpack.c.l.b16 %v1587
    %v1599 = vunpack.c.h.b16 %v1587
    %v1600 = vpack.c.b16 %v1596, %v1592
    %v1601 = vpack.c.b16 %v1597, %v1593
    %v1602 = vpack.c.b16 %v1598, %v1594
    %v1603 = vpack.c.b16 %v1599, %v1595
    %1608 = vmatprep.subr.bf16.mxu0 0
    %1609 = vmatpush1.bf16.msra.mxu0 0
    %1610 = vmatprep.subr.bf16.mxu0 0
    %1611 = vmatpush1.bf16.msra.mxu0 0
    %1612 = vmatprep.subr.bf16.mxu0 0
    %1613 = vmatpush1.bf16.msra.mxu0 0
    %1614 = vmatprep.subr.bf16.mxu0 0
    %1615 = vmatpush1.bf16.msra.mxu0 0
    %1616 = vmatprep.subr.bf16.mxu0 0
    %1617 = vmatpush1.bf16.msra.mxu0 0
    %1618 = vmatprep.subr.bf16.mxu0 0
    %1619 = vmatpush1.bf16.msra.mxu0 0
    %1620 = vmatprep.subr.bf16.mxu0 0
    %1621 = vmatpush1.bf16.msra.mxu0 0
    %1622 = vmatprep.subr.bf16.mxu0 %v1601
    %1623 = vmatpush1.bf16.msra.mxu0 %v1600
    %1624 = vmatprep.subr.bf16.mxu0 0
    %1625 = vmatpush2.bf16.msra.mxu0 0
    %1626 = vmatprep.subr.bf16.mxu0 0
    %1627 = vmatpush2.bf16.msra.mxu0 0
    %1628 = vmatprep.subr.bf16.mxu0 0
    %1629 = vmatpush2.bf16.msra.mxu0 0
    %1630 = vmatprep.subr.bf16.mxu0 0
    %1631 = vmatpush2.bf16.msra.mxu0 0
    %1632 = vmatprep.subr.bf16.mxu0 0
    %1633 = vmatpush2.bf16.msra.mxu0 0
    %1634 = vmatprep.subr.bf16.mxu0 0
    %1635 = vmatpush2.bf16.msra.mxu0 0
    %1636 = vmatprep.subr.bf16.mxu0 0
    %1637 = vmatpush2.bf16.msra.mxu0 0
    %1638 = vmatprep.subr.bf16.mxu0 0
    %1639 = vmatpush2.bf16.msra.mxu0 0
    %1640 = vmatprep.mubr.bf16.mxu0 0
    %1641 = vmatmul.mubr.bf16.gmra.mxu0 %v1342
    %v1642 = vpop.f32.mrf.mxu0
    %v1643 = vadd.f32 0.0, %v1642
    %v1644 = vpop.f32.mrf.mxu0
    %v1645 = vadd.f32 0.0, %v1644
    %v1646 = vpop.f32.mrf.mxu0
    %v1647 = vadd.f32 0.0, %v1646
    %v1648 = vpop.f32.mrf.mxu0
    %v1649 = vadd.f32 0.0, %v1648
    %1650 = vdwg.mxu0
    %1651 = vmatprep.subr.bf16.mxu0 0
    %1652 = vmatpush1.bf16.msra.mxu0 0
    %1653 = vmatprep.subr.bf16.mxu0 0
    %1654 = vmatpush1.bf16.msra.mxu0 0
    %1655 = vmatprep.subr.bf16.mxu0 0
    %1656 = vmatpush1.bf16.msra.mxu0 0
    %1657 = vmatprep.subr.bf16.mxu0 0
    %1658 = vmatpush1.bf16.msra.mxu0 0
    %1659 = vmatprep.subr.bf16.mxu0 0
    %1660 = vmatpush1.bf16.msra.mxu0 0
    %1661 = vmatprep.subr.bf16.mxu0 0
    %1662 = vmatpush1.bf16.msra.mxu0 0
    %1663 = vmatprep.subr.bf16.mxu0 0
    %1664 = vmatpush1.bf16.msra.mxu0 0
    %1665 = vmatprep.subr.bf16.mxu0 %v1603
    %1666 = vmatpush1.bf16.msra.mxu0 %v1602
    %1667 = vmatprep.subr.bf16.mxu0 0
    %1668 = vmatpush2.bf16.msra.mxu0 0
    %1669 = vmatprep.subr.bf16.mxu0 0
    %1670 = vmatpush2.bf16.msra.mxu0 0
    %1671 = vmatprep.subr.bf16.mxu0 0
    %1672 = vmatpush2.bf16.msra.mxu0 0
    %1673 = vmatprep.subr.bf16.mxu0 0
    %1674 = vmatpush2.bf16.msra.mxu0 0
    %1675 = vmatprep.subr.bf16.mxu0 0
    %1676 = vmatpush2.bf16.msra.mxu0 0
    %1677 = vmatprep.subr.bf16.mxu0 0
    %1678 = vmatpush2.bf16.msra.mxu0 0
    %1679 = vmatprep.subr.bf16.mxu0 0
    %1680 = vmatpush2.bf16.msra.mxu0 0
    %1681 = vmatprep.subr.bf16.mxu0 0
    %1682 = vmatpush2.bf16.msra.mxu0 0
    %1683 = vmatprep.mubr.bf16.mxu0 0
    %1684 = vmatmul.mubr.bf16.gmra.mxu0 %v1342
    %v1685 = vpop.f32.mrf.mxu0
    %v1686 = vadd.f32 0.0, %v1685
    %v1687 = vpop.f32.mrf.mxu0
    %v1688 = vadd.f32 0.0, %v1687
    %v1689 = vpop.f32.mrf.mxu0
    %v1690 = vadd.f32 0.0, %v1689
    %v1691 = vpop.f32.mrf.mxu0
    %v1692 = vadd.f32 0.0, %v1691
    %1693 = vdwg.mxu0
    %v1702 = vrot.slane %v1643, 2
    %v1703 = vrot.slane %v1647, 2
    %v1704 = vsel %vm450, %v1702, %v1703
    %v1705 = vrot.slane %v1645, 2
    %v1706 = vrot.slane %v1649, 2
    %v1707 = vsel %vm450, %v1705, %v1706
    %v1708 = vrot.slane %v1686, 2
    %v1709 = vrot.slane %v1690, 2
    %v1710 = vsel %vm450, %v1708, %v1709
    %v1711 = vrot.slane %v1688, 2
    %v1712 = vrot.slane %v1692, 2
    %v1713 = vsel %vm450, %v1711, %v1712
    %v1722 = vadd.f32 %v1576, %v1704
    %v1723 = vadd.f32 %v1577, %v1707
    %v1724 = vadd.f32 %v1578, %v1710
    %v1725 = vadd.f32 %v1579, %v1713
    %v1726 = vadd.f32 %v1580, %v1703
    %v1727 = vadd.f32 %v1581, %v1706
    %v1728 = vadd.f32 %v1582, %v1709
    %v1729 = vadd.f32 %v1583, %v1712
    %v1730 = vmax.f32 %v1722, 0.0
    %v1731 = vmax.f32 %v1723, 0.0
    %v1732 = vmax.f32 %v1724, 0.0
    %v1733 = vmax.f32 %v1725, 0.0
    %v1734 = vmax.f32 %v1726, 0.0
    %v1735 = vmax.f32 %v1727, 0.0
    %v1736 = vmax.f32 %v1728, 0.0
    %v1737 = vmax.f32 %v1729, 0.0
    %v1738 = vpack.c.bf16 %v1734, %v1730
    %v1739 = vpack.c.bf16 %v1735, %v1731
    %v1740 = vpack.c.bf16 %v1736, %v1732
    %v1741 = vpack.c.bf16 %v1737, %v1733
    %v1742 = vld [vmem:[%s2] sm:$0xff]
    %v1743 = vld [vmem:[%s2 + $0x8] sm:$0xff]
    %v1744 = vld [vmem:[%s2 + $0x10] sm:$0xff]
    %v1745 = vld [vmem:[%s2 + $0x18] sm:$0xff]
    %v1746 = vld [vmem:[%s2 + $0x20] sm:$0xff]
    %v1747 = vld [vmem:[%s2 + $0x28] sm:$0xff]
    %v1748 = vld [vmem:[%s2 + $0x30] sm:$0xff]
    %v1749 = vld [vmem:[%s2 + $0x38] sm:$0xff]
    %v1750 = vld [vmem:[%s2 + $0x40] sm:$0xff]
    %v1751 = vld [vmem:[%s2 + $0x48] sm:$0xff]
    %v1752 = vld [vmem:[%s2 + $0x50] sm:$0xff]
    %v1753 = vld [vmem:[%s2 + $0x58] sm:$0xff]
    %v1754 = vld [vmem:[%s2 + $0x60] sm:$0xff]
    %v1755 = vld [vmem:[%s2 + $0x68] sm:$0xff]
    %v1756 = vld [vmem:[%s2 + $0x70] sm:$0xff]
    %v1757 = vld [vmem:[%s2 + $0x78] sm:$0xff]
    %v1758 = vld [vmem:[%s2 + $0x80] sm:$0xff]
    %v1759 = vld [vmem:[%s2 + $0x88] sm:$0xff]
    %v1760 = vld [vmem:[%s2 + $0x90] sm:$0xff]
    %v1761 = vld [vmem:[%s2 + $0x98] sm:$0xff]
    %v1762 = vld [vmem:[%s2 + $0xa0] sm:$0xff]
    %v1763 = vld [vmem:[%s2 + $0xa8] sm:$0xff]
    %v1764 = vld [vmem:[%s2 + $0xb0] sm:$0xff]
    %v1765 = vld [vmem:[%s2 + $0xb8] sm:$0xff]
    %v1766 = vld [vmem:[%s2 + $0xc0] sm:$0xff]
    %v1767 = vld [vmem:[%s2 + $0xc8] sm:$0xff]
    %v1768 = vld [vmem:[%s2 + $0xd0] sm:$0xff]
    %v1769 = vld [vmem:[%s2 + $0xd8] sm:$0xff]
    %v1770 = vld [vmem:[%s2 + $0xe0] sm:$0xff]
    %v1771 = vld [vmem:[%s2 + $0xe8] sm:$0xff]
    %v1772 = vld [vmem:[%s2 + $0xf0] sm:$0xff]
    %v1773 = vld [vmem:[%s2 + $0xf8] sm:$0xff]
    %v1774 = vld [vmem:[%s2 + $0x100] sm:$0xff]
    %v1775 = vld [vmem:[%s2 + $0x108] sm:$0xff]
    %v1776 = vld [vmem:[%s2 + $0x110] sm:$0xff]
    %v1777 = vld [vmem:[%s2 + $0x118] sm:$0xff]
    %v1778 = vld [vmem:[%s2 + $0x120] sm:$0xff]
    %v1779 = vld [vmem:[%s2 + $0x128] sm:$0xff]
    %v1780 = vld [vmem:[%s2 + $0x130] sm:$0xff]
    %v1781 = vld [vmem:[%s2 + $0x138] sm:$0xff]
    %v1782 = vld [vmem:[%s2 + $0x140] sm:$0xff]
    %v1783 = vld [vmem:[%s2 + $0x148] sm:$0xff]
    %v1784 = vld [vmem:[%s2 + $0x150] sm:$0xff]
    %v1785 = vld [vmem:[%s2 + $0x158] sm:$0xff]
    %v1786 = vld [vmem:[%s2 + $0x160] sm:$0xff]
    %v1787 = vld [vmem:[%s2 + $0x168] sm:$0xff]
    %v1788 = vld [vmem:[%s2 + $0x170] sm:$0xff]
    %v1789 = vld [vmem:[%s2 + $0x178] sm:$0xff]
    %v1790 = vld [vmem:[%s2 + $0x180] sm:$0xff]
    %v1791 = vld [vmem:[%s2 + $0x188] sm:$0xff]
    %v1792 = vld [vmem:[%s2 + $0x190] sm:$0xff]
    %v1793 = vld [vmem:[%s2 + $0x198] sm:$0xff]
    %v1794 = vld [vmem:[%s2 + $0x1a0] sm:$0xff]
    %v1795 = vld [vmem:[%s2 + $0x1a8] sm:$0xff]
    %v1796 = vld [vmem:[%s2 + $0x1b0] sm:$0xff]
    %v1797 = vld [vmem:[%s2 + $0x1b8] sm:$0xff]
    %v1854 = vunpack.c.l.b16 %v1742
    %v1855 = vunpack.c.h.b16 %v1742
    %v1856 = vunpack.c.l.b16 %v1743
    %v1857 = vunpack.c.h.b16 %v1743
    %v1858 = vunpack.c.l.b16 %v1744
    %v1859 = vunpack.c.h.b16 %v1744
    %v1860 = vunpack.c.l.b16 %v1745
    %v1861 = vunpack.c.h.b16 %v1745
    %v1862 = vunpack.c.l.b16 %v1746
    %v1863 = vunpack.c.h.b16 %v1746
    %v1864 = vunpack.c.l.b16 %v1747
    %v1865 = vunpack.c.h.b16 %v1747
    %v1866 = vunpack.c.l.b16 %v1748
    %v1867 = vunpack.c.h.b16 %v1748
    %v1868 = vunpack.c.l.b16 %v1749
    %v1869 = vunpack.c.h.b16 %v1749
    %v1870 = vunpack.c.l.b16 %v1750
    %v1871 = vunpack.c.h.b16 %v1750
    %v1872 = vunpack.c.l.b16 %v1751
    %v1873 = vunpack.c.h.b16 %v1751
    %v1874 = vunpack.c.l.b16 %v1752
    %v1875 = vunpack.c.h.b16 %v1752
    %v1876 = vunpack.c.l.b16 %v1753
    %v1877 = vunpack.c.h.b16 %v1753
    %v1878 = vunpack.c.l.b16 %v1754
    %v1879 = vunpack.c.h.b16 %v1754
    %v1880 = vunpack.c.l.b16 %v1755
    %v1881 = vunpack.c.h.b16 %v1755
    %v1882 = vunpack.c.l.b16 %v1756
    %v1883 = vunpack.c.h.b16 %v1756
    %v1884 = vunpack.c.l.b16 %v1757
    %v1885 = vunpack.c.h.b16 %v1757
    %v1886 = vunpack.c.l.b16 %v1758
    %v1887 = vunpack.c.h.b16 %v1758
    %v1888 = vunpack.c.l.b16 %v1759
    %v1889 = vunpack.c.h.b16 %v1759
    %v1890 = vunpack.c.l.b16 %v1760
    %v1891 = vunpack.c.h.b16 %v1760
    %v1892 = vunpack.c.l.b16 %v1761
    %v1893 = vunpack.c.h.b16 %v1761
    %v1894 = vunpack.c.l.b16 %v1762
    %v1895 = vunpack.c.h.b16 %v1762
    %v1896 = vunpack.c.l.b16 %v1763
    %v1897 = vunpack.c.h.b16 %v1763
    %v1898 = vunpack.c.l.b16 %v1764
    %v1899 = vunpack.c.h.b16 %v1764
    %v1900 = vunpack.c.l.b16 %v1765
    %v1901 = vunpack.c.h.b16 %v1765
    %v1902 = vunpack.c.l.b16 %v1766
    %v1903 = vunpack.c.h.b16 %v1766
    %v1904 = vunpack.c.l.b16 %v1767
    %v1905 = vunpack.c.h.b16 %v1767
    %v1906 = vunpack.c.l.b16 %v1768
    %v1907 = vunpack.c.h.b16 %v1768
    %v1908 = vunpack.c.l.b16 %v1769
    %v1909 = vunpack.c.h.b16 %v1769
    %v1910 = vunpack.c.l.b16 %v1770
    %v1911 = vunpack.c.h.b16 %v1770
    %v1912 = vunpack.c.l.b16 %v1771
    %v1913 = vunpack.c.h.b16 %v1771
    %v1914 = vunpack.c.l.b16 %v1772
    %v1915 = vunpack.c.h.b16 %v1772
    %v1916 = vunpack.c.l.b16 %v1773
    %v1917 = vunpack.c.h.b16 %v1773
    %v1918 = vunpack.c.l.b16 %v1774
    %v1919 = vunpack.c.h.b16 %v1774
    %v1920 = vunpack.c.l.b16 %v1775
    %v1921 = vunpack.c.h.b16 %v1775
    %v1922 = vunpack.c.l.b16 %v1776
    %v1923 = vunpack.c.h.b16 %v1776
    %v1924 = vunpack.c.l.b16 %v1777
    %v1925 = vunpack.c.h.b16 %v1777
    %v1926 = vunpack.c.l.b16 %v1778
    %v1927 = vunpack.c.h.b16 %v1778
    %v1928 = vunpack.c.l.b16 %v1779
    %v1929 = vunpack.c.h.b16 %v1779
    %v1930 = vunpack.c.l.b16 %v1780
    %v1931 = vunpack.c.h.b16 %v1780
    %v1932 = vunpack.c.l.b16 %v1781
    %v1933 = vunpack.c.h.b16 %v1781
    %v1934 = vunpack.c.l.b16 %v1782
    %v1935 = vunpack.c.h.b16 %v1782
    %v1936 = vunpack.c.l.b16 %v1783
    %v1937 = vunpack.c.h.b16 %v1783
    %v1938 = vunpack.c.l.b16 %v1784
    %v1939 = vunpack.c.h.b16 %v1784
    %v1940 = vunpack.c.l.b16 %v1785
    %v1941 = vunpack.c.h.b16 %v1785
    %v1942 = vunpack.c.l.b16 %v1786
    %v1943 = vunpack.c.h.b16 %v1786
    %v1944 = vunpack.c.l.b16 %v1787
    %v1945 = vunpack.c.h.b16 %v1787
    %v1946 = vunpack.c.l.b16 %v1788
    %v1947 = vunpack.c.h.b16 %v1788
    %v1948 = vunpack.c.l.b16 %v1789
    %v1949 = vunpack.c.h.b16 %v1789
    %v1950 = vunpack.c.l.b16 %v1790
    %v1951 = vunpack.c.h.b16 %v1790
    %v1952 = vunpack.c.l.b16 %v1791
    %v1953 = vunpack.c.h.b16 %v1791
    %v1954 = vunpack.c.l.b16 %v1792
    %v1955 = vunpack.c.h.b16 %v1792
    %v1956 = vunpack.c.l.b16 %v1793
    %v1957 = vunpack.c.h.b16 %v1793
    %v1958 = vunpack.c.l.b16 %v1794
    %v1959 = vunpack.c.h.b16 %v1794
    %v1960 = vunpack.c.l.b16 %v1795
    %v1961 = vunpack.c.h.b16 %v1795
    %v1962 = vunpack.c.l.b16 %v1796
    %v1963 = vunpack.c.h.b16 %v1796
    %v1964 = vunpack.c.l.b16 %v1797
    %v1965 = vunpack.c.h.b16 %v1797
    %v1966 = vpack.c.b16 %v1856, %v1854
    %v1967 = vpack.c.b16 %v1857, %v1855
    %v1968 = vpack.c.b16 %v1860, %v1858
    %v1969 = vpack.c.b16 %v1861, %v1859
    %v1970 = vpack.c.b16 %v1864, %v1862
    %v1971 = vpack.c.b16 %v1865, %v1863
    %v1972 = vpack.c.b16 %v1868, %v1866
    %v1973 = vpack.c.b16 %v1869, %v1867
    %v1974 = vpack.c.b16 %v1872, %v1870
    %v1975 = vpack.c.b16 %v1873, %v1871
    %v1976 = vpack.c.b16 %v1876, %v1874
    %v1977 = vpack.c.b16 %v1877, %v1875
    %v1978 = vpack.c.b16 %v1880, %v1878
    %v1979 = vpack.c.b16 %v1881, %v1879
    %v1980 = vpack.c.b16 %v1884, %v1882
    %v1981 = vpack.c.b16 %v1885, %v1883
    %v1982 = vpack.c.b16 %v1888, %v1886
    %v1983 = vpack.c.b16 %v1889, %v1887
    %v1984 = vpack.c.b16 %v1892, %v1890
    %v1985 = vpack.c.b16 %v1893, %v1891
    %v1986 = vpack.c.b16 %v1896, %v1894
    %v1987 = vpack.c.b16 %v1897, %v1895
    %v1988 = vpack.c.b16 %v1900, %v1898
    %v1989 = vpack.c.b16 %v1901, %v1899
    %v1990 = vpack.c.b16 %v1904, %v1902
    %v1991 = vpack.c.b16 %v1905, %v1903
    %v1992 = vpack.c.b16 %v1908, %v1906
    %v1993 = vpack.c.b16 %v1909, %v1907
    %v1994 = vpack.c.b16 %v1912, %v1910
    %v1995 = vpack.c.b16 %v1913, %v1911
    %v1996 = vpack.c.b16 %v1916, %v1914
    %v1997 = vpack.c.b16 %v1917, %v1915
    %v1998 = vpack.c.b16 %v1920, %v1918
    %v1999 = vpack.c.b16 %v1921, %v1919
    %v2000 = vpack.c.b16 %v1924, %v1922
    %v2001 = vpack.c.b16 %v1925, %v1923
    %v2002 = vpack.c.b16 %v1928, %v1926
    %v2003 = vpack.c.b16 %v1929, %v1927
    %v2004 = vpack.c.b16 %v1932, %v1930
    %v2005 = vpack.c.b16 %v1933, %v1931
    %v2006 = vpack.c.b16 %v1936, %v1934
    %v2007 = vpack.c.b16 %v1937, %v1935
    %v2008 = vpack.c.b16 %v1940, %v1938
    %v2009 = vpack.c.b16 %v1941, %v1939
    %v2010 = vpack.c.b16 %v1944, %v1942
    %v2011 = vpack.c.b16 %v1945, %v1943
    %v2012 = vpack.c.b16 %v1948, %v1946
    %v2013 = vpack.c.b16 %v1949, %v1947
    %v2014 = vpack.c.b16 %v1952, %v1950
    %v2015 = vpack.c.b16 %v1953, %v1951
    %v2016 = vpack.c.b16 %v1956, %v1954
    %v2017 = vpack.c.b16 %v1957, %v1955
    %v2018 = vpack.c.b16 %v1960, %v1958
    %v2019 = vpack.c.b16 %v1961, %v1959
    %v2020 = vpack.c.b16 %v1964, %v1962
    %v2021 = vpack.c.b16 %v1965, %v1963
    %vm2078 = vcmask 523264
    %v2080 = vsel %vm2078, %v1741, 0
    %2082 = vmatprep.subr.bf16.mxu0 %v1981
    %2083 = vmatpush1.bf16.msra.mxu0 %v1980
    %2084 = vmatprep.subr.bf16.mxu0 %v1979
    %2085 = vmatpush1.bf16.msra.mxu0 %v1978
    %2086 = vmatprep.subr.bf16.mxu0 %v1977
    %2087 = vmatpush1.bf16.msra.mxu0 %v1976
    %2088 = vmatprep.subr.bf16.mxu0 %v1975
    %2089 = vmatpush1.bf16.msra.mxu0 %v1974
    %2090 = vmatprep.subr.bf16.mxu0 %v1973
    %2091 = vmatpush1.bf16.msra.mxu0 %v1972
    %2092 = vmatprep.subr.bf16.mxu0 %v1971
    %2093 = vmatpush1.bf16.msra.mxu0 %v1970
    %2094 = vmatprep.subr.bf16.mxu0 %v1969
    %2095 = vmatpush1.bf16.msra.mxu0 %v1968
    %2096 = vmatprep.subr.bf16.mxu0 %v1967
    %2097 = vmatpush1.bf16.msra.mxu0 %v1966
    %2098 = vmatprep.subr.bf16.mxu0 %v1997
    %2099 = vmatpush2.bf16.msra.mxu0 %v1996
    %2100 = vmatprep.subr.bf16.mxu0 %v1995
    %2101 = vmatpush2.bf16.msra.mxu0 %v1994
    %2102 = vmatprep.subr.bf16.mxu0 %v1993
    %2103 = vmatpush2.bf16.msra.mxu0 %v1992
    %2104 = vmatprep.subr.bf16.mxu0 %v1991
    %2105 = vmatpush2.bf16.msra.mxu0 %v1990
    %2106 = vmatprep.subr.bf16.mxu0 %v1989
    %2107 = vmatpush2.bf16.msra.mxu0 %v1988
    %2108 = vmatprep.subr.bf16.mxu0 %v1987
    %2109 = vmatpush2.bf16.msra.mxu0 %v1986
    %2110 = vmatprep.subr.bf16.mxu0 %v1985
    %2111 = vmatpush2.bf16.msra.mxu0 %v1984
    %2112 = vmatprep.subr.bf16.mxu0 %v1983
    %2113 = vmatpush2.bf16.msra.mxu0 %v1982
    %2114 = vmatprep.mubr.bf16.mxu0 %v1739
    %2115 = vmatmul.mubr.bf16.gmra.mxu0 %v1738
    %v2116 = vpop.f32.mrf.mxu0
    %v2117 = vadd.f32 0.0, %v2116
    %v2118 = vpop.f32.mrf.mxu0
    %v2119 = vadd.f32 0.0, %v2118
    %v2120 = vpop.f32.mrf.mxu0
    %v2121 = vadd.f32 0.0, %v2120
    %v2122 = vpop.f32.mrf.mxu0
    %v2123 = vadd.f32 0.0, %v2122
    %2124 = vdwg.mxu0
    %2125 = vmatprep.subr.bf16.mxu0 %v2013
    %2126 = vmatpush1.bf16.msra.mxu0 %v2012
    %2127 = vmatprep.subr.bf16.mxu0 %v2011
    %2128 = vmatpush1.bf16.msra.mxu0 %v2010
    %2129 = vmatprep.subr.bf16.mxu0 %v2009
    %2130 = vmatpush1.bf16.msra.mxu0 %v2008
    %2131 = vmatprep.subr.bf16.mxu0 %v2007
    %2132 = vmatpush1.bf16.msra.mxu0 %v2006
    %2133 = vmatprep.subr.bf16.mxu0 %v2005
    %2134 = vmatpush1.bf16.msra.mxu0 %v2004
    %2135 = vmatprep.subr.bf16.mxu0 %v2003
    %2136 = vmatpush1.bf16.msra.mxu0 %v2002
    %2137 = vmatprep.subr.bf16.mxu0 %v2001
    %2138 = vmatpush1.bf16.msra.mxu0 %v2000
    %2139 = vmatprep.subr.bf16.mxu0 %v1999
    %2140 = vmatpush1.bf16.msra.mxu0 %v1998
    %2141 = vmatprep.subr.bf16.mxu0 0
    %2142 = vmatpush2.bf16.msra.mxu0 0
    %2143 = vmatprep.subr.bf16.mxu0 0
    %2144 = vmatpush2.bf16.msra.mxu0 0
    %2145 = vmatprep.subr.bf16.mxu0 0
    %2146 = vmatpush2.bf16.msra.mxu0 0
    %2147 = vmatprep.subr.bf16.mxu0 0
    %2148 = vmatpush2.bf16.msra.mxu0 0
    %2149 = vmatprep.subr.bf16.mxu0 %v2021
    %2150 = vmatpush2.bf16.msra.mxu0 %v2020
    %2151 = vmatprep.subr.bf16.mxu0 %v2019
    %2152 = vmatpush2.bf16.msra.mxu0 %v2018
    %2153 = vmatprep.subr.bf16.mxu0 %v2017
    %2154 = vmatpush2.bf16.msra.mxu0 %v2016
    %2155 = vmatprep.subr.bf16.mxu0 %v2015
    %2156 = vmatpush2.bf16.msra.mxu0 %v2014
    %2157 = vmatprep.mubr.bf16.mxu0 %v2080
    %2158 = vmatmul.mubr.bf16.gmra.mxu0 %v1740
    %v2159 = vpop.f32.mrf.mxu0
    %v2160 = vadd.f32 %v2117, %v2159
    %v2161 = vpop.f32.mrf.mxu0
    %v2162 = vadd.f32 %v2119, %v2161
    %v2163 = vpop.f32.mrf.mxu0
    %v2164 = vadd.f32 %v2121, %v2163
    %v2165 = vpop.f32.mrf.mxu0
    %v2166 = vadd.f32 %v2123, %v2165
    %2167 = vdwg.mxu0
    %s2168 = scalar_lea.vmem %s2, 448
    %v2169 = vld [vmem:[%s2168] sm:$0xff]
    %v2170 = vld [vmem:[%s2168 + $0x8] sm:$0xff]
    %v2171 = vld [vmem:[%s2168 + $0x10] sm:$0xff]
    %v2172 = vld [vmem:[%s2168 + $0x18] sm:$0xff]
    %v2173 = vld [vmem:[%s2168 + $0x20] sm:$0xff]
    %v2174 = vld [vmem:[%s2168 + $0x28] sm:$0xff]
    %v2175 = vld [vmem:[%s2168 + $0x30] sm:$0xff]
    %v2176 = vld [vmem:[%s2168 + $0x38] sm:$0xff]
    %v2177 = vld [vmem:[%s2168 + $0x40] sm:$0xff]
    %v2178 = vld [vmem:[%s2168 + $0x48] sm:$0xff]
    %v2179 = vld [vmem:[%s2168 + $0x50] sm:$0xff]
    %v2180 = vld [vmem:[%s2168 + $0x58] sm:$0xff]
    %v2181 = vld [vmem:[%s2168 + $0x60] sm:$0xff]
    %v2182 = vld [vmem:[%s2168 + $0x68] sm:$0xff]
    %v2183 = vld [vmem:[%s2168 + $0x70] sm:$0xff]
    %v2184 = vld [vmem:[%s2168 + $0x78] sm:$0xff]
    %v2185 = vld [vmem:[%s2168 + $0x80] sm:$0xff]
    %v2186 = vld [vmem:[%s2168 + $0x88] sm:$0xff]
    %v2187 = vld [vmem:[%s2168 + $0x90] sm:$0xff]
    %v2188 = vld [vmem:[%s2168 + $0x98] sm:$0xff]
    %v2189 = vld [vmem:[%s2168 + $0xa0] sm:$0xff]
    %v2190 = vld [vmem:[%s2168 + $0xa8] sm:$0xff]
    %v2191 = vld [vmem:[%s2168 + $0xb0] sm:$0xff]
    %v2192 = vld [vmem:[%s2168 + $0xb8] sm:$0xff]
    %v2193 = vld [vmem:[%s2168 + $0xc0] sm:$0xff]
    %v2194 = vld [vmem:[%s2168 + $0xc8] sm:$0xff]
    %v2195 = vld [vmem:[%s2168 + $0xd0] sm:$0xff]
    %v2196 = vld [vmem:[%s2168 + $0xd8] sm:$0xff]
    %v2197 = vld [vmem:[%s2168 + $0xe0] sm:$0xff]
    %v2198 = vld [vmem:[%s2168 + $0xe8] sm:$0xff]
    %v2199 = vld [vmem:[%s2168 + $0xf0] sm:$0xff]
    %v2200 = vld [vmem:[%s2168 + $0xf8] sm:$0xff]
    %v2201 = vld [vmem:[%s2168 + $0x100] sm:$0xff]
    %v2202 = vld [vmem:[%s2168 + $0x108] sm:$0xff]
    %v2203 = vld [vmem:[%s2168 + $0x110] sm:$0xff]
    %v2204 = vld [vmem:[%s2168 + $0x118] sm:$0xff]
    %v2205 = vld [vmem:[%s2168 + $0x120] sm:$0xff]
    %v2206 = vld [vmem:[%s2168 + $0x128] sm:$0xff]
    %v2207 = vld [vmem:[%s2168 + $0x130] sm:$0xff]
    %v2208 = vld [vmem:[%s2168 + $0x138] sm:$0xff]
    %v2209 = vld [vmem:[%s2168 + $0x140] sm:$0xff]
    %v2210 = vld [vmem:[%s2168 + $0x148] sm:$0xff]
    %v2211 = vld [vmem:[%s2168 + $0x150] sm:$0xff]
    %v2212 = vld [vmem:[%s2168 + $0x158] sm:$0xff]
    %v2213 = vld [vmem:[%s2168 + $0x160] sm:$0xff]
    %v2214 = vld [vmem:[%s2168 + $0x168] sm:$0xff]
    %v2215 = vld [vmem:[%s2168 + $0x170] sm:$0xff]
    %v2216 = vld [vmem:[%s2168 + $0x178] sm:$0xff]
    %v2217 = vld [vmem:[%s2168 + $0x180] sm:$0xff]
    %v2218 = vld [vmem:[%s2168 + $0x188] sm:$0xff]
    %v2219 = vld [vmem:[%s2168 + $0x190] sm:$0xff]
    %v2220 = vld [vmem:[%s2168 + $0x198] sm:$0xff]
    %v2221 = vld [vmem:[%s2168 + $0x1a0] sm:$0xff]
    %v2222 = vld [vmem:[%s2168 + $0x1a8] sm:$0xff]
    %v2223 = vld [vmem:[%s2168 + $0x1b0] sm:$0xff]
    %v2224 = vld [vmem:[%s2168 + $0x1b8] sm:$0xff]
    %v2281 = vunpack.c.l.b16 %v2169
    %v2282 = vunpack.c.h.b16 %v2169
    %v2283 = vunpack.c.l.b16 %v2170
    %v2284 = vunpack.c.h.b16 %v2170
    %v2285 = vunpack.c.l.b16 %v2171
    %v2286 = vunpack.c.h.b16 %v2171
    %v2287 = vunpack.c.l.b16 %v2172
    %v2288 = vunpack.c.h.b16 %v2172
    %v2289 = vunpack.c.l.b16 %v2173
    %v2290 = vunpack.c.h.b16 %v2173
    %v2291 = vunpack.c.l.b16 %v2174
    %v2292 = vunpack.c.h.b16 %v2174
    %v2293 = vunpack.c.l.b16 %v2175
    %v2294 = vunpack.c.h.b16 %v2175
    %v2295 = vunpack.c.l.b16 %v2176
    %v2296 = vunpack.c.h.b16 %v2176
    %v2297 = vunpack.c.l.b16 %v2177
    %v2298 = vunpack.c.h.b16 %v2177
    %v2299 = vunpack.c.l.b16 %v2178
    %v2300 = vunpack.c.h.b16 %v2178
    %v2301 = vunpack.c.l.b16 %v2179
    %v2302 = vunpack.c.h.b16 %v2179
    %v2303 = vunpack.c.l.b16 %v2180
    %v2304 = vunpack.c.h.b16 %v2180
    %v2305 = vunpack.c.l.b16 %v2181
    %v2306 = vunpack.c.h.b16 %v2181
    %v2307 = vunpack.c.l.b16 %v2182
    %v2308 = vunpack.c.h.b16 %v2182
    %v2309 = vunpack.c.l.b16 %v2183
    %v2310 = vunpack.c.h.b16 %v2183
    %v2311 = vunpack.c.l.b16 %v2184
    %v2312 = vunpack.c.h.b16 %v2184
    %v2313 = vunpack.c.l.b16 %v2185
    %v2314 = vunpack.c.h.b16 %v2185
    %v2315 = vunpack.c.l.b16 %v2186
    %v2316 = vunpack.c.h.b16 %v2186
    %v2317 = vunpack.c.l.b16 %v2187
    %v2318 = vunpack.c.h.b16 %v2187
    %v2319 = vunpack.c.l.b16 %v2188
    %v2320 = vunpack.c.h.b16 %v2188
    %v2321 = vunpack.c.l.b16 %v2189
    %v2322 = vunpack.c.h.b16 %v2189
    %v2323 = vunpack.c.l.b16 %v2190
    %v2324 = vunpack.c.h.b16 %v2190
    %v2325 = vunpack.c.l.b16 %v2191
    %v2326 = vunpack.c.h.b16 %v2191
    %v2327 = vunpack.c.l.b16 %v2192
    %v2328 = vunpack.c.h.b16 %v2192
    %v2329 = vunpack.c.l.b16 %v2193
    %v2330 = vunpack.c.h.b16 %v2193
    %v2331 = vunpack.c.l.b16 %v2194
    %v2332 = vunpack.c.h.b16 %v2194
    %v2333 = vunpack.c.l.b16 %v2195
    %v2334 = vunpack.c.h.b16 %v2195
    %v2335 = vunpack.c.l.b16 %v2196
    %v2336 = vunpack.c.h.b16 %v2196
    %v2337 = vunpack.c.l.b16 %v2197
    %v2338 = vunpack.c.h.b16 %v2197
    %v2339 = vunpack.c.l.b16 %v2198
    %v2340 = vunpack.c.h.b16 %v2198
    %v2341 = vunpack.c.l.b16 %v2199
    %v2342 = vunpack.c.h.b16 %v2199
    %v2343 = vunpack.c.l.b16 %v2200
    %v2344 = vunpack.c.h.b16 %v2200
    %v2345 = vunpack.c.l.b16 %v2201
    %v2346 = vunpack.c.h.b16 %v2201
    %v2347 = vunpack.c.l.b16 %v2202
    %v2348 = vunpack.c.h.b16 %v2202
    %v2349 = vunpack.c.l.b16 %v2203
    %v2350 = vunpack.c.h.b16 %v2203
    %v2351 = vunpack.c.l.b16 %v2204
    %v2352 = vunpack.c.h.b16 %v2204
    %v2353 = vunpack.c.l.b16 %v2205
    %v2354 = vunpack.c.h.b16 %v2205
    %v2355 = vunpack.c.l.b16 %v2206
    %v2356 = vunpack.c.h.b16 %v2206
    %v2357 = vunpack.c.l.b16 %v2207
    %v2358 = vunpack.c.h.b16 %v2207
    %v2359 = vunpack.c.l.b16 %v2208
    %v2360 = vunpack.c.h.b16 %v2208
    %v2361 = vunpack.c.l.b16 %v2209
    %v2362 = vunpack.c.h.b16 %v2209
    %v2363 = vunpack.c.l.b16 %v2210
    %v2364 = vunpack.c.h.b16 %v2210
    %v2365 = vunpack.c.l.b16 %v2211
    %v2366 = vunpack.c.h.b16 %v2211
    %v2367 = vunpack.c.l.b16 %v2212
    %v2368 = vunpack.c.h.b16 %v2212
    %v2369 = vunpack.c.l.b16 %v2213
    %v2370 = vunpack.c.h.b16 %v2213
    %v2371 = vunpack.c.l.b16 %v2214
    %v2372 = vunpack.c.h.b16 %v2214
    %v2373 = vunpack.c.l.b16 %v2215
    %v2374 = vunpack.c.h.b16 %v2215
    %v2375 = vunpack.c.l.b16 %v2216
    %v2376 = vunpack.c.h.b16 %v2216
    %v2377 = vunpack.c.l.b16 %v2217
    %v2378 = vunpack.c.h.b16 %v2217
    %v2379 = vunpack.c.l.b16 %v2218
    %v2380 = vunpack.c.h.b16 %v2218
    %v2381 = vunpack.c.l.b16 %v2219
    %v2382 = vunpack.c.h.b16 %v2219
    %v2383 = vunpack.c.l.b16 %v2220
    %v2384 = vunpack.c.h.b16 %v2220
    %v2385 = vunpack.c.l.b16 %v2221
    %v2386 = vunpack.c.h.b16 %v2221
    %v2387 = vunpack.c.l.b16 %v2222
    %v2388 = vunpack.c.h.b16 %v2222
    %v2389 = vunpack.c.l.b16 %v2223
    %v2390 = vunpack.c.h.b16 %v2223
    %v2391 = vunpack.c.l.b16 %v2224
    %v2392 = vunpack.c.h.b16 %v2224
    %v2393 = vpack.c.b16 %v2283, %v2281
    %v2394 = vpack.c.b16 %v2284, %v2282
    %v2395 = vpack.c.b16 %v2287, %v2285
    %v2396 = vpack.c.b16 %v2288, %v2286
    %v2397 = vpack.c.b16 %v2291, %v2289
    %v2398 = vpack.c.b16 %v2292, %v2290
    %v2399 = vpack.c.b16 %v2295, %v2293
    %v2400 = vpack.c.b16 %v2296, %v2294
    %v2401 = vpack.c.b16 %v2299, %v2297
    %v2402 = vpack.c.b16 %v2300, %v2298
    %v2403 = vpack.c.b16 %v2303, %v2301
    %v2404 = vpack.c.b16 %v2304, %v2302
    %v2405 = vpack.c.b16 %v2307, %v2305
    %v2406 = vpack.c.b16 %v2308, %v2306
    %v2407 = vpack.c.b16 %v2311, %v2309
    %v2408 = vpack.c.b16 %v2312, %v2310
    %v2409 = vpack.c.b16 %v2315, %v2313
    %v2410 = vpack.c.b16 %v2316, %v2314
    %v2411 = vpack.c.b16 %v2319, %v2317
    %v2412 = vpack.c.b16 %v2320, %v2318
    %v2413 = vpack.c.b16 %v2323, %v2321
    %v2414 = vpack.c.b16 %v2324, %v2322
    %v2415 = vpack.c.b16 %v2327, %v2325
    %v2416 = vpack.c.b16 %v2328, %v2326
    %v2417 = vpack.c.b16 %v2331, %v2329
    %v2418 = vpack.c.b16 %v2332, %v2330
    %v2419 = vpack.c.b16 %v2335, %v2333
    %v2420 = vpack.c.b16 %v2336, %v2334
    %v2421 = vpack.c.b16 %v2339, %v2337
    %v2422 = vpack.c.b16 %v2340, %v2338
    %v2423 = vpack.c.b16 %v2343, %v2341
    %v2424 = vpack.c.b16 %v2344, %v2342
    %v2425 = vpack.c.b16 %v2347, %v2345
    %v2426 = vpack.c.b16 %v2348, %v2346
    %v2427 = vpack.c.b16 %v2351, %v2349
    %v2428 = vpack.c.b16 %v2352, %v2350
    %v2429 = vpack.c.b16 %v2355, %v2353
    %v2430 = vpack.c.b16 %v2356, %v2354
    %v2431 = vpack.c.b16 %v2359, %v2357
    %v2432 = vpack.c.b16 %v2360, %v2358
    %v2433 = vpack.c.b16 %v2363, %v2361
    %v2434 = vpack.c.b16 %v2364, %v2362
    %v2435 = vpack.c.b16 %v2367, %v2365
    %v2436 = vpack.c.b16 %v2368, %v2366
    %v2437 = vpack.c.b16 %v2371, %v2369
    %v2438 = vpack.c.b16 %v2372, %v2370
    %v2439 = vpack.c.b16 %v2375, %v2373
    %v2440 = vpack.c.b16 %v2376, %v2374
    %v2441 = vpack.c.b16 %v2379, %v2377
    %v2442 = vpack.c.b16 %v2380, %v2378
    %v2443 = vpack.c.b16 %v2383, %v2381
    %v2444 = vpack.c.b16 %v2384, %v2382
    %v2445 = vpack.c.b16 %v2387, %v2385
    %v2446 = vpack.c.b16 %v2388, %v2386
    %v2447 = vpack.c.b16 %v2391, %v2389
    %v2448 = vpack.c.b16 %v2392, %v2390
    %2505 = vmatprep.subr.bf16.mxu0 %v2408
    %2506 = vmatpush1.bf16.msra.mxu0 %v2407
    %2507 = vmatprep.subr.bf16.mxu0 %v2406
    %2508 = vmatpush1.bf16.msra.mxu0 %v2405
    %2509 = vmatprep.subr.bf16.mxu0 %v2404
    %2510 = vmatpush1.bf16.msra.mxu0 %v2403
    %2511 = vmatprep.subr.bf16.mxu0 %v2402
    %2512 = vmatpush1.bf16.msra.mxu0 %v2401
    %2513 = vmatprep.subr.bf16.mxu0 %v2400
    %2514 = vmatpush1.bf16.msra.mxu0 %v2399
    %2515 = vmatprep.subr.bf16.mxu0 %v2398
    %2516 = vmatpush1.bf16.msra.mxu0 %v2397
    %2517 = vmatprep.subr.bf16.mxu0 %v2396
    %2518 = vmatpush1.bf16.msra.mxu0 %v2395
    %2519 = vmatprep.subr.bf16.mxu0 %v2394
    %2520 = vmatpush1.bf16.msra.mxu0 %v2393
    %2521 = vmatprep.subr.bf16.mxu0 %v2424
    %2522 = vmatpush2.bf16.msra.mxu0 %v2423
    %2523 = vmatprep.subr.bf16.mxu0 %v2422
    %2524 = vmatpush2.bf16.msra.mxu0 %v2421
    %2525 = vmatprep.subr.bf16.mxu0 %v2420
    %2526 = vmatpush2.bf16.msra.mxu0 %v2419
    %2527 = vmatprep.subr.bf16.mxu0 %v2418
    %2528 = vmatpush2.bf16.msra.mxu0 %v2417
    %2529 = vmatprep.subr.bf16.mxu0 %v2416
    %2530 = vmatpush2.bf16.msra.mxu0 %v2415
    %2531 = vmatprep.subr.bf16.mxu0 %v2414
    %2532 = vmatpush2.bf16.msra.mxu0 %v2413
    %2533 = vmatprep.subr.bf16.mxu0 %v2412
    %2534 = vmatpush2.bf16.msra.mxu0 %v2411
    %2535 = vmatprep.subr.bf16.mxu0 %v2410
    %2536 = vmatpush2.bf16.msra.mxu0 %v2409
    %2537 = vmatprep.mubr.bf16.mxu0 %v1739
    %2538 = vmatmul.mubr.bf16.gmra.mxu0 %v1738
    %v2539 = vpop.f32.mrf.mxu0
    %v2540 = vadd.f32 0.0, %v2539
    %v2541 = vpop.f32.mrf.mxu0
    %v2542 = vadd.f32 0.0, %v2541
    %v2543 = vpop.f32.mrf.mxu0
    %v2544 = vadd.f32 0.0, %v2543
    %v2545 = vpop.f32.mrf.mxu0
    %v2546 = vadd.f32 0.0, %v2545
    %2547 = vdwg.mxu0
    %2548 = vmatprep.subr.bf16.mxu0 %v2440
    %2549 = vmatpush1.bf16.msra.mxu0 %v2439
    %2550 = vmatprep.subr.bf16.mxu0 %v2438
    %2551 = vmatpush1.bf16.msra.mxu0 %v2437
    %2552 = vmatprep.subr.bf16.mxu0 %v2436
    %2553 = vmatpush1.bf16.msra.mxu0 %v2435
    %2554 = vmatprep.subr.bf16.mxu0 %v2434
    %2555 = vmatpush1.bf16.msra.mxu0 %v2433
    %2556 = vmatprep.subr.bf16.mxu0 %v2432
    %2557 = vmatpush1.bf16.msra.mxu0 %v2431
    %2558 = vmatprep.subr.bf16.mxu0 %v2430
    %2559 = vmatpush1.bf16.msra.mxu0 %v2429
    %2560 = vmatprep.subr.bf16.mxu0 %v2428
    %2561 = vmatpush1.bf16.msra.mxu0 %v2427
    %2562 = vmatprep.subr.bf16.mxu0 %v2426
    %2563 = vmatpush1.bf16.msra.mxu0 %v2425
    %2564 = vmatprep.subr.bf16.mxu0 0
    %2565 = vmatpush2.bf16.msra.mxu0 0
    %2566 = vmatprep.subr.bf16.mxu0 0
    %2567 = vmatpush2.bf16.msra.mxu0 0
    %2568 = vmatprep.subr.bf16.mxu0 0
    %2569 = vmatpush2.bf16.msra.mxu0 0
    %2570 = vmatprep.subr.bf16.mxu0 0
    %2571 = vmatpush2.bf16.msra.mxu0 0
    %2572 = vmatprep.subr.bf16.mxu0 %v2448
    %2573 = vmatpush2.bf16.msra.mxu0 %v2447
    %2574 = vmatprep.subr.bf16.mxu0 %v2446
    %2575 = vmatpush2.bf16.msra.mxu0 %v2445
    %2576 = vmatprep.subr.bf16.mxu0 %v2444
    %2577 = vmatpush2.bf16.msra.mxu0 %v2443
    %2578 = vmatprep.subr.bf16.mxu0 %v2442
    %2579 = vmatpush2.bf16.msra.mxu0 %v2441
    %2580 = vmatprep.mubr.bf16.mxu0 %v2080
    %2581 = vmatmul.mubr.bf16.gmra.mxu0 %v1740
    %v2582 = vpop.f32.mrf.mxu0
    %v2583 = vadd.f32 %v2540, %v2582
    %v2584 = vpop.f32.mrf.mxu0
    %v2585 = vadd.f32 %v2542, %v2584
    %v2586 = vpop.f32.mrf.mxu0
    %v2587 = vadd.f32 %v2544, %v2586
    %v2588 = vpop.f32.mrf.mxu0
    %v2589 = vadd.f32 %v2546, %v2588
    %2590 = vdwg.mxu0
    %s2591 = scalar_lea.vmem %s2, 896
    %v2592 = vld [vmem:[%s2591] sm:$0xff]
    %v2593 = vld [vmem:[%s2591 + $0x8] sm:$0xff]
    %v2594 = vld [vmem:[%s2591 + $0x10] sm:$0xff]
    %v2595 = vld [vmem:[%s2591 + $0x18] sm:$0xff]
    %v2596 = vld [vmem:[%s2591 + $0x20] sm:$0xff]
    %v2597 = vld [vmem:[%s2591 + $0x28] sm:$0xff]
    %v2598 = vld [vmem:[%s2591 + $0x30] sm:$0xff]
    %v2599 = vld [vmem:[%s2591 + $0x38] sm:$0xff]
    %v2600 = vld [vmem:[%s2591 + $0x40] sm:$0xff]
    %v2601 = vld [vmem:[%s2591 + $0x48] sm:$0xff]
    %v2602 = vld [vmem:[%s2591 + $0x50] sm:$0xff]
    %v2603 = vld [vmem:[%s2591 + $0x58] sm:$0xff]
    %v2604 = vld [vmem:[%s2591 + $0x60] sm:$0xff]
    %v2605 = vld [vmem:[%s2591 + $0x68] sm:$0xff]
    %v2606 = vld [vmem:[%s2591 + $0x70] sm:$0xff]
    %v2607 = vld [vmem:[%s2591 + $0x78] sm:$0xff]
    %v2608 = vld [vmem:[%s2591 + $0x80] sm:$0xff]
    %v2609 = vld [vmem:[%s2591 + $0x88] sm:$0xff]
    %v2610 = vld [vmem:[%s2591 + $0x90] sm:$0xff]
    %v2611 = vld [vmem:[%s2591 + $0x98] sm:$0xff]
    %v2612 = vld [vmem:[%s2591 + $0xa0] sm:$0xff]
    %v2613 = vld [vmem:[%s2591 + $0xa8] sm:$0xff]
    %v2614 = vld [vmem:[%s2591 + $0xb0] sm:$0xff]
    %v2615 = vld [vmem:[%s2591 + $0xb8] sm:$0xff]
    %v2616 = vld [vmem:[%s2591 + $0xc0] sm:$0xff]
    %v2617 = vld [vmem:[%s2591 + $0xc8] sm:$0xff]
    %v2618 = vld [vmem:[%s2591 + $0xd0] sm:$0xff]
    %v2619 = vld [vmem:[%s2591 + $0xd8] sm:$0xff]
    %v2620 = vld [vmem:[%s2591 + $0xe0] sm:$0xff]
    %v2621 = vld [vmem:[%s2591 + $0xe8] sm:$0xff]
    %v2622 = vld [vmem:[%s2591 + $0xf0] sm:$0xff]
    %v2623 = vld [vmem:[%s2591 + $0xf8] sm:$0xff]
    %v2624 = vld [vmem:[%s2591 + $0x100] sm:$0xff]
    %v2625 = vld [vmem:[%s2591 + $0x108] sm:$0xff]
    %v2626 = vld [vmem:[%s2591 + $0x110] sm:$0xff]
    %v2627 = vld [vmem:[%s2591 + $0x118] sm:$0xff]
    %v2628 = vld [vmem:[%s2591 + $0x120] sm:$0xff]
    %v2629 = vld [vmem:[%s2591 + $0x128] sm:$0xff]
    %v2630 = vld [vmem:[%s2591 + $0x130] sm:$0xff]
    %v2631 = vld [vmem:[%s2591 + $0x138] sm:$0xff]
    %v2632 = vld [vmem:[%s2591 + $0x140] sm:$0xff]
    %v2633 = vld [vmem:[%s2591 + $0x148] sm:$0xff]
    %v2634 = vld [vmem:[%s2591 + $0x150] sm:$0xff]
    %v2635 = vld [vmem:[%s2591 + $0x158] sm:$0xff]
    %v2636 = vld [vmem:[%s2591 + $0x160] sm:$0xff]
    %v2637 = vld [vmem:[%s2591 + $0x168] sm:$0xff]
    %v2638 = vld [vmem:[%s2591 + $0x170] sm:$0xff]
    %v2639 = vld [vmem:[%s2591 + $0x178] sm:$0xff]
    %v2640 = vld [vmem:[%s2591 + $0x180] sm:$0xff]
    %v2641 = vld [vmem:[%s2591 + $0x188] sm:$0xff]
    %v2642 = vld [vmem:[%s2591 + $0x190] sm:$0xff]
    %v2643 = vld [vmem:[%s2591 + $0x198] sm:$0xff]
    %v2644 = vld [vmem:[%s2591 + $0x1a0] sm:$0xff]
    %v2645 = vld [vmem:[%s2591 + $0x1a8] sm:$0xff]
    %v2646 = vld [vmem:[%s2591 + $0x1b0] sm:$0xff]
    %v2647 = vld [vmem:[%s2591 + $0x1b8] sm:$0xff]
    %v2704 = vunpack.c.l.b16 %v2592
    %v2705 = vunpack.c.h.b16 %v2592
    %v2706 = vunpack.c.l.b16 %v2593
    %v2707 = vunpack.c.h.b16 %v2593
    %v2708 = vunpack.c.l.b16 %v2594
    %v2709 = vunpack.c.h.b16 %v2594
    %v2710 = vunpack.c.l.b16 %v2595
    %v2711 = vunpack.c.h.b16 %v2595
    %v2712 = vunpack.c.l.b16 %v2596
    %v2713 = vunpack.c.h.b16 %v2596
    %v2714 = vunpack.c.l.b16 %v2597
    %v2715 = vunpack.c.h.b16 %v2597
    %v2716 = vunpack.c.l.b16 %v2598
    %v2717 = vunpack.c.h.b16 %v2598
    %v2718 = vunpack.c.l.b16 %v2599
    %v2719 = vunpack.c.h.b16 %v2599
    %v2720 = vunpack.c.l.b16 %v2600
    %v2721 = vunpack.c.h.b16 %v2600
    %v2722 = vunpack.c.l.b16 %v2601
    %v2723 = vunpack.c.h.b16 %v2601
    %v2724 = vunpack.c.l.b16 %v2602
    %v2725 = vunpack.c.h.b16 %v2602
    %v2726 = vunpack.c.l.b16 %v2603
    %v2727 = vunpack.c.h.b16 %v2603
    %v2728 = vunpack.c.l.b16 %v2604
    %v2729 = vunpack.c.h.b16 %v2604
    %v2730 = vunpack.c.l.b16 %v2605
    %v2731 = vunpack.c.h.b16 %v2605
    %v2732 = vunpack.c.l.b16 %v2606
    %v2733 = vunpack.c.h.b16 %v2606
    %v2734 = vunpack.c.l.b16 %v2607
    %v2735 = vunpack.c.h.b16 %v2607
    %v2736 = vunpack.c.l.b16 %v2608
    %v2737 = vunpack.c.h.b16 %v2608
    %v2738 = vunpack.c.l.b16 %v2609
    %v2739 = vunpack.c.h.b16 %v2609
    %v2740 = vunpack.c.l.b16 %v2610
    %v2741 = vunpack.c.h.b16 %v2610
    %v2742 = vunpack.c.l.b16 %v2611
    %v2743 = vunpack.c.h.b16 %v2611
    %v2744 = vunpack.c.l.b16 %v2612
    %v2745 = vunpack.c.h.b16 %v2612
    %v2746 = vunpack.c.l.b16 %v2613
    %v2747 = vunpack.c.h.b16 %v2613
    %v2748 = vunpack.c.l.b16 %v2614
    %v2749 = vunpack.c.h.b16 %v2614
    %v2750 = vunpack.c.l.b16 %v2615
    %v2751 = vunpack.c.h.b16 %v2615
    %v2752 = vunpack.c.l.b16 %v2616
    %v2753 = vunpack.c.h.b16 %v2616
    %v2754 = vunpack.c.l.b16 %v2617
    %v2755 = vunpack.c.h.b16 %v2617
    %v2756 = vunpack.c.l.b16 %v2618
    %v2757 = vunpack.c.h.b16 %v2618
    %v2758 = vunpack.c.l.b16 %v2619
    %v2759 = vunpack.c.h.b16 %v2619
    %v2760 = vunpack.c.l.b16 %v2620
    %v2761 = vunpack.c.h.b16 %v2620
    %v2762 = vunpack.c.l.b16 %v2621
    %v2763 = vunpack.c.h.b16 %v2621
    %v2764 = vunpack.c.l.b16 %v2622
    %v2765 = vunpack.c.h.b16 %v2622
    %v2766 = vunpack.c.l.b16 %v2623
    %v2767 = vunpack.c.h.b16 %v2623
    %v2768 = vunpack.c.l.b16 %v2624
    %v2769 = vunpack.c.h.b16 %v2624
    %v2770 = vunpack.c.l.b16 %v2625
    %v2771 = vunpack.c.h.b16 %v2625
    %v2772 = vunpack.c.l.b16 %v2626
    %v2773 = vunpack.c.h.b16 %v2626
    %v2774 = vunpack.c.l.b16 %v2627
    %v2775 = vunpack.c.h.b16 %v2627
    %v2776 = vunpack.c.l.b16 %v2628
    %v2777 = vunpack.c.h.b16 %v2628
    %v2778 = vunpack.c.l.b16 %v2629
    %v2779 = vunpack.c.h.b16 %v2629
    %v2780 = vunpack.c.l.b16 %v2630
    %v2781 = vunpack.c.h.b16 %v2630
    %v2782 = vunpack.c.l.b16 %v2631
    %v2783 = vunpack.c.h.b16 %v2631
    %v2784 = vunpack.c.l.b16 %v2632
    %v2785 = vunpack.c.h.b16 %v2632
    %v2786 = vunpack.c.l.b16 %v2633
    %v2787 = vunpack.c.h.b16 %v2633
    %v2788 = vunpack.c.l.b16 %v2634
    %v2789 = vunpack.c.h.b16 %v2634
    %v2790 = vunpack.c.l.b16 %v2635
    %v2791 = vunpack.c.h.b16 %v2635
    %v2792 = vunpack.c.l.b16 %v2636
    %v2793 = vunpack.c.h.b16 %v2636
    %v2794 = vunpack.c.l.b16 %v2637
    %v2795 = vunpack.c.h.b16 %v2637
    %v2796 = vunpack.c.l.b16 %v2638
    %v2797 = vunpack.c.h.b16 %v2638
    %v2798 = vunpack.c.l.b16 %v2639
    %v2799 = vunpack.c.h.b16 %v2639
    %v2800 = vunpack.c.l.b16 %v2640
    %v2801 = vunpack.c.h.b16 %v2640
    %v2802 = vunpack.c.l.b16 %v2641
    %v2803 = vunpack.c.h.b16 %v2641
    %v2804 = vunpack.c.l.b16 %v2642
    %v2805 = vunpack.c.h.b16 %v2642
    %v2806 = vunpack.c.l.b16 %v2643
    %v2807 = vunpack.c.h.b16 %v2643
    %v2808 = vunpack.c.l.b16 %v2644
    %v2809 = vunpack.c.h.b16 %v2644
    %v2810 = vunpack.c.l.b16 %v2645
    %v2811 = vunpack.c.h.b16 %v2645
    %v2812 = vunpack.c.l.b16 %v2646
    %v2813 = vunpack.c.h.b16 %v2646
    %v2814 = vunpack.c.l.b16 %v2647
    %v2815 = vunpack.c.h.b16 %v2647
    %v2816 = vpack.c.b16 %v2706, %v2704
    %v2817 = vpack.c.b16 %v2707, %v2705
    %v2818 = vpack.c.b16 %v2710, %v2708
    %v2819 = vpack.c.b16 %v2711, %v2709
    %v2820 = vpack.c.b16 %v2714, %v2712
    %v2821 = vpack.c.b16 %v2715, %v2713
    %v2822 = vpack.c.b16 %v2718, %v2716
    %v2823 = vpack.c.b16 %v2719, %v2717
    %v2824 = vpack.c.b16 %v2722, %v2720
    %v2825 = vpack.c.b16 %v2723, %v2721
    %v2826 = vpack.c.b16 %v2726, %v2724
    %v2827 = vpack.c.b16 %v2727, %v2725
    %v2828 = vpack.c.b16 %v2730, %v2728
    %v2829 = vpack.c.b16 %v2731, %v2729
    %v2830 = vpack.c.b16 %v2734, %v2732
    %v2831 = vpack.c.b16 %v2735, %v2733
    %v2832 = vpack.c.b16 %v2738, %v2736
    %v2833 = vpack.c.b16 %v2739, %v2737
    %v2834 = vpack.c.b16 %v2742, %v2740
    %v2835 = vpack.c.b16 %v2743, %v2741
    %v2836 = vpack.c.b16 %v2746, %v2744
    %v2837 = vpack.c.b16 %v2747, %v2745
    %v2838 = vpack.c.b16 %v2750, %v2748
    %v2839 = vpack.c.b16 %v2751, %v2749
    %v2840 = vpack.c.b16 %v2754, %v2752
    %v2841 = vpack.c.b16 %v2755, %v2753
    %v2842 = vpack.c.b16 %v2758, %v2756
    %v2843 = vpack.c.b16 %v2759, %v2757
    %v2844 = vpack.c.b16 %v2762, %v2760
    %v2845 = vpack.c.b16 %v2763, %v2761
    %v2846 = vpack.c.b16 %v2766, %v2764
    %v2847 = vpack.c.b16 %v2767, %v2765
    %v2848 = vpack.c.b16 %v2770, %v2768
    %v2849 = vpack.c.b16 %v2771, %v2769
    %v2850 = vpack.c.b16 %v2774, %v2772
    %v2851 = vpack.c.b16 %v2775, %v2773
    %v2852 = vpack.c.b16 %v2778, %v2776
    %v2853 = vpack.c.b16 %v2779, %v2777
    %v2854 = vpack.c.b16 %v2782, %v2780
    %v2855 = vpack.c.b16 %v2783, %v2781
    %v2856 = vpack.c.b16 %v2786, %v2784
    %v2857 = vpack.c.b16 %v2787, %v2785
    %v2858 = vpack.c.b16 %v2790, %v2788
    %v2859 = vpack.c.b16 %v2791, %v2789
    %v2860 = vpack.c.b16 %v2794, %v2792
    %v2861 = vpack.c.b16 %v2795, %v2793
    %v2862 = vpack.c.b16 %v2798, %v2796
    %v2863 = vpack.c.b16 %v2799, %v2797
    %v2864 = vpack.c.b16 %v2802, %v2800
    %v2865 = vpack.c.b16 %v2803, %v2801
    %v2866 = vpack.c.b16 %v2806, %v2804
    %v2867 = vpack.c.b16 %v2807, %v2805
    %v2868 = vpack.c.b16 %v2810, %v2808
    %v2869 = vpack.c.b16 %v2811, %v2809
    %v2870 = vpack.c.b16 %v2814, %v2812
    %v2871 = vpack.c.b16 %v2815, %v2813
    %2928 = vmatprep.subr.bf16.mxu0 %v2831
    %2929 = vmatpush1.bf16.msra.mxu0 %v2830
    %2930 = vmatprep.subr.bf16.mxu0 %v2829
    %2931 = vmatpush1.bf16.msra.mxu0 %v2828
    %2932 = vmatprep.subr.bf16.mxu0 %v2827
    %2933 = vmatpush1.bf16.msra.mxu0 %v2826
    %2934 = vmatprep.subr.bf16.mxu0 %v2825
    %2935 = vmatpush1.bf16.msra.mxu0 %v2824
    %2936 = vmatprep.subr.bf16.mxu0 %v2823
    %2937 = vmatpush1.bf16.msra.mxu0 %v2822
    %2938 = vmatprep.subr.bf16.mxu0 %v2821
    %2939 = vmatpush1.bf16.msra.mxu0 %v2820
    %2940 = vmatprep.subr.bf16.mxu0 %v2819
    %2941 = vmatpush1.bf16.msra.mxu0 %v2818
    %2942 = vmatprep.subr.bf16.mxu0 %v2817
    %2943 = vmatpush1.bf16.msra.mxu0 %v2816
    %2944 = vmatprep.subr.bf16.mxu0 %v2847
    %2945 = vmatpush2.bf16.msra.mxu0 %v2846
    %2946 = vmatprep.subr.bf16.mxu0 %v2845
    %2947 = vmatpush2.bf16.msra.mxu0 %v2844
    %2948 = vmatprep.subr.bf16.mxu0 %v2843
    %2949 = vmatpush2.bf16.msra.mxu0 %v2842
    %2950 = vmatprep.subr.bf16.mxu0 %v2841
    %2951 = vmatpush2.bf16.msra.mxu0 %v2840
    %2952 = vmatprep.subr.bf16.mxu0 %v2839
    %2953 = vmatpush2.bf16.msra.mxu0 %v2838
    %2954 = vmatprep.subr.bf16.mxu0 %v2837
    %2955 = vmatpush2.bf16.msra.mxu0 %v2836
    %2956 = vmatprep.subr.bf16.mxu0 %v2835
    %2957 = vmatpush2.bf16.msra.mxu0 %v2834
    %2958 = vmatprep.subr.bf16.mxu0 %v2833
    %2959 = vmatpush2.bf16.msra.mxu0 %v2832
    %2960 = vmatprep.mubr.bf16.mxu0 %v1739
    %2961 = vmatmul.mubr.bf16.gmra.mxu0 %v1738
    %v2962 = vpop.f32.mrf.mxu0
    %v2963 = vadd.f32 0.0, %v2962
    %v2964 = vpop.f32.mrf.mxu0
    %v2965 = vadd.f32 0.0, %v2964
    %v2966 = vpop.f32.mrf.mxu0
    %v2967 = vadd.f32 0.0, %v2966
    %v2968 = vpop.f32.mrf.mxu0
    %v2969 = vadd.f32 0.0, %v2968
    %2970 = vdwg.mxu0
    %2971 = vmatprep.subr.bf16.mxu0 %v2863
    %2972 = vmatpush1.bf16.msra.mxu0 %v2862
    %2973 = vmatprep.subr.bf16.mxu0 %v2861
    %2974 = vmatpush1.bf16.msra.mxu0 %v2860
    %2975 = vmatprep.subr.bf16.mxu0 %v2859
    %2976 = vmatpush1.bf16.msra.mxu0 %v2858
    %2977 = vmatprep.subr.bf16.mxu0 %v2857
    %2978 = vmatpush1.bf16.msra.mxu0 %v2856
    %2979 = vmatprep.subr.bf16.mxu0 %v2855
    %2980 = vmatpush1.bf16.msra.mxu0 %v2854
    %2981 = vmatprep.subr.bf16.mxu0 %v2853
    %2982 = vmatpush1.bf16.msra.mxu0 %v2852
    %2983 = vmatprep.subr.bf16.mxu0 %v2851
    %2984 = vmatpush1.bf16.msra.mxu0 %v2850
    %2985 = vmatprep.subr.bf16.mxu0 %v2849
    %2986 = vmatpush1.bf16.msra.mxu0 %v2848
    %2987 = vmatprep.subr.bf16.mxu0 0
    %2988 = vmatpush2.bf16.msra.mxu0 0
    %2989 = vmatprep.subr.bf16.mxu0 0
    %2990 = vmatpush2.bf16.msra.mxu0 0
    %2991 = vmatprep.subr.bf16.mxu0 0
    %2992 = vmatpush2.bf16.msra.mxu0 0
    %2993 = vmatprep.subr.bf16.mxu0 0
    %2994 = vmatpush2.bf16.msra.mxu0 0
    %2995 = vmatprep.subr.bf16.mxu0 %v2871
    %2996 = vmatpush2.bf16.msra.mxu0 %v2870
    %2997 = vmatprep.subr.bf16.mxu0 %v2869
    %2998 = vmatpush2.bf16.msra.mxu0 %v2868
    %2999 = vmatprep.subr.bf16.mxu0 %v2867
    %3000 = vmatpush2.bf16.msra.mxu0 %v2866
    %3001 = vmatprep.subr.bf16.mxu0 %v2865
    %3002 = vmatpush2.bf16.msra.mxu0 %v2864
    %3003 = vmatprep.mubr.bf16.mxu0 %v2080
    %3004 = vmatmul.mubr.bf16.gmra.mxu0 %v1740
    %v3005 = vpop.f32.mrf.mxu0
    %v3006 = vadd.f32 %v2963, %v3005
    %v3007 = vpop.f32.mrf.mxu0
    %v3008 = vadd.f32 %v2965, %v3007
    %v3009 = vpop.f32.mrf.mxu0
    %v3010 = vadd.f32 %v2967, %v3009
    %v3011 = vpop.f32.mrf.mxu0
    %v3012 = vadd.f32 %v2969, %v3011
    %3013 = vdwg.mxu0
    %v3018 = vrot.slane %v2583, 1
    %v3019 = vrot.slane %v2587, 1
    %v3020 = vsel %vm302, %v3018, %v3019
    %v3021 = vrot.slane %v2585, 1
    %v3022 = vrot.slane %v2589, 1
    %v3023 = vsel %vm302, %v3021, %v3022
    %v3028 = vadd.f32 %v2160, %v3020
    %v3029 = vadd.f32 %v2162, %v3023
    %v3030 = vadd.f32 %v2164, %v3019
    %v3031 = vadd.f32 %v2166, %v3022
    %v3036 = vrot.slane %v3006, 2
    %v3037 = vrot.slane %v3010, 2
    %v3038 = vsel %vm450, %v3036, %v3037
    %v3039 = vrot.slane %v3008, 2
    %v3040 = vrot.slane %v3012, 2
    %v3041 = vsel %vm450, %v3039, %v3040
    %v3046 = vadd.f32 %v3028, %v3038
    %v3047 = vadd.f32 %v3029, %v3041
    %v3048 = vadd.f32 %v3030, %v3037
    %v3049 = vadd.f32 %v3031, %v3040
    %v3051 = vlaneseq
    %v3052 = vshrl.u32 %v3051, 7
    %v3053 = vsub.s32 0, %v3052
    %v3054 = vrot.slane %v32, %v3053
    %v3055 = vlaneseq
    %v3056 = vshrl.u32 %v3055, 7
    %v3057 = vsub.s32 1, %v3056
    %v3058 = vrot.slane %v32, %v3057
    %v3061 = vadd.f32 %v3046, %v3054
    %v3062 = vadd.f32 %v3047, %v3058
    %v3063 = vadd.f32 %v3048, %v3054
    %v3064 = vadd.f32 %v3049, %v3058
    %v3065 = vmax.f32 %v3061, 0.0
    %v3066 = vmax.f32 %v3062, 0.0
    %v3067 = vmax.f32 %v3063, 0.0
    %v3068 = vmax.f32 %v3064, 0.0
    %v3069 = vpack.c.bf16 %v3067, %v3065
    %v3070 = vpack.c.bf16 %v3068, %v3066
    %v3071 = vld [vmem:[%s3] sm:$0xf]
    %v3072 = vld [vmem:[%s3 + $0x4] sm:$0xf]
    %v3073 = vld [vmem:[%s3 + $0x8] sm:$0xf]
    %v3074 = vld [vmem:[%s3 + $0xc] sm:$0xf]
    %v3075 = vld [vmem:[%s3 + $0x10] sm:$0xf]
    %v3076 = vld [vmem:[%s3 + $0x14] sm:$0xf]
    %v3077 = vld [vmem:[%s3 + $0x18] sm:$0xf]
    %v3078 = vld [vmem:[%s3 + $0x1c] sm:$0xf]
    %v3079 = vld [vmem:[%s3 + $0x20] sm:$0xf]
    %v3080 = vld [vmem:[%s3 + $0x24] sm:$0xf]
    %v3081 = vld [vmem:[%s3 + $0x28] sm:$0xf]
    %v3082 = vld [vmem:[%s3 + $0x2c] sm:$0xf]
    %v3083 = vld [vmem:[%s3 + $0x30] sm:$0xf]
    %v3084 = vld [vmem:[%s3 + $0x34] sm:$0xf]
    %v3085 = vld [vmem:[%s3 + $0x38] sm:$0xf]
    %v3086 = vld [vmem:[%s3 + $0x3c] sm:$0xf]
    %v3087 = vld [vmem:[%s3 + $0x40] sm:$0xf]
    %v3088 = vld [vmem:[%s3 + $0x44] sm:$0xf]
    %v3089 = vld [vmem:[%s3 + $0x48] sm:$0xf]
    %v3090 = vld [vmem:[%s3 + $0x4c] sm:$0xf]
    %v3091 = vld [vmem:[%s3 + $0x50] sm:$0xf]
    %v3092 = vld [vmem:[%s3 + $0x54] sm:$0xf]
    %v3093 = vld [vmem:[%s3 + $0x58] sm:$0xf]
    %v3094 = vld [vmem:[%s3 + $0x5c] sm:$0xf]
    %v3119 = vunpack.c.l.b16 %v3071
    %v3120 = vunpack.c.l.b16 %v3072
    %v3121 = vunpack.c.l.b16 %v3073
    %v3122 = vunpack.c.l.b16 %v3074
    %v3123 = vunpack.c.l.b16 %v3075
    %v3124 = vunpack.c.l.b16 %v3076
    %v3125 = vunpack.c.l.b16 %v3077
    %v3126 = vunpack.c.l.b16 %v3078
    %v3127 = vunpack.c.l.b16 %v3079
    %v3128 = vunpack.c.l.b16 %v3080
    %v3129 = vunpack.c.l.b16 %v3081
    %v3130 = vunpack.c.l.b16 %v3082
    %v3131 = vunpack.c.l.b16 %v3083
    %v3132 = vunpack.c.l.b16 %v3084
    %v3133 = vunpack.c.l.b16 %v3085
    %v3134 = vunpack.c.l.b16 %v3086
    %v3135 = vunpack.c.l.b16 %v3087
    %v3136 = vunpack.c.l.b16 %v3088
    %v3137 = vunpack.c.l.b16 %v3089
    %v3138 = vunpack.c.l.b16 %v3090
    %v3139 = vunpack.c.l.b16 %v3091
    %v3140 = vunpack.c.l.b16 %v3092
    %v3141 = vunpack.c.l.b16 %v3093
    %v3142 = vunpack.c.l.b16 %v3094
    %v3143 = vpack.c.b16 %v3120, %v3119
    %v3144 = vpack.c.b16 %v3122, %v3121
    %v3145 = vpack.c.b16 %v3124, %v3123
    %v3146 = vpack.c.b16 %v3126, %v3125
    %v3147 = vpack.c.b16 %v3128, %v3127
    %v3148 = vpack.c.b16 %v3130, %v3129
    %v3149 = vpack.c.b16 %v3132, %v3131
    %v3150 = vpack.c.b16 %v3134, %v3133
    %v3151 = vpack.c.b16 %v3136, %v3135
    %v3152 = vpack.c.b16 %v3138, %v3137
    %v3153 = vpack.c.b16 %v3140, %v3139
    %v3154 = vpack.c.b16 %v3142, %v3141
    %v3168 = vsel %vm2078, %v3070, 0
    %3170 = vmatprep.subr.bf16.mxu0 0
    %3171 = vmatpush1.bf16.msra.mxu0 %v3150
    %3172 = vmatprep.subr.bf16.mxu0 0
    %3173 = vmatpush1.bf16.msra.mxu0 %v3149
    %3174 = vmatprep.subr.bf16.mxu0 0
    %3175 = vmatpush1.bf16.msra.mxu0 %v3148
    %3176 = vmatprep.subr.bf16.mxu0 0
    %3177 = vmatpush1.bf16.msra.mxu0 %v3147
    %3178 = vmatprep.subr.bf16.mxu0 0
    %3179 = vmatpush1.bf16.msra.mxu0 %v3146
    %3180 = vmatprep.subr.bf16.mxu0 0
    %3181 = vmatpush1.bf16.msra.mxu0 %v3145
    %3182 = vmatprep.subr.bf16.mxu0 0
    %3183 = vmatpush1.bf16.msra.mxu0 %v3144
    %3184 = vmatprep.subr.bf16.mxu0 0
    %3185 = vmatpush1.bf16.msra.mxu0 %v3143
    %3186 = vmatprep.subr.bf16.mxu0 0
    %3187 = vmatpush2.bf16.msra.mxu0 0
    %3188 = vmatprep.subr.bf16.mxu0 0
    %3189 = vmatpush2.bf16.msra.mxu0 0
    %3190 = vmatprep.subr.bf16.mxu0 0
    %3191 = vmatpush2.bf16.msra.mxu0 0
    %3192 = vmatprep.subr.bf16.mxu0 0
    %3193 = vmatpush2.bf16.msra.mxu0 0
    %3194 = vmatprep.subr.bf16.mxu0 0
    %3195 = vmatpush2.bf16.msra.mxu0 %v3154
    %3196 = vmatprep.subr.bf16.mxu0 0
    %3197 = vmatpush2.bf16.msra.mxu0 %v3153
    %3198 = vmatprep.subr.bf16.mxu0 0
    %3199 = vmatpush2.bf16.msra.mxu0 %v3152
    %3200 = vmatprep.subr.bf16.mxu0 0
    %3201 = vmatpush2.bf16.msra.mxu0 %v3151
    %3202 = vmatprep.mubr.bf16.mxu0 %v3168
    %3203 = vmatmul.mubr.bf16.gmra.mxu0 %v3069
    %v3204 = vpop.f32.mrf.mxu0
    %v3205 = vadd.f32 0.0, %v3204
    %v3206 = vpop.f32.mrf.mxu0
    %v3207 = vpop.f32.mrf.mxu0
    %v3208 = vadd.f32 0.0, %v3207
    %v3209 = vpop.f32.mrf.mxu0
    %3210 = vdwg.mxu0
    %s3211 = scalar_lea.vmem %s3, 96
    %v3212 = vld [vmem:[%s3211] sm:$0xf]
    %v3213 = vld [vmem:[%s3211 + $0x4] sm:$0xf]
    %v3214 = vld [vmem:[%s3211 + $0x8] sm:$0xf]
    %v3215 = vld [vmem:[%s3211 + $0xc] sm:$0xf]
    %v3216 = vld [vmem:[%s3211 + $0x10] sm:$0xf]
    %v3217 = vld [vmem:[%s3211 + $0x14] sm:$0xf]
    %v3218 = vld [vmem:[%s3211 + $0x18] sm:$0xf]
    %v3219 = vld [vmem:[%s3211 + $0x1c] sm:$0xf]
    %v3220 = vld [vmem:[%s3211 + $0x20] sm:$0xf]
    %v3221 = vld [vmem:[%s3211 + $0x24] sm:$0xf]
    %v3222 = vld [vmem:[%s3211 + $0x28] sm:$0xf]
    %v3223 = vld [vmem:[%s3211 + $0x2c] sm:$0xf]
    %v3224 = vld [vmem:[%s3211 + $0x30] sm:$0xf]
    %v3225 = vld [vmem:[%s3211 + $0x34] sm:$0xf]
    %v3226 = vld [vmem:[%s3211 + $0x38] sm:$0xf]
    %v3227 = vld [vmem:[%s3211 + $0x3c] sm:$0xf]
    %v3228 = vld [vmem:[%s3211 + $0x40] sm:$0xf]
    %v3229 = vld [vmem:[%s3211 + $0x44] sm:$0xf]
    %v3230 = vld [vmem:[%s3211 + $0x48] sm:$0xf]
    %v3231 = vld [vmem:[%s3211 + $0x4c] sm:$0xf]
    %v3232 = vld [vmem:[%s3211 + $0x50] sm:$0xf]
    %v3233 = vld [vmem:[%s3211 + $0x54] sm:$0xf]
    %v3234 = vld [vmem:[%s3211 + $0x58] sm:$0xf]
    %v3235 = vld [vmem:[%s3211 + $0x5c] sm:$0xf]
    %v3260 = vunpack.c.l.b16 %v3212
    %v3261 = vunpack.c.l.b16 %v3213
    %v3262 = vunpack.c.l.b16 %v3214
    %v3263 = vunpack.c.l.b16 %v3215
    %v3264 = vunpack.c.l.b16 %v3216
    %v3265 = vunpack.c.l.b16 %v3217
    %v3266 = vunpack.c.l.b16 %v3218
    %v3267 = vunpack.c.l.b16 %v3219
    %v3268 = vunpack.c.l.b16 %v3220
    %v3269 = vunpack.c.l.b16 %v3221
    %v3270 = vunpack.c.l.b16 %v3222
    %v3271 = vunpack.c.l.b16 %v3223
    %v3272 = vunpack.c.l.b16 %v3224
    %v3273 = vunpack.c.l.b16 %v3225
    %v3274 = vunpack.c.l.b16 %v3226
    %v3275 = vunpack.c.l.b16 %v3227
    %v3276 = vunpack.c.l.b16 %v3228
    %v3277 = vunpack.c.l.b16 %v3229
    %v3278 = vunpack.c.l.b16 %v3230
    %v3279 = vunpack.c.l.b16 %v3231
    %v3280 = vunpack.c.l.b16 %v3232
    %v3281 = vunpack.c.l.b16 %v3233
    %v3282 = vunpack.c.l.b16 %v3234
    %v3283 = vunpack.c.l.b16 %v3235
    %v3284 = vpack.c.b16 %v3261, %v3260
    %v3285 = vpack.c.b16 %v3263, %v3262
    %v3286 = vpack.c.b16 %v3265, %v3264
    %v3287 = vpack.c.b16 %v3267, %v3266
    %v3288 = vpack.c.b16 %v3269, %v3268
    %v3289 = vpack.c.b16 %v3271, %v3270
    %v3290 = vpack.c.b16 %v3273, %v3272
    %v3291 = vpack.c.b16 %v3275, %v3274
    %v3292 = vpack.c.b16 %v3277, %v3276
    %v3293 = vpack.c.b16 %v3279, %v3278
    %v3294 = vpack.c.b16 %v3281, %v3280
    %v3295 = vpack.c.b16 %v3283, %v3282
    %3308 = vmatprep.subr.bf16.mxu0 0
    %3309 = vmatpush1.bf16.msra.mxu0 %v3291
    %3310 = vmatprep.subr.bf16.mxu0 0
    %3311 = vmatpush1.bf16.msra.mxu0 %v3290
    %3312 = vmatprep.subr.bf16.mxu0 0
    %3313 = vmatpush1.bf16.msra.mxu0 %v3289
    %3314 = vmatprep.subr.bf16.mxu0 0
    %3315 = vmatpush1.bf16.msra.mxu0 %v3288
    %3316 = vmatprep.subr.bf16.mxu0 0
    %3317 = vmatpush1.bf16.msra.mxu0 %v3287
    %3318 = vmatprep.subr.bf16.mxu0 0
    %3319 = vmatpush1.bf16.msra.mxu0 %v3286
    %3320 = vmatprep.subr.bf16.mxu0 0
    %3321 = vmatpush1.bf16.msra.mxu0 %v3285
    %3322 = vmatprep.subr.bf16.mxu0 0
    %3323 = vmatpush1.bf16.msra.mxu0 %v3284
    %3324 = vmatprep.subr.bf16.mxu0 0
    %3325 = vmatpush2.bf16.msra.mxu0 0
    %3326 = vmatprep.subr.bf16.mxu0 0
    %3327 = vmatpush2.bf16.msra.mxu0 0
    %3328 = vmatprep.subr.bf16.mxu0 0
    %3329 = vmatpush2.bf16.msra.mxu0 0
    %3330 = vmatprep.subr.bf16.mxu0 0
    %3331 = vmatpush2.bf16.msra.mxu0 0
    %3332 = vmatprep.subr.bf16.mxu0 0
    %3333 = vmatpush2.bf16.msra.mxu0 %v3295
    %3334 = vmatprep.subr.bf16.mxu0 0
    %3335 = vmatpush2.bf16.msra.mxu0 %v3294
    %3336 = vmatprep.subr.bf16.mxu0 0
    %3337 = vmatpush2.bf16.msra.mxu0 %v3293
    %3338 = vmatprep.subr.bf16.mxu0 0
    %3339 = vmatpush2.bf16.msra.mxu0 %v3292
    %3340 = vmatprep.mubr.bf16.mxu0 %v3168
    %3341 = vmatmul.mubr.bf16.gmra.mxu0 %v3069
    %v3342 = vpop.f32.mrf.mxu0
    %v3343 = vadd.f32 0.0, %v3342
    %v3344 = vpop.f32.mrf.mxu0
    %v3345 = vpop.f32.mrf.mxu0
    %v3346 = vadd.f32 0.0, %v3345
    %v3347 = vpop.f32.mrf.mxu0
    %3348 = vdwg.mxu0
    %s3349 = scalar_lea.vmem %s3, 192
    %v3350 = vld [vmem:[%s3349] sm:$0xf]
    %v3351 = vld [vmem:[%s3349 + $0x4] sm:$0xf]
    %v3352 = vld [vmem:[%s3349 + $0x8] sm:$0xf]
    %v3353 = vld [vmem:[%s3349 + $0xc] sm:$0xf]
    %v3354 = vld [vmem:[%s3349 + $0x10] sm:$0xf]
    %v3355 = vld [vmem:[%s3349 + $0x14] sm:$0xf]
    %v3356 = vld [vmem:[%s3349 + $0x18] sm:$0xf]
    %v3357 = vld [vmem:[%s3349 + $0x1c] sm:$0xf]
    %v3358 = vld [vmem:[%s3349 + $0x20] sm:$0xf]
    %v3359 = vld [vmem:[%s3349 + $0x24] sm:$0xf]
    %v3360 = vld [vmem:[%s3349 + $0x28] sm:$0xf]
    %v3361 = vld [vmem:[%s3349 + $0x2c] sm:$0xf]
    %v3362 = vld [vmem:[%s3349 + $0x30] sm:$0xf]
    %v3363 = vld [vmem:[%s3349 + $0x34] sm:$0xf]
    %v3364 = vld [vmem:[%s3349 + $0x38] sm:$0xf]
    %v3365 = vld [vmem:[%s3349 + $0x3c] sm:$0xf]
    %v3366 = vld [vmem:[%s3349 + $0x40] sm:$0xf]
    %v3367 = vld [vmem:[%s3349 + $0x44] sm:$0xf]
    %v3368 = vld [vmem:[%s3349 + $0x48] sm:$0xf]
    %v3369 = vld [vmem:[%s3349 + $0x4c] sm:$0xf]
    %v3370 = vld [vmem:[%s3349 + $0x50] sm:$0xf]
    %v3371 = vld [vmem:[%s3349 + $0x54] sm:$0xf]
    %v3372 = vld [vmem:[%s3349 + $0x58] sm:$0xf]
    %v3373 = vld [vmem:[%s3349 + $0x5c] sm:$0xf]
    %v3398 = vunpack.c.l.b16 %v3350
    %v3399 = vunpack.c.l.b16 %v3351
    %v3400 = vunpack.c.l.b16 %v3352
    %v3401 = vunpack.c.l.b16 %v3353
    %v3402 = vunpack.c.l.b16 %v3354
    %v3403 = vunpack.c.l.b16 %v3355
    %v3404 = vunpack.c.l.b16 %v3356
    %v3405 = vunpack.c.l.b16 %v3357
    %v3406 = vunpack.c.l.b16 %v3358
    %v3407 = vunpack.c.l.b16 %v3359
    %v3408 = vunpack.c.l.b16 %v3360
    %v3409 = vunpack.c.l.b16 %v3361
    %v3410 = vunpack.c.l.b16 %v3362
    %v3411 = vunpack.c.l.b16 %v3363
    %v3412 = vunpack.c.l.b16 %v3364
    %v3413 = vunpack.c.l.b16 %v3365
    %v3414 = vunpack.c.l.b16 %v3366
    %v3415 = vunpack.c.l.b16 %v3367
    %v3416 = vunpack.c.l.b16 %v3368
    %v3417 = vunpack.c.l.b16 %v3369
    %v3418 = vunpack.c.l.b16 %v3370
    %v3419 = vunpack.c.l.b16 %v3371
    %v3420 = vunpack.c.l.b16 %v3372
    %v3421 = vunpack.c.l.b16 %v3373
    %v3422 = vpack.c.b16 %v3399, %v3398
    %v3423 = vpack.c.b16 %v3401, %v3400
    %v3424 = vpack.c.b16 %v3403, %v3402
    %v3425 = vpack.c.b16 %v3405, %v3404
    %v3426 = vpack.c.b16 %v3407, %v3406
    %v3427 = vpack.c.b16 %v3409, %v3408
    %v3428 = vpack.c.b16 %v3411, %v3410
    %v3429 = vpack.c.b16 %v3413, %v3412
    %v3430 = vpack.c.b16 %v3415, %v3414
    %v3431 = vpack.c.b16 %v3417, %v3416
    %v3432 = vpack.c.b16 %v3419, %v3418
    %v3433 = vpack.c.b16 %v3421, %v3420
    %3446 = vmatprep.subr.bf16.mxu0 0
    %3447 = vmatpush1.bf16.msra.mxu0 %v3429
    %3448 = vmatprep.subr.bf16.mxu0 0
    %3449 = vmatpush1.bf16.msra.mxu0 %v3428
    %3450 = vmatprep.subr.bf16.mxu0 0
    %3451 = vmatpush1.bf16.msra.mxu0 %v3427
    %3452 = vmatprep.subr.bf16.mxu0 0
    %3453 = vmatpush1.bf16.msra.mxu0 %v3426
    %3454 = vmatprep.subr.bf16.mxu0 0
    %3455 = vmatpush1.bf16.msra.mxu0 %v3425
    %3456 = vmatprep.subr.bf16.mxu0 0
    %3457 = vmatpush1.bf16.msra.mxu0 %v3424
    %3458 = vmatprep.subr.bf16.mxu0 0
    %3459 = vmatpush1.bf16.msra.mxu0 %v3423
    %3460 = vmatprep.subr.bf16.mxu0 0
    %3461 = vmatpush1.bf16.msra.mxu0 %v3422
    %3462 = vmatprep.subr.bf16.mxu0 0
    %3463 = vmatpush2.bf16.msra.mxu0 0
    %3464 = vmatprep.subr.bf16.mxu0 0
    %3465 = vmatpush2.bf16.msra.mxu0 0
    %3466 = vmatprep.subr.bf16.mxu0 0
    %3467 = vmatpush2.bf16.msra.mxu0 0
    %3468 = vmatprep.subr.bf16.mxu0 0
    %3469 = vmatpush2.bf16.msra.mxu0 0
    %3470 = vmatprep.subr.bf16.mxu0 0
    %3471 = vmatpush2.bf16.msra.mxu0 %v3433
    %3472 = vmatprep.subr.bf16.mxu0 0
    %3473 = vmatpush2.bf16.msra.mxu0 %v3432
    %3474 = vmatprep.subr.bf16.mxu0 0
    %3475 = vmatpush2.bf16.msra.mxu0 %v3431
    %3476 = vmatprep.subr.bf16.mxu0 0
    %3477 = vmatpush2.bf16.msra.mxu0 %v3430
    %3478 = vmatprep.mubr.bf16.mxu0 %v3168
    %3479 = vmatmul.mubr.bf16.gmra.mxu0 %v3069
    %v3480 = vpop.f32.mrf.mxu0
    %v3481 = vadd.f32 0.0, %v3480
    %v3482 = vpop.f32.mrf.mxu0
    %v3483 = vpop.f32.mrf.mxu0
    %v3484 = vadd.f32 0.0, %v3483
    %v3485 = vpop.f32.mrf.mxu0
    %3486 = vdwg.mxu0
    %v3489 = vrot.slane %v3343, 1
    %v3490 = vrot.slane %v3346, 1
    %v3491 = vsel %vm302, %v3489, %v3490
    %v3494 = vadd.f32 %v3205, %v3491
    %v3495 = vadd.f32 %v3208, %v3490
    %v3498 = vrot.slane %v3481, 2
    %v3499 = vrot.slane %v3484, 2
    %v3500 = vsel %vm450, %v3498, %v3499
    %v3503 = vadd.f32 %v3494, %v3500
    %v3504 = vadd.f32 %v3495, %v3499
    %v3506 = vlaneseq
    %v3507 = vshrl.u32 %v3506, 7
    %v3508 = vsub.s32 0, %v3507
    %v3509 = vrot.slane %v33, %v3508
    %v3511 = vadd.f32 %v3503, %v3509
    %v3512 = vadd.f32 %v3504, %v3509
    %v3513 = vmax.f32 %v3511, 0.0
    %v3514 = vmax.f32 %v3512, 0.0
    %3515 = vst [vmem:[#allocation2] sm:$0x1] %v3513
    %v3518 = vunpack.c.l.s4 1983009808
    %v3519 = vunpack.c.0.s8 %v3518
    %v3520 = vlaneseq
    %v3521 = vshrl.u32 %v3520, 7
    %v3522 = vsub.s32 %v3519, %v3521
    %v3523 = vrot.slane %v3513, %v3522
    %v3524 = vrot.slane %v3523, 7
    %v3525 = vrot.slane %v3524, 2
    %3527 = vst [vmem:[#allocation2 + $0x2] sm:$0x1] %v3525
    %v3528 = vcombine.high %v3523, %v3523
    %3530 = vst [vmem:[#allocation2 + $0x4] sm:$0x1] %v3528
    %v3531 = vrot.slane %v3528, 7
    %v3532 = vrot.slane %v3531, 2
    %3534 = vst [vmem:[#allocation2 + $0x6] sm:$0x1] %v3532
    %v3535 = vcombine.high %v3513, %v3513
    %v3537 = vunpack.c.l.s4 1983009808
    %v3538 = vunpack.c.0.s8 %v3537
    %v3539 = vlaneseq
    %v3540 = vshrl.u32 %v3539, 7
    %v3541 = vsub.s32 %v3538, %v3540
    %v3542 = vrot.slane %v3535, %v3541
    %3544 = vst [vmem:[#allocation2 + $0x8] sm:$0x1] %v3542
    %v3545 = vrot.slane %v3542, 7
    %v3546 = vrot.slane %v3545, 2
    %3548 = vst [vmem:[#allocation2 + $0xa] sm:$0x1] %v3546
    %v3549 = vcombine.high %v3542, %v3542
    %3551 = vst [vmem:[#allocation2 + $0xc] sm:$0x1] %v3549
    %v3552 = vrot.slane %v3549, 7
    %v3553 = vrot.slane %v3552, 2
    %3555 = vst [vmem:[#allocation2 + $0xe] sm:$0x1] %v3553
    %3556 = vst [vmem:[#allocation2 + $0x10] sm:$0x1] %v3514
    %v3559 = vunpack.c.l.s4 1983009808
    %v3560 = vunpack.c.0.s8 %v3559
    %v3561 = vlaneseq
    %v3562 = vshrl.u32 %v3561, 7
    %v3563 = vsub.s32 %v3560, %v3562
    %v3564 = vrot.slane %v3514, %v3563
    %v3565 = vrot.slane %v3564, 7
    %v3566 = vrot.slane %v3565, 2
    %3568 = vst [vmem:[#allocation2 + $0x12] sm:$0x1] %v3566
    %s3569 = scalar_lea.vmem %s0, 64
    %v3570 = vld [vmem:[%s3569] sm:$0xff]
    %v3571 = vld [vmem:[%s3569 + $0x8] sm:$0xff]
    %v3572 = vpack.c.bf16 %v3571, %v3570
    %v3573 = vld [vmem:[%s1] sm:$0xff]
    %v3574 = vld [vmem:[%s1 + $0x8] sm:$0xff]
    %v3575 = vld [vmem:[%s1 + $0x10] sm:$0xff]
    %v3576 = vld [vmem:[%s1 + $0x18] sm:$0xff]
    %v3581 = vunpack.c.l.b16 %v3573
    %v3582 = vunpack.c.h.b16 %v3573
    %v3583 = vunpack.c.l.b16 %v3574
    %v3584 = vunpack.c.h.b16 %v3574
    %v3585 = vunpack.c.l.b16 %v3575
    %v3586 = vunpack.c.h.b16 %v3575
    %v3587 = vunpack.c.l.b16 %v3576
    %v3588 = vunpack.c.h.b16 %v3576
    %v3589 = vpack.c.b16 %v3585, %v3581
    %v3590 = vpack.c.b16 %v3586, %v3582
    %v3591 = vpack.c.b16 %v3587, %v3583
    %v3592 = vpack.c.b16 %v3588, %v3584
    %v3598 = vsel %vm64, %v3572, 0
    %3600 = vmatprep.subr.bf16.mxu0 0
    %3601 = vmatpush1.bf16.msra.mxu0 0
    %3602 = vmatprep.subr.bf16.mxu0 0
    %3603 = vmatpush1.bf16.msra.mxu0 0
    %3604 = vmatprep.subr.bf16.mxu0 0
    %3605 = vmatpush1.bf16.msra.mxu0 0
    %3606 = vmatprep.subr.bf16.mxu0 0
    %3607 = vmatpush1.bf16.msra.mxu0 0
    %3608 = vmatprep.subr.bf16.mxu0 0
    %3609 = vmatpush1.bf16.msra.mxu0 0
    %3610 = vmatprep.subr.bf16.mxu0 0
    %3611 = vmatpush1.bf16.msra.mxu0 0
    %3612 = vmatprep.subr.bf16.mxu0 0
    %3613 = vmatpush1.bf16.msra.mxu0 0
    %3614 = vmatprep.subr.bf16.mxu0 %v3590
    %3615 = vmatpush1.bf16.msra.mxu0 %v3589
    %3616 = vmatprep.subr.bf16.mxu0 0
    %3617 = vmatpush2.bf16.msra.mxu0 0
    %3618 = vmatprep.subr.bf16.mxu0 0
    %3619 = vmatpush2.bf16.msra.mxu0 0
    %3620 = vmatprep.subr.bf16.mxu0 0
    %3621 = vmatpush2.bf16.msra.mxu0 0
    %3622 = vmatprep.subr.bf16.mxu0 0
    %3623 = vmatpush2.bf16.msra.mxu0 0
    %3624 = vmatprep.subr.bf16.mxu0 0
    %3625 = vmatpush2.bf16.msra.mxu0 0
    %3626 = vmatprep.subr.bf16.mxu0 0
    %3627 = vmatpush2.bf16.msra.mxu0 0
    %3628 = vmatprep.subr.bf16.mxu0 0
    %3629 = vmatpush2.bf16.msra.mxu0 0
    %3630 = vmatprep.subr.bf16.mxu0 0
    %3631 = vmatpush2.bf16.msra.mxu0 0
    %3632 = vmatprep.mubr.bf16.mxu0 0
    %3633 = vmatmul.mubr.bf16.gmra.mxu0 %v3598
    %v3634 = vpop.f32.mrf.mxu0
    %v3635 = vadd.f32 0.0, %v3634
    %v3636 = vpop.f32.mrf.mxu0
    %v3637 = vadd.f32 0.0, %v3636
    %v3638 = vpop.f32.mrf.mxu0
    %v3639 = vadd.f32 0.0, %v3638
    %v3640 = vpop.f32.mrf.mxu0
    %v3641 = vadd.f32 0.0, %v3640
    %3642 = vdwg.mxu0
    %3643 = vmatprep.subr.bf16.mxu0 0
    %3644 = vmatpush1.bf16.msra.mxu0 0
    %3645 = vmatprep.subr.bf16.mxu0 0
    %3646 = vmatpush1.bf16.msra.mxu0 0
    %3647 = vmatprep.subr.bf16.mxu0 0
    %3648 = vmatpush1.bf16.msra.mxu0 0
    %3649 = vmatprep.subr.bf16.mxu0 0
    %3650 = vmatpush1.bf16.msra.mxu0 0
    %3651 = vmatprep.subr.bf16.mxu0 0
    %3652 = vmatpush1.bf16.msra.mxu0 0
    %3653 = vmatprep.subr.bf16.mxu0 0
    %3654 = vmatpush1.bf16.msra.mxu0 0
    %3655 = vmatprep.subr.bf16.mxu0 0
    %3656 = vmatpush1.bf16.msra.mxu0 0
    %3657 = vmatprep.subr.bf16.mxu0 %v3592
    %3658 = vmatpush1.bf16.msra.mxu0 %v3591
    %3659 = vmatprep.subr.bf16.mxu0 0
    %3660 = vmatpush2.bf16.msra.mxu0 0
    %3661 = vmatprep.subr.bf16.mxu0 0
    %3662 = vmatpush2.bf16.msra.mxu0 0
    %3663 = vmatprep.subr.bf16.mxu0 0
    %3664 = vmatpush2.bf16.msra.mxu0 0
    %3665 = vmatprep.subr.bf16.mxu0 0
    %3666 = vmatpush2.bf16.msra.mxu0 0
    %3667 = vmatprep.subr.bf16.mxu0 0
    %3668 = vmatpush2.bf16.msra.mxu0 0
    %3669 = vmatprep.subr.bf16.mxu0 0
    %3670 = vmatpush2.bf16.msra.mxu0 0
    %3671 = vmatprep.subr.bf16.mxu0 0
    %3672 = vmatpush2.bf16.msra.mxu0 0
    %3673 = vmatprep.subr.bf16.mxu0 0
    %3674 = vmatpush2.bf16.msra.mxu0 0
    %3675 = vmatprep.mubr.bf16.mxu0 0
    %3676 = vmatmul.mubr.bf16.gmra.mxu0 %v3598
    %v3677 = vpop.f32.mrf.mxu0
    %v3678 = vadd.f32 0.0, %v3677
    %v3679 = vpop.f32.mrf.mxu0
    %v3680 = vadd.f32 0.0, %v3679
    %v3681 = vpop.f32.mrf.mxu0
    %v3682 = vadd.f32 0.0, %v3681
    %v3683 = vpop.f32.mrf.mxu0
    %v3684 = vadd.f32 0.0, %v3683
    %3685 = vdwg.mxu0
    %v3686 = vadd.f32 %v158, %v3635
    %v3687 = vadd.f32 %v162, %v3637
    %v3688 = vadd.f32 %v166, %v3678
    %v3689 = vadd.f32 %v170, %v3680
    %v3690 = vadd.f32 %v158, %v3639
    %v3691 = vadd.f32 %v162, %v3641
    %v3692 = vadd.f32 %v166, %v3682
    %v3693 = vadd.f32 %v170, %v3684
    %v3694 = vld [vmem:[%s183] sm:$0xff]
    %v3695 = vld [vmem:[%s183 + $0x8] sm:$0xff]
    %v3696 = vld [vmem:[%s183 + $0x10] sm:$0xff]
    %v3697 = vld [vmem:[%s183 + $0x18] sm:$0xff]
    %v3702 = vunpack.c.l.b16 %v3694
    %v3703 = vunpack.c.h.b16 %v3694
    %v3704 = vunpack.c.l.b16 %v3695
    %v3705 = vunpack.c.h.b16 %v3695
    %v3706 = vunpack.c.l.b16 %v3696
    %v3707 = vunpack.c.h.b16 %v3696
    %v3708 = vunpack.c.l.b16 %v3697
    %v3709 = vunpack.c.h.b16 %v3697
    %v3710 = vpack.c.b16 %v3706, %v3702
    %v3711 = vpack.c.b16 %v3707, %v3703
    %v3712 = vpack.c.b16 %v3708, %v3704
    %v3713 = vpack.c.b16 %v3709, %v3705
    %3718 = vmatprep.subr.bf16.mxu0 0
    %3719 = vmatpush1.bf16.msra.mxu0 0
    %3720 = vmatprep.subr.bf16.mxu0 0
    %3721 = vmatpush1.bf16.msra.mxu0 0
    %3722 = vmatprep.subr.bf16.mxu0 0
    %3723 = vmatpush1.bf16.msra.mxu0 0
    %3724 = vmatprep.subr.bf16.mxu0 0
    %3725 = vmatpush1.bf16.msra.mxu0 0
    %3726 = vmatprep.subr.bf16.mxu0 0
    %3727 = vmatpush1.bf16.msra.mxu0 0
    %3728 = vmatprep.subr.bf16.mxu0 0
    %3729 = vmatpush1.bf16.msra.mxu0 0
    %3730 = vmatprep.subr.bf16.mxu0 0
    %3731 = vmatpush1.bf16.msra.mxu0 0
    %3732 = vmatprep.subr.bf16.mxu0 %v3711
    %3733 = vmatpush1.bf16.msra.mxu0 %v3710
    %3734 = vmatprep.subr.bf16.mxu0 0
    %3735 = vmatpush2.bf16.msra.mxu0 0
    %3736 = vmatprep.subr.bf16.mxu0 0
    %3737 = vmatpush2.bf16.msra.mxu0 0
    %3738 = vmatprep.subr.bf16.mxu0 0
    %3739 = vmatpush2.bf16.msra.mxu0 0
    %3740 = vmatprep.subr.bf16.mxu0 0
    %3741 = vmatpush2.bf16.msra.mxu0 0
    %3742 = vmatprep.subr.bf16.mxu0 0
    %3743 = vmatpush2.bf16.msra.mxu0 0
    %3744 = vmatprep.subr.bf16.mxu0 0
    %3745 = vmatpush2.bf16.msra.mxu0 0
    %3746 = vmatprep.subr.bf16.mxu0 0
    %3747 = vmatpush2.bf16.msra.mxu0 0
    %3748 = vmatprep.subr.bf16.mxu0 0
    %3749 = vmatpush2.bf16.msra.mxu0 0
    %3750 = vmatprep.mubr.bf16.mxu0 0
    %3751 = vmatmul.mubr.bf16.gmra.mxu0 %v3598
    %v3752 = vpop.f32.mrf.mxu0
    %v3753 = vadd.f32 0.0, %v3752
    %v3754 = vpop.f32.mrf.mxu0
    %v3755 = vadd.f32 0.0, %v3754
    %v3756 = vpop.f32.mrf.mxu0
    %v3757 = vadd.f32 0.0, %v3756
    %v3758 = vpop.f32.mrf.mxu0
    %v3759 = vadd.f32 0.0, %v3758
    %3760 = vdwg.mxu0
    %3761 = vmatprep.subr.bf16.mxu0 0
    %3762 = vmatpush1.bf16.msra.mxu0 0
    %3763 = vmatprep.subr.bf16.mxu0 0
    %3764 = vmatpush1.bf16.msra.mxu0 0
    %3765 = vmatprep.subr.bf16.mxu0 0
    %3766 = vmatpush1.bf16.msra.mxu0 0
    %3767 = vmatprep.subr.bf16.mxu0 0
    %3768 = vmatpush1.bf16.msra.mxu0 0
    %3769 = vmatprep.subr.bf16.mxu0 0
    %3770 = vmatpush1.bf16.msra.mxu0 0
    %3771 = vmatprep.subr.bf16.mxu0 0
    %3772 = vmatpush1.bf16.msra.mxu0 0
    %3773 = vmatprep.subr.bf16.mxu0 0
    %3774 = vmatpush1.bf16.msra.mxu0 0
    %3775 = vmatprep.subr.bf16.mxu0 %v3713
    %3776 = vmatpush1.bf16.msra.mxu0 %v3712
    %3777 = vmatprep.subr.bf16.mxu0 0
    %3778 = vmatpush2.bf16.msra.mxu0 0
    %3779 = vmatprep.subr.bf16.mxu0 0
    %3780 = vmatpush2.bf16.msra.mxu0 0
    %3781 = vmatprep.subr.bf16.mxu0 0
    %3782 = vmatpush2.bf16.msra.mxu0 0
    %3783 = vmatprep.subr.bf16.mxu0 0
    %3784 = vmatpush2.bf16.msra.mxu0 0
    %3785 = vmatprep.subr.bf16.mxu0 0
    %3786 = vmatpush2.bf16.msra.mxu0 0
    %3787 = vmatprep.subr.bf16.mxu0 0
    %3788 = vmatpush2.bf16.msra.mxu0 0
    %3789 = vmatprep.subr.bf16.mxu0 0
    %3790 = vmatpush2.bf16.msra.mxu0 0
    %3791 = vmatprep.subr.bf16.mxu0 0
    %3792 = vmatpush2.bf16.msra.mxu0 0
    %3793 = vmatprep.mubr.bf16.mxu0 0
    %3794 = vmatmul.mubr.bf16.gmra.mxu0 %v3598
    %v3795 = vpop.f32.mrf.mxu0
    %v3796 = vadd.f32 0.0, %v3795
    %v3797 = vpop.f32.mrf.mxu0
    %v3798 = vadd.f32 0.0, %v3797
    %v3799 = vpop.f32.mrf.mxu0
    %v3800 = vadd.f32 0.0, %v3799
    %v3801 = vpop.f32.mrf.mxu0
    %v3802 = vadd.f32 0.0, %v3801
    %3803 = vdwg.mxu0
    %v3812 = vrot.slane %v3753, 1
    %v3813 = vrot.slane %v3757, 1
    %v3814 = vsel %vm302, %v3812, %v3813
    %v3815 = vrot.slane %v3755, 1
    %v3816 = vrot.slane %v3759, 1
    %v3817 = vsel %vm302, %v3815, %v3816
    %v3818 = vrot.slane %v3796, 1
    %v3819 = vrot.slane %v3800, 1
    %v3820 = vsel %vm302, %v3818, %v3819
    %v3821 = vrot.slane %v3798, 1
    %v3822 = vrot.slane %v3802, 1
    %v3823 = vsel %vm302, %v3821, %v3822
    %v3832 = vadd.f32 %v3686, %v3814
    %v3833 = vadd.f32 %v3687, %v3817
    %v3834 = vadd.f32 %v3688, %v3820
    %v3835 = vadd.f32 %v3689, %v3823
    %v3836 = vadd.f32 %v3690, %v3813
    %v3837 = vadd.f32 %v3691, %v3816
    %v3838 = vadd.f32 %v3692, %v3819
    %v3839 = vadd.f32 %v3693, %v3822
    %v3840 = vld [vmem:[%s331] sm:$0xff]
    %v3841 = vld [vmem:[%s331 + $0x8] sm:$0xff]
    %v3842 = vld [vmem:[%s331 + $0x10] sm:$0xff]
    %v3843 = vld [vmem:[%s331 + $0x18] sm:$0xff]
    %v3848 = vunpack.c.l.b16 %v3840
    %v3849 = vunpack.c.h.b16 %v3840
    %v3850 = vunpack.c.l.b16 %v3841
    %v3851 = vunpack.c.h.b16 %v3841
    %v3852 = vunpack.c.l.b16 %v3842
    %v3853 = vunpack.c.h.b16 %v3842
    %v3854 = vunpack.c.l.b16 %v3843
    %v3855 = vunpack.c.h.b16 %v3843
    %v3856 = vpack.c.b16 %v3852, %v3848
    %v3857 = vpack.c.b16 %v3853, %v3849
    %v3858 = vpack.c.b16 %v3854, %v3850
    %v3859 = vpack.c.b16 %v3855, %v3851
    %3864 = vmatprep.subr.bf16.mxu0 0
    %3865 = vmatpush1.bf16.msra.mxu0 0
    %3866 = vmatprep.subr.bf16.mxu0 0
    %3867 = vmatpush1.bf16.msra.mxu0 0
    %3868 = vmatprep.subr.bf16.mxu0 0
    %3869 = vmatpush1.bf16.msra.mxu0 0
    %3870 = vmatprep.subr.bf16.mxu0 0
    %3871 = vmatpush1.bf16.msra.mxu0 0
    %3872 = vmatprep.subr.bf16.mxu0 0
    %3873 = vmatpush1.bf16.msra.mxu0 0
    %3874 = vmatprep.subr.bf16.mxu0 0
    %3875 = vmatpush1.bf16.msra.mxu0 0
    %3876 = vmatprep.subr.bf16.mxu0 0
    %3877 = vmatpush1.bf16.msra.mxu0 0
    %3878 = vmatprep.subr.bf16.mxu0 %v3857
    %3879 = vmatpush1.bf16.msra.mxu0 %v3856
    %3880 = vmatprep.subr.bf16.mxu0 0
    %3881 = vmatpush2.bf16.msra.mxu0 0
    %3882 = vmatprep.subr.bf16.mxu0 0
    %3883 = vmatpush2.bf16.msra.mxu0 0
    %3884 = vmatprep.subr.bf16.mxu0 0
    %3885 = vmatpush2.bf16.msra.mxu0 0
    %3886 = vmatprep.subr.bf16.mxu0 0
    %3887 = vmatpush2.bf16.msra.mxu0 0
    %3888 = vmatprep.subr.bf16.mxu0 0
    %3889 = vmatpush2.bf16.msra.mxu0 0
    %3890 = vmatprep.subr.bf16.mxu0 0
    %3891 = vmatpush2.bf16.msra.mxu0 0
    %3892 = vmatprep.subr.bf16.mxu0 0
    %3893 = vmatpush2.bf16.msra.mxu0 0
    %3894 = vmatprep.subr.bf16.mxu0 0
    %3895 = vmatpush2.bf16.msra.mxu0 0
    %3896 = vmatprep.mubr.bf16.mxu0 0
    %3897 = vmatmul.mubr.bf16.gmra.mxu0 %v3598
    %v3898 = vpop.f32.mrf.mxu0
    %v3899 = vadd.f32 0.0, %v3898
    %v3900 = vpop.f32.mrf.mxu0
    %v3901 = vadd.f32 0.0, %v3900
    %v3902 = vpop.f32.mrf.mxu0
    %v3903 = vadd.f32 0.0, %v3902
    %v3904 = vpop.f32.mrf.mxu0
    %v3905 = vadd.f32 0.0, %v3904
    %3906 = vdwg.mxu0
    %3907 = vmatprep.subr.bf16.mxu0 0
    %3908 = vmatpush1.bf16.msra.mxu0 0
    %3909 = vmatprep.subr.bf16.mxu0 0
    %3910 = vmatpush1.bf16.msra.mxu0 0
    %3911 = vmatprep.subr.bf16.mxu0 0
    %3912 = vmatpush1.bf16.msra.mxu0 0
    %3913 = vmatprep.subr.bf16.mxu0 0
    %3914 = vmatpush1.bf16.msra.mxu0 0
    %3915 = vmatprep.subr.bf16.mxu0 0
    %3916 = vmatpush1.bf16.msra.mxu0 0
    %3917 = vmatprep.subr.bf16.mxu0 0
    %3918 = vmatpush1.bf16.msra.mxu0 0
    %3919 = vmatprep.subr.bf16.mxu0 0
    %3920 = vmatpush1.bf16.msra.mxu0 0
    %3921 = vmatprep.subr.bf16.mxu0 %v3859
    %3922 = vmatpush1.bf16.msra.mxu0 %v3858
    %3923 = vmatprep.subr.bf16.mxu0 0
    %3924 = vmatpush2.bf16.msra.mxu0 0
    %3925 = vmatprep.subr.bf16.mxu0 0
    %3926 = vmatpush2.bf16.msra.mxu0 0
    %3927 = vmatprep.subr.bf16.mxu0 0
    %3928 = vmatpush2.bf16.msra.mxu0 0
    %3929 = vmatprep.subr.bf16.mxu0 0
    %3930 = vmatpush2.bf16.msra.mxu0 0
    %3931 = vmatprep.subr.bf16.mxu0 0
    %3932 = vmatpush2.bf16.msra.mxu0 0
    %3933 = vmatprep.subr.bf16.mxu0 0
    %3934 = vmatpush2.bf16.msra.mxu0 0
    %3935 = vmatprep.subr.bf16.mxu0 0
    %3936 = vmatpush2.bf16.msra.mxu0 0
    %3937 = vmatprep.subr.bf16.mxu0 0
    %3938 = vmatpush2.bf16.msra.mxu0 0
    %3939 = vmatprep.mubr.bf16.mxu0 0
    %3940 = vmatmul.mubr.bf16.gmra.mxu0 %v3598
    %v3941 = vpop.f32.mrf.mxu0
    %v3942 = vadd.f32 0.0, %v3941
    %v3943 = vpop.f32.mrf.mxu0
    %v3944 = vadd.f32 0.0, %v3943
    %v3945 = vpop.f32.mrf.mxu0
    %v3946 = vadd.f32 0.0, %v3945
    %v3947 = vpop.f32.mrf.mxu0
    %v3948 = vadd.f32 0.0, %v3947
    %3949 = vdwg.mxu0
    %v3958 = vrot.slane %v3899, 2
    %v3959 = vrot.slane %v3903, 2
    %v3960 = vsel %vm450, %v3958, %v3959
    %v3961 = vrot.slane %v3901, 2
    %v3962 = vrot.slane %v3905, 2
    %v3963 = vsel %vm450, %v3961, %v3962
    %v3964 = vrot.slane %v3942, 2
    %v3965 = vrot.slane %v3946, 2
    %v3966 = vsel %vm450, %v3964, %v3965
    %v3967 = vrot.slane %v3944, 2
    %v3968 = vrot.slane %v3948, 2
    %v3969 = vsel %vm450, %v3967, %v3968
    %v3978 = vadd.f32 %v3832, %v3960
    %v3979 = vadd.f32 %v3833, %v3963
    %v3980 = vadd.f32 %v3834, %v3966
    %v3981 = vadd.f32 %v3835, %v3969
    %v3982 = vadd.f32 %v3836, %v3959
    %v3983 = vadd.f32 %v3837, %v3962
    %v3984 = vadd.f32 %v3838, %v3965
    %v3985 = vadd.f32 %v3839, %v3968
    %s3986 = scalar_lea.vmem %s0, 80
    %v3987 = vld [vmem:[%s3986] sm:$0xff]
    %v3988 = vld [vmem:[%s3986 + $0x8] sm:$0xff]
    %v3989 = vpack.c.bf16 %v3988, %v3987
    %v3990 = vld [vmem:[%s1 + $0x20] sm:$0xff]
    %v3991 = vld [vmem:[%s1 + $0x28] sm:$0xff]
    %v3992 = vld [vmem:[%s1 + $0x30] sm:$0xff]
    %v3993 = vld [vmem:[%s1 + $0x38] sm:$0xff]
    %v3998 = vunpack.c.l.b16 %v3990
    %v3999 = vunpack.c.h.b16 %v3990
    %v4000 = vunpack.c.l.b16 %v3991
    %v4001 = vunpack.c.h.b16 %v3991
    %v4002 = vunpack.c.l.b16 %v3992
    %v4003 = vunpack.c.h.b16 %v3992
    %v4004 = vunpack.c.l.b16 %v3993
    %v4005 = vunpack.c.h.b16 %v3993
    %v4006 = vpack.c.b16 %v4002, %v3998
    %v4007 = vpack.c.b16 %v4003, %v3999
    %v4008 = vpack.c.b16 %v4004, %v4000
    %v4009 = vpack.c.b16 %v4005, %v4001
    %v4015 = vsel %vm64, %v3989, 0
    %4017 = vmatprep.subr.bf16.mxu0 0
    %4018 = vmatpush1.bf16.msra.mxu0 0
    %4019 = vmatprep.subr.bf16.mxu0 0
    %4020 = vmatpush1.bf16.msra.mxu0 0
    %4021 = vmatprep.subr.bf16.mxu0 0
    %4022 = vmatpush1.bf16.msra.mxu0 0
    %4023 = vmatprep.subr.bf16.mxu0 0
    %4024 = vmatpush1.bf16.msra.mxu0 0
    %4025 = vmatprep.subr.bf16.mxu0 0
    %4026 = vmatpush1.bf16.msra.mxu0 0
    %4027 = vmatprep.subr.bf16.mxu0 0
    %4028 = vmatpush1.bf16.msra.mxu0 0
    %4029 = vmatprep.subr.bf16.mxu0 0
    %4030 = vmatpush1.bf16.msra.mxu0 0
    %4031 = vmatprep.subr.bf16.mxu0 %v4007
    %4032 = vmatpush1.bf16.msra.mxu0 %v4006
    %4033 = vmatprep.subr.bf16.mxu0 0
    %4034 = vmatpush2.bf16.msra.mxu0 0
    %4035 = vmatprep.subr.bf16.mxu0 0
    %4036 = vmatpush2.bf16.msra.mxu0 0
    %4037 = vmatprep.subr.bf16.mxu0 0
    %4038 = vmatpush2.bf16.msra.mxu0 0
    %4039 = vmatprep.subr.bf16.mxu0 0
    %4040 = vmatpush2.bf16.msra.mxu0 0
    %4041 = vmatprep.subr.bf16.mxu0 0
    %4042 = vmatpush2.bf16.msra.mxu0 0
    %4043 = vmatprep.subr.bf16.mxu0 0
    %4044 = vmatpush2.bf16.msra.mxu0 0
    %4045 = vmatprep.subr.bf16.mxu0 0
    %4046 = vmatpush2.bf16.msra.mxu0 0
    %4047 = vmatprep.subr.bf16.mxu0 0
    %4048 = vmatpush2.bf16.msra.mxu0 0
    %4049 = vmatprep.mubr.bf16.mxu0 0
    %4050 = vmatmul.mubr.bf16.gmra.mxu0 %v4015
    %v4051 = vpop.f32.mrf.mxu0
    %v4052 = vadd.f32 0.0, %v4051
    %v4053 = vpop.f32.mrf.mxu0
    %v4054 = vadd.f32 0.0, %v4053
    %v4055 = vpop.f32.mrf.mxu0
    %v4056 = vadd.f32 0.0, %v4055
    %v4057 = vpop.f32.mrf.mxu0
    %v4058 = vadd.f32 0.0, %v4057
    %4059 = vdwg.mxu0
    %4060 = vmatprep.subr.bf16.mxu0 0
    %4061 = vmatpush1.bf16.msra.mxu0 0
    %4062 = vmatprep.subr.bf16.mxu0 0
    %4063 = vmatpush1.bf16.msra.mxu0 0
    %4064 = vmatprep.subr.bf16.mxu0 0
    %4065 = vmatpush1.bf16.msra.mxu0 0
    %4066 = vmatprep.subr.bf16.mxu0 0
    %4067 = vmatpush1.bf16.msra.mxu0 0
    %4068 = vmatprep.subr.bf16.mxu0 0
    %4069 = vmatpush1.bf16.msra.mxu0 0
    %4070 = vmatprep.subr.bf16.mxu0 0
    %4071 = vmatpush1.bf16.msra.mxu0 0
    %4072 = vmatprep.subr.bf16.mxu0 0
    %4073 = vmatpush1.bf16.msra.mxu0 0
    %4074 = vmatprep.subr.bf16.mxu0 %v4009
    %4075 = vmatpush1.bf16.msra.mxu0 %v4008
    %4076 = vmatprep.subr.bf16.mxu0 0
    %4077 = vmatpush2.bf16.msra.mxu0 0
    %4078 = vmatprep.subr.bf16.mxu0 0
    %4079 = vmatpush2.bf16.msra.mxu0 0
    %4080 = vmatprep.subr.bf16.mxu0 0
    %4081 = vmatpush2.bf16.msra.mxu0 0
    %4082 = vmatprep.subr.bf16.mxu0 0
    %4083 = vmatpush2.bf16.msra.mxu0 0
    %4084 = vmatprep.subr.bf16.mxu0 0
    %4085 = vmatpush2.bf16.msra.mxu0 0
    %4086 = vmatprep.subr.bf16.mxu0 0
    %4087 = vmatpush2.bf16.msra.mxu0 0
    %4088 = vmatprep.subr.bf16.mxu0 0
    %4089 = vmatpush2.bf16.msra.mxu0 0
    %4090 = vmatprep.subr.bf16.mxu0 0
    %4091 = vmatpush2.bf16.msra.mxu0 0
    %4092 = vmatprep.mubr.bf16.mxu0 0
    %4093 = vmatmul.mubr.bf16.gmra.mxu0 %v4015
    %v4094 = vpop.f32.mrf.mxu0
    %v4095 = vadd.f32 0.0, %v4094
    %v4096 = vpop.f32.mrf.mxu0
    %v4097 = vadd.f32 0.0, %v4096
    %v4098 = vpop.f32.mrf.mxu0
    %v4099 = vadd.f32 0.0, %v4098
    %v4100 = vpop.f32.mrf.mxu0
    %v4101 = vadd.f32 0.0, %v4100
    %4102 = vdwg.mxu0
    %v4103 = vadd.f32 %v3978, %v4052
    %v4104 = vadd.f32 %v3979, %v4054
    %v4105 = vadd.f32 %v3980, %v4095
    %v4106 = vadd.f32 %v3981, %v4097
    %v4107 = vadd.f32 %v3982, %v4056
    %v4108 = vadd.f32 %v3983, %v4058
    %v4109 = vadd.f32 %v3984, %v4099
    %v4110 = vadd.f32 %v3985, %v4101
    %v4111 = vld [vmem:[%s183 + $0x20] sm:$0xff]
    %v4112 = vld [vmem:[%s183 + $0x28] sm:$0xff]
    %v4113 = vld [vmem:[%s183 + $0x30] sm:$0xff]
    %v4114 = vld [vmem:[%s183 + $0x38] sm:$0xff]
    %v4119 = vunpack.c.l.b16 %v4111
    %v4120 = vunpack.c.h.b16 %v4111
    %v4121 = vunpack.c.l.b16 %v4112
    %v4122 = vunpack.c.h.b16 %v4112
    %v4123 = vunpack.c.l.b16 %v4113
    %v4124 = vunpack.c.h.b16 %v4113
    %v4125 = vunpack.c.l.b16 %v4114
    %v4126 = vunpack.c.h.b16 %v4114
    %v4127 = vpack.c.b16 %v4123, %v4119
    %v4128 = vpack.c.b16 %v4124, %v4120
    %v4129 = vpack.c.b16 %v4125, %v4121
    %v4130 = vpack.c.b16 %v4126, %v4122
    %4135 = vmatprep.subr.bf16.mxu0 0
    %4136 = vmatpush1.bf16.msra.mxu0 0
    %4137 = vmatprep.subr.bf16.mxu0 0
    %4138 = vmatpush1.bf16.msra.mxu0 0
    %4139 = vmatprep.subr.bf16.mxu0 0
    %4140 = vmatpush1.bf16.msra.mxu0 0
    %4141 = vmatprep.subr.bf16.mxu0 0
    %4142 = vmatpush1.bf16.msra.mxu0 0
    %4143 = vmatprep.subr.bf16.mxu0 0
    %4144 = vmatpush1.bf16.msra.mxu0 0
    %4145 = vmatprep.subr.bf16.mxu0 0
    %4146 = vmatpush1.bf16.msra.mxu0 0
    %4147 = vmatprep.subr.bf16.mxu0 0
    %4148 = vmatpush1.bf16.msra.mxu0 0
    %4149 = vmatprep.subr.bf16.mxu0 %v4128
    %4150 = vmatpush1.bf16.msra.mxu0 %v4127
    %4151 = vmatprep.subr.bf16.mxu0 0
    %4152 = vmatpush2.bf16.msra.mxu0 0
    %4153 = vmatprep.subr.bf16.mxu0 0
    %4154 = vmatpush2.bf16.msra.mxu0 0
    %4155 = vmatprep.subr.bf16.mxu0 0
    %4156 = vmatpush2.bf16.msra.mxu0 0
    %4157 = vmatprep.subr.bf16.mxu0 0
    %4158 = vmatpush2.bf16.msra.mxu0 0
    %4159 = vmatprep.subr.bf16.mxu0 0
    %4160 = vmatpush2.bf16.msra.mxu0 0
    %4161 = vmatprep.subr.bf16.mxu0 0
    %4162 = vmatpush2.bf16.msra.mxu0 0
    %4163 = vmatprep.subr.bf16.mxu0 0
    %4164 = vmatpush2.bf16.msra.mxu0 0
    %4165 = vmatprep.subr.bf16.mxu0 0
    %4166 = vmatpush2.bf16.msra.mxu0 0
    %4167 = vmatprep.mubr.bf16.mxu0 0
    %4168 = vmatmul.mubr.bf16.gmra.mxu0 %v4015
    %v4169 = vpop.f32.mrf.mxu0
    %v4170 = vadd.f32 0.0, %v4169
    %v4171 = vpop.f32.mrf.mxu0
    %v4172 = vadd.f32 0.0, %v4171
    %v4173 = vpop.f32.mrf.mxu0
    %v4174 = vadd.f32 0.0, %v4173
    %v4175 = vpop.f32.mrf.mxu0
    %v4176 = vadd.f32 0.0, %v4175
    %4177 = vdwg.mxu0
    %4178 = vmatprep.subr.bf16.mxu0 0
    %4179 = vmatpush1.bf16.msra.mxu0 0
    %4180 = vmatprep.subr.bf16.mxu0 0
    %4181 = vmatpush1.bf16.msra.mxu0 0
    %4182 = vmatprep.subr.bf16.mxu0 0
    %4183 = vmatpush1.bf16.msra.mxu0 0
    %4184 = vmatprep.subr.bf16.mxu0 0
    %4185 = vmatpush1.bf16.msra.mxu0 0
    %4186 = vmatprep.subr.bf16.mxu0 0
    %4187 = vmatpush1.bf16.msra.mxu0 0
    %4188 = vmatprep.subr.bf16.mxu0 0
    %4189 = vmatpush1.bf16.msra.mxu0 0
    %4190 = vmatprep.subr.bf16.mxu0 0
    %4191 = vmatpush1.bf16.msra.mxu0 0
    %4192 = vmatprep.subr.bf16.mxu0 %v4130
    %4193 = vmatpush1.bf16.msra.mxu0 %v4129
    %4194 = vmatprep.subr.bf16.mxu0 0
    %4195 = vmatpush2.bf16.msra.mxu0 0
    %4196 = vmatprep.subr.bf16.mxu0 0
    %4197 = vmatpush2.bf16.msra.mxu0 0
    %4198 = vmatprep.subr.bf16.mxu0 0
    %4199 = vmatpush2.bf16.msra.mxu0 0
    %4200 = vmatprep.subr.bf16.mxu0 0
    %4201 = vmatpush2.bf16.msra.mxu0 0
    %4202 = vmatprep.subr.bf16.mxu0 0
    %4203 = vmatpush2.bf16.msra.mxu0 0
    %4204 = vmatprep.subr.bf16.mxu0 0
    %4205 = vmatpush2.bf16.msra.mxu0 0
    %4206 = vmatprep.subr.bf16.mxu0 0
    %4207 = vmatpush2.bf16.msra.mxu0 0
    %4208 = vmatprep.subr.bf16.mxu0 0
    %4209 = vmatpush2.bf16.msra.mxu0 0
    %4210 = vmatprep.mubr.bf16.mxu0 0
    %4211 = vmatmul.mubr.bf16.gmra.mxu0 %v4015
    %v4212 = vpop.f32.mrf.mxu0
    %v4213 = vadd.f32 0.0, %v4212
    %v4214 = vpop.f32.mrf.mxu0
    %v4215 = vadd.f32 0.0, %v4214
    %v4216 = vpop.f32.mrf.mxu0
    %v4217 = vadd.f32 0.0, %v4216
    %v4218 = vpop.f32.mrf.mxu0
    %v4219 = vadd.f32 0.0, %v4218
    %4220 = vdwg.mxu0
    %v4229 = vrot.slane %v4170, 1
    %v4230 = vrot.slane %v4174, 1
    %v4231 = vsel %vm302, %v4229, %v4230
    %v4232 = vrot.slane %v4172, 1
    %v4233 = vrot.slane %v4176, 1
    %v4234 = vsel %vm302, %v4232, %v4233
    %v4235 = vrot.slane %v4213, 1
    %v4236 = vrot.slane %v4217, 1
    %v4237 = vsel %vm302, %v4235, %v4236
    %v4238 = vrot.slane %v4215, 1
    %v4239 = vrot.slane %v4219, 1
    %v4240 = vsel %vm302, %v4238, %v4239
    %v4249 = vadd.f32 %v4103, %v4231
    %v4250 = vadd.f32 %v4104, %v4234
    %v4251 = vadd.f32 %v4105, %v4237
    %v4252 = vadd.f32 %v4106, %v4240
    %v4253 = vadd.f32 %v4107, %v4230
    %v4254 = vadd.f32 %v4108, %v4233
    %v4255 = vadd.f32 %v4109, %v4236
    %v4256 = vadd.f32 %v4110, %v4239
    %v4257 = vld [vmem:[%s331 + $0x20] sm:$0xff]
    %v4258 = vld [vmem:[%s331 + $0x28] sm:$0xff]
    %v4259 = vld [vmem:[%s331 + $0x30] sm:$0xff]
    %v4260 = vld [vmem:[%s331 + $0x38] sm:$0xff]
    %v4265 = vunpack.c.l.b16 %v4257
    %v4266 = vunpack.c.h.b16 %v4257
    %v4267 = vunpack.c.l.b16 %v4258
    %v4268 = vunpack.c.h.b16 %v4258
    %v4269 = vunpack.c.l.b16 %v4259
    %v4270 = vunpack.c.h.b16 %v4259
    %v4271 = vunpack.c.l.b16 %v4260
    %v4272 = vunpack.c.h.b16 %v4260
    %v4273 = vpack.c.b16 %v4269, %v4265
    %v4274 = vpack.c.b16 %v4270, %v4266
    %v4275 = vpack.c.b16 %v4271, %v4267
    %v4276 = vpack.c.b16 %v4272, %v4268
    %4281 = vmatprep.subr.bf16.mxu0 0
    %4282 = vmatpush1.bf16.msra.mxu0 0
    %4283 = vmatprep.subr.bf16.mxu0 0
    %4284 = vmatpush1.bf16.msra.mxu0 0
    %4285 = vmatprep.subr.bf16.mxu0 0
    %4286 = vmatpush1.bf16.msra.mxu0 0
    %4287 = vmatprep.subr.bf16.mxu0 0
    %4288 = vmatpush1.bf16.msra.mxu0 0
    %4289 = vmatprep.subr.bf16.mxu0 0
    %4290 = vmatpush1.bf16.msra.mxu0 0
    %4291 = vmatprep.subr.bf16.mxu0 0
    %4292 = vmatpush1.bf16.msra.mxu0 0
    %4293 = vmatprep.subr.bf16.mxu0 0
    %4294 = vmatpush1.bf16.msra.mxu0 0
    %4295 = vmatprep.subr.bf16.mxu0 %v4274
    %4296 = vmatpush1.bf16.msra.mxu0 %v4273
    %4297 = vmatprep.subr.bf16.mxu0 0
    %4298 = vmatpush2.bf16.msra.mxu0 0
    %4299 = vmatprep.subr.bf16.mxu0 0
    %4300 = vmatpush2.bf16.msra.mxu0 0
    %4301 = vmatprep.subr.bf16.mxu0 0
    %4302 = vmatpush2.bf16.msra.mxu0 0
    %4303 = vmatprep.subr.bf16.mxu0 0
    %4304 = vmatpush2.bf16.msra.mxu0 0
    %4305 = vmatprep.subr.bf16.mxu0 0
    %4306 = vmatpush2.bf16.msra.mxu0 0
    %4307 = vmatprep.subr.bf16.mxu0 0
    %4308 = vmatpush2.bf16.msra.mxu0 0
    %4309 = vmatprep.subr.bf16.mxu0 0
    %4310 = vmatpush2.bf16.msra.mxu0 0
    %4311 = vmatprep.subr.bf16.mxu0 0
    %4312 = vmatpush2.bf16.msra.mxu0 0
    %4313 = vmatprep.mubr.bf16.mxu0 0
    %4314 = vmatmul.mubr.bf16.gmra.mxu0 %v4015
    %v4315 = vpop.f32.mrf.mxu0
    %v4316 = vadd.f32 0.0, %v4315
    %v4317 = vpop.f32.mrf.mxu0
    %v4318 = vadd.f32 0.0, %v4317
    %v4319 = vpop.f32.mrf.mxu0
    %v4320 = vadd.f32 0.0, %v4319
    %v4321 = vpop.f32.mrf.mxu0
    %v4322 = vadd.f32 0.0, %v4321
    %4323 = vdwg.mxu0
    %4324 = vmatprep.subr.bf16.mxu0 0
    %4325 = vmatpush1.bf16.msra.mxu0 0
    %4326 = vmatprep.subr.bf16.mxu0 0
    %4327 = vmatpush1.bf16.msra.mxu0 0
    %4328 = vmatprep.subr.bf16.mxu0 0
    %4329 = vmatpush1.bf16.msra.mxu0 0
    %4330 = vmatprep.subr.bf16.mxu0 0
    %4331 = vmatpush1.bf16.msra.mxu0 0
    %4332 = vmatprep.subr.bf16.mxu0 0
    %4333 = vmatpush1.bf16.msra.mxu0 0
    %4334 = vmatprep.subr.bf16.mxu0 0
    %4335 = vmatpush1.bf16.msra.mxu0 0
    %4336 = vmatprep.subr.bf16.mxu0 0
    %4337 = vmatpush1.bf16.msra.mxu0 0
    %4338 = vmatprep.subr.bf16.mxu0 %v4276
    %4339 = vmatpush1.bf16.msra.mxu0 %v4275
    %4340 = vmatprep.subr.bf16.mxu0 0
    %4341 = vmatpush2.bf16.msra.mxu0 0
    %4342 = vmatprep.subr.bf16.mxu0 0
    %4343 = vmatpush2.bf16.msra.mxu0 0
    %4344 = vmatprep.subr.bf16.mxu0 0
    %4345 = vmatpush2.bf16.msra.mxu0 0
    %4346 = vmatprep.subr.bf16.mxu0 0
    %4347 = vmatpush2.bf16.msra.mxu0 0
    %4348 = vmatprep.subr.bf16.mxu0 0
    %4349 = vmatpush2.bf16.msra.mxu0 0
    %4350 = vmatprep.subr.bf16.mxu0 0
    %4351 = vmatpush2.bf16.msra.mxu0 0
    %4352 = vmatprep.subr.bf16.mxu0 0
    %4353 = vmatpush2.bf16.msra.mxu0 0
    %4354 = vmatprep.subr.bf16.mxu0 0
    %4355 = vmatpush2.bf16.msra.mxu0 0
    %4356 = vmatprep.mubr.bf16.mxu0 0
    %4357 = vmatmul.mubr.bf16.gmra.mxu0 %v4015
    %v4358 = vpop.f32.mrf.mxu0
    %v4359 = vadd.f32 0.0, %v4358
    %v4360 = vpop.f32.mrf.mxu0
    %v4361 = vadd.f32 0.0, %v4360
    %v4362 = vpop.f32.mrf.mxu0
    %v4363 = vadd.f32 0.0, %v4362
    %v4364 = vpop.f32.mrf.mxu0
    %v4365 = vadd.f32 0.0, %v4364
    %4366 = vdwg.mxu0
    %v4375 = vrot.slane %v4316, 2
    %v4376 = vrot.slane %v4320, 2
    %v4377 = vsel %vm450, %v4375, %v4376
    %v4378 = vrot.slane %v4318, 2
    %v4379 = vrot.slane %v4322, 2
    %v4380 = vsel %vm450, %v4378, %v4379
    %v4381 = vrot.slane %v4359, 2
    %v4382 = vrot.slane %v4363, 2
    %v4383 = vsel %vm450, %v4381, %v4382
    %v4384 = vrot.slane %v4361, 2
    %v4385 = vrot.slane %v4365, 2
    %v4386 = vsel %vm450, %v4384, %v4385
    %v4395 = vadd.f32 %v4249, %v4377
    %v4396 = vadd.f32 %v4250, %v4380
    %v4397 = vadd.f32 %v4251, %v4383
    %v4398 = vadd.f32 %v4252, %v4386
    %v4399 = vadd.f32 %v4253, %v4376
    %v4400 = vadd.f32 %v4254, %v4379
    %v4401 = vadd.f32 %v4255, %v4382
    %v4402 = vadd.f32 %v4256, %v4385
    %s4403 = scalar_lea.vmem %s0, 96
    %v4404 = vld [vmem:[%s4403] sm:$0xff]
    %v4405 = vld [vmem:[%s4403 + $0x8] sm:$0xff]
    %v4406 = vpack.c.bf16 %v4405, %v4404
    %v4407 = vld [vmem:[%s1 + $0x40] sm:$0xff]
    %v4408 = vld [vmem:[%s1 + $0x48] sm:$0xff]
    %v4409 = vld [vmem:[%s1 + $0x50] sm:$0xff]
    %v4410 = vld [vmem:[%s1 + $0x58] sm:$0xff]
    %v4415 = vunpack.c.l.b16 %v4407
    %v4416 = vunpack.c.h.b16 %v4407
    %v4417 = vunpack.c.l.b16 %v4408
    %v4418 = vunpack.c.h.b16 %v4408
    %v4419 = vunpack.c.l.b16 %v4409
    %v4420 = vunpack.c.h.b16 %v4409
    %v4421 = vunpack.c.l.b16 %v4410
    %v4422 = vunpack.c.h.b16 %v4410
    %v4423 = vpack.c.b16 %v4419, %v4415
    %v4424 = vpack.c.b16 %v4420, %v4416
    %v4425 = vpack.c.b16 %v4421, %v4417
    %v4426 = vpack.c.b16 %v4422, %v4418
    %v4432 = vsel %vm64, %v4406, 0
    %4434 = vmatprep.subr.bf16.mxu0 0
    %4435 = vmatpush1.bf16.msra.mxu0 0
    %4436 = vmatprep.subr.bf16.mxu0 0
    %4437 = vmatpush1.bf16.msra.mxu0 0
    %4438 = vmatprep.subr.bf16.mxu0 0
    %4439 = vmatpush1.bf16.msra.mxu0 0
    %4440 = vmatprep.subr.bf16.mxu0 0
    %4441 = vmatpush1.bf16.msra.mxu0 0
    %4442 = vmatprep.subr.bf16.mxu0 0
    %4443 = vmatpush1.bf16.msra.mxu0 0
    %4444 = vmatprep.subr.bf16.mxu0 0
    %4445 = vmatpush1.bf16.msra.mxu0 0
    %4446 = vmatprep.subr.bf16.mxu0 0
    %4447 = vmatpush1.bf16.msra.mxu0 0
    %4448 = vmatprep.subr.bf16.mxu0 %v4424
    %4449 = vmatpush1.bf16.msra.mxu0 %v4423
    %4450 = vmatprep.subr.bf16.mxu0 0
    %4451 = vmatpush2.bf16.msra.mxu0 0
    %4452 = vmatprep.subr.bf16.mxu0 0
    %4453 = vmatpush2.bf16.msra.mxu0 0
    %4454 = vmatprep.subr.bf16.mxu0 0
    %4455 = vmatpush2.bf16.msra.mxu0 0
    %4456 = vmatprep.subr.bf16.mxu0 0
    %4457 = vmatpush2.bf16.msra.mxu0 0
    %4458 = vmatprep.subr.bf16.mxu0 0
    %4459 = vmatpush2.bf16.msra.mxu0 0
    %4460 = vmatprep.subr.bf16.mxu0 0
    %4461 = vmatpush2.bf16.msra.mxu0 0
    %4462 = vmatprep.subr.bf16.mxu0 0
    %4463 = vmatpush2.bf16.msra.mxu0 0
    %4464 = vmatprep.subr.bf16.mxu0 0
    %4465 = vmatpush2.bf16.msra.mxu0 0
    %4466 = vmatprep.mubr.bf16.mxu0 0
    %4467 = vmatmul.mubr.bf16.gmra.mxu0 %v4432
    %v4468 = vpop.f32.mrf.mxu0
    %v4469 = vadd.f32 0.0, %v4468
    %v4470 = vpop.f32.mrf.mxu0
    %v4471 = vadd.f32 0.0, %v4470
    %v4472 = vpop.f32.mrf.mxu0
    %v4473 = vadd.f32 0.0, %v4472
    %v4474 = vpop.f32.mrf.mxu0
    %v4475 = vadd.f32 0.0, %v4474
    %4476 = vdwg.mxu0
    %4477 = vmatprep.subr.bf16.mxu0 0
    %4478 = vmatpush1.bf16.msra.mxu0 0
    %4479 = vmatprep.subr.bf16.mxu0 0
    %4480 = vmatpush1.bf16.msra.mxu0 0
    %4481 = vmatprep.subr.bf16.mxu0 0
    %4482 = vmatpush1.bf16.msra.mxu0 0
    %4483 = vmatprep.subr.bf16.mxu0 0
    %4484 = vmatpush1.bf16.msra.mxu0 0
    %4485 = vmatprep.subr.bf16.mxu0 0
    %4486 = vmatpush1.bf16.msra.mxu0 0
    %4487 = vmatprep.subr.bf16.mxu0 0
    %4488 = vmatpush1.bf16.msra.mxu0 0
    %4489 = vmatprep.subr.bf16.mxu0 0
    %4490 = vmatpush1.bf16.msra.mxu0 0
    %4491 = vmatprep.subr.bf16.mxu0 %v4426
    %4492 = vmatpush1.bf16.msra.mxu0 %v4425
    %4493 = vmatprep.subr.bf16.mxu0 0
    %4494 = vmatpush2.bf16.msra.mxu0 0
    %4495 = vmatprep.subr.bf16.mxu0 0
    %4496 = vmatpush2.bf16.msra.mxu0 0
    %4497 = vmatprep.subr.bf16.mxu0 0
    %4498 = vmatpush2.bf16.msra.mxu0 0
    %4499 = vmatprep.subr.bf16.mxu0 0
    %4500 = vmatpush2.bf16.msra.mxu0 0
    %4501 = vmatprep.subr.bf16.mxu0 0
    %4502 = vmatpush2.bf16.msra.mxu0 0
    %4503 = vmatprep.subr.bf16.mxu0 0
    %4504 = vmatpush2.bf16.msra.mxu0 0
    %4505 = vmatprep.subr.bf16.mxu0 0
    %4506 = vmatpush2.bf16.msra.mxu0 0
    %4507 = vmatprep.subr.bf16.mxu0 0
    %4508 = vmatpush2.bf16.msra.mxu0 0
    %4509 = vmatprep.mubr.bf16.mxu0 0
    %4510 = vmatmul.mubr.bf16.gmra.mxu0 %v4432
    %v4511 = vpop.f32.mrf.mxu0
    %v4512 = vadd.f32 0.0, %v4511
    %v4513 = vpop.f32.mrf.mxu0
    %v4514 = vadd.f32 0.0, %v4513
    %v4515 = vpop.f32.mrf.mxu0
    %v4516 = vadd.f32 0.0, %v4515
    %v4517 = vpop.f32.mrf.mxu0
    %v4518 = vadd.f32 0.0, %v4517
    %4519 = vdwg.mxu0
    %v4520 = vadd.f32 %v4395, %v4469
    %v4521 = vadd.f32 %v4396, %v4471
    %v4522 = vadd.f32 %v4397, %v4512
    %v4523 = vadd.f32 %v4398, %v4514
    %v4524 = vadd.f32 %v4399, %v4473
    %v4525 = vadd.f32 %v4400, %v4475
    %v4526 = vadd.f32 %v4401, %v4516
    %v4527 = vadd.f32 %v4402, %v4518
    %v4528 = vld [vmem:[%s183 + $0x40] sm:$0xff]
    %v4529 = vld [vmem:[%s183 + $0x48] sm:$0xff]
    %v4530 = vld [vmem:[%s183 + $0x50] sm:$0xff]
    %v4531 = vld [vmem:[%s183 + $0x58] sm:$0xff]
    %v4536 = vunpack.c.l.b16 %v4528
    %v4537 = vunpack.c.h.b16 %v4528
    %v4538 = vunpack.c.l.b16 %v4529
    %v4539 = vunpack.c.h.b16 %v4529
    %v4540 = vunpack.c.l.b16 %v4530
    %v4541 = vunpack.c.h.b16 %v4530
    %v4542 = vunpack.c.l.b16 %v4531
    %v4543 = vunpack.c.h.b16 %v4531
    %v4544 = vpack.c.b16 %v4540, %v4536
    %v4545 = vpack.c.b16 %v4541, %v4537
    %v4546 = vpack.c.b16 %v4542, %v4538
    %v4547 = vpack.c.b16 %v4543, %v4539
    %4552 = vmatprep.subr.bf16.mxu0 0
    %4553 = vmatpush1.bf16.msra.mxu0 0
    %4554 = vmatprep.subr.bf16.mxu0 0
    %4555 = vmatpush1.bf16.msra.mxu0 0
    %4556 = vmatprep.subr.bf16.mxu0 0
    %4557 = vmatpush1.bf16.msra.mxu0 0
    %4558 = vmatprep.subr.bf16.mxu0 0
    %4559 = vmatpush1.bf16.msra.mxu0 0
    %4560 = vmatprep.subr.bf16.mxu0 0
    %4561 = vmatpush1.bf16.msra.mxu0 0
    %4562 = vmatprep.subr.bf16.mxu0 0
    %4563 = vmatpush1.bf16.msra.mxu0 0
    %4564 = vmatprep.subr.bf16.mxu0 0
    %4565 = vmatpush1.bf16.msra.mxu0 0
    %4566 = vmatprep.subr.bf16.mxu0 %v4545
    %4567 = vmatpush1.bf16.msra.mxu0 %v4544
    %4568 = vmatprep.subr.bf16.mxu0 0
    %4569 = vmatpush2.bf16.msra.mxu0 0
    %4570 = vmatprep.subr.bf16.mxu0 0
    %4571 = vmatpush2.bf16.msra.mxu0 0
    %4572 = vmatprep.subr.bf16.mxu0 0
    %4573 = vmatpush2.bf16.msra.mxu0 0
    %4574 = vmatprep.subr.bf16.mxu0 0
    %4575 = vmatpush2.bf16.msra.mxu0 0
    %4576 = vmatprep.subr.bf16.mxu0 0
    %4577 = vmatpush2.bf16.msra.mxu0 0
    %4578 = vmatprep.subr.bf16.mxu0 0
    %4579 = vmatpush2.bf16.msra.mxu0 0
    %4580 = vmatprep.subr.bf16.mxu0 0
    %4581 = vmatpush2.bf16.msra.mxu0 0
    %4582 = vmatprep.subr.bf16.mxu0 0
    %4583 = vmatpush2.bf16.msra.mxu0 0
    %4584 = vmatprep.mubr.bf16.mxu0 0
    %4585 = vmatmul.mubr.bf16.gmra.mxu0 %v4432
    %v4586 = vpop.f32.mrf.mxu0
    %v4587 = vadd.f32 0.0, %v4586
    %v4588 = vpop.f32.mrf.mxu0
    %v4589 = vadd.f32 0.0, %v4588
    %v4590 = vpop.f32.mrf.mxu0
    %v4591 = vadd.f32 0.0, %v4590
    %v4592 = vpop.f32.mrf.mxu0
    %v4593 = vadd.f32 0.0, %v4592
    %4594 = vdwg.mxu0
    %4595 = vmatprep.subr.bf16.mxu0 0
    %4596 = vmatpush1.bf16.msra.mxu0 0
    %4597 = vmatprep.subr.bf16.mxu0 0
    %4598 = vmatpush1.bf16.msra.mxu0 0
    %4599 = vmatprep.subr.bf16.mxu0 0
    %4600 = vmatpush1.bf16.msra.mxu0 0
    %4601 = vmatprep.subr.bf16.mxu0 0
    %4602 = vmatpush1.bf16.msra.mxu0 0
    %4603 = vmatprep.subr.bf16.mxu0 0
    %4604 = vmatpush1.bf16.msra.mxu0 0
    %4605 = vmatprep.subr.bf16.mxu0 0
    %4606 = vmatpush1.bf16.msra.mxu0 0
    %4607 = vmatprep.subr.bf16.mxu0 0
    %4608 = vmatpush1.bf16.msra.mxu0 0
    %4609 = vmatprep.subr.bf16.mxu0 %v4547
    %4610 = vmatpush1.bf16.msra.mxu0 %v4546
    %4611 = vmatprep.subr.bf16.mxu0 0
    %4612 = vmatpush2.bf16.msra.mxu0 0
    %4613 = vmatprep.subr.bf16.mxu0 0
    %4614 = vmatpush2.bf16.msra.mxu0 0
    %4615 = vmatprep.subr.bf16.mxu0 0
    %4616 = vmatpush2.bf16.msra.mxu0 0
    %4617 = vmatprep.subr.bf16.mxu0 0
    %4618 = vmatpush2.bf16.msra.mxu0 0
    %4619 = vmatprep.subr.bf16.mxu0 0
    %4620 = vmatpush2.bf16.msra.mxu0 0
    %4621 = vmatprep.subr.bf16.mxu0 0
    %4622 = vmatpush2.bf16.msra.mxu0 0
    %4623 = vmatprep.subr.bf16.mxu0 0
    %4624 = vmatpush2.bf16.msra.mxu0 0
    %4625 = vmatprep.subr.bf16.mxu0 0
    %4626 = vmatpush2.bf16.msra.mxu0 0
    %4627 = vmatprep.mubr.bf16.mxu0 0
    %4628 = vmatmul.mubr.bf16.gmra.mxu0 %v4432
    %v4629 = vpop.f32.mrf.mxu0
    %v4630 = vadd.f32 0.0, %v4629
    %v4631 = vpop.f32.mrf.mxu0
    %v4632 = vadd.f32 0.0, %v4631
    %v4633 = vpop.f32.mrf.mxu0
    %v4634 = vadd.f32 0.0, %v4633
    %v4635 = vpop.f32.mrf.mxu0
    %v4636 = vadd.f32 0.0, %v4635
    %4637 = vdwg.mxu0
    %v4646 = vrot.slane %v4587, 1
    %v4647 = vrot.slane %v4591, 1
    %v4648 = vsel %vm302, %v4646, %v4647
    %v4649 = vrot.slane %v4589, 1
    %v4650 = vrot.slane %v4593, 1
    %v4651 = vsel %vm302, %v4649, %v4650
    %v4652 = vrot.slane %v4630, 1
    %v4653 = vrot.slane %v4634, 1
    %v4654 = vsel %vm302, %v4652, %v4653
    %v4655 = vrot.slane %v4632, 1
    %v4656 = vrot.slane %v4636, 1
    %v4657 = vsel %vm302, %v4655, %v4656
    %v4666 = vadd.f32 %v4520, %v4648
    %v4667 = vadd.f32 %v4521, %v4651
    %v4668 = vadd.f32 %v4522, %v4654
    %v4669 = vadd.f32 %v4523, %v4657
    %v4670 = vadd.f32 %v4524, %v4647
    %v4671 = vadd.f32 %v4525, %v4650
    %v4672 = vadd.f32 %v4526, %v4653
    %v4673 = vadd.f32 %v4527, %v4656
    %v4674 = vld [vmem:[%s331 + $0x40] sm:$0xff]
    %v4675 = vld [vmem:[%s331 + $0x48] sm:$0xff]
    %v4676 = vld [vmem:[%s331 + $0x50] sm:$0xff]
    %v4677 = vld [vmem:[%s331 + $0x58] sm:$0xff]
    %v4682 = vunpack.c.l.b16 %v4674
    %v4683 = vunpack.c.h.b16 %v4674
    %v4684 = vunpack.c.l.b16 %v4675
    %v4685 = vunpack.c.h.b16 %v4675
    %v4686 = vunpack.c.l.b16 %v4676
    %v4687 = vunpack.c.h.b16 %v4676
    %v4688 = vunpack.c.l.b16 %v4677
    %v4689 = vunpack.c.h.b16 %v4677
    %v4690 = vpack.c.b16 %v4686, %v4682
    %v4691 = vpack.c.b16 %v4687, %v4683
    %v4692 = vpack.c.b16 %v4688, %v4684
    %v4693 = vpack.c.b16 %v4689, %v4685
    %4698 = vmatprep.subr.bf16.mxu0 0
    %4699 = vmatpush1.bf16.msra.mxu0 0
    %4700 = vmatprep.subr.bf16.mxu0 0
    %4701 = vmatpush1.bf16.msra.mxu0 0
    %4702 = vmatprep.subr.bf16.mxu0 0
    %4703 = vmatpush1.bf16.msra.mxu0 0
    %4704 = vmatprep.subr.bf16.mxu0 0
    %4705 = vmatpush1.bf16.msra.mxu0 0
    %4706 = vmatprep.subr.bf16.mxu0 0
    %4707 = vmatpush1.bf16.msra.mxu0 0
    %4708 = vmatprep.subr.bf16.mxu0 0
    %4709 = vmatpush1.bf16.msra.mxu0 0
    %4710 = vmatprep.subr.bf16.mxu0 0
    %4711 = vmatpush1.bf16.msra.mxu0 0
    %4712 = vmatprep.subr.bf16.mxu0 %v4691
    %4713 = vmatpush1.bf16.msra.mxu0 %v4690
    %4714 = vmatprep.subr.bf16.mxu0 0
    %4715 = vmatpush2.bf16.msra.mxu0 0
    %4716 = vmatprep.subr.bf16.mxu0 0
    %4717 = vmatpush2.bf16.msra.mxu0 0
    %4718 = vmatprep.subr.bf16.mxu0 0
    %4719 = vmatpush2.bf16.msra.mxu0 0
    %4720 = vmatprep.subr.bf16.mxu0 0
    %4721 = vmatpush2.bf16.msra.mxu0 0
    %4722 = vmatprep.subr.bf16.mxu0 0
    %4723 = vmatpush2.bf16.msra.mxu0 0
    %4724 = vmatprep.subr.bf16.mxu0 0
    %4725 = vmatpush2.bf16.msra.mxu0 0
    %4726 = vmatprep.subr.bf16.mxu0 0
    %4727 = vmatpush2.bf16.msra.mxu0 0
    %4728 = vmatprep.subr.bf16.mxu0 0
    %4729 = vmatpush2.bf16.msra.mxu0 0
    %4730 = vmatprep.mubr.bf16.mxu0 0
    %4731 = vmatmul.mubr.bf16.gmra.mxu0 %v4432
    %v4732 = vpop.f32.mrf.mxu0
    %v4733 = vadd.f32 0.0, %v4732
    %v4734 = vpop.f32.mrf.mxu0
    %v4735 = vadd.f32 0.0, %v4734
    %v4736 = vpop.f32.mrf.mxu0
    %v4737 = vadd.f32 0.0, %v4736
    %v4738 = vpop.f32.mrf.mxu0
    %v4739 = vadd.f32 0.0, %v4738
    %4740 = vdwg.mxu0
    %4741 = vmatprep.subr.bf16.mxu0 0
    %4742 = vmatpush1.bf16.msra.mxu0 0
    %4743 = vmatprep.subr.bf16.mxu0 0
    %4744 = vmatpush1.bf16.msra.mxu0 0
    %4745 = vmatprep.subr.bf16.mxu0 0
    %4746 = vmatpush1.bf16.msra.mxu0 0
    %4747 = vmatprep.subr.bf16.mxu0 0
    %4748 = vmatpush1.bf16.msra.mxu0 0
    %4749 = vmatprep.subr.bf16.mxu0 0
    %4750 = vmatpush1.bf16.msra.mxu0 0
    %4751 = vmatprep.subr.bf16.mxu0 0
    %4752 = vmatpush1.bf16.msra.mxu0 0
    %4753 = vmatprep.subr.bf16.mxu0 0
    %4754 = vmatpush1.bf16.msra.mxu0 0
    %4755 = vmatprep.subr.bf16.mxu0 %v4693
    %4756 = vmatpush1.bf16.msra.mxu0 %v4692
    %4757 = vmatprep.subr.bf16.mxu0 0
    %4758 = vmatpush2.bf16.msra.mxu0 0
    %4759 = vmatprep.subr.bf16.mxu0 0
    %4760 = vmatpush2.bf16.msra.mxu0 0
    %4761 = vmatprep.subr.bf16.mxu0 0
    %4762 = vmatpush2.bf16.msra.mxu0 0
    %4763 = vmatprep.subr.bf16.mxu0 0
    %4764 = vmatpush2.bf16.msra.mxu0 0
    %4765 = vmatprep.subr.bf16.mxu0 0
    %4766 = vmatpush2.bf16.msra.mxu0 0
    %4767 = vmatprep.subr.bf16.mxu0 0
    %4768 = vmatpush2.bf16.msra.mxu0 0
    %4769 = vmatprep.subr.bf16.mxu0 0
    %4770 = vmatpush2.bf16.msra.mxu0 0
    %4771 = vmatprep.subr.bf16.mxu0 0
    %4772 = vmatpush2.bf16.msra.mxu0 0
    %4773 = vmatprep.mubr.bf16.mxu0 0
    %4774 = vmatmul.mubr.bf16.gmra.mxu0 %v4432
    %v4775 = vpop.f32.mrf.mxu0
    %v4776 = vadd.f32 0.0, %v4775
    %v4777 = vpop.f32.mrf.mxu0
    %v4778 = vadd.f32 0.0, %v4777
    %v4779 = vpop.f32.mrf.mxu0
    %v4780 = vadd.f32 0.0, %v4779
    %v4781 = vpop.f32.mrf.mxu0
    %v4782 = vadd.f32 0.0, %v4781
    %4783 = vdwg.mxu0
    %v4792 = vrot.slane %v4733, 2
    %v4793 = vrot.slane %v4737, 2
    %v4794 = vsel %vm450, %v4792, %v4793
    %v4795 = vrot.slane %v4735, 2
    %v4796 = vrot.slane %v4739, 2
    %v4797 = vsel %vm450, %v4795, %v4796
    %v4798 = vrot.slane %v4776, 2
    %v4799 = vrot.slane %v4780, 2
    %v4800 = vsel %vm450, %v4798, %v4799
    %v4801 = vrot.slane %v4778, 2
    %v4802 = vrot.slane %v4782, 2
    %v4803 = vsel %vm450, %v4801, %v4802
    %v4812 = vadd.f32 %v4666, %v4794
    %v4813 = vadd.f32 %v4667, %v4797
    %v4814 = vadd.f32 %v4668, %v4800
    %v4815 = vadd.f32 %v4669, %v4803
    %v4816 = vadd.f32 %v4670, %v4793
    %v4817 = vadd.f32 %v4671, %v4796
    %v4818 = vadd.f32 %v4672, %v4799
    %v4819 = vadd.f32 %v4673, %v4802
    %s4820 = scalar_lea.vmem %s0, 112
    %v4821 = vld [vmem:[%s4820] sm:$0xff]
    %v4822 = vld [vmem:[%s4820 + $0x8] sm:$0xff]
    %v4823 = vpack.c.bf16 %v4822, %v4821
    %v4824 = vld [vmem:[%s1 + $0x60] sm:$0xff]
    %v4825 = vld [vmem:[%s1 + $0x68] sm:$0xff]
    %v4826 = vld [vmem:[%s1 + $0x70] sm:$0xff]
    %v4827 = vld [vmem:[%s1 + $0x78] sm:$0xff]
    %v4832 = vunpack.c.l.b16 %v4824
    %v4833 = vunpack.c.h.b16 %v4824
    %v4834 = vunpack.c.l.b16 %v4825
    %v4835 = vunpack.c.h.b16 %v4825
    %v4836 = vunpack.c.l.b16 %v4826
    %v4837 = vunpack.c.h.b16 %v4826
    %v4838 = vunpack.c.l.b16 %v4827
    %v4839 = vunpack.c.h.b16 %v4827
    %v4840 = vpack.c.b16 %v4836, %v4832
    %v4841 = vpack.c.b16 %v4837, %v4833
    %v4842 = vpack.c.b16 %v4838, %v4834
    %v4843 = vpack.c.b16 %v4839, %v4835
    %v4849 = vsel %vm64, %v4823, 0
    %4851 = vmatprep.subr.bf16.mxu0 0
    %4852 = vmatpush1.bf16.msra.mxu0 0
    %4853 = vmatprep.subr.bf16.mxu0 0
    %4854 = vmatpush1.bf16.msra.mxu0 0
    %4855 = vmatprep.subr.bf16.mxu0 0
    %4856 = vmatpush1.bf16.msra.mxu0 0
    %4857 = vmatprep.subr.bf16.mxu0 0
    %4858 = vmatpush1.bf16.msra.mxu0 0
    %4859 = vmatprep.subr.bf16.mxu0 0
    %4860 = vmatpush1.bf16.msra.mxu0 0
    %4861 = vmatprep.subr.bf16.mxu0 0
    %4862 = vmatpush1.bf16.msra.mxu0 0
    %4863 = vmatprep.subr.bf16.mxu0 0
    %4864 = vmatpush1.bf16.msra.mxu0 0
    %4865 = vmatprep.subr.bf16.mxu0 %v4841
    %4866 = vmatpush1.bf16.msra.mxu0 %v4840
    %4867 = vmatprep.subr.bf16.mxu0 0
    %4868 = vmatpush2.bf16.msra.mxu0 0
    %4869 = vmatprep.subr.bf16.mxu0 0
    %4870 = vmatpush2.bf16.msra.mxu0 0
    %4871 = vmatprep.subr.bf16.mxu0 0
    %4872 = vmatpush2.bf16.msra.mxu0 0
    %4873 = vmatprep.subr.bf16.mxu0 0
    %4874 = vmatpush2.bf16.msra.mxu0 0
    %4875 = vmatprep.subr.bf16.mxu0 0
    %4876 = vmatpush2.bf16.msra.mxu0 0
    %4877 = vmatprep.subr.bf16.mxu0 0
    %4878 = vmatpush2.bf16.msra.mxu0 0
    %4879 = vmatprep.subr.bf16.mxu0 0
    %4880 = vmatpush2.bf16.msra.mxu0 0
    %4881 = vmatprep.subr.bf16.mxu0 0
    %4882 = vmatpush2.bf16.msra.mxu0 0
    %4883 = vmatprep.mubr.bf16.mxu0 0
    %4884 = vmatmul.mubr.bf16.gmra.mxu0 %v4849
    %v4885 = vpop.f32.mrf.mxu0
    %v4886 = vadd.f32 0.0, %v4885
    %v4887 = vpop.f32.mrf.mxu0
    %v4888 = vadd.f32 0.0, %v4887
    %v4889 = vpop.f32.mrf.mxu0
    %v4890 = vadd.f32 0.0, %v4889
    %v4891 = vpop.f32.mrf.mxu0
    %v4892 = vadd.f32 0.0, %v4891
    %4893 = vdwg.mxu0
    %4894 = vmatprep.subr.bf16.mxu0 0
    %4895 = vmatpush1.bf16.msra.mxu0 0
    %4896 = vmatprep.subr.bf16.mxu0 0
    %4897 = vmatpush1.bf16.msra.mxu0 0
    %4898 = vmatprep.subr.bf16.mxu0 0
    %4899 = vmatpush1.bf16.msra.mxu0 0
    %4900 = vmatprep.subr.bf16.mxu0 0
    %4901 = vmatpush1.bf16.msra.mxu0 0
    %4902 = vmatprep.subr.bf16.mxu0 0
    %4903 = vmatpush1.bf16.msra.mxu0 0
    %4904 = vmatprep.subr.bf16.mxu0 0
    %4905 = vmatpush1.bf16.msra.mxu0 0
    %4906 = vmatprep.subr.bf16.mxu0 0
    %4907 = vmatpush1.bf16.msra.mxu0 0
    %4908 = vmatprep.subr.bf16.mxu0 %v4843
    %4909 = vmatpush1.bf16.msra.mxu0 %v4842
    %4910 = vmatprep.subr.bf16.mxu0 0
    %4911 = vmatpush2.bf16.msra.mxu0 0
    %4912 = vmatprep.subr.bf16.mxu0 0
    %4913 = vmatpush2.bf16.msra.mxu0 0
    %4914 = vmatprep.subr.bf16.mxu0 0
    %4915 = vmatpush2.bf16.msra.mxu0 0
    %4916 = vmatprep.subr.bf16.mxu0 0
    %4917 = vmatpush2.bf16.msra.mxu0 0
    %4918 = vmatprep.subr.bf16.mxu0 0
    %4919 = vmatpush2.bf16.msra.mxu0 0
    %4920 = vmatprep.subr.bf16.mxu0 0
    %4921 = vmatpush2.bf16.msra.mxu0 0
    %4922 = vmatprep.subr.bf16.mxu0 0
    %4923 = vmatpush2.bf16.msra.mxu0 0
    %4924 = vmatprep.subr.bf16.mxu0 0
    %4925 = vmatpush2.bf16.msra.mxu0 0
    %4926 = vmatprep.mubr.bf16.mxu0 0
    %4927 = vmatmul.mubr.bf16.gmra.mxu0 %v4849
    %v4928 = vpop.f32.mrf.mxu0
    %v4929 = vadd.f32 0.0, %v4928
    %v4930 = vpop.f32.mrf.mxu0
    %v4931 = vadd.f32 0.0, %v4930
    %v4932 = vpop.f32.mrf.mxu0
    %v4933 = vadd.f32 0.0, %v4932
    %v4934 = vpop.f32.mrf.mxu0
    %v4935 = vadd.f32 0.0, %v4934
    %4936 = vdwg.mxu0
    %v4937 = vadd.f32 %v4812, %v4886
    %v4938 = vadd.f32 %v4813, %v4888
    %v4939 = vadd.f32 %v4814, %v4929
    %v4940 = vadd.f32 %v4815, %v4931
    %v4941 = vadd.f32 %v4816, %v4890
    %v4942 = vadd.f32 %v4817, %v4892
    %v4943 = vadd.f32 %v4818, %v4933
    %v4944 = vadd.f32 %v4819, %v4935
    %v4945 = vld [vmem:[%s183 + $0x60] sm:$0xff]
    %v4946 = vld [vmem:[%s183 + $0x68] sm:$0xff]
    %v4947 = vld [vmem:[%s183 + $0x70] sm:$0xff]
    %v4948 = vld [vmem:[%s183 + $0x78] sm:$0xff]
    %v4953 = vunpack.c.l.b16 %v4945
    %v4954 = vunpack.c.h.b16 %v4945
    %v4955 = vunpack.c.l.b16 %v4946
    %v4956 = vunpack.c.h.b16 %v4946
    %v4957 = vunpack.c.l.b16 %v4947
    %v4958 = vunpack.c.h.b16 %v4947
    %v4959 = vunpack.c.l.b16 %v4948
    %v4960 = vunpack.c.h.b16 %v4948
    %v4961 = vpack.c.b16 %v4957, %v4953
    %v4962 = vpack.c.b16 %v4958, %v4954
    %v4963 = vpack.c.b16 %v4959, %v4955
    %v4964 = vpack.c.b16 %v4960, %v4956
    %4969 = vmatprep.subr.bf16.mxu0 0
    %4970 = vmatpush1.bf16.msra.mxu0 0
    %4971 = vmatprep.subr.bf16.mxu0 0
    %4972 = vmatpush1.bf16.msra.mxu0 0
    %4973 = vmatprep.subr.bf16.mxu0 0
    %4974 = vmatpush1.bf16.msra.mxu0 0
    %4975 = vmatprep.subr.bf16.mxu0 0
    %4976 = vmatpush1.bf16.msra.mxu0 0
    %4977 = vmatprep.subr.bf16.mxu0 0
    %4978 = vmatpush1.bf16.msra.mxu0 0
    %4979 = vmatprep.subr.bf16.mxu0 0
    %4980 = vmatpush1.bf16.msra.mxu0 0
    %4981 = vmatprep.subr.bf16.mxu0 0
    %4982 = vmatpush1.bf16.msra.mxu0 0
    %4983 = vmatprep.subr.bf16.mxu0 %v4962
    %4984 = vmatpush1.bf16.msra.mxu0 %v4961
    %4985 = vmatprep.subr.bf16.mxu0 0
    %4986 = vmatpush2.bf16.msra.mxu0 0
    %4987 = vmatprep.subr.bf16.mxu0 0
    %4988 = vmatpush2.bf16.msra.mxu0 0
    %4989 = vmatprep.subr.bf16.mxu0 0
    %4990 = vmatpush2.bf16.msra.mxu0 0
    %4991 = vmatprep.subr.bf16.mxu0 0
    %4992 = vmatpush2.bf16.msra.mxu0 0
    %4993 = vmatprep.subr.bf16.mxu0 0
    %4994 = vmatpush2.bf16.msra.mxu0 0
    %4995 = vmatprep.subr.bf16.mxu0 0
    %4996 = vmatpush2.bf16.msra.mxu0 0
    %4997 = vmatprep.subr.bf16.mxu0 0
    %4998 = vmatpush2.bf16.msra.mxu0 0
    %4999 = vmatprep.subr.bf16.mxu0 0
    %5000 = vmatpush2.bf16.msra.mxu0 0
    %5001 = vmatprep.mubr.bf16.mxu0 0
    %5002 = vmatmul.mubr.bf16.gmra.mxu0 %v4849
    %v5003 = vpop.f32.mrf.mxu0
    %v5004 = vadd.f32 0.0, %v5003
    %v5005 = vpop.f32.mrf.mxu0
    %v5006 = vadd.f32 0.0, %v5005
    %v5007 = vpop.f32.mrf.mxu0
    %v5008 = vadd.f32 0.0, %v5007
    %v5009 = vpop.f32.mrf.mxu0
    %v5010 = vadd.f32 0.0, %v5009
    %5011 = vdwg.mxu0
    %5012 = vmatprep.subr.bf16.mxu0 0
    %5013 = vmatpush1.bf16.msra.mxu0 0
    %5014 = vmatprep.subr.bf16.mxu0 0
    %5015 = vmatpush1.bf16.msra.mxu0 0
    %5016 = vmatprep.subr.bf16.mxu0 0
    %5017 = vmatpush1.bf16.msra.mxu0 0
    %5018 = vmatprep.subr.bf16.mxu0 0
    %5019 = vmatpush1.bf16.msra.mxu0 0
    %5020 = vmatprep.subr.bf16.mxu0 0
    %5021 = vmatpush1.bf16.msra.mxu0 0
    %5022 = vmatprep.subr.bf16.mxu0 0
    %5023 = vmatpush1.bf16.msra.mxu0 0
    %5024 = vmatprep.subr.bf16.mxu0 0
    %5025 = vmatpush1.bf16.msra.mxu0 0
    %5026 = vmatprep.subr.bf16.mxu0 %v4964
    %5027 = vmatpush1.bf16.msra.mxu0 %v4963
    %5028 = vmatprep.subr.bf16.mxu0 0
    %5029 = vmatpush2.bf16.msra.mxu0 0
    %5030 = vmatprep.subr.bf16.mxu0 0
    %5031 = vmatpush2.bf16.msra.mxu0 0
    %5032 = vmatprep.subr.bf16.mxu0 0
    %5033 = vmatpush2.bf16.msra.mxu0 0
    %5034 = vmatprep.subr.bf16.mxu0 0
    %5035 = vmatpush2.bf16.msra.mxu0 0
    %5036 = vmatprep.subr.bf16.mxu0 0
    %5037 = vmatpush2.bf16.msra.mxu0 0
    %5038 = vmatprep.subr.bf16.mxu0 0
    %5039 = vmatpush2.bf16.msra.mxu0 0
    %5040 = vmatprep.subr.bf16.mxu0 0
    %5041 = vmatpush2.bf16.msra.mxu0 0
    %5042 = vmatprep.subr.bf16.mxu0 0
    %5043 = vmatpush2.bf16.msra.mxu0 0
    %5044 = vmatprep.mubr.bf16.mxu0 0
    %5045 = vmatmul.mubr.bf16.gmra.mxu0 %v4849
    %v5046 = vpop.f32.mrf.mxu0
    %v5047 = vadd.f32 0.0, %v5046
    %v5048 = vpop.f32.mrf.mxu0
    %v5049 = vadd.f32 0.0, %v5048
    %v5050 = vpop.f32.mrf.mxu0
    %v5051 = vadd.f32 0.0, %v5050
    %v5052 = vpop.f32.mrf.mxu0
    %v5053 = vadd.f32 0.0, %v5052
    %5054 = vdwg.mxu0
    %v5063 = vrot.slane %v5004, 1
    %v5064 = vrot.slane %v5008, 1
    %v5065 = vsel %vm302, %v5063, %v5064
    %v5066 = vrot.slane %v5006, 1
    %v5067 = vrot.slane %v5010, 1
    %v5068 = vsel %vm302, %v5066, %v5067
    %v5069 = vrot.slane %v5047, 1
    %v5070 = vrot.slane %v5051, 1
    %v5071 = vsel %vm302, %v5069, %v5070
    %v5072 = vrot.slane %v5049, 1
    %v5073 = vrot.slane %v5053, 1
    %v5074 = vsel %vm302, %v5072, %v5073
    %v5083 = vadd.f32 %v4937, %v5065
    %v5084 = vadd.f32 %v4938, %v5068
    %v5085 = vadd.f32 %v4939, %v5071
    %v5086 = vadd.f32 %v4940, %v5074
    %v5087 = vadd.f32 %v4941, %v5064
    %v5088 = vadd.f32 %v4942, %v5067
    %v5089 = vadd.f32 %v4943, %v5070
    %v5090 = vadd.f32 %v4944, %v5073
    %v5091 = vld [vmem:[%s331 + $0x60] sm:$0xff]
    %v5092 = vld [vmem:[%s331 + $0x68] sm:$0xff]
    %v5093 = vld [vmem:[%s331 + $0x70] sm:$0xff]
    %v5094 = vld [vmem:[%s331 + $0x78] sm:$0xff]
    %v5099 = vunpack.c.l.b16 %v5091
    %v5100 = vunpack.c.h.b16 %v5091
    %v5101 = vunpack.c.l.b16 %v5092
    %v5102 = vunpack.c.h.b16 %v5092
    %v5103 = vunpack.c.l.b16 %v5093
    %v5104 = vunpack.c.h.b16 %v5093
    %v5105 = vunpack.c.l.b16 %v5094
    %v5106 = vunpack.c.h.b16 %v5094
    %v5107 = vpack.c.b16 %v5103, %v5099
    %v5108 = vpack.c.b16 %v5104, %v5100
    %v5109 = vpack.c.b16 %v5105, %v5101
    %v5110 = vpack.c.b16 %v5106, %v5102
    %5115 = vmatprep.subr.bf16.mxu0 0
    %5116 = vmatpush1.bf16.msra.mxu0 0
    %5117 = vmatprep.subr.bf16.mxu0 0
    %5118 = vmatpush1.bf16.msra.mxu0 0
    %5119 = vmatprep.subr.bf16.mxu0 0
    %5120 = vmatpush1.bf16.msra.mxu0 0
    %5121 = vmatprep.subr.bf16.mxu0 0
    %5122 = vmatpush1.bf16.msra.mxu0 0
    %5123 = vmatprep.subr.bf16.mxu0 0
    %5124 = vmatpush1.bf16.msra.mxu0 0
    %5125 = vmatprep.subr.bf16.mxu0 0
    %5126 = vmatpush1.bf16.msra.mxu0 0
    %5127 = vmatprep.subr.bf16.mxu0 0
    %5128 = vmatpush1.bf16.msra.mxu0 0
    %5129 = vmatprep.subr.bf16.mxu0 %v5108
    %5130 = vmatpush1.bf16.msra.mxu0 %v5107
    %5131 = vmatprep.subr.bf16.mxu0 0
    %5132 = vmatpush2.bf16.msra.mxu0 0
    %5133 = vmatprep.subr.bf16.mxu0 0
    %5134 = vmatpush2.bf16.msra.mxu0 0
    %5135 = vmatprep.subr.bf16.mxu0 0
    %5136 = vmatpush2.bf16.msra.mxu0 0
    %5137 = vmatprep.subr.bf16.mxu0 0
    %5138 = vmatpush2.bf16.msra.mxu0 0
    %5139 = vmatprep.subr.bf16.mxu0 0
    %5140 = vmatpush2.bf16.msra.mxu0 0
    %5141 = vmatprep.subr.bf16.mxu0 0
    %5142 = vmatpush2.bf16.msra.mxu0 0
    %5143 = vmatprep.subr.bf16.mxu0 0
    %5144 = vmatpush2.bf16.msra.mxu0 0
    %5145 = vmatprep.subr.bf16.mxu0 0
    %5146 = vmatpush2.bf16.msra.mxu0 0
    %5147 = vmatprep.mubr.bf16.mxu0 0
    %5148 = vmatmul.mubr.bf16.gmra.mxu0 %v4849
    %v5149 = vpop.f32.mrf.mxu0
    %v5150 = vadd.f32 0.0, %v5149
    %v5151 = vpop.f32.mrf.mxu0
    %v5152 = vadd.f32 0.0, %v5151
    %v5153 = vpop.f32.mrf.mxu0
    %v5154 = vadd.f32 0.0, %v5153
    %v5155 = vpop.f32.mrf.mxu0
    %v5156 = vadd.f32 0.0, %v5155
    %5157 = vdwg.mxu0
    %5158 = vmatprep.subr.bf16.mxu0 0
    %5159 = vmatpush1.bf16.msra.mxu0 0
    %5160 = vmatprep.subr.bf16.mxu0 0
    %5161 = vmatpush1.bf16.msra.mxu0 0
    %5162 = vmatprep.subr.bf16.mxu0 0
    %5163 = vmatpush1.bf16.msra.mxu0 0
    %5164 = vmatprep.subr.bf16.mxu0 0
    %5165 = vmatpush1.bf16.msra.mxu0 0
    %5166 = vmatprep.subr.bf16.mxu0 0
    %5167 = vmatpush1.bf16.msra.mxu0 0
    %5168 = vmatprep.subr.bf16.mxu0 0
    %5169 = vmatpush1.bf16.msra.mxu0 0
    %5170 = vmatprep.subr.bf16.mxu0 0
    %5171 = vmatpush1.bf16.msra.mxu0 0
    %5172 = vmatprep.subr.bf16.mxu0 %v5110
    %5173 = vmatpush1.bf16.msra.mxu0 %v5109
    %5174 = vmatprep.subr.bf16.mxu0 0
    %5175 = vmatpush2.bf16.msra.mxu0 0
    %5176 = vmatprep.subr.bf16.mxu0 0
    %5177 = vmatpush2.bf16.msra.mxu0 0
    %5178 = vmatprep.subr.bf16.mxu0 0
    %5179 = vmatpush2.bf16.msra.mxu0 0
    %5180 = vmatprep.subr.bf16.mxu0 0
    %5181 = vmatpush2.bf16.msra.mxu0 0
    %5182 = vmatprep.subr.bf16.mxu0 0
    %5183 = vmatpush2.bf16.msra.mxu0 0
    %5184 = vmatprep.subr.bf16.mxu0 0
    %5185 = vmatpush2.bf16.msra.mxu0 0
    %5186 = vmatprep.subr.bf16.mxu0 0
    %5187 = vmatpush2.bf16.msra.mxu0 0
    %5188 = vmatprep.subr.bf16.mxu0 0
    %5189 = vmatpush2.bf16.msra.mxu0 0
    %5190 = vmatprep.mubr.bf16.mxu0 0
    %5191 = vmatmul.mubr.bf16.gmra.mxu0 %v4849
    %v5192 = vpop.f32.mrf.mxu0
    %v5193 = vadd.f32 0.0, %v5192
    %v5194 = vpop.f32.mrf.mxu0
    %v5195 = vadd.f32 0.0, %v5194
    %v5196 = vpop.f32.mrf.mxu0
    %v5197 = vadd.f32 0.0, %v5196
    %v5198 = vpop.f32.mrf.mxu0
    %v5199 = vadd.f32 0.0, %v5198
    %5200 = vdwg.mxu0
    %v5209 = vrot.slane %v5150, 2
    %v5210 = vrot.slane %v5154, 2
    %v5211 = vsel %vm450, %v5209, %v5210
    %v5212 = vrot.slane %v5152, 2
    %v5213 = vrot.slane %v5156, 2
    %v5214 = vsel %vm450, %v5212, %v5213
    %v5215 = vrot.slane %v5193, 2
    %v5216 = vrot.slane %v5197, 2
    %v5217 = vsel %vm450, %v5215, %v5216
    %v5218 = vrot.slane %v5195, 2
    %v5219 = vrot.slane %v5199, 2
    %v5220 = vsel %vm450, %v5218, %v5219
    %v5229 = vadd.f32 %v5083, %v5211
    %v5230 = vadd.f32 %v5084, %v5214
    %v5231 = vadd.f32 %v5085, %v5217
    %v5232 = vadd.f32 %v5086, %v5220
    %v5233 = vadd.f32 %v5087, %v5210
    %v5234 = vadd.f32 %v5088, %v5213
    %v5235 = vadd.f32 %v5089, %v5216
    %v5236 = vadd.f32 %v5090, %v5219
    %v5237 = vmax.f32 %v5229, 0.0
    %v5238 = vmax.f32 %v5230, 0.0
    %v5239 = vmax.f32 %v5231, 0.0
    %v5240 = vmax.f32 %v5232, 0.0
    %v5241 = vmax.f32 %v5233, 0.0
    %v5242 = vmax.f32 %v5234, 0.0
    %v5243 = vmax.f32 %v5235, 0.0
    %v5244 = vmax.f32 %v5236, 0.0
    %v5245 = vpack.c.bf16 %v5241, %v5237
    %v5246 = vpack.c.bf16 %v5242, %v5238
    %v5247 = vpack.c.bf16 %v5243, %v5239
    %v5248 = vpack.c.bf16 %v5244, %v5240
    %v5249 = vld [vmem:[%s2] sm:$0xff]
    %v5250 = vld [vmem:[%s2 + $0x8] sm:$0xff]
    %v5251 = vld [vmem:[%s2 + $0x10] sm:$0xff]
    %v5252 = vld [vmem:[%s2 + $0x18] sm:$0xff]
    %v5253 = vld [vmem:[%s2 + $0x20] sm:$0xff]
    %v5254 = vld [vmem:[%s2 + $0x28] sm:$0xff]
    %v5255 = vld [vmem:[%s2 + $0x30] sm:$0xff]
    %v5256 = vld [vmem:[%s2 + $0x38] sm:$0xff]
    %v5257 = vld [vmem:[%s2 + $0x40] sm:$0xff]
    %v5258 = vld [vmem:[%s2 + $0x48] sm:$0xff]
    %v5259 = vld [vmem:[%s2 + $0x50] sm:$0xff]
    %v5260 = vld [vmem:[%s2 + $0x58] sm:$0xff]
    %v5261 = vld [vmem:[%s2 + $0x60] sm:$0xff]
    %v5262 = vld [vmem:[%s2 + $0x68] sm:$0xff]
    %v5263 = vld [vmem:[%s2 + $0x70] sm:$0xff]
    %v5264 = vld [vmem:[%s2 + $0x78] sm:$0xff]
    %v5265 = vld [vmem:[%s2 + $0x80] sm:$0xff]
    %v5266 = vld [vmem:[%s2 + $0x88] sm:$0xff]
    %v5267 = vld [vmem:[%s2 + $0x90] sm:$0xff]
    %v5268 = vld [vmem:[%s2 + $0x98] sm:$0xff]
    %v5269 = vld [vmem:[%s2 + $0xa0] sm:$0xff]
    %v5270 = vld [vmem:[%s2 + $0xa8] sm:$0xff]
    %v5271 = vld [vmem:[%s2 + $0xb0] sm:$0xff]
    %v5272 = vld [vmem:[%s2 + $0xb8] sm:$0xff]
    %v5273 = vld [vmem:[%s2 + $0xc0] sm:$0xff]
    %v5274 = vld [vmem:[%s2 + $0xc8] sm:$0xff]
    %v5275 = vld [vmem:[%s2 + $0xd0] sm:$0xff]
    %v5276 = vld [vmem:[%s2 + $0xd8] sm:$0xff]
    %v5277 = vld [vmem:[%s2 + $0xe0] sm:$0xff]
    %v5278 = vld [vmem:[%s2 + $0xe8] sm:$0xff]
    %v5279 = vld [vmem:[%s2 + $0xf0] sm:$0xff]
    %v5280 = vld [vmem:[%s2 + $0xf8] sm:$0xff]
    %v5281 = vld [vmem:[%s2 + $0x100] sm:$0xff]
    %v5282 = vld [vmem:[%s2 + $0x108] sm:$0xff]
    %v5283 = vld [vmem:[%s2 + $0x110] sm:$0xff]
    %v5284 = vld [vmem:[%s2 + $0x118] sm:$0xff]
    %v5285 = vld [vmem:[%s2 + $0x120] sm:$0xff]
    %v5286 = vld [vmem:[%s2 + $0x128] sm:$0xff]
    %v5287 = vld [vmem:[%s2 + $0x130] sm:$0xff]
    %v5288 = vld [vmem:[%s2 + $0x138] sm:$0xff]
    %v5289 = vld [vmem:[%s2 + $0x140] sm:$0xff]
    %v5290 = vld [vmem:[%s2 + $0x148] sm:$0xff]
    %v5291 = vld [vmem:[%s2 + $0x150] sm:$0xff]
    %v5292 = vld [vmem:[%s2 + $0x158] sm:$0xff]
    %v5293 = vld [vmem:[%s2 + $0x160] sm:$0xff]
    %v5294 = vld [vmem:[%s2 + $0x168] sm:$0xff]
    %v5295 = vld [vmem:[%s2 + $0x170] sm:$0xff]
    %v5296 = vld [vmem:[%s2 + $0x178] sm:$0xff]
    %v5297 = vld [vmem:[%s2 + $0x180] sm:$0xff]
    %v5298 = vld [vmem:[%s2 + $0x188] sm:$0xff]
    %v5299 = vld [vmem:[%s2 + $0x190] sm:$0xff]
    %v5300 = vld [vmem:[%s2 + $0x198] sm:$0xff]
    %v5301 = vld [vmem:[%s2 + $0x1a0] sm:$0xff]
    %v5302 = vld [vmem:[%s2 + $0x1a8] sm:$0xff]
    %v5303 = vld [vmem:[%s2 + $0x1b0] sm:$0xff]
    %v5304 = vld [vmem:[%s2 + $0x1b8] sm:$0xff]
    %v5361 = vunpack.c.l.b16 %v5249
    %v5362 = vunpack.c.h.b16 %v5249
    %v5363 = vunpack.c.l.b16 %v5250
    %v5364 = vunpack.c.h.b16 %v5250
    %v5365 = vunpack.c.l.b16 %v5251
    %v5366 = vunpack.c.h.b16 %v5251
    %v5367 = vunpack.c.l.b16 %v5252
    %v5368 = vunpack.c.h.b16 %v5252
    %v5369 = vunpack.c.l.b16 %v5253
    %v5370 = vunpack.c.h.b16 %v5253
    %v5371 = vunpack.c.l.b16 %v5254
    %v5372 = vunpack.c.h.b16 %v5254
    %v5373 = vunpack.c.l.b16 %v5255
    %v5374 = vunpack.c.h.b16 %v5255
    %v5375 = vunpack.c.l.b16 %v5256
    %v5376 = vunpack.c.h.b16 %v5256
    %v5377 = vunpack.c.l.b16 %v5257
    %v5378 = vunpack.c.h.b16 %v5257
    %v5379 = vunpack.c.l.b16 %v5258
    %v5380 = vunpack.c.h.b16 %v5258
    %v5381 = vunpack.c.l.b16 %v5259
    %v5382 = vunpack.c.h.b16 %v5259
    %v5383 = vunpack.c.l.b16 %v5260
    %v5384 = vunpack.c.h.b16 %v5260
    %v5385 = vunpack.c.l.b16 %v5261
    %v5386 = vunpack.c.h.b16 %v5261
    %v5387 = vunpack.c.l.b16 %v5262
    %v5388 = vunpack.c.h.b16 %v5262
    %v5389 = vunpack.c.l.b16 %v5263
    %v5390 = vunpack.c.h.b16 %v5263
    %v5391 = vunpack.c.l.b16 %v5264
    %v5392 = vunpack.c.h.b16 %v5264
    %v5393 = vunpack.c.l.b16 %v5265
    %v5394 = vunpack.c.h.b16 %v5265
    %v5395 = vunpack.c.l.b16 %v5266
    %v5396 = vunpack.c.h.b16 %v5266
    %v5397 = vunpack.c.l.b16 %v5267
    %v5398 = vunpack.c.h.b16 %v5267
    %v5399 = vunpack.c.l.b16 %v5268
    %v5400 = vunpack.c.h.b16 %v5268
    %v5401 = vunpack.c.l.b16 %v5269
    %v5402 = vunpack.c.h.b16 %v5269
    %v5403 = vunpack.c.l.b16 %v5270
    %v5404 = vunpack.c.h.b16 %v5270
    %v5405 = vunpack.c.l.b16 %v5271
    %v5406 = vunpack.c.h.b16 %v5271
    %v5407 = vunpack.c.l.b16 %v5272
    %v5408 = vunpack.c.h.b16 %v5272
    %v5409 = vunpack.c.l.b16 %v5273
    %v5410 = vunpack.c.h.b16 %v5273
    %v5411 = vunpack.c.l.b16 %v5274
    %v5412 = vunpack.c.h.b16 %v5274
    %v5413 = vunpack.c.l.b16 %v5275
    %v5414 = vunpack.c.h.b16 %v5275
    %v5415 = vunpack.c.l.b16 %v5276
    %v5416 = vunpack.c.h.b16 %v5276
    %v5417 = vunpack.c.l.b16 %v5277
    %v5418 = vunpack.c.h.b16 %v5277
    %v5419 = vunpack.c.l.b16 %v5278
    %v5420 = vunpack.c.h.b16 %v5278
    %v5421 = vunpack.c.l.b16 %v5279
    %v5422 = vunpack.c.h.b16 %v5279
    %v5423 = vunpack.c.l.b16 %v5280
    %v5424 = vunpack.c.h.b16 %v5280
    %v5425 = vunpack.c.l.b16 %v5281
    %v5426 = vunpack.c.h.b16 %v5281
    %v5427 = vunpack.c.l.b16 %v5282
    %v5428 = vunpack.c.h.b16 %v5282
    %v5429 = vunpack.c.l.b16 %v5283
    %v5430 = vunpack.c.h.b16 %v5283
    %v5431 = vunpack.c.l.b16 %v5284
    %v5432 = vunpack.c.h.b16 %v5284
    %v5433 = vunpack.c.l.b16 %v5285
    %v5434 = vunpack.c.h.b16 %v5285
    %v5435 = vunpack.c.l.b16 %v5286
    %v5436 = vunpack.c.h.b16 %v5286
    %v5437 = vunpack.c.l.b16 %v5287
    %v5438 = vunpack.c.h.b16 %v5287
    %v5439 = vunpack.c.l.b16 %v5288
    %v5440 = vunpack.c.h.b16 %v5288
    %v5441 = vunpack.c.l.b16 %v5289
    %v5442 = vunpack.c.h.b16 %v5289
    %v5443 = vunpack.c.l.b16 %v5290
    %v5444 = vunpack.c.h.b16 %v5290
    %v5445 = vunpack.c.l.b16 %v5291
    %v5446 = vunpack.c.h.b16 %v5291
    %v5447 = vunpack.c.l.b16 %v5292
    %v5448 = vunpack.c.h.b16 %v5292
    %v5449 = vunpack.c.l.b16 %v5293
    %v5450 = vunpack.c.h.b16 %v5293
    %v5451 = vunpack.c.l.b16 %v5294
    %v5452 = vunpack.c.h.b16 %v5294
    %v5453 = vunpack.c.l.b16 %v5295
    %v5454 = vunpack.c.h.b16 %v5295
    %v5455 = vunpack.c.l.b16 %v5296
    %v5456 = vunpack.c.h.b16 %v5296
    %v5457 = vunpack.c.l.b16 %v5297
    %v5458 = vunpack.c.h.b16 %v5297
    %v5459 = vunpack.c.l.b16 %v5298
    %v5460 = vunpack.c.h.b16 %v5298
    %v5461 = vunpack.c.l.b16 %v5299
    %v5462 = vunpack.c.h.b16 %v5299
    %v5463 = vunpack.c.l.b16 %v5300
    %v5464 = vunpack.c.h.b16 %v5300
    %v5465 = vunpack.c.l.b16 %v5301
    %v5466 = vunpack.c.h.b16 %v5301
    %v5467 = vunpack.c.l.b16 %v5302
    %v5468 = vunpack.c.h.b16 %v5302
    %v5469 = vunpack.c.l.b16 %v5303
    %v5470 = vunpack.c.h.b16 %v5303
    %v5471 = vunpack.c.l.b16 %v5304
    %v5472 = vunpack.c.h.b16 %v5304
    %v5473 = vpack.c.b16 %v5363, %v5361
    %v5474 = vpack.c.b16 %v5364, %v5362
    %v5475 = vpack.c.b16 %v5367, %v5365
    %v5476 = vpack.c.b16 %v5368, %v5366
    %v5477 = vpack.c.b16 %v5371, %v5369
    %v5478 = vpack.c.b16 %v5372, %v5370
    %v5479 = vpack.c.b16 %v5375, %v5373
    %v5480 = vpack.c.b16 %v5376, %v5374
    %v5481 = vpack.c.b16 %v5379, %v5377
    %v5482 = vpack.c.b16 %v5380, %v5378
    %v5483 = vpack.c.b16 %v5383, %v5381
    %v5484 = vpack.c.b16 %v5384, %v5382
    %v5485 = vpack.c.b16 %v5387, %v5385
    %v5486 = vpack.c.b16 %v5388, %v5386
    %v5487 = vpack.c.b16 %v5391, %v5389
    %v5488 = vpack.c.b16 %v5392, %v5390
    %v5489 = vpack.c.b16 %v5395, %v5393
    %v5490 = vpack.c.b16 %v5396, %v5394
    %v5491 = vpack.c.b16 %v5399, %v5397
    %v5492 = vpack.c.b16 %v5400, %v5398
    %v5493 = vpack.c.b16 %v5403, %v5401
    %v5494 = vpack.c.b16 %v5404, %v5402
    %v5495 = vpack.c.b16 %v5407, %v5405
    %v5496 = vpack.c.b16 %v5408, %v5406
    %v5497 = vpack.c.b16 %v5411, %v5409
    %v5498 = vpack.c.b16 %v5412, %v5410
    %v5499 = vpack.c.b16 %v5415, %v5413
    %v5500 = vpack.c.b16 %v5416, %v5414
    %v5501 = vpack.c.b16 %v5419, %v5417
    %v5502 = vpack.c.b16 %v5420, %v5418
    %v5503 = vpack.c.b16 %v5423, %v5421
    %v5504 = vpack.c.b16 %v5424, %v5422
    %v5505 = vpack.c.b16 %v5427, %v5425
    %v5506 = vpack.c.b16 %v5428, %v5426
    %v5507 = vpack.c.b16 %v5431, %v5429
    %v5508 = vpack.c.b16 %v5432, %v5430
    %v5509 = vpack.c.b16 %v5435, %v5433
    %v5510 = vpack.c.b16 %v5436, %v5434
    %v5511 = vpack.c.b16 %v5439, %v5437
    %v5512 = vpack.c.b16 %v5440, %v5438
    %v5513 = vpack.c.b16 %v5443, %v5441
    %v5514 = vpack.c.b16 %v5444, %v5442
    %v5515 = vpack.c.b16 %v5447, %v5445
    %v5516 = vpack.c.b16 %v5448, %v5446
    %v5517 = vpack.c.b16 %v5451, %v5449
    %v5518 = vpack.c.b16 %v5452, %v5450
    %v5519 = vpack.c.b16 %v5455, %v5453
    %v5520 = vpack.c.b16 %v5456, %v5454
    %v5521 = vpack.c.b16 %v5459, %v5457
    %v5522 = vpack.c.b16 %v5460, %v5458
    %v5523 = vpack.c.b16 %v5463, %v5461
    %v5524 = vpack.c.b16 %v5464, %v5462
    %v5525 = vpack.c.b16 %v5467, %v5465
    %v5526 = vpack.c.b16 %v5468, %v5466
    %v5527 = vpack.c.b16 %v5471, %v5469
    %v5528 = vpack.c.b16 %v5472, %v5470
    %v5586 = vsel %vm2078, %v5248, 0
    %5588 = vmatprep.subr.bf16.mxu0 %v5488
    %5589 = vmatpush1.bf16.msra.mxu0 %v5487
    %5590 = vmatprep.subr.bf16.mxu0 %v5486
    %5591 = vmatpush1.bf16.msra.mxu0 %v5485
    %5592 = vmatprep.subr.bf16.mxu0 %v5484
    %5593 = vmatpush1.bf16.msra.mxu0 %v5483
    %5594 = vmatprep.subr.bf16.mxu0 %v5482
    %5595 = vmatpush1.bf16.msra.mxu0 %v5481
    %5596 = vmatprep.subr.bf16.mxu0 %v5480
    %5597 = vmatpush1.bf16.msra.mxu0 %v5479
    %5598 = vmatprep.subr.bf16.mxu0 %v5478
    %5599 = vmatpush1.bf16.msra.mxu0 %v5477
    %5600 = vmatprep.subr.bf16.mxu0 %v5476
    %5601 = vmatpush1.bf16.msra.mxu0 %v5475
    %5602 = vmatprep.subr.bf16.mxu0 %v5474
    %5603 = vmatpush1.bf16.msra.mxu0 %v5473
    %5604 = vmatprep.subr.bf16.mxu0 %v5504
    %5605 = vmatpush2.bf16.msra.mxu0 %v5503
    %5606 = vmatprep.subr.bf16.mxu0 %v5502
    %5607 = vmatpush2.bf16.msra.mxu0 %v5501
    %5608 = vmatprep.subr.bf16.mxu0 %v5500
    %5609 = vmatpush2.bf16.msra.mxu0 %v5499
    %5610 = vmatprep.subr.bf16.mxu0 %v5498
    %5611 = vmatpush2.bf16.msra.mxu0 %v5497
    %5612 = vmatprep.subr.bf16.mxu0 %v5496
    %5613 = vmatpush2.bf16.msra.mxu0 %v5495
    %5614 = vmatprep.subr.bf16.mxu0 %v5494
    %5615 = vmatpush2.bf16.msra.mxu0 %v5493
    %5616 = vmatprep.subr.bf16.mxu0 %v5492
    %5617 = vmatpush2.bf16.msra.mxu0 %v5491
    %5618 = vmatprep.subr.bf16.mxu0 %v5490
    %5619 = vmatpush2.bf16.msra.mxu0 %v5489
    %5620 = vmatprep.mubr.bf16.mxu0 %v5246
    %5621 = vmatmul.mubr.bf16.gmra.mxu0 %v5245
    %v5622 = vpop.f32.mrf.mxu0
    %v5623 = vadd.f32 0.0, %v5622
    %v5624 = vpop.f32.mrf.mxu0
    %v5625 = vadd.f32 0.0, %v5624
    %v5626 = vpop.f32.mrf.mxu0
    %v5627 = vadd.f32 0.0, %v5626
    %v5628 = vpop.f32.mrf.mxu0
    %v5629 = vadd.f32 0.0, %v5628
    %5630 = vdwg.mxu0
    %5631 = vmatprep.subr.bf16.mxu0 %v5520
    %5632 = vmatpush1.bf16.msra.mxu0 %v5519
    %5633 = vmatprep.subr.bf16.mxu0 %v5518
    %5634 = vmatpush1.bf16.msra.mxu0 %v5517
    %5635 = vmatprep.subr.bf16.mxu0 %v5516
    %5636 = vmatpush1.bf16.msra.mxu0 %v5515
    %5637 = vmatprep.subr.bf16.mxu0 %v5514
    %5638 = vmatpush1.bf16.msra.mxu0 %v5513
    %5639 = vmatprep.subr.bf16.mxu0 %v5512
    %5640 = vmatpush1.bf16.msra.mxu0 %v5511
    %5641 = vmatprep.subr.bf16.mxu0 %v5510
    %5642 = vmatpush1.bf16.msra.mxu0 %v5509
    %5643 = vmatprep.subr.bf16.mxu0 %v5508
    %5644 = vmatpush1.bf16.msra.mxu0 %v5507
    %5645 = vmatprep.subr.bf16.mxu0 %v5506
    %5646 = vmatpush1.bf16.msra.mxu0 %v5505
    %5647 = vmatprep.subr.bf16.mxu0 0
    %5648 = vmatpush2.bf16.msra.mxu0 0
    %5649 = vmatprep.subr.bf16.mxu0 0
    %5650 = vmatpush2.bf16.msra.mxu0 0
    %5651 = vmatprep.subr.bf16.mxu0 0
    %5652 = vmatpush2.bf16.msra.mxu0 0
    %5653 = vmatprep.subr.bf16.mxu0 0
    %5654 = vmatpush2.bf16.msra.mxu0 0
    %5655 = vmatprep.subr.bf16.mxu0 %v5528
    %5656 = vmatpush2.bf16.msra.mxu0 %v5527
    %5657 = vmatprep.subr.bf16.mxu0 %v5526
    %5658 = vmatpush2.bf16.msra.mxu0 %v5525
    %5659 = vmatprep.subr.bf16.mxu0 %v5524
    %5660 = vmatpush2.bf16.msra.mxu0 %v5523
    %5661 = vmatprep.subr.bf16.mxu0 %v5522
    %5662 = vmatpush2.bf16.msra.mxu0 %v5521
    %5663 = vmatprep.mubr.bf16.mxu0 %v5586
    %5664 = vmatmul.mubr.bf16.gmra.mxu0 %v5247
    %v5665 = vpop.f32.mrf.mxu0
    %v5666 = vadd.f32 %v5623, %v5665
    %v5667 = vpop.f32.mrf.mxu0
    %v5668 = vadd.f32 %v5625, %v5667
    %v5669 = vpop.f32.mrf.mxu0
    %v5670 = vadd.f32 %v5627, %v5669
    %v5671 = vpop.f32.mrf.mxu0
    %v5672 = vadd.f32 %v5629, %v5671
    %5673 = vdwg.mxu0
    %v5674 = vld [vmem:[%s2168] sm:$0xff]
    %v5675 = vld [vmem:[%s2168 + $0x8] sm:$0xff]
    %v5676 = vld [vmem:[%s2168 + $0x10] sm:$0xff]
    %v5677 = vld [vmem:[%s2168 + $0x18] sm:$0xff]
    %v5678 = vld [vmem:[%s2168 + $0x20] sm:$0xff]
    %v5679 = vld [vmem:[%s2168 + $0x28] sm:$0xff]
    %v5680 = vld [vmem:[%s2168 + $0x30] sm:$0xff]
    %v5681 = vld [vmem:[%s2168 + $0x38] sm:$0xff]
    %v5682 = vld [vmem:[%s2168 + $0x40] sm:$0xff]
    %v5683 = vld [vmem:[%s2168 + $0x48] sm:$0xff]
    %v5684 = vld [vmem:[%s2168 + $0x50] sm:$0xff]
    %v5685 = vld [vmem:[%s2168 + $0x58] sm:$0xff]
    %v5686 = vld [vmem:[%s2168 + $0x60] sm:$0xff]
    %v5687 = vld [vmem:[%s2168 + $0x68] sm:$0xff]
    %v5688 = vld [vmem:[%s2168 + $0x70] sm:$0xff]
    %v5689 = vld [vmem:[%s2168 + $0x78] sm:$0xff]
    %v5690 = vld [vmem:[%s2168 + $0x80] sm:$0xff]
    %v5691 = vld [vmem:[%s2168 + $0x88] sm:$0xff]
    %v5692 = vld [vmem:[%s2168 + $0x90] sm:$0xff]
    %v5693 = vld [vmem:[%s2168 + $0x98] sm:$0xff]
    %v5694 = vld [vmem:[%s2168 + $0xa0] sm:$0xff]
    %v5695 = vld [vmem:[%s2168 + $0xa8] sm:$0xff]
    %v5696 = vld [vmem:[%s2168 + $0xb0] sm:$0xff]
    %v5697 = vld [vmem:[%s2168 + $0xb8] sm:$0xff]
    %v5698 = vld [vmem:[%s2168 + $0xc0] sm:$0xff]
    %v5699 = vld [vmem:[%s2168 + $0xc8] sm:$0xff]
    %v5700 = vld [vmem:[%s2168 + $0xd0] sm:$0xff]
    %v5701 = vld [vmem:[%s2168 + $0xd8] sm:$0xff]
    %v5702 = vld [vmem:[%s2168 + $0xe0] sm:$0xff]
    %v5703 = vld [vmem:[%s2168 + $0xe8] sm:$0xff]
    %v5704 = vld [vmem:[%s2168 + $0xf0] sm:$0xff]
    %v5705 = vld [vmem:[%s2168 + $0xf8] sm:$0xff]
    %v5706 = vld [vmem:[%s2168 + $0x100] sm:$0xff]
    %v5707 = vld [vmem:[%s2168 + $0x108] sm:$0xff]
    %v5708 = vld [vmem:[%s2168 + $0x110] sm:$0xff]
    %v5709 = vld [vmem:[%s2168 + $0x118] sm:$0xff]
    %v5710 = vld [vmem:[%s2168 + $0x120] sm:$0xff]
    %v5711 = vld [vmem:[%s2168 + $0x128] sm:$0xff]
    %v5712 = vld [vmem:[%s2168 + $0x130] sm:$0xff]
    %v5713 = vld [vmem:[%s2168 + $0x138] sm:$0xff]
    %v5714 = vld [vmem:[%s2168 + $0x140] sm:$0xff]
    %v5715 = vld [vmem:[%s2168 + $0x148] sm:$0xff]
    %v5716 = vld [vmem:[%s2168 + $0x150] sm:$0xff]
    %v5717 = vld [vmem:[%s2168 + $0x158] sm:$0xff]
    %v5718 = vld [vmem:[%s2168 + $0x160] sm:$0xff]
    %v5719 = vld [vmem:[%s2168 + $0x168] sm:$0xff]
    %v5720 = vld [vmem:[%s2168 + $0x170] sm:$0xff]
    %v5721 = vld [vmem:[%s2168 + $0x178] sm:$0xff]
    %v5722 = vld [vmem:[%s2168 + $0x180] sm:$0xff]
    %v5723 = vld [vmem:[%s2168 + $0x188] sm:$0xff]
    %v5724 = vld [vmem:[%s2168 + $0x190] sm:$0xff]
    %v5725 = vld [vmem:[%s2168 + $0x198] sm:$0xff]
    %v5726 = vld [vmem:[%s2168 + $0x1a0] sm:$0xff]
    %v5727 = vld [vmem:[%s2168 + $0x1a8] sm:$0xff]
    %v5728 = vld [vmem:[%s2168 + $0x1b0] sm:$0xff]
    %v5729 = vld [vmem:[%s2168 + $0x1b8] sm:$0xff]
    %v5786 = vunpack.c.l.b16 %v5674
    %v5787 = vunpack.c.h.b16 %v5674
    %v5788 = vunpack.c.l.b16 %v5675
    %v5789 = vunpack.c.h.b16 %v5675
    %v5790 = vunpack.c.l.b16 %v5676
    %v5791 = vunpack.c.h.b16 %v5676
    %v5792 = vunpack.c.l.b16 %v5677
    %v5793 = vunpack.c.h.b16 %v5677
    %v5794 = vunpack.c.l.b16 %v5678
    %v5795 = vunpack.c.h.b16 %v5678
    %v5796 = vunpack.c.l.b16 %v5679
    %v5797 = vunpack.c.h.b16 %v5679
    %v5798 = vunpack.c.l.b16 %v5680
    %v5799 = vunpack.c.h.b16 %v5680
    %v5800 = vunpack.c.l.b16 %v5681
    %v5801 = vunpack.c.h.b16 %v5681
    %v5802 = vunpack.c.l.b16 %v5682
    %v5803 = vunpack.c.h.b16 %v5682
    %v5804 = vunpack.c.l.b16 %v5683
    %v5805 = vunpack.c.h.b16 %v5683
    %v5806 = vunpack.c.l.b16 %v5684
    %v5807 = vunpack.c.h.b16 %v5684
    %v5808 = vunpack.c.l.b16 %v5685
    %v5809 = vunpack.c.h.b16 %v5685
    %v5810 = vunpack.c.l.b16 %v5686
    %v5811 = vunpack.c.h.b16 %v5686
    %v5812 = vunpack.c.l.b16 %v5687
    %v5813 = vunpack.c.h.b16 %v5687
    %v5814 = vunpack.c.l.b16 %v5688
    %v5815 = vunpack.c.h.b16 %v5688
    %v5816 = vunpack.c.l.b16 %v5689
    %v5817 = vunpack.c.h.b16 %v5689
    %v5818 = vunpack.c.l.b16 %v5690
    %v5819 = vunpack.c.h.b16 %v5690
    %v5820 = vunpack.c.l.b16 %v5691
    %v5821 = vunpack.c.h.b16 %v5691
    %v5822 = vunpack.c.l.b16 %v5692
    %v5823 = vunpack.c.h.b16 %v5692
    %v5824 = vunpack.c.l.b16 %v5693
    %v5825 = vunpack.c.h.b16 %v5693
    %v5826 = vunpack.c.l.b16 %v5694
    %v5827 = vunpack.c.h.b16 %v5694
    %v5828 = vunpack.c.l.b16 %v5695
    %v5829 = vunpack.c.h.b16 %v5695
    %v5830 = vunpack.c.l.b16 %v5696
    %v5831 = vunpack.c.h.b16 %v5696
    %v5832 = vunpack.c.l.b16 %v5697
    %v5833 = vunpack.c.h.b16 %v5697
    %v5834 = vunpack.c.l.b16 %v5698
    %v5835 = vunpack.c.h.b16 %v5698
    %v5836 = vunpack.c.l.b16 %v5699
    %v5837 = vunpack.c.h.b16 %v5699
    %v5838 = vunpack.c.l.b16 %v5700
    %v5839 = vunpack.c.h.b16 %v5700
    %v5840 = vunpack.c.l.b16 %v5701
    %v5841 = vunpack.c.h.b16 %v5701
    %v5842 = vunpack.c.l.b16 %v5702
    %v5843 = vunpack.c.h.b16 %v5702
    %v5844 = vunpack.c.l.b16 %v5703
    %v5845 = vunpack.c.h.b16 %v5703
    %v5846 = vunpack.c.l.b16 %v5704
    %v5847 = vunpack.c.h.b16 %v5704
    %v5848 = vunpack.c.l.b16 %v5705
    %v5849 = vunpack.c.h.b16 %v5705
    %v5850 = vunpack.c.l.b16 %v5706
    %v5851 = vunpack.c.h.b16 %v5706
    %v5852 = vunpack.c.l.b16 %v5707
    %v5853 = vunpack.c.h.b16 %v5707
    %v5854 = vunpack.c.l.b16 %v5708
    %v5855 = vunpack.c.h.b16 %v5708
    %v5856 = vunpack.c.l.b16 %v5709
    %v5857 = vunpack.c.h.b16 %v5709
    %v5858 = vunpack.c.l.b16 %v5710
    %v5859 = vunpack.c.h.b16 %v5710
    %v5860 = vunpack.c.l.b16 %v5711
    %v5861 = vunpack.c.h.b16 %v5711
    %v5862 = vunpack.c.l.b16 %v5712
    %v5863 = vunpack.c.h.b16 %v5712
    %v5864 = vunpack.c.l.b16 %v5713
    %v5865 = vunpack.c.h.b16 %v5713
    %v5866 = vunpack.c.l.b16 %v5714
    %v5867 = vunpack.c.h.b16 %v5714
    %v5868 = vunpack.c.l.b16 %v5715
    %v5869 = vunpack.c.h.b16 %v5715
    %v5870 = vunpack.c.l.b16 %v5716
    %v5871 = vunpack.c.h.b16 %v5716
    %v5872 = vunpack.c.l.b16 %v5717
    %v5873 = vunpack.c.h.b16 %v5717
    %v5874 = vunpack.c.l.b16 %v5718
    %v5875 = vunpack.c.h.b16 %v5718
    %v5876 = vunpack.c.l.b16 %v5719
    %v5877 = vunpack.c.h.b16 %v5719
    %v5878 = vunpack.c.l.b16 %v5720
    %v5879 = vunpack.c.h.b16 %v5720
    %v5880 = vunpack.c.l.b16 %v5721
    %v5881 = vunpack.c.h.b16 %v5721
    %v5882 = vunpack.c.l.b16 %v5722
    %v5883 = vunpack.c.h.b16 %v5722
    %v5884 = vunpack.c.l.b16 %v5723
    %v5885 = vunpack.c.h.b16 %v5723
    %v5886 = vunpack.c.l.b16 %v5724
    %v5887 = vunpack.c.h.b16 %v5724
    %v5888 = vunpack.c.l.b16 %v5725
    %v5889 = vunpack.c.h.b16 %v5725
    %v5890 = vunpack.c.l.b16 %v5726
    %v5891 = vunpack.c.h.b16 %v5726
    %v5892 = vunpack.c.l.b16 %v5727
    %v5893 = vunpack.c.h.b16 %v5727
    %v5894 = vunpack.c.l.b16 %v5728
    %v5895 = vunpack.c.h.b16 %v5728
    %v5896 = vunpack.c.l.b16 %v5729
    %v5897 = vunpack.c.h.b16 %v5729
    %v5898 = vpack.c.b16 %v5788, %v5786
    %v5899 = vpack.c.b16 %v5789, %v5787
    %v5900 = vpack.c.b16 %v5792, %v5790
    %v5901 = vpack.c.b16 %v5793, %v5791
    %v5902 = vpack.c.b16 %v5796, %v5794
    %v5903 = vpack.c.b16 %v5797, %v5795
    %v5904 = vpack.c.b16 %v5800, %v5798
    %v5905 = vpack.c.b16 %v5801, %v5799
    %v5906 = vpack.c.b16 %v5804, %v5802
    %v5907 = vpack.c.b16 %v5805, %v5803
    %v5908 = vpack.c.b16 %v5808, %v5806
    %v5909 = vpack.c.b16 %v5809, %v5807
    %v5910 = vpack.c.b16 %v5812, %v5810
    %v5911 = vpack.c.b16 %v5813, %v5811
    %v5912 = vpack.c.b16 %v5816, %v5814
    %v5913 = vpack.c.b16 %v5817, %v5815
    %v5914 = vpack.c.b16 %v5820, %v5818
    %v5915 = vpack.c.b16 %v5821, %v5819
    %v5916 = vpack.c.b16 %v5824, %v5822
    %v5917 = vpack.c.b16 %v5825, %v5823
    %v5918 = vpack.c.b16 %v5828, %v5826
    %v5919 = vpack.c.b16 %v5829, %v5827
    %v5920 = vpack.c.b16 %v5832, %v5830
    %v5921 = vpack.c.b16 %v5833, %v5831
    %v5922 = vpack.c.b16 %v5836, %v5834
    %v5923 = vpack.c.b16 %v5837, %v5835
    %v5924 = vpack.c.b16 %v5840, %v5838
    %v5925 = vpack.c.b16 %v5841, %v5839
    %v5926 = vpack.c.b16 %v5844, %v5842
    %v5927 = vpack.c.b16 %v5845, %v5843
    %v5928 = vpack.c.b16 %v5848, %v5846
    %v5929 = vpack.c.b16 %v5849, %v5847
    %v5930 = vpack.c.b16 %v5852, %v5850
    %v5931 = vpack.c.b16 %v5853, %v5851
    %v5932 = vpack.c.b16 %v5856, %v5854
    %v5933 = vpack.c.b16 %v5857, %v5855
    %v5934 = vpack.c.b16 %v5860, %v5858
    %v5935 = vpack.c.b16 %v5861, %v5859
    %v5936 = vpack.c.b16 %v5864, %v5862
    %v5937 = vpack.c.b16 %v5865, %v5863
    %v5938 = vpack.c.b16 %v5868, %v5866
    %v5939 = vpack.c.b16 %v5869, %v5867
    %v5940 = vpack.c.b16 %v5872, %v5870
    %v5941 = vpack.c.b16 %v5873, %v5871
    %v5942 = vpack.c.b16 %v5876, %v5874
    %v5943 = vpack.c.b16 %v5877, %v5875
    %v5944 = vpack.c.b16 %v5880, %v5878
    %v5945 = vpack.c.b16 %v5881, %v5879
    %v5946 = vpack.c.b16 %v5884, %v5882
    %v5947 = vpack.c.b16 %v5885, %v5883
    %v5948 = vpack.c.b16 %v5888, %v5886
    %v5949 = vpack.c.b16 %v5889, %v5887
    %v5950 = vpack.c.b16 %v5892, %v5890
    %v5951 = vpack.c.b16 %v5893, %v5891
    %v5952 = vpack.c.b16 %v5896, %v5894
    %v5953 = vpack.c.b16 %v5897, %v5895
    %6010 = vmatprep.subr.bf16.mxu0 %v5913
    %6011 = vmatpush1.bf16.msra.mxu0 %v5912
    %6012 = vmatprep.subr.bf16.mxu0 %v5911
    %6013 = vmatpush1.bf16.msra.mxu0 %v5910
    %6014 = vmatprep.subr.bf16.mxu0 %v5909
    %6015 = vmatpush1.bf16.msra.mxu0 %v5908
    %6016 = vmatprep.subr.bf16.mxu0 %v5907
    %6017 = vmatpush1.bf16.msra.mxu0 %v5906
    %6018 = vmatprep.subr.bf16.mxu0 %v5905
    %6019 = vmatpush1.bf16.msra.mxu0 %v5904
    %6020 = vmatprep.subr.bf16.mxu0 %v5903
    %6021 = vmatpush1.bf16.msra.mxu0 %v5902
    %6022 = vmatprep.subr.bf16.mxu0 %v5901
    %6023 = vmatpush1.bf16.msra.mxu0 %v5900
    %6024 = vmatprep.subr.bf16.mxu0 %v5899
    %6025 = vmatpush1.bf16.msra.mxu0 %v5898
    %6026 = vmatprep.subr.bf16.mxu0 %v5929
    %6027 = vmatpush2.bf16.msra.mxu0 %v5928
    %6028 = vmatprep.subr.bf16.mxu0 %v5927
    %6029 = vmatpush2.bf16.msra.mxu0 %v5926
    %6030 = vmatprep.subr.bf16.mxu0 %v5925
    %6031 = vmatpush2.bf16.msra.mxu0 %v5924
    %6032 = vmatprep.subr.bf16.mxu0 %v5923
    %6033 = vmatpush2.bf16.msra.mxu0 %v5922
    %6034 = vmatprep.subr.bf16.mxu0 %v5921
    %6035 = vmatpush2.bf16.msra.mxu0 %v5920
    %6036 = vmatprep.subr.bf16.mxu0 %v5919
    %6037 = vmatpush2.bf16.msra.mxu0 %v5918
    %6038 = vmatprep.subr.bf16.mxu0 %v5917
    %6039 = vmatpush2.bf16.msra.mxu0 %v5916
    %6040 = vmatprep.subr.bf16.mxu0 %v5915
    %6041 = vmatpush2.bf16.msra.mxu0 %v5914
    %6042 = vmatprep.mubr.bf16.mxu0 %v5246
    %6043 = vmatmul.mubr.bf16.gmra.mxu0 %v5245
    %v6044 = vpop.f32.mrf.mxu0
    %v6045 = vadd.f32 0.0, %v6044
    %v6046 = vpop.f32.mrf.mxu0
    %v6047 = vadd.f32 0.0, %v6046
    %v6048 = vpop.f32.mrf.mxu0
    %v6049 = vadd.f32 0.0, %v6048
    %v6050 = vpop.f32.mrf.mxu0
    %v6051 = vadd.f32 0.0, %v6050
    %6052 = vdwg.mxu0
    %6053 = vmatprep.subr.bf16.mxu0 %v5945
    %6054 = vmatpush1.bf16.msra.mxu0 %v5944
    %6055 = vmatprep.subr.bf16.mxu0 %v5943
    %6056 = vmatpush1.bf16.msra.mxu0 %v5942
    %6057 = vmatprep.subr.bf16.mxu0 %v5941
    %6058 = vmatpush1.bf16.msra.mxu0 %v5940
    %6059 = vmatprep.subr.bf16.mxu0 %v5939
    %6060 = vmatpush1.bf16.msra.mxu0 %v5938
    %6061 = vmatprep.subr.bf16.mxu0 %v5937
    %6062 = vmatpush1.bf16.msra.mxu0 %v5936
    %6063 = vmatprep.subr.bf16.mxu0 %v5935
    %6064 = vmatpush1.bf16.msra.mxu0 %v5934
    %6065 = vmatprep.subr.bf16.mxu0 %v5933
    %6066 = vmatpush1.bf16.msra.mxu0 %v5932
    %6067 = vmatprep.subr.bf16.mxu0 %v5931
    %6068 = vmatpush1.bf16.msra.mxu0 %v5930
    %6069 = vmatprep.subr.bf16.mxu0 0
    %6070 = vmatpush2.bf16.msra.mxu0 0
    %6071 = vmatprep.subr.bf16.mxu0 0
    %6072 = vmatpush2.bf16.msra.mxu0 0
    %6073 = vmatprep.subr.bf16.mxu0 0
    %6074 = vmatpush2.bf16.msra.mxu0 0
    %6075 = vmatprep.subr.bf16.mxu0 0
    %6076 = vmatpush2.bf16.msra.mxu0 0
    %6077 = vmatprep.subr.bf16.mxu0 %v5953
    %6078 = vmatpush2.bf16.msra.mxu0 %v5952
    %6079 = vmatprep.subr.bf16.mxu0 %v5951
    %6080 = vmatpush2.bf16.msra.mxu0 %v5950
    %6081 = vmatprep.subr.bf16.mxu0 %v5949
    %6082 = vmatpush2.bf16.msra.mxu0 %v5948
    %6083 = vmatprep.subr.bf16.mxu0 %v5947
    %6084 = vmatpush2.bf16.msra.mxu0 %v5946
    %6085 = vmatprep.mubr.bf16.mxu0 %v5586
    %6086 = vmatmul.mubr.bf16.gmra.mxu0 %v5247
    %v6087 = vpop.f32.mrf.mxu0
    %v6088 = vadd.f32 %v6045, %v6087
    %v6089 = vpop.f32.mrf.mxu0
    %v6090 = vadd.f32 %v6047, %v6089
    %v6091 = vpop.f32.mrf.mxu0
    %v6092 = vadd.f32 %v6049, %v6091
    %v6093 = vpop.f32.mrf.mxu0
    %v6094 = vadd.f32 %v6051, %v6093
    %6095 = vdwg.mxu0
    %v6096 = vld [vmem:[%s2591] sm:$0xff]
    %v6097 = vld [vmem:[%s2591 + $0x8] sm:$0xff]
    %v6098 = vld [vmem:[%s2591 + $0x10] sm:$0xff]
    %v6099 = vld [vmem:[%s2591 + $0x18] sm:$0xff]
    %v6100 = vld [vmem:[%s2591 + $0x20] sm:$0xff]
    %v6101 = vld [vmem:[%s2591 + $0x28] sm:$0xff]
    %v6102 = vld [vmem:[%s2591 + $0x30] sm:$0xff]
    %v6103 = vld [vmem:[%s2591 + $0x38] sm:$0xff]
    %v6104 = vld [vmem:[%s2591 + $0x40] sm:$0xff]
    %v6105 = vld [vmem:[%s2591 + $0x48] sm:$0xff]
    %v6106 = vld [vmem:[%s2591 + $0x50] sm:$0xff]
    %v6107 = vld [vmem:[%s2591 + $0x58] sm:$0xff]
    %v6108 = vld [vmem:[%s2591 + $0x60] sm:$0xff]
    %v6109 = vld [vmem:[%s2591 + $0x68] sm:$0xff]
    %v6110 = vld [vmem:[%s2591 + $0x70] sm:$0xff]
    %v6111 = vld [vmem:[%s2591 + $0x78] sm:$0xff]
    %v6112 = vld [vmem:[%s2591 + $0x80] sm:$0xff]
    %v6113 = vld [vmem:[%s2591 + $0x88] sm:$0xff]
    %v6114 = vld [vmem:[%s2591 + $0x90] sm:$0xff]
    %v6115 = vld [vmem:[%s2591 + $0x98] sm:$0xff]
    %v6116 = vld [vmem:[%s2591 + $0xa0] sm:$0xff]
    %v6117 = vld [vmem:[%s2591 + $0xa8] sm:$0xff]
    %v6118 = vld [vmem:[%s2591 + $0xb0] sm:$0xff]
    %v6119 = vld [vmem:[%s2591 + $0xb8] sm:$0xff]
    %v6120 = vld [vmem:[%s2591 + $0xc0] sm:$0xff]
    %v6121 = vld [vmem:[%s2591 + $0xc8] sm:$0xff]
    %v6122 = vld [vmem:[%s2591 + $0xd0] sm:$0xff]
    %v6123 = vld [vmem:[%s2591 + $0xd8] sm:$0xff]
    %v6124 = vld [vmem:[%s2591 + $0xe0] sm:$0xff]
    %v6125 = vld [vmem:[%s2591 + $0xe8] sm:$0xff]
    %v6126 = vld [vmem:[%s2591 + $0xf0] sm:$0xff]
    %v6127 = vld [vmem:[%s2591 + $0xf8] sm:$0xff]
    %v6128 = vld [vmem:[%s2591 + $0x100] sm:$0xff]
    %v6129 = vld [vmem:[%s2591 + $0x108] sm:$0xff]
    %v6130 = vld [vmem:[%s2591 + $0x110] sm:$0xff]
    %v6131 = vld [vmem:[%s2591 + $0x118] sm:$0xff]
    %v6132 = vld [vmem:[%s2591 + $0x120] sm:$0xff]
    %v6133 = vld [vmem:[%s2591 + $0x128] sm:$0xff]
    %v6134 = vld [vmem:[%s2591 + $0x130] sm:$0xff]
    %v6135 = vld [vmem:[%s2591 + $0x138] sm:$0xff]
    %v6136 = vld [vmem:[%s2591 + $0x140] sm:$0xff]
    %v6137 = vld [vmem:[%s2591 + $0x148] sm:$0xff]
    %v6138 = vld [vmem:[%s2591 + $0x150] sm:$0xff]
    %v6139 = vld [vmem:[%s2591 + $0x158] sm:$0xff]
    %v6140 = vld [vmem:[%s2591 + $0x160] sm:$0xff]
    %v6141 = vld [vmem:[%s2591 + $0x168] sm:$0xff]
    %v6142 = vld [vmem:[%s2591 + $0x170] sm:$0xff]
    %v6143 = vld [vmem:[%s2591 + $0x178] sm:$0xff]
    %v6144 = vld [vmem:[%s2591 + $0x180] sm:$0xff]
    %v6145 = vld [vmem:[%s2591 + $0x188] sm:$0xff]
    %v6146 = vld [vmem:[%s2591 + $0x190] sm:$0xff]
    %v6147 = vld [vmem:[%s2591 + $0x198] sm:$0xff]
    %v6148 = vld [vmem:[%s2591 + $0x1a0] sm:$0xff]
    %v6149 = vld [vmem:[%s2591 + $0x1a8] sm:$0xff]
    %v6150 = vld [vmem:[%s2591 + $0x1b0] sm:$0xff]
    %v6151 = vld [vmem:[%s2591 + $0x1b8] sm:$0xff]
    %v6208 = vunpack.c.l.b16 %v6096
    %v6209 = vunpack.c.h.b16 %v6096
    %v6210 = vunpack.c.l.b16 %v6097
    %v6211 = vunpack.c.h.b16 %v6097
    %v6212 = vunpack.c.l.b16 %v6098
    %v6213 = vunpack.c.h.b16 %v6098
    %v6214 = vunpack.c.l.b16 %v6099
    %v6215 = vunpack.c.h.b16 %v6099
    %v6216 = vunpack.c.l.b16 %v6100
    %v6217 = vunpack.c.h.b16 %v6100
    %v6218 = vunpack.c.l.b16 %v6101
    %v6219 = vunpack.c.h.b16 %v6101
    %v6220 = vunpack.c.l.b16 %v6102
    %v6221 = vunpack.c.h.b16 %v6102
    %v6222 = vunpack.c.l.b16 %v6103
    %v6223 = vunpack.c.h.b16 %v6103
    %v6224 = vunpack.c.l.b16 %v6104
    %v6225 = vunpack.c.h.b16 %v6104
    %v6226 = vunpack.c.l.b16 %v6105
    %v6227 = vunpack.c.h.b16 %v6105
    %v6228 = vunpack.c.l.b16 %v6106
    %v6229 = vunpack.c.h.b16 %v6106
    %v6230 = vunpack.c.l.b16 %v6107
    %v6231 = vunpack.c.h.b16 %v6107
    %v6232 = vunpack.c.l.b16 %v6108
    %v6233 = vunpack.c.h.b16 %v6108
    %v6234 = vunpack.c.l.b16 %v6109
    %v6235 = vunpack.c.h.b16 %v6109
    %v6236 = vunpack.c.l.b16 %v6110
    %v6237 = vunpack.c.h.b16 %v6110
    %v6238 = vunpack.c.l.b16 %v6111
    %v6239 = vunpack.c.h.b16 %v6111
    %v6240 = vunpack.c.l.b16 %v6112
    %v6241 = vunpack.c.h.b16 %v6112
    %v6242 = vunpack.c.l.b16 %v6113
    %v6243 = vunpack.c.h.b16 %v6113
    %v6244 = vunpack.c.l.b16 %v6114
    %v6245 = vunpack.c.h.b16 %v6114
    %v6246 = vunpack.c.l.b16 %v6115
    %v6247 = vunpack.c.h.b16 %v6115
    %v6248 = vunpack.c.l.b16 %v6116
    %v6249 = vunpack.c.h.b16 %v6116
    %v6250 = vunpack.c.l.b16 %v6117
    %v6251 = vunpack.c.h.b16 %v6117
    %v6252 = vunpack.c.l.b16 %v6118
    %v6253 = vunpack.c.h.b16 %v6118
    %v6254 = vunpack.c.l.b16 %v6119
    %v6255 = vunpack.c.h.b16 %v6119
    %v6256 = vunpack.c.l.b16 %v6120
    %v6257 = vunpack.c.h.b16 %v6120
    %v6258 = vunpack.c.l.b16 %v6121
    %v6259 = vunpack.c.h.b16 %v6121
    %v6260 = vunpack.c.l.b16 %v6122
    %v6261 = vunpack.c.h.b16 %v6122
    %v6262 = vunpack.c.l.b16 %v6123
    %v6263 = vunpack.c.h.b16 %v6123
    %v6264 = vunpack.c.l.b16 %v6124
    %v6265 = vunpack.c.h.b16 %v6124
    %v6266 = vunpack.c.l.b16 %v6125
    %v6267 = vunpack.c.h.b16 %v6125
    %v6268 = vunpack.c.l.b16 %v6126
    %v6269 = vunpack.c.h.b16 %v6126
    %v6270 = vunpack.c.l.b16 %v6127
    %v6271 = vunpack.c.h.b16 %v6127
    %v6272 = vunpack.c.l.b16 %v6128
    %v6273 = vunpack.c.h.b16 %v6128
    %v6274 = vunpack.c.l.b16 %v6129
    %v6275 = vunpack.c.h.b16 %v6129
    %v6276 = vunpack.c.l.b16 %v6130
    %v6277 = vunpack.c.h.b16 %v6130
    %v6278 = vunpack.c.l.b16 %v6131
    %v6279 = vunpack.c.h.b16 %v6131
    %v6280 = vunpack.c.l.b16 %v6132
    %v6281 = vunpack.c.h.b16 %v6132
    %v6282 = vunpack.c.l.b16 %v6133
    %v6283 = vunpack.c.h.b16 %v6133
    %v6284 = vunpack.c.l.b16 %v6134
    %v6285 = vunpack.c.h.b16 %v6134
    %v6286 = vunpack.c.l.b16 %v6135
    %v6287 = vunpack.c.h.b16 %v6135
    %v6288 = vunpack.c.l.b16 %v6136
    %v6289 = vunpack.c.h.b16 %v6136
    %v6290 = vunpack.c.l.b16 %v6137
    %v6291 = vunpack.c.h.b16 %v6137
    %v6292 = vunpack.c.l.b16 %v6138
    %v6293 = vunpack.c.h.b16 %v6138
    %v6294 = vunpack.c.l.b16 %v6139
    %v6295 = vunpack.c.h.b16 %v6139
    %v6296 = vunpack.c.l.b16 %v6140
    %v6297 = vunpack.c.h.b16 %v6140
    %v6298 = vunpack.c.l.b16 %v6141
    %v6299 = vunpack.c.h.b16 %v6141
    %v6300 = vunpack.c.l.b16 %v6142
    %v6301 = vunpack.c.h.b16 %v6142
    %v6302 = vunpack.c.l.b16 %v6143
    %v6303 = vunpack.c.h.b16 %v6143
    %v6304 = vunpack.c.l.b16 %v6144
    %v6305 = vunpack.c.h.b16 %v6144
    %v6306 = vunpack.c.l.b16 %v6145
    %v6307 = vunpack.c.h.b16 %v6145
    %v6308 = vunpack.c.l.b16 %v6146
    %v6309 = vunpack.c.h.b16 %v6146
    %v6310 = vunpack.c.l.b16 %v6147
    %v6311 = vunpack.c.h.b16 %v6147
    %v6312 = vunpack.c.l.b16 %v6148
    %v6313 = vunpack.c.h.b16 %v6148
    %v6314 = vunpack.c.l.b16 %v6149
    %v6315 = vunpack.c.h.b16 %v6149
    %v6316 = vunpack.c.l.b16 %v6150
    %v6317 = vunpack.c.h.b16 %v6150
    %v6318 = vunpack.c.l.b16 %v6151
    %v6319 = vunpack.c.h.b16 %v6151
    %v6320 = vpack.c.b16 %v6210, %v6208
    %v6321 = vpack.c.b16 %v6211, %v6209
    %v6322 = vpack.c.b16 %v6214, %v6212
    %v6323 = vpack.c.b16 %v6215, %v6213
    %v6324 = vpack.c.b16 %v6218, %v6216
    %v6325 = vpack.c.b16 %v6219, %v6217
    %v6326 = vpack.c.b16 %v6222, %v6220
    %v6327 = vpack.c.b16 %v6223, %v6221
    %v6328 = vpack.c.b16 %v6226, %v6224
    %v6329 = vpack.c.b16 %v6227, %v6225
    %v6330 = vpack.c.b16 %v6230, %v6228
    %v6331 = vpack.c.b16 %v6231, %v6229
    %v6332 = vpack.c.b16 %v6234, %v6232
    %v6333 = vpack.c.b16 %v6235, %v6233
    %v6334 = vpack.c.b16 %v6238, %v6236
    %v6335 = vpack.c.b16 %v6239, %v6237
    %v6336 = vpack.c.b16 %v6242, %v6240
    %v6337 = vpack.c.b16 %v6243, %v6241
    %v6338 = vpack.c.b16 %v6246, %v6244
    %v6339 = vpack.c.b16 %v6247, %v6245
    %v6340 = vpack.c.b16 %v6250, %v6248
    %v6341 = vpack.c.b16 %v6251, %v6249
    %v6342 = vpack.c.b16 %v6254, %v6252
    %v6343 = vpack.c.b16 %v6255, %v6253
    %v6344 = vpack.c.b16 %v6258, %v6256
    %v6345 = vpack.c.b16 %v6259, %v6257
    %v6346 = vpack.c.b16 %v6262, %v6260
    %v6347 = vpack.c.b16 %v6263, %v6261
    %v6348 = vpack.c.b16 %v6266, %v6264
    %v6349 = vpack.c.b16 %v6267, %v6265
    %v6350 = vpack.c.b16 %v6270, %v6268
    %v6351 = vpack.c.b16 %v6271, %v6269
    %v6352 = vpack.c.b16 %v6274, %v6272
    %v6353 = vpack.c.b16 %v6275, %v6273
    %v6354 = vpack.c.b16 %v6278, %v6276
    %v6355 = vpack.c.b16 %v6279, %v6277
    %v6356 = vpack.c.b16 %v6282, %v6280
    %v6357 = vpack.c.b16 %v6283, %v6281
    %v6358 = vpack.c.b16 %v6286, %v6284
    %v6359 = vpack.c.b16 %v6287, %v6285
    %v6360 = vpack.c.b16 %v6290, %v6288
    %v6361 = vpack.c.b16 %v6291, %v6289
    %v6362 = vpack.c.b16 %v6294, %v6292
    %v6363 = vpack.c.b16 %v6295, %v6293
    %v6364 = vpack.c.b16 %v6298, %v6296
    %v6365 = vpack.c.b16 %v6299, %v6297
    %v6366 = vpack.c.b16 %v6302, %v6300
    %v6367 = vpack.c.b16 %v6303, %v6301
    %v6368 = vpack.c.b16 %v6306, %v6304
    %v6369 = vpack.c.b16 %v6307, %v6305
    %v6370 = vpack.c.b16 %v6310, %v6308
    %v6371 = vpack.c.b16 %v6311, %v6309
    %v6372 = vpack.c.b16 %v6314, %v6312
    %v6373 = vpack.c.b16 %v6315, %v6313
    %v6374 = vpack.c.b16 %v6318, %v6316
    %v6375 = vpack.c.b16 %v6319, %v6317
    %6432 = vmatprep.subr.bf16.mxu0 %v6335
    %6433 = vmatpush1.bf16.msra.mxu0 %v6334
    %6434 = vmatprep.subr.bf16.mxu0 %v6333
    %6435 = vmatpush1.bf16.msra.mxu0 %v6332
    %6436 = vmatprep.subr.bf16.mxu0 %v6331
    %6437 = vmatpush1.bf16.msra.mxu0 %v6330
    %6438 = vmatprep.subr.bf16.mxu0 %v6329
    %6439 = vmatpush1.bf16.msra.mxu0 %v6328
    %6440 = vmatprep.subr.bf16.mxu0 %v6327
    %6441 = vmatpush1.bf16.msra.mxu0 %v6326
    %6442 = vmatprep.subr.bf16.mxu0 %v6325
    %6443 = vmatpush1.bf16.msra.mxu0 %v6324
    %6444 = vmatprep.subr.bf16.mxu0 %v6323
    %6445 = vmatpush1.bf16.msra.mxu0 %v6322
    %6446 = vmatprep.subr.bf16.mxu0 %v6321
    %6447 = vmatpush1.bf16.msra.mxu0 %v6320
    %6448 = vmatprep.subr.bf16.mxu0 %v6351
    %6449 = vmatpush2.bf16.msra.mxu0 %v6350
    %6450 = vmatprep.subr.bf16.mxu0 %v6349
    %6451 = vmatpush2.bf16.msra.mxu0 %v6348
    %6452 = vmatprep.subr.bf16.mxu0 %v6347
    %6453 = vmatpush2.bf16.msra.mxu0 %v6346
    %6454 = vmatprep.subr.bf16.mxu0 %v6345
    %6455 = vmatpush2.bf16.msra.mxu0 %v6344
    %6456 = vmatprep.subr.bf16.mxu0 %v6343
    %6457 = vmatpush2.bf16.msra.mxu0 %v6342
    %6458 = vmatprep.subr.bf16.mxu0 %v6341
    %6459 = vmatpush2.bf16.msra.mxu0 %v6340
    %6460 = vmatprep.subr.bf16.mxu0 %v6339
    %6461 = vmatpush2.bf16.msra.mxu0 %v6338
    %6462 = vmatprep.subr.bf16.mxu0 %v6337
    %6463 = vmatpush2.bf16.msra.mxu0 %v6336
    %6464 = vmatprep.mubr.bf16.mxu0 %v5246
    %6465 = vmatmul.mubr.bf16.gmra.mxu0 %v5245
    %v6466 = vpop.f32.mrf.mxu0
    %v6467 = vadd.f32 0.0, %v6466
    %v6468 = vpop.f32.mrf.mxu0
    %v6469 = vadd.f32 0.0, %v6468
    %v6470 = vpop.f32.mrf.mxu0
    %v6471 = vadd.f32 0.0, %v6470
    %v6472 = vpop.f32.mrf.mxu0
    %v6473 = vadd.f32 0.0, %v6472
    %6474 = vdwg.mxu0
    %6475 = vmatprep.subr.bf16.mxu0 %v6367
    %6476 = vmatpush1.bf16.msra.mxu0 %v6366
    %6477 = vmatprep.subr.bf16.mxu0 %v6365
    %6478 = vmatpush1.bf16.msra.mxu0 %v6364
    %6479 = vmatprep.subr.bf16.mxu0 %v6363
    %6480 = vmatpush1.bf16.msra.mxu0 %v6362
    %6481 = vmatprep.subr.bf16.mxu0 %v6361
    %6482 = vmatpush1.bf16.msra.mxu0 %v6360
    %6483 = vmatprep.subr.bf16.mxu0 %v6359
    %6484 = vmatpush1.bf16.msra.mxu0 %v6358
    %6485 = vmatprep.subr.bf16.mxu0 %v6357
    %6486 = vmatpush1.bf16.msra.mxu0 %v6356
    %6487 = vmatprep.subr.bf16.mxu0 %v6355
    %6488 = vmatpush1.bf16.msra.mxu0 %v6354
    %6489 = vmatprep.subr.bf16.mxu0 %v6353
    %6490 = vmatpush1.bf16.msra.mxu0 %v6352
    %6491 = vmatprep.subr.bf16.mxu0 0
    %6492 = vmatpush2.bf16.msra.mxu0 0
    %6493 = vmatprep.subr.bf16.mxu0 0
    %6494 = vmatpush2.bf16.msra.mxu0 0
    %6495 = vmatprep.subr.bf16.mxu0 0
    %6496 = vmatpush2.bf16.msra.mxu0 0
    %6497 = vmatprep.subr.bf16.mxu0 0
    %6498 = vmatpush2.bf16.msra.mxu0 0
    %6499 = vmatprep.subr.bf16.mxu0 %v6375
    %6500 = vmatpush2.bf16.msra.mxu0 %v6374
    %6501 = vmatprep.subr.bf16.mxu0 %v6373
    %6502 = vmatpush2.bf16.msra.mxu0 %v6372
    %6503 = vmatprep.subr.bf16.mxu0 %v6371
    %6504 = vmatpush2.bf16.msra.mxu0 %v6370
    %6505 = vmatprep.subr.bf16.mxu0 %v6369
    %6506 = vmatpush2.bf16.msra.mxu0 %v6368
    %6507 = vmatprep.mubr.bf16.mxu0 %v5586
    %6508 = vmatmul.mubr.bf16.gmra.mxu0 %v5247
    %v6509 = vpop.f32.mrf.mxu0
    %v6510 = vadd.f32 %v6467, %v6509
    %v6511 = vpop.f32.mrf.mxu0
    %v6512 = vadd.f32 %v6469, %v6511
    %v6513 = vpop.f32.mrf.mxu0
    %v6514 = vadd.f32 %v6471, %v6513
    %v6515 = vpop.f32.mrf.mxu0
    %v6516 = vadd.f32 %v6473, %v6515
    %6517 = vdwg.mxu0
    %v6522 = vrot.slane %v6088, 1
    %v6523 = vrot.slane %v6092, 1
    %v6524 = vsel %vm302, %v6522, %v6523
    %v6525 = vrot.slane %v6090, 1
    %v6526 = vrot.slane %v6094, 1
    %v6527 = vsel %vm302, %v6525, %v6526
    %v6532 = vadd.f32 %v5666, %v6524
    %v6533 = vadd.f32 %v5668, %v6527
    %v6534 = vadd.f32 %v5670, %v6523
    %v6535 = vadd.f32 %v5672, %v6526
    %v6540 = vrot.slane %v6510, 2
    %v6541 = vrot.slane %v6514, 2
    %v6542 = vsel %vm450, %v6540, %v6541
    %v6543 = vrot.slane %v6512, 2
    %v6544 = vrot.slane %v6516, 2
    %v6545 = vsel %vm450, %v6543, %v6544
    %v6550 = vadd.f32 %v6532, %v6542
    %v6551 = vadd.f32 %v6533, %v6545
    %v6552 = vadd.f32 %v6534, %v6541
    %v6553 = vadd.f32 %v6535, %v6544
    %v6554 = vadd.f32 %v6550, %v3054
    %v6555 = vadd.f32 %v6551, %v3058
    %v6556 = vadd.f32 %v6552, %v3054
    %v6557 = vadd.f32 %v6553, %v3058
    %v6558 = vmax.f32 %v6554, 0.0
    %v6559 = vmax.f32 %v6555, 0.0
    %v6560 = vmax.f32 %v6556, 0.0
    %v6561 = vmax.f32 %v6557, 0.0
    %v6562 = vpack.c.bf16 %v6560, %v6558
    %v6563 = vpack.c.bf16 %v6561, %v6559
    %v6564 = vld [vmem:[%s3] sm:$0xf]
    %v6565 = vld [vmem:[%s3 + $0x4] sm:$0xf]
    %v6566 = vld [vmem:[%s3 + $0x8] sm:$0xf]
    %v6567 = vld [vmem:[%s3 + $0xc] sm:$0xf]
    %v6568 = vld [vmem:[%s3 + $0x10] sm:$0xf]
    %v6569 = vld [vmem:[%s3 + $0x14] sm:$0xf]
    %v6570 = vld [vmem:[%s3 + $0x18] sm:$0xf]
    %v6571 = vld [vmem:[%s3 + $0x1c] sm:$0xf]
    %v6572 = vld [vmem:[%s3 + $0x20] sm:$0xf]
    %v6573 = vld [vmem:[%s3 + $0x24] sm:$0xf]
    %v6574 = vld [vmem:[%s3 + $0x28] sm:$0xf]
    %v6575 = vld [vmem:[%s3 + $0x2c] sm:$0xf]
    %v6576 = vld [vmem:[%s3 + $0x30] sm:$0xf]
    %v6577 = vld [vmem:[%s3 + $0x34] sm:$0xf]
    %v6578 = vld [vmem:[%s3 + $0x38] sm:$0xf]
    %v6579 = vld [vmem:[%s3 + $0x3c] sm:$0xf]
    %v6580 = vld [vmem:[%s3 + $0x40] sm:$0xf]
    %v6581 = vld [vmem:[%s3 + $0x44] sm:$0xf]
    %v6582 = vld [vmem:[%s3 + $0x48] sm:$0xf]
    %v6583 = vld [vmem:[%s3 + $0x4c] sm:$0xf]
    %v6584 = vld [vmem:[%s3 + $0x50] sm:$0xf]
    %v6585 = vld [vmem:[%s3 + $0x54] sm:$0xf]
    %v6586 = vld [vmem:[%s3 + $0x58] sm:$0xf]
    %v6587 = vld [vmem:[%s3 + $0x5c] sm:$0xf]
    %v6612 = vunpack.c.l.b16 %v6564
    %v6613 = vunpack.c.l.b16 %v6565
    %v6614 = vunpack.c.l.b16 %v6566
    %v6615 = vunpack.c.l.b16 %v6567
    %v6616 = vunpack.c.l.b16 %v6568
    %v6617 = vunpack.c.l.b16 %v6569
    %v6618 = vunpack.c.l.b16 %v6570
    %v6619 = vunpack.c.l.b16 %v6571
    %v6620 = vunpack.c.l.b16 %v6572
    %v6621 = vunpack.c.l.b16 %v6573
    %v6622 = vunpack.c.l.b16 %v6574
    %v6623 = vunpack.c.l.b16 %v6575
    %v6624 = vunpack.c.l.b16 %v6576
    %v6625 = vunpack.c.l.b16 %v6577
    %v6626 = vunpack.c.l.b16 %v6578
    %v6627 = vunpack.c.l.b16 %v6579
    %v6628 = vunpack.c.l.b16 %v6580
    %v6629 = vunpack.c.l.b16 %v6581
    %v6630 = vunpack.c.l.b16 %v6582
    %v6631 = vunpack.c.l.b16 %v6583
    %v6632 = vunpack.c.l.b16 %v6584
    %v6633 = vunpack.c.l.b16 %v6585
    %v6634 = vunpack.c.l.b16 %v6586
    %v6635 = vunpack.c.l.b16 %v6587
    %v6636 = vpack.c.b16 %v6613, %v6612
    %v6637 = vpack.c.b16 %v6615, %v6614
    %v6638 = vpack.c.b16 %v6617, %v6616
    %v6639 = vpack.c.b16 %v6619, %v6618
    %v6640 = vpack.c.b16 %v6621, %v6620
    %v6641 = vpack.c.b16 %v6623, %v6622
    %v6642 = vpack.c.b16 %v6625, %v6624
    %v6643 = vpack.c.b16 %v6627, %v6626
    %v6644 = vpack.c.b16 %v6629, %v6628
    %v6645 = vpack.c.b16 %v6631, %v6630
    %v6646 = vpack.c.b16 %v6633, %v6632
    %v6647 = vpack.c.b16 %v6635, %v6634
    %v6661 = vsel %vm2078, %v6563, 0
    %6663 = vmatprep.subr.bf16.mxu0 0
    %6664 = vmatpush1.bf16.msra.mxu0 %v6643
    %6665 = vmatprep.subr.bf16.mxu0 0
    %6666 = vmatpush1.bf16.msra.mxu0 %v6642
    %6667 = vmatprep.subr.bf16.mxu0 0
    %6668 = vmatpush1.bf16.msra.mxu0 %v6641
    %6669 = vmatprep.subr.bf16.mxu0 0
    %6670 = vmatpush1.bf16.msra.mxu0 %v6640
    %6671 = vmatprep.subr.bf16.mxu0 0
    %6672 = vmatpush1.bf16.msra.mxu0 %v6639
    %6673 = vmatprep.subr.bf16.mxu0 0
    %6674 = vmatpush1.bf16.msra.mxu0 %v6638
    %6675 = vmatprep.subr.bf16.mxu0 0
    %6676 = vmatpush1.bf16.msra.mxu0 %v6637
    %6677 = vmatprep.subr.bf16.mxu0 0
    %6678 = vmatpush1.bf16.msra.mxu0 %v6636
    %6679 = vmatprep.subr.bf16.mxu0 0
    %6680 = vmatpush2.bf16.msra.mxu0 0
    %6681 = vmatprep.subr.bf16.mxu0 0
    %6682 = vmatpush2.bf16.msra.mxu0 0
    %6683 = vmatprep.subr.bf16.mxu0 0
    %6684 = vmatpush2.bf16.msra.mxu0 0
    %6685 = vmatprep.subr.bf16.mxu0 0
    %6686 = vmatpush2.bf16.msra.mxu0 0
    %6687 = vmatprep.subr.bf16.mxu0 0
    %6688 = vmatpush2.bf16.msra.mxu0 %v6647
    %6689 = vmatprep.subr.bf16.mxu0 0
    %6690 = vmatpush2.bf16.msra.mxu0 %v6646
    %6691 = vmatprep.subr.bf16.mxu0 0
    %6692 = vmatpush2.bf16.msra.mxu0 %v6645
    %6693 = vmatprep.subr.bf16.mxu0 0
    %6694 = vmatpush2.bf16.msra.mxu0 %v6644
    %6695 = vmatprep.mubr.bf16.mxu0 %v6661
    %6696 = vmatmul.mubr.bf16.gmra.mxu0 %v6562
    %v6697 = vpop.f32.mrf.mxu0
    %v6698 = vadd.f32 0.0, %v6697
    %v6699 = vpop.f32.mrf.mxu0
    %v6700 = vpop.f32.mrf.mxu0
    %v6701 = vadd.f32 0.0, %v6700
    %v6702 = vpop.f32.mrf.mxu0
    %6703 = vdwg.mxu0
    %v6704 = vld [vmem:[%s3211] sm:$0xf]
    %v6705 = vld [vmem:[%s3211 + $0x4] sm:$0xf]
    %v6706 = vld [vmem:[%s3211 + $0x8] sm:$0xf]
    %v6707 = vld [vmem:[%s3211 + $0xc] sm:$0xf]
    %v6708 = vld [vmem:[%s3211 + $0x10] sm:$0xf]
    %v6709 = vld [vmem:[%s3211 + $0x14] sm:$0xf]
    %v6710 = vld [vmem:[%s3211 + $0x18] sm:$0xf]
    %v6711 = vld [vmem:[%s3211 + $0x1c] sm:$0xf]
    %v6712 = vld [vmem:[%s3211 + $0x20] sm:$0xf]
    %v6713 = vld [vmem:[%s3211 + $0x24] sm:$0xf]
    %v6714 = vld [vmem:[%s3211 + $0x28] sm:$0xf]
    %v6715 = vld [vmem:[%s3211 + $0x2c] sm:$0xf]
    %v6716 = vld [vmem:[%s3211 + $0x30] sm:$0xf]
    %v6717 = vld [vmem:[%s3211 + $0x34] sm:$0xf]
    %v6718 = vld [vmem:[%s3211 + $0x38] sm:$0xf]
    %v6719 = vld [vmem:[%s3211 + $0x3c] sm:$0xf]
    %v6720 = vld [vmem:[%s3211 + $0x40] sm:$0xf]
    %v6721 = vld [vmem:[%s3211 + $0x44] sm:$0xf]
    %v6722 = vld [vmem:[%s3211 + $0x48] sm:$0xf]
    %v6723 = vld [vmem:[%s3211 + $0x4c] sm:$0xf]
    %v6724 = vld [vmem:[%s3211 + $0x50] sm:$0xf]
    %v6725 = vld [vmem:[%s3211 + $0x54] sm:$0xf]
    %v6726 = vld [vmem:[%s3211 + $0x58] sm:$0xf]
    %v6727 = vld [vmem:[%s3211 + $0x5c] sm:$0xf]
    %v6752 = vunpack.c.l.b16 %v6704
    %v6753 = vunpack.c.l.b16 %v6705
    %v6754 = vunpack.c.l.b16 %v6706
    %v6755 = vunpack.c.l.b16 %v6707
    %v6756 = vunpack.c.l.b16 %v6708
    %v6757 = vunpack.c.l.b16 %v6709
    %v6758 = vunpack.c.l.b16 %v6710
    %v6759 = vunpack.c.l.b16 %v6711
    %v6760 = vunpack.c.l.b16 %v6712
    %v6761 = vunpack.c.l.b16 %v6713
    %v6762 = vunpack.c.l.b16 %v6714
    %v6763 = vunpack.c.l.b16 %v6715
    %v6764 = vunpack.c.l.b16 %v6716
    %v6765 = vunpack.c.l.b16 %v6717
    %v6766 = vunpack.c.l.b16 %v6718
    %v6767 = vunpack.c.l.b16 %v6719
    %v6768 = vunpack.c.l.b16 %v6720
    %v6769 = vunpack.c.l.b16 %v6721
    %v6770 = vunpack.c.l.b16 %v6722
    %v6771 = vunpack.c.l.b16 %v6723
    %v6772 = vunpack.c.l.b16 %v6724
    %v6773 = vunpack.c.l.b16 %v6725
    %v6774 = vunpack.c.l.b16 %v6726
    %v6775 = vunpack.c.l.b16 %v6727
    %v6776 = vpack.c.b16 %v6753, %v6752
    %v6777 = vpack.c.b16 %v6755, %v6754
    %v6778 = vpack.c.b16 %v6757, %v6756
    %v6779 = vpack.c.b16 %v6759, %v6758
    %v6780 = vpack.c.b16 %v6761, %v6760
    %v6781 = vpack.c.b16 %v6763, %v6762
    %v6782 = vpack.c.b16 %v6765, %v6764
    %v6783 = vpack.c.b16 %v6767, %v6766
    %v6784 = vpack.c.b16 %v6769, %v6768
    %v6785 = vpack.c.b16 %v6771, %v6770
    %v6786 = vpack.c.b16 %v6773, %v6772
    %v6787 = vpack.c.b16 %v6775, %v6774
    %6800 = vmatprep.subr.bf16.mxu0 0
    %6801 = vmatpush1.bf16.msra.mxu0 %v6783
    %6802 = vmatprep.subr.bf16.mxu0 0
    %6803 = vmatpush1.bf16.msra.mxu0 %v6782
    %6804 = vmatprep.subr.bf16.mxu0 0
    %6805 = vmatpush1.bf16.msra.mxu0 %v6781
    %6806 = vmatprep.subr.bf16.mxu0 0
    %6807 = vmatpush1.bf16.msra.mxu0 %v6780
    %6808 = vmatprep.subr.bf16.mxu0 0
    %6809 = vmatpush1.bf16.msra.mxu0 %v6779
    %6810 = vmatprep.subr.bf16.mxu0 0
    %6811 = vmatpush1.bf16.msra.mxu0 %v6778
    %6812 = vmatprep.subr.bf16.mxu0 0
    %6813 = vmatpush1.bf16.msra.mxu0 %v6777
    %6814 = vmatprep.subr.bf16.mxu0 0
    %6815 = vmatpush1.bf16.msra.mxu0 %v6776
    %6816 = vmatprep.subr.bf16.mxu0 0
    %6817 = vmatpush2.bf16.msra.mxu0 0
    %6818 = vmatprep.subr.bf16.mxu0 0
    %6819 = vmatpush2.bf16.msra.mxu0 0
    %6820 = vmatprep.subr.bf16.mxu0 0
    %6821 = vmatpush2.bf16.msra.mxu0 0
    %6822 = vmatprep.subr.bf16.mxu0 0
    %6823 = vmatpush2.bf16.msra.mxu0 0
    %6824 = vmatprep.subr.bf16.mxu0 0
    %6825 = vmatpush2.bf16.msra.mxu0 %v6787
    %6826 = vmatprep.subr.bf16.mxu0 0
    %6827 = vmatpush2.bf16.msra.mxu0 %v6786
    %6828 = vmatprep.subr.bf16.mxu0 0
    %6829 = vmatpush2.bf16.msra.mxu0 %v6785
    %6830 = vmatprep.subr.bf16.mxu0 0
    %6831 = vmatpush2.bf16.msra.mxu0 %v6784
    %6832 = vmatprep.mubr.bf16.mxu0 %v6661
    %6833 = vmatmul.mubr.bf16.gmra.mxu0 %v6562
    %v6834 = vpop.f32.mrf.mxu0
    %v6835 = vadd.f32 0.0, %v6834
    %v6836 = vpop.f32.mrf.mxu0
    %v6837 = vpop.f32.mrf.mxu0
    %v6838 = vadd.f32 0.0, %v6837
    %v6839 = vpop.f32.mrf.mxu0
    %6840 = vdwg.mxu0
    %v6841 = vld [vmem:[%s3349] sm:$0xf]
    %v6842 = vld [vmem:[%s3349 + $0x4] sm:$0xf]
    %v6843 = vld [vmem:[%s3349 + $0x8] sm:$0xf]
    %v6844 = vld [vmem:[%s3349 + $0xc] sm:$0xf]
    %v6845 = vld [vmem:[%s3349 + $0x10] sm:$0xf]
    %v6846 = vld [vmem:[%s3349 + $0x14] sm:$0xf]
    %v6847 = vld [vmem:[%s3349 + $0x18] sm:$0xf]
    %v6848 = vld [vmem:[%s3349 + $0x1c] sm:$0xf]
    %v6849 = vld [vmem:[%s3349 + $0x20] sm:$0xf]
    %v6850 = vld [vmem:[%s3349 + $0x24] sm:$0xf]
    %v6851 = vld [vmem:[%s3349 + $0x28] sm:$0xf]
    %v6852 = vld [vmem:[%s3349 + $0x2c] sm:$0xf]
    %v6853 = vld [vmem:[%s3349 + $0x30] sm:$0xf]
    %v6854 = vld [vmem:[%s3349 + $0x34] sm:$0xf]
    %v6855 = vld [vmem:[%s3349 + $0x38] sm:$0xf]
    %v6856 = vld [vmem:[%s3349 + $0x3c] sm:$0xf]
    %v6857 = vld [vmem:[%s3349 + $0x40] sm:$0xf]
    %v6858 = vld [vmem:[%s3349 + $0x44] sm:$0xf]
    %v6859 = vld [vmem:[%s3349 + $0x48] sm:$0xf]
    %v6860 = vld [vmem:[%s3349 + $0x4c] sm:$0xf]
    %v6861 = vld [vmem:[%s3349 + $0x50] sm:$0xf]
    %v6862 = vld [vmem:[%s3349 + $0x54] sm:$0xf]
    %v6863 = vld [vmem:[%s3349 + $0x58] sm:$0xf]
    %v6864 = vld [vmem:[%s3349 + $0x5c] sm:$0xf]
    %v6889 = vunpack.c.l.b16 %v6841
    %v6890 = vunpack.c.l.b16 %v6842
    %v6891 = vunpack.c.l.b16 %v6843
    %v6892 = vunpack.c.l.b16 %v6844
    %v6893 = vunpack.c.l.b16 %v6845
    %v6894 = vunpack.c.l.b16 %v6846
    %v6895 = vunpack.c.l.b16 %v6847
    %v6896 = vunpack.c.l.b16 %v6848
    %v6897 = vunpack.c.l.b16 %v6849
    %v6898 = vunpack.c.l.b16 %v6850
    %v6899 = vunpack.c.l.b16 %v6851
    %v6900 = vunpack.c.l.b16 %v6852
    %v6901 = vunpack.c.l.b16 %v6853
    %v6902 = vunpack.c.l.b16 %v6854
    %v6903 = vunpack.c.l.b16 %v6855
    %v6904 = vunpack.c.l.b16 %v6856
    %v6905 = vunpack.c.l.b16 %v6857
    %v6906 = vunpack.c.l.b16 %v6858
    %v6907 = vunpack.c.l.b16 %v6859
    %v6908 = vunpack.c.l.b16 %v6860
    %v6909 = vunpack.c.l.b16 %v6861
    %v6910 = vunpack.c.l.b16 %v6862
    %v6911 = vunpack.c.l.b16 %v6863
    %v6912 = vunpack.c.l.b16 %v6864
    %v6913 = vpack.c.b16 %v6890, %v6889
    %v6914 = vpack.c.b16 %v6892, %v6891
    %v6915 = vpack.c.b16 %v6894, %v6893
    %v6916 = vpack.c.b16 %v6896, %v6895
    %v6917 = vpack.c.b16 %v6898, %v6897
    %v6918 = vpack.c.b16 %v6900, %v6899
    %v6919 = vpack.c.b16 %v6902, %v6901
    %v6920 = vpack.c.b16 %v6904, %v6903
    %v6921 = vpack.c.b16 %v6906, %v6905
    %v6922 = vpack.c.b16 %v6908, %v6907
    %v6923 = vpack.c.b16 %v6910, %v6909
    %v6924 = vpack.c.b16 %v6912, %v6911
    %6937 = vmatprep.subr.bf16.mxu0 0
    %6938 = vmatpush1.bf16.msra.mxu0 %v6920
    %6939 = vmatprep.subr.bf16.mxu0 0
    %6940 = vmatpush1.bf16.msra.mxu0 %v6919
    %6941 = vmatprep.subr.bf16.mxu0 0
    %6942 = vmatpush1.bf16.msra.mxu0 %v6918
    %6943 = vmatprep.subr.bf16.mxu0 0
    %6944 = vmatpush1.bf16.msra.mxu0 %v6917
    %6945 = vmatprep.subr.bf16.mxu0 0
    %6946 = vmatpush1.bf16.msra.mxu0 %v6916
    %6947 = vmatprep.subr.bf16.mxu0 0
    %6948 = vmatpush1.bf16.msra.mxu0 %v6915
    %6949 = vmatprep.subr.bf16.mxu0 0
    %6950 = vmatpush1.bf16.msra.mxu0 %v6914
    %6951 = vmatprep.subr.bf16.mxu0 0
    %6952 = vmatpush1.bf16.msra.mxu0 %v6913
    %6953 = vmatprep.subr.bf16.mxu0 0
    %6954 = vmatpush2.bf16.msra.mxu0 0
    %6955 = vmatprep.subr.bf16.mxu0 0
    %6956 = vmatpush2.bf16.msra.mxu0 0
    %6957 = vmatprep.subr.bf16.mxu0 0
    %6958 = vmatpush2.bf16.msra.mxu0 0
    %6959 = vmatprep.subr.bf16.mxu0 0
    %6960 = vmatpush2.bf16.msra.mxu0 0
    %6961 = vmatprep.subr.bf16.mxu0 0
    %6962 = vmatpush2.bf16.msra.mxu0 %v6924
    %6963 = vmatprep.subr.bf16.mxu0 0
    %6964 = vmatpush2.bf16.msra.mxu0 %v6923
    %6965 = vmatprep.subr.bf16.mxu0 0
    %6966 = vmatpush2.bf16.msra.mxu0 %v6922
    %6967 = vmatprep.subr.bf16.mxu0 0
    %6968 = vmatpush2.bf16.msra.mxu0 %v6921
    %6969 = vmatprep.mubr.bf16.mxu0 %v6661
    %6970 = vmatmul.mubr.bf16.gmra.mxu0 %v6562
    %v6971 = vpop.f32.mrf.mxu0
    %v6972 = vadd.f32 0.0, %v6971
    %v6973 = vpop.f32.mrf.mxu0
    %v6974 = vpop.f32.mrf.mxu0
    %v6975 = vadd.f32 0.0, %v6974
    %v6976 = vpop.f32.mrf.mxu0
    %6977 = vdwg.mxu0
    %v6980 = vrot.slane %v6835, 1
    %v6981 = vrot.slane %v6838, 1
    %v6982 = vsel %vm302, %v6980, %v6981
    %v6985 = vadd.f32 %v6698, %v6982
    %v6986 = vadd.f32 %v6701, %v6981
    %v6989 = vrot.slane %v6972, 2
    %v6990 = vrot.slane %v6975, 2
    %v6991 = vsel %vm450, %v6989, %v6990
    %v6994 = vadd.f32 %v6985, %v6991
    %v6995 = vadd.f32 %v6986, %v6990
    %v6996 = vadd.f32 %v6994, %v3509
    %v6997 = vadd.f32 %v6995, %v3509
    %v6998 = vmax.f32 %v6996, 0.0
    %v6999 = vmax.f32 %v6997, 0.0
    %7000 = vst [vmem:[#allocation2 + $0x1] sm:$0x1] %v6998
    %v7003 = vunpack.c.l.s4 1983009808
    %v7004 = vunpack.c.0.s8 %v7003
    %v7005 = vlaneseq
    %v7006 = vshrl.u32 %v7005, 7
    %v7007 = vsub.s32 %v7004, %v7006
    %v7008 = vrot.slane %v6998, %v7007
    %v7009 = vrot.slane %v7008, 7
    %v7010 = vrot.slane %v7009, 2
    %7012 = vst [vmem:[#allocation2 + $0x3] sm:$0x1] %v7010
    %v7013 = vcombine.high %v7008, %v7008
    %7015 = vst [vmem:[#allocation2 + $0x5] sm:$0x1] %v7013
    %v7016 = vrot.slane %v7013, 7
    %v7017 = vrot.slane %v7016, 2
    %7019 = vst [vmem:[#allocation2 + $0x7] sm:$0x1] %v7017
    %v7020 = vcombine.high %v6998, %v6998
    %v7022 = vunpack.c.l.s4 1983009808
    %v7023 = vunpack.c.0.s8 %v7022
    %v7024 = vlaneseq
    %v7025 = vshrl.u32 %v7024, 7
    %v7026 = vsub.s32 %v7023, %v7025
    %v7027 = vrot.slane %v7020, %v7026
    %7029 = vst [vmem:[#allocation2 + $0x9] sm:$0x1] %v7027
    %v7030 = vrot.slane %v7027, 7
    %v7031 = vrot.slane %v7030, 2
    %7033 = vst [vmem:[#allocation2 + $0xb] sm:$0x1] %v7031
    %v7034 = vcombine.high %v7027, %v7027
    %7036 = vst [vmem:[#allocation2 + $0xd] sm:$0x1] %v7034
    %v7037 = vrot.slane %v7034, 7
    %v7038 = vrot.slane %v7037, 2
    %7040 = vst [vmem:[#allocation2 + $0xf] sm:$0x1] %v7038
    %7041 = vst [vmem:[#allocation2 + $0x11] sm:$0x1] %v6999
    %v7044 = vunpack.c.l.s4 1983009808
    %v7045 = vunpack.c.0.s8 %v7044
    %v7046 = vlaneseq
    %v7047 = vshrl.u32 %v7046, 7
    %v7048 = vsub.s32 %v7045, %v7047
    %v7049 = vrot.slane %v6999, %v7048
    %v7050 = vrot.slane %v7049, 7
    %v7051 = vrot.slane %v7050, 2
    %7053 = vst [vmem:[#allocation2 + $0x13] sm:$0x1] %v7051
    %v7054 = vld [vmem:[#allocation2] sm:$0xff]
    %v7055 = vld [vmem:[#allocation2 + $0x8] sm:$0xff]
    %v7056 = vld [vmem:[#allocation2 + $0x10] sm:$0xf]
    %v7060 = vcombine.high %v7054, %v7054
    %v7062 = vunpack.c.l.s4 1983009808
    %v7063 = vunpack.c.0.s8 %v7062
    %v7064 = vlaneseq
    %v7065 = vshrl.u32 %v7064, 7
    %v7066 = vsub.s32 %v7063, %v7065
    %v7067 = vrot.slane %v7054, %v7066
    %v7069 = vunpack.c.l.s4 1983009808
    %v7070 = vunpack.c.0.s8 %v7069
    %v7071 = vlaneseq
    %v7072 = vshrl.u32 %v7071, 7
    %v7073 = vsub.s32 %v7070, %v7072
    %v7074 = vrot.slane %v7060, %v7073
    %v7075 = vcombine.high %v7067, %v7067
    %v7076 = vcombine.high %v7074, %v7074
    %v7077 = vcombine.high %v7055, %v7055
    %v7079 = vunpack.c.l.s4 1983009808
    %v7080 = vunpack.c.0.s8 %v7079
    %v7081 = vlaneseq
    %v7082 = vshrl.u32 %v7081, 7
    %v7083 = vsub.s32 %v7080, %v7082
    %v7084 = vrot.slane %v7055, %v7083
    %v7086 = vunpack.c.l.s4 1983009808
    %v7087 = vunpack.c.0.s8 %v7086
    %v7088 = vlaneseq
    %v7089 = vshrl.u32 %v7088, 7
    %v7090 = vsub.s32 %v7087, %v7089
    %v7091 = vrot.slane %v7077, %v7090
    %v7092 = vcombine.high %v7084, %v7084
    %v7093 = vcombine.high %v7091, %v7091
    %v7095 = vunpack.c.l.s4 1983009808
    %v7096 = vunpack.c.0.s8 %v7095
    %v7097 = vlaneseq
    %v7098 = vshrl.u32 %v7097, 7
    %v7099 = vsub.s32 %v7096, %v7098
    %v7100 = vrot.slane %v7056, %v7099
    %v7101 = vcombine.high %v7100, %v7100
    %v7112 = vpack.c.bf16 %v7067, %v7067
    %v7113 = vpack.c.bf16 %v7075, %v7075
    %v7114 = vpack.c.bf16 %v7074, %v7074
    %v7115 = vpack.c.bf16 %v7076, %v7076
    %v7116 = vpack.c.bf16 %v7084, %v7084
    %v7117 = vpack.c.bf16 %v7092, %v7092
    %v7118 = vpack.c.bf16 %v7091, %v7091
    %v7119 = vpack.c.bf16 %v7093, %v7093
    %v7120 = vpack.c.bf16 %v7100, %v7100
    %v7121 = vpack.c.bf16 %v7101, %v7101
    %v7122 = vld [vmem:[%s4] sm:$0xff]
    %v7123 = vld [vmem:[%s4 + $0x8] sm:$0xff]
    %v7124 = vld [vmem:[%s4 + $0x10] sm:$0xff]
    %v7125 = vld [vmem:[%s4 + $0x18] sm:$0xff]
    %v7126 = vld [vmem:[%s4 + $0x20] sm:$0xff]
    %v7127 = vld [vmem:[%s4 + $0x28] sm:$0xff]
    %v7128 = vld [vmem:[%s4 + $0x30] sm:$0xff]
    %v7129 = vld [vmem:[%s4 + $0x38] sm:$0xff]
    %v7130 = vld [vmem:[%s4 + $0x40] sm:$0xff]
    %v7131 = vld [vmem:[%s4 + $0x48] sm:$0xff]
    %v7132 = vld [vmem:[%s4 + $0x50] sm:$0xff]
    %v7133 = vld [vmem:[%s4 + $0x58] sm:$0xff]
    %v7134 = vld [vmem:[%s4 + $0x60] sm:$0xff]
    %v7135 = vld [vmem:[%s4 + $0x68] sm:$0xff]
    %v7136 = vld [vmem:[%s4 + $0x70] sm:$0xff]
    %v7137 = vld [vmem:[%s4 + $0x78] sm:$0xff]
    %v7138 = vld [vmem:[%s4 + $0x80] sm:$0xff]
    %v7139 = vld [vmem:[%s4 + $0x88] sm:$0xff]
    %v7140 = vld [vmem:[%s4 + $0x90] sm:$0xff]
    %v7141 = vld [vmem:[%s4 + $0x98] sm:$0xff]
    %v7142 = vld [vmem:[%s4 + $0xa0] sm:$0xff]
    %v7143 = vld [vmem:[%s4 + $0xa8] sm:$0xff]
    %v7144 = vld [vmem:[%s4 + $0xb0] sm:$0xff]
    %v7145 = vld [vmem:[%s4 + $0xb8] sm:$0xff]
    %v7146 = vld [vmem:[%s4 + $0xc0] sm:$0xff]
    %v7147 = vld [vmem:[%s4 + $0xc8] sm:$0xff]
    %v7148 = vld [vmem:[%s4 + $0xd0] sm:$0xff]
    %v7149 = vld [vmem:[%s4 + $0xd8] sm:$0xff]
    %v7150 = vld [vmem:[%s4 + $0xe0] sm:$0xff]
    %v7151 = vld [vmem:[%s4 + $0xe8] sm:$0xff]
    %v7152 = vld [vmem:[%s4 + $0xf0] sm:$0xff]
    %v7153 = vld [vmem:[%s4 + $0xf8] sm:$0xff]
    %v7154 = vld [vmem:[%s4 + $0x100] sm:$0xff]
    %v7155 = vld [vmem:[%s4 + $0x108] sm:$0xff]
    %v7156 = vld [vmem:[%s4 + $0x110] sm:$0xff]
    %v7157 = vld [vmem:[%s4 + $0x118] sm:$0xff]
    %v7158 = vld [vmem:[%s4 + $0x120] sm:$0xff]
    %v7159 = vld [vmem:[%s4 + $0x128] sm:$0xff]
    %v7160 = vld [vmem:[%s4 + $0x130] sm:$0xff]
    %v7161 = vld [vmem:[%s4 + $0x138] sm:$0xff]
    %v7162 = vld [vmem:[%s4 + $0x140] sm:$0xff]
    %v7163 = vld [vmem:[%s4 + $0x148] sm:$0xff]
    %v7164 = vld [vmem:[%s4 + $0x150] sm:$0xff]
    %v7165 = vld [vmem:[%s4 + $0x158] sm:$0xff]
    %v7166 = vld [vmem:[%s4 + $0x160] sm:$0xff]
    %v7167 = vld [vmem:[%s4 + $0x168] sm:$0xff]
    %v7168 = vld [vmem:[%s4 + $0x170] sm:$0xff]
    %v7169 = vld [vmem:[%s4 + $0x178] sm:$0xff]
    %v7170 = vld [vmem:[%s4 + $0x180] sm:$0xff]
    %v7171 = vld [vmem:[%s4 + $0x188] sm:$0xff]
    %v7172 = vld [vmem:[%s4 + $0x190] sm:$0xff]
    %v7173 = vld [vmem:[%s4 + $0x198] sm:$0xff]
    %v7174 = vld [vmem:[%s4 + $0x1a0] sm:$0xff]
    %v7175 = vld [vmem:[%s4 + $0x1a8] sm:$0xff]
    %v7176 = vld [vmem:[%s4 + $0x1b0] sm:$0xff]
    %v7177 = vld [vmem:[%s4 + $0x1b8] sm:$0xff]
    %v7178 = vld [vmem:[%s4 + $0x1c0] sm:$0xff]
    %v7179 = vld [vmem:[%s4 + $0x1c8] sm:$0xff]
    %v7180 = vld [vmem:[%s4 + $0x1d0] sm:$0xff]
    %v7181 = vld [vmem:[%s4 + $0x1d8] sm:$0xff]
    %v7182 = vld [vmem:[%s4 + $0x1e0] sm:$0xff]
    %v7183 = vld [vmem:[%s4 + $0x1e8] sm:$0xff]
    %v7184 = vld [vmem:[%s4 + $0x1f0] sm:$0xff]
    %v7185 = vld [vmem:[%s4 + $0x1f8] sm:$0xff]
    %v7186 = vld [vmem:[%s4 + $0x200] sm:$0xff]
    %v7187 = vld [vmem:[%s4 + $0x208] sm:$0xff]
    %v7188 = vld [vmem:[%s4 + $0x210] sm:$0xff]
    %v7189 = vld [vmem:[%s4 + $0x218] sm:$0xff]
    %v7190 = vld [vmem:[%s4 + $0x220] sm:$0xff]
    %v7191 = vld [vmem:[%s4 + $0x228] sm:$0xff]
    %v7192 = vld [vmem:[%s4 + $0x230] sm:$0xff]
    %v7193 = vld [vmem:[%s4 + $0x238] sm:$0xff]
    %v7194 = vld [vmem:[%s4 + $0x240] sm:$0xff]
    %v7195 = vld [vmem:[%s4 + $0x248] sm:$0xff]
    %v7196 = vld [vmem:[%s4 + $0x250] sm:$0xff]
    %v7197 = vld [vmem:[%s4 + $0x258] sm:$0xff]
    %v7198 = vld [vmem:[%s4 + $0x260] sm:$0xff]
    %v7199 = vld [vmem:[%s4 + $0x268] sm:$0xff]
    %v7200 = vld [vmem:[%s4 + $0x270] sm:$0xff]
    %v7201 = vld [vmem:[%s4 + $0x278] sm:$0xff]
    %v7202 = vld [vmem:[%s4 + $0x280] sm:$0xff]
    %v7203 = vld [vmem:[%s4 + $0x288] sm:$0xff]
    %v7204 = vld [vmem:[%s4 + $0x290] sm:$0xff]
    %v7205 = vld [vmem:[%s4 + $0x298] sm:$0xff]
    %v7206 = vld [vmem:[%s4 + $0x2a0] sm:$0xff]
    %v7207 = vld [vmem:[%s4 + $0x2a8] sm:$0xff]
    %v7208 = vld [vmem:[%s4 + $0x2b0] sm:$0xff]
    %v7209 = vld [vmem:[%s4 + $0x2b8] sm:$0xff]
    %v7210 = vld [vmem:[%s4 + $0x2c0] sm:$0xff]
    %v7211 = vld [vmem:[%s4 + $0x2c8] sm:$0xff]
    %v7212 = vld [vmem:[%s4 + $0x2d0] sm:$0xff]
    %v7213 = vld [vmem:[%s4 + $0x2d8] sm:$0xff]
    %v7214 = vld [vmem:[%s4 + $0x2e0] sm:$0xff]
    %v7215 = vld [vmem:[%s4 + $0x2e8] sm:$0xff]
    %v7216 = vld [vmem:[%s4 + $0x2f0] sm:$0xff]
    %v7217 = vld [vmem:[%s4 + $0x2f8] sm:$0xff]
    %v7218 = vld [vmem:[%s4 + $0x300] sm:$0xff]
    %v7219 = vld [vmem:[%s4 + $0x308] sm:$0xff]
    %v7220 = vld [vmem:[%s4 + $0x310] sm:$0xff]
    %v7221 = vld [vmem:[%s4 + $0x318] sm:$0xff]
    %v7222 = vld [vmem:[%s4 + $0x320] sm:$0xff]
    %v7223 = vld [vmem:[%s4 + $0x328] sm:$0xff]
    %v7224 = vld [vmem:[%s4 + $0x330] sm:$0xff]
    %v7225 = vld [vmem:[%s4 + $0x338] sm:$0xff]
    %v7226 = vld [vmem:[%s4 + $0x340] sm:$0xff]
    %v7227 = vld [vmem:[%s4 + $0x348] sm:$0xff]
    %v7228 = vld [vmem:[%s4 + $0x350] sm:$0xff]
    %v7229 = vld [vmem:[%s4 + $0x358] sm:$0xff]
    %v7230 = vld [vmem:[%s4 + $0x360] sm:$0xff]
    %v7231 = vld [vmem:[%s4 + $0x368] sm:$0xff]
    %v7232 = vld [vmem:[%s4 + $0x370] sm:$0xff]
    %v7233 = vld [vmem:[%s4 + $0x378] sm:$0xff]
    %v7234 = vld [vmem:[%s4 + $0x380] sm:$0xff]
    %v7235 = vld [vmem:[%s4 + $0x388] sm:$0xff]
    %v7236 = vld [vmem:[%s4 + $0x390] sm:$0xff]
    %v7237 = vld [vmem:[%s4 + $0x398] sm:$0xff]
    %v7238 = vld [vmem:[%s4 + $0x3a0] sm:$0xff]
    %v7239 = vld [vmem:[%s4 + $0x3a8] sm:$0xff]
    %v7240 = vld [vmem:[%s4 + $0x3b0] sm:$0xff]
    %v7241 = vld [vmem:[%s4 + $0x3b8] sm:$0xff]
    %v7242 = vld [vmem:[%s4 + $0x3c0] sm:$0xff]
    %v7243 = vld [vmem:[%s4 + $0x3c8] sm:$0xff]
    %v7244 = vld [vmem:[%s4 + $0x3d0] sm:$0xff]
    %v7245 = vld [vmem:[%s4 + $0x3d8] sm:$0xff]
    %v7246 = vld [vmem:[%s4 + $0x3e0] sm:$0xff]
    %v7247 = vld [vmem:[%s4 + $0x3e8] sm:$0xff]
    %v7248 = vld [vmem:[%s4 + $0x3f0] sm:$0xff]
    %v7249 = vld [vmem:[%s4 + $0x3f8] sm:$0xff]
    %v7250 = vld [vmem:[%s4 + $0x400] sm:$0xff]
    %v7251 = vld [vmem:[%s4 + $0x408] sm:$0xff]
    %v7252 = vld [vmem:[%s4 + $0x410] sm:$0xff]
    %v7253 = vld [vmem:[%s4 + $0x418] sm:$0xff]
    %v7254 = vld [vmem:[%s4 + $0x420] sm:$0xff]
    %v7255 = vld [vmem:[%s4 + $0x428] sm:$0xff]
    %v7256 = vld [vmem:[%s4 + $0x430] sm:$0xff]
    %v7257 = vld [vmem:[%s4 + $0x438] sm:$0xff]
    %v7258 = vld [vmem:[%s4 + $0x440] sm:$0xff]
    %v7259 = vld [vmem:[%s4 + $0x448] sm:$0xff]
    %v7260 = vld [vmem:[%s4 + $0x450] sm:$0xff]
    %v7261 = vld [vmem:[%s4 + $0x458] sm:$0xff]
    %v7262 = vld [vmem:[%s4 + $0x460] sm:$0xff]
    %v7263 = vld [vmem:[%s4 + $0x468] sm:$0xff]
    %v7264 = vld [vmem:[%s4 + $0x470] sm:$0xff]
    %v7265 = vld [vmem:[%s4 + $0x478] sm:$0xff]
    %v7266 = vld [vmem:[%s4 + $0x480] sm:$0xff]
    %v7267 = vld [vmem:[%s4 + $0x488] sm:$0xff]
    %v7268 = vld [vmem:[%s4 + $0x490] sm:$0xff]
    %v7269 = vld [vmem:[%s4 + $0x498] sm:$0xff]
    %v7270 = vld [vmem:[%s4 + $0x4a0] sm:$0xff]
    %v7271 = vld [vmem:[%s4 + $0x4a8] sm:$0xff]
    %v7272 = vld [vmem:[%s4 + $0x4b0] sm:$0xff]
    %v7273 = vld [vmem:[%s4 + $0x4b8] sm:$0xff]
    %v7274 = vld [vmem:[%s4 + $0x4c0] sm:$0xff]
    %v7275 = vld [vmem:[%s4 + $0x4c8] sm:$0xff]
    %v7276 = vld [vmem:[%s4 + $0x4d0] sm:$0xff]
    %v7277 = vld [vmem:[%s4 + $0x4d8] sm:$0xff]
    %v7278 = vld [vmem:[%s4 + $0x4e0] sm:$0xff]
    %v7279 = vld [vmem:[%s4 + $0x4e8] sm:$0xff]
    %v7280 = vld [vmem:[%s4 + $0x4f0] sm:$0xff]
    %v7281 = vld [vmem:[%s4 + $0x4f8] sm:$0xff]
    %v7283 = vlaneseq
    %v7284 = vshrl.u32 %v7283, 7
    %v7285 = vsub.s32 0, %v7284
    %v7286 = vrot.slane %v34, %v7285
    %v7287 = vlaneseq
    %v7288 = vshrl.u32 %v7287, 7
    %v7289 = vsub.s32 1, %v7288
    %v7290 = vrot.slane %v34, %v7289
    %v7453 = vunpack.c.l.b16 %v7122
    %v7454 = vunpack.c.h.b16 %v7122
    %v7455 = vunpack.c.l.b16 %v7123
    %v7456 = vunpack.c.h.b16 %v7123
    %v7457 = vunpack.c.l.b16 %v7124
    %v7458 = vunpack.c.h.b16 %v7124
    %v7459 = vunpack.c.l.b16 %v7125
    %v7460 = vunpack.c.h.b16 %v7125
    %v7461 = vunpack.c.l.b16 %v7126
    %v7462 = vunpack.c.h.b16 %v7126
    %v7463 = vunpack.c.l.b16 %v7127
    %v7464 = vunpack.c.h.b16 %v7127
    %v7465 = vunpack.c.l.b16 %v7128
    %v7466 = vunpack.c.h.b16 %v7128
    %v7467 = vunpack.c.l.b16 %v7129
    %v7468 = vunpack.c.h.b16 %v7129
    %v7469 = vunpack.c.l.b16 %v7130
    %v7470 = vunpack.c.h.b16 %v7130
    %v7471 = vunpack.c.l.b16 %v7131
    %v7472 = vunpack.c.h.b16 %v7131
    %v7473 = vunpack.c.l.b16 %v7132
    %v7474 = vunpack.c.h.b16 %v7132
    %v7475 = vunpack.c.l.b16 %v7133
    %v7476 = vunpack.c.h.b16 %v7133
    %v7477 = vunpack.c.l.b16 %v7134
    %v7478 = vunpack.c.h.b16 %v7134
    %v7479 = vunpack.c.l.b16 %v7135
    %v7480 = vunpack.c.h.b16 %v7135
    %v7481 = vunpack.c.l.b16 %v7136
    %v7482 = vunpack.c.h.b16 %v7136
    %v7483 = vunpack.c.l.b16 %v7137
    %v7484 = vunpack.c.h.b16 %v7137
    %v7485 = vunpack.c.l.b16 %v7138
    %v7486 = vunpack.c.h.b16 %v7138
    %v7487 = vunpack.c.l.b16 %v7139
    %v7488 = vunpack.c.h.b16 %v7139
    %v7489 = vunpack.c.l.b16 %v7140
    %v7490 = vunpack.c.h.b16 %v7140
    %v7491 = vunpack.c.l.b16 %v7141
    %v7492 = vunpack.c.h.b16 %v7141
    %v7493 = vunpack.c.l.b16 %v7142
    %v7494 = vunpack.c.h.b16 %v7142
    %v7495 = vunpack.c.l.b16 %v7143
    %v7496 = vunpack.c.h.b16 %v7143
    %v7497 = vunpack.c.l.b16 %v7144
    %v7498 = vunpack.c.h.b16 %v7144
    %v7499 = vunpack.c.l.b16 %v7145
    %v7500 = vunpack.c.h.b16 %v7145
    %v7501 = vunpack.c.l.b16 %v7146
    %v7502 = vunpack.c.h.b16 %v7146
    %v7503 = vunpack.c.l.b16 %v7147
    %v7504 = vunpack.c.h.b16 %v7147
    %v7505 = vunpack.c.l.b16 %v7148
    %v7506 = vunpack.c.h.b16 %v7148
    %v7507 = vunpack.c.l.b16 %v7149
    %v7508 = vunpack.c.h.b16 %v7149
    %v7509 = vunpack.c.l.b16 %v7150
    %v7510 = vunpack.c.h.b16 %v7150
    %v7511 = vunpack.c.l.b16 %v7151
    %v7512 = vunpack.c.h.b16 %v7151
    %v7513 = vunpack.c.l.b16 %v7152
    %v7514 = vunpack.c.h.b16 %v7152
    %v7515 = vunpack.c.l.b16 %v7153
    %v7516 = vunpack.c.h.b16 %v7153
    %v7517 = vunpack.c.l.b16 %v7154
    %v7518 = vunpack.c.h.b16 %v7154
    %v7519 = vunpack.c.l.b16 %v7155
    %v7520 = vunpack.c.h.b16 %v7155
    %v7521 = vunpack.c.l.b16 %v7156
    %v7522 = vunpack.c.h.b16 %v7156
    %v7523 = vunpack.c.l.b16 %v7157
    %v7524 = vunpack.c.h.b16 %v7157
    %v7525 = vunpack.c.l.b16 %v7158
    %v7526 = vunpack.c.h.b16 %v7158
    %v7527 = vunpack.c.l.b16 %v7159
    %v7528 = vunpack.c.h.b16 %v7159
    %v7529 = vunpack.c.l.b16 %v7160
    %v7530 = vunpack.c.h.b16 %v7160
    %v7531 = vunpack.c.l.b16 %v7161
    %v7532 = vunpack.c.h.b16 %v7161
    %v7533 = vunpack.c.l.b16 %v7162
    %v7534 = vunpack.c.h.b16 %v7162
    %v7535 = vunpack.c.l.b16 %v7163
    %v7536 = vunpack.c.h.b16 %v7163
    %v7537 = vunpack.c.l.b16 %v7164
    %v7538 = vunpack.c.h.b16 %v7164
    %v7539 = vunpack.c.l.b16 %v7165
    %v7540 = vunpack.c.h.b16 %v7165
    %v7541 = vunpack.c.l.b16 %v7166
    %v7542 = vunpack.c.h.b16 %v7166
    %v7543 = vunpack.c.l.b16 %v7167
    %v7544 = vunpack.c.h.b16 %v7167
    %v7545 = vunpack.c.l.b16 %v7168
    %v7546 = vunpack.c.h.b16 %v7168
    %v7547 = vunpack.c.l.b16 %v7169
    %v7548 = vunpack.c.h.b16 %v7169
    %v7549 = vunpack.c.l.b16 %v7170
    %v7550 = vunpack.c.h.b16 %v7170
    %v7551 = vunpack.c.l.b16 %v7171
    %v7552 = vunpack.c.h.b16 %v7171
    %v7553 = vunpack.c.l.b16 %v7172
    %v7554 = vunpack.c.h.b16 %v7172
    %v7555 = vunpack.c.l.b16 %v7173
    %v7556 = vunpack.c.h.b16 %v7173
    %v7557 = vunpack.c.l.b16 %v7174
    %v7558 = vunpack.c.h.b16 %v7174
    %v7559 = vunpack.c.l.b16 %v7175
    %v7560 = vunpack.c.h.b16 %v7175
    %v7561 = vunpack.c.l.b16 %v7176
    %v7562 = vunpack.c.h.b16 %v7176
    %v7563 = vunpack.c.l.b16 %v7177
    %v7564 = vunpack.c.h.b16 %v7177
    %v7565 = vunpack.c.l.b16 %v7178
    %v7566 = vunpack.c.h.b16 %v7178
    %v7567 = vunpack.c.l.b16 %v7179
    %v7568 = vunpack.c.h.b16 %v7179
    %v7569 = vunpack.c.l.b16 %v7180
    %v7570 = vunpack.c.h.b16 %v7180
    %v7571 = vunpack.c.l.b16 %v7181
    %v7572 = vunpack.c.h.b16 %v7181
    %v7573 = vunpack.c.l.b16 %v7182
    %v7574 = vunpack.c.h.b16 %v7182
    %v7575 = vunpack.c.l.b16 %v7183
    %v7576 = vunpack.c.h.b16 %v7183
    %v7577 = vunpack.c.l.b16 %v7184
    %v7578 = vunpack.c.h.b16 %v7184
    %v7579 = vunpack.c.l.b16 %v7185
    %v7580 = vunpack.c.h.b16 %v7185
    %v7581 = vunpack.c.l.b16 %v7186
    %v7582 = vunpack.c.h.b16 %v7186
    %v7583 = vunpack.c.l.b16 %v7187
    %v7584 = vunpack.c.h.b16 %v7187
    %v7585 = vunpack.c.l.b16 %v7188
    %v7586 = vunpack.c.h.b16 %v7188
    %v7587 = vunpack.c.l.b16 %v7189
    %v7588 = vunpack.c.h.b16 %v7189
    %v7589 = vunpack.c.l.b16 %v7190
    %v7590 = vunpack.c.h.b16 %v7190
    %v7591 = vunpack.c.l.b16 %v7191
    %v7592 = vunpack.c.h.b16 %v7191
    %v7593 = vunpack.c.l.b16 %v7192
    %v7594 = vunpack.c.h.b16 %v7192
    %v7595 = vunpack.c.l.b16 %v7193
    %v7596 = vunpack.c.h.b16 %v7193
    %v7597 = vunpack.c.l.b16 %v7194
    %v7598 = vunpack.c.h.b16 %v7194
    %v7599 = vunpack.c.l.b16 %v7195
    %v7600 = vunpack.c.h.b16 %v7195
    %v7601 = vunpack.c.l.b16 %v7196
    %v7602 = vunpack.c.h.b16 %v7196
    %v7603 = vunpack.c.l.b16 %v7197
    %v7604 = vunpack.c.h.b16 %v7197
    %v7605 = vunpack.c.l.b16 %v7198
    %v7606 = vunpack.c.h.b16 %v7198
    %v7607 = vunpack.c.l.b16 %v7199
    %v7608 = vunpack.c.h.b16 %v7199
    %v7609 = vunpack.c.l.b16 %v7200
    %v7610 = vunpack.c.h.b16 %v7200
    %v7611 = vunpack.c.l.b16 %v7201
    %v7612 = vunpack.c.h.b16 %v7201
    %v7613 = vunpack.c.l.b16 %v7202
    %v7614 = vunpack.c.h.b16 %v7202
    %v7615 = vunpack.c.l.b16 %v7203
    %v7616 = vunpack.c.h.b16 %v7203
    %v7617 = vunpack.c.l.b16 %v7204
    %v7618 = vunpack.c.h.b16 %v7204
    %v7619 = vunpack.c.l.b16 %v7205
    %v7620 = vunpack.c.h.b16 %v7205
    %v7621 = vunpack.c.l.b16 %v7206
    %v7622 = vunpack.c.h.b16 %v7206
    %v7623 = vunpack.c.l.b16 %v7207
    %v7624 = vunpack.c.h.b16 %v7207
    %v7625 = vunpack.c.l.b16 %v7208
    %v7626 = vunpack.c.h.b16 %v7208
    %v7627 = vunpack.c.l.b16 %v7209
    %v7628 = vunpack.c.h.b16 %v7209
    %v7629 = vunpack.c.l.b16 %v7210
    %v7630 = vunpack.c.h.b16 %v7210
    %v7631 = vunpack.c.l.b16 %v7211
    %v7632 = vunpack.c.h.b16 %v7211
    %v7633 = vunpack.c.l.b16 %v7212
    %v7634 = vunpack.c.h.b16 %v7212
    %v7635 = vunpack.c.l.b16 %v7213
    %v7636 = vunpack.c.h.b16 %v7213
    %v7637 = vunpack.c.l.b16 %v7214
    %v7638 = vunpack.c.h.b16 %v7214
    %v7639 = vunpack.c.l.b16 %v7215
    %v7640 = vunpack.c.h.b16 %v7215
    %v7641 = vunpack.c.l.b16 %v7216
    %v7642 = vunpack.c.h.b16 %v7216
    %v7643 = vunpack.c.l.b16 %v7217
    %v7644 = vunpack.c.h.b16 %v7217
    %v7645 = vunpack.c.l.b16 %v7218
    %v7646 = vunpack.c.h.b16 %v7218
    %v7647 = vunpack.c.l.b16 %v7219
    %v7648 = vunpack.c.h.b16 %v7219
    %v7649 = vunpack.c.l.b16 %v7220
    %v7650 = vunpack.c.h.b16 %v7220
    %v7651 = vunpack.c.l.b16 %v7221
    %v7652 = vunpack.c.h.b16 %v7221
    %v7653 = vunpack.c.l.b16 %v7222
    %v7654 = vunpack.c.h.b16 %v7222
    %v7655 = vunpack.c.l.b16 %v7223
    %v7656 = vunpack.c.h.b16 %v7223
    %v7657 = vunpack.c.l.b16 %v7224
    %v7658 = vunpack.c.h.b16 %v7224
    %v7659 = vunpack.c.l.b16 %v7225
    %v7660 = vunpack.c.h.b16 %v7225
    %v7661 = vunpack.c.l.b16 %v7226
    %v7662 = vunpack.c.h.b16 %v7226
    %v7663 = vunpack.c.l.b16 %v7227
    %v7664 = vunpack.c.h.b16 %v7227
    %v7665 = vunpack.c.l.b16 %v7228
    %v7666 = vunpack.c.h.b16 %v7228
    %v7667 = vunpack.c.l.b16 %v7229
    %v7668 = vunpack.c.h.b16 %v7229
    %v7669 = vunpack.c.l.b16 %v7230
    %v7670 = vunpack.c.h.b16 %v7230
    %v7671 = vunpack.c.l.b16 %v7231
    %v7672 = vunpack.c.h.b16 %v7231
    %v7673 = vunpack.c.l.b16 %v7232
    %v7674 = vunpack.c.h.b16 %v7232
    %v7675 = vunpack.c.l.b16 %v7233
    %v7676 = vunpack.c.h.b16 %v7233
    %v7677 = vunpack.c.l.b16 %v7234
    %v7678 = vunpack.c.h.b16 %v7234
    %v7679 = vunpack.c.l.b16 %v7235
    %v7680 = vunpack.c.h.b16 %v7235
    %v7681 = vunpack.c.l.b16 %v7236
    %v7682 = vunpack.c.h.b16 %v7236
    %v7683 = vunpack.c.l.b16 %v7237
    %v7684 = vunpack.c.h.b16 %v7237
    %v7685 = vunpack.c.l.b16 %v7238
    %v7686 = vunpack.c.h.b16 %v7238
    %v7687 = vunpack.c.l.b16 %v7239
    %v7688 = vunpack.c.h.b16 %v7239
    %v7689 = vunpack.c.l.b16 %v7240
    %v7690 = vunpack.c.h.b16 %v7240
    %v7691 = vunpack.c.l.b16 %v7241
    %v7692 = vunpack.c.h.b16 %v7241
    %v7693 = vunpack.c.l.b16 %v7242
    %v7694 = vunpack.c.h.b16 %v7242
    %v7695 = vunpack.c.l.b16 %v7243
    %v7696 = vunpack.c.h.b16 %v7243
    %v7697 = vunpack.c.l.b16 %v7244
    %v7698 = vunpack.c.h.b16 %v7244
    %v7699 = vunpack.c.l.b16 %v7245
    %v7700 = vunpack.c.h.b16 %v7245
    %v7701 = vunpack.c.l.b16 %v7246
    %v7702 = vunpack.c.h.b16 %v7246
    %v7703 = vunpack.c.l.b16 %v7247
    %v7704 = vunpack.c.h.b16 %v7247
    %v7705 = vunpack.c.l.b16 %v7248
    %v7706 = vunpack.c.h.b16 %v7248
    %v7707 = vunpack.c.l.b16 %v7249
    %v7708 = vunpack.c.h.b16 %v7249
    %v7709 = vunpack.c.l.b16 %v7250
    %v7710 = vunpack.c.h.b16 %v7250
    %v7711 = vunpack.c.l.b16 %v7251
    %v7712 = vunpack.c.h.b16 %v7251
    %v7713 = vunpack.c.l.b16 %v7252
    %v7714 = vunpack.c.h.b16 %v7252
    %v7715 = vunpack.c.l.b16 %v7253
    %v7716 = vunpack.c.h.b16 %v7253
    %v7717 = vunpack.c.l.b16 %v7254
    %v7718 = vunpack.c.h.b16 %v7254
    %v7719 = vunpack.c.l.b16 %v7255
    %v7720 = vunpack.c.h.b16 %v7255
    %v7721 = vunpack.c.l.b16 %v7256
    %v7722 = vunpack.c.h.b16 %v7256
    %v7723 = vunpack.c.l.b16 %v7257
    %v7724 = vunpack.c.h.b16 %v7257
    %v7725 = vunpack.c.l.b16 %v7258
    %v7726 = vunpack.c.h.b16 %v7258
    %v7727 = vunpack.c.l.b16 %v7259
    %v7728 = vunpack.c.h.b16 %v7259
    %v7729 = vunpack.c.l.b16 %v7260
    %v7730 = vunpack.c.h.b16 %v7260
    %v7731 = vunpack.c.l.b16 %v7261
    %v7732 = vunpack.c.h.b16 %v7261
    %v7733 = vunpack.c.l.b16 %v7262
    %v7734 = vunpack.c.h.b16 %v7262
    %v7735 = vunpack.c.l.b16 %v7263
    %v7736 = vunpack.c.h.b16 %v7263
    %v7737 = vunpack.c.l.b16 %v7264
    %v7738 = vunpack.c.h.b16 %v7264
    %v7739 = vunpack.c.l.b16 %v7265
    %v7740 = vunpack.c.h.b16 %v7265
    %v7741 = vunpack.c.l.b16 %v7266
    %v7742 = vunpack.c.h.b16 %v7266
    %v7743 = vunpack.c.l.b16 %v7267
    %v7744 = vunpack.c.h.b16 %v7267
    %v7745 = vunpack.c.l.b16 %v7268
    %v7746 = vunpack.c.h.b16 %v7268
    %v7747 = vunpack.c.l.b16 %v7269
    %v7748 = vunpack.c.h.b16 %v7269
    %v7749 = vunpack.c.l.b16 %v7270
    %v7750 = vunpack.c.h.b16 %v7270
    %v7751 = vunpack.c.l.b16 %v7271
    %v7752 = vunpack.c.h.b16 %v7271
    %v7753 = vunpack.c.l.b16 %v7272
    %v7754 = vunpack.c.h.b16 %v7272
    %v7755 = vunpack.c.l.b16 %v7273
    %v7756 = vunpack.c.h.b16 %v7273
    %v7757 = vunpack.c.l.b16 %v7274
    %v7758 = vunpack.c.h.b16 %v7274
    %v7759 = vunpack.c.l.b16 %v7275
    %v7760 = vunpack.c.h.b16 %v7275
    %v7761 = vunpack.c.l.b16 %v7276
    %v7762 = vunpack.c.h.b16 %v7276
    %v7763 = vunpack.c.l.b16 %v7277
    %v7764 = vunpack.c.h.b16 %v7277
    %v7765 = vunpack.c.l.b16 %v7278
    %v7766 = vunpack.c.h.b16 %v7278
    %v7767 = vunpack.c.l.b16 %v7279
    %v7768 = vunpack.c.h.b16 %v7279
    %v7769 = vunpack.c.l.b16 %v7280
    %v7770 = vunpack.c.h.b16 %v7280
    %v7771 = vunpack.c.l.b16 %v7281
    %v7772 = vunpack.c.h.b16 %v7281
    %v7773 = vpack.c.b16 %v7455, %v7453
    %v7774 = vpack.c.b16 %v7456, %v7454
    %v7775 = vpack.c.b16 %v7459, %v7457
    %v7776 = vpack.c.b16 %v7460, %v7458
    %v7777 = vpack.c.b16 %v7463, %v7461
    %v7778 = vpack.c.b16 %v7464, %v7462
    %v7779 = vpack.c.b16 %v7467, %v7465
    %v7780 = vpack.c.b16 %v7468, %v7466
    %v7781 = vpack.c.b16 %v7471, %v7469
    %v7782 = vpack.c.b16 %v7472, %v7470
    %v7783 = vpack.c.b16 %v7475, %v7473
    %v7784 = vpack.c.b16 %v7476, %v7474
    %v7785 = vpack.c.b16 %v7479, %v7477
    %v7786 = vpack.c.b16 %v7480, %v7478
    %v7787 = vpack.c.b16 %v7483, %v7481
    %v7788 = vpack.c.b16 %v7484, %v7482
    %v7789 = vpack.c.b16 %v7487, %v7485
    %v7790 = vpack.c.b16 %v7488, %v7486
    %v7791 = vpack.c.b16 %v7491, %v7489
    %v7792 = vpack.c.b16 %v7492, %v7490
    %v7793 = vpack.c.b16 %v7495, %v7493
    %v7794 = vpack.c.b16 %v7496, %v7494
    %v7795 = vpack.c.b16 %v7499, %v7497
    %v7796 = vpack.c.b16 %v7500, %v7498
    %v7797 = vpack.c.b16 %v7503, %v7501
    %v7798 = vpack.c.b16 %v7504, %v7502
    %v7799 = vpack.c.b16 %v7507, %v7505
    %v7800 = vpack.c.b16 %v7508, %v7506
    %v7801 = vpack.c.b16 %v7511, %v7509
    %v7802 = vpack.c.b16 %v7512, %v7510
    %v7803 = vpack.c.b16 %v7515, %v7513
    %v7804 = vpack.c.b16 %v7516, %v7514
    %v7805 = vpack.c.b16 %v7519, %v7517
    %v7806 = vpack.c.b16 %v7520, %v7518
    %v7807 = vpack.c.b16 %v7523, %v7521
    %v7808 = vpack.c.b16 %v7524, %v7522
    %v7809 = vpack.c.b16 %v7527, %v7525
    %v7810 = vpack.c.b16 %v7528, %v7526
    %v7811 = vpack.c.b16 %v7531, %v7529
    %v7812 = vpack.c.b16 %v7532, %v7530
    %v7813 = vpack.c.b16 %v7535, %v7533
    %v7814 = vpack.c.b16 %v7536, %v7534
    %v7815 = vpack.c.b16 %v7539, %v7537
    %v7816 = vpack.c.b16 %v7540, %v7538
    %v7817 = vpack.c.b16 %v7543, %v7541
    %v7818 = vpack.c.b16 %v7544, %v7542
    %v7819 = vpack.c.b16 %v7547, %v7545
    %v7820 = vpack.c.b16 %v7548, %v7546
    %v7821 = vpack.c.b16 %v7551, %v7549
    %v7822 = vpack.c.b16 %v7552, %v7550
    %v7823 = vpack.c.b16 %v7555, %v7553
    %v7824 = vpack.c.b16 %v7556, %v7554
    %v7825 = vpack.c.b16 %v7559, %v7557
    %v7826 = vpack.c.b16 %v7560, %v7558
    %v7827 = vpack.c.b16 %v7563, %v7561
    %v7828 = vpack.c.b16 %v7564, %v7562
    %v7829 = vpack.c.b16 %v7567, %v7565
    %v7830 = vpack.c.b16 %v7568, %v7566
    %v7831 = vpack.c.b16 %v7571, %v7569
    %v7832 = vpack.c.b16 %v7572, %v7570
    %v7833 = vpack.c.b16 %v7575, %v7573
    %v7834 = vpack.c.b16 %v7576, %v7574
    %v7835 = vpack.c.b16 %v7579, %v7577
    %v7836 = vpack.c.b16 %v7580, %v7578
    %v7837 = vpack.c.b16 %v7583, %v7581
    %v7838 = vpack.c.b16 %v7584, %v7582
    %v7839 = vpack.c.b16 %v7587, %v7585
    %v7840 = vpack.c.b16 %v7588, %v7586
    %v7841 = vpack.c.b16 %v7591, %v7589
    %v7842 = vpack.c.b16 %v7592, %v7590
    %v7843 = vpack.c.b16 %v7595, %v7593
    %v7844 = vpack.c.b16 %v7596, %v7594
    %v7845 = vpack.c.b16 %v7599, %v7597
    %v7846 = vpack.c.b16 %v7600, %v7598
    %v7847 = vpack.c.b16 %v7603, %v7601
    %v7848 = vpack.c.b16 %v7604, %v7602
    %v7849 = vpack.c.b16 %v7607, %v7605
    %v7850 = vpack.c.b16 %v7608, %v7606
    %v7851 = vpack.c.b16 %v7611, %v7609
    %v7852 = vpack.c.b16 %v7612, %v7610
    %v7853 = vpack.c.b16 %v7615, %v7613
    %v7854 = vpack.c.b16 %v7616, %v7614
    %v7855 = vpack.c.b16 %v7619, %v7617
    %v7856 = vpack.c.b16 %v7620, %v7618
    %v7857 = vpack.c.b16 %v7623, %v7621
    %v7858 = vpack.c.b16 %v7624, %v7622
    %v7859 = vpack.c.b16 %v7627, %v7625
    %v7860 = vpack.c.b16 %v7628, %v7626
    %v7861 = vpack.c.b16 %v7631, %v7629
    %v7862 = vpack.c.b16 %v7632, %v7630
    %v7863 = vpack.c.b16 %v7635, %v7633
    %v7864 = vpack.c.b16 %v7636, %v7634
    %v7865 = vpack.c.b16 %v7639, %v7637
    %v7866 = vpack.c.b16 %v7640, %v7638
    %v7867 = vpack.c.b16 %v7643, %v7641
    %v7868 = vpack.c.b16 %v7644, %v7642
    %v7869 = vpack.c.b16 %v7647, %v7645
    %v7870 = vpack.c.b16 %v7648, %v7646
    %v7871 = vpack.c.b16 %v7651, %v7649
    %v7872 = vpack.c.b16 %v7652, %v7650
    %v7873 = vpack.c.b16 %v7655, %v7653
    %v7874 = vpack.c.b16 %v7656, %v7654
    %v7875 = vpack.c.b16 %v7659, %v7657
    %v7876 = vpack.c.b16 %v7660, %v7658
    %v7877 = vpack.c.b16 %v7663, %v7661
    %v7878 = vpack.c.b16 %v7664, %v7662
    %v7879 = vpack.c.b16 %v7667, %v7665
    %v7880 = vpack.c.b16 %v7668, %v7666
    %v7881 = vpack.c.b16 %v7671, %v7669
    %v7882 = vpack.c.b16 %v7672, %v7670
    %v7883 = vpack.c.b16 %v7675, %v7673
    %v7884 = vpack.c.b16 %v7676, %v7674
    %v7885 = vpack.c.b16 %v7679, %v7677
    %v7886 = vpack.c.b16 %v7680, %v7678
    %v7887 = vpack.c.b16 %v7683, %v7681
    %v7888 = vpack.c.b16 %v7684, %v7682
    %v7889 = vpack.c.b16 %v7687, %v7685
    %v7890 = vpack.c.b16 %v7688, %v7686
    %v7891 = vpack.c.b16 %v7691, %v7689
    %v7892 = vpack.c.b16 %v7692, %v7690
    %v7893 = vpack.c.b16 %v7695, %v7693
    %v7894 = vpack.c.b16 %v7696, %v7694
    %v7895 = vpack.c.b16 %v7699, %v7697
    %v7896 = vpack.c.b16 %v7700, %v7698
    %v7897 = vpack.c.b16 %v7703, %v7701
    %v7898 = vpack.c.b16 %v7704, %v7702
    %v7899 = vpack.c.b16 %v7707, %v7705
    %v7900 = vpack.c.b16 %v7708, %v7706
    %v7901 = vpack.c.b16 %v7711, %v7709
    %v7902 = vpack.c.b16 %v7712, %v7710
    %v7903 = vpack.c.b16 %v7715, %v7713
    %v7904 = vpack.c.b16 %v7716, %v7714
    %v7905 = vpack.c.b16 %v7719, %v7717
    %v7906 = vpack.c.b16 %v7720, %v7718
    %v7907 = vpack.c.b16 %v7723, %v7721
    %v7908 = vpack.c.b16 %v7724, %v7722
    %v7909 = vpack.c.b16 %v7727, %v7725
    %v7910 = vpack.c.b16 %v7728, %v7726
    %v7911 = vpack.c.b16 %v7731, %v7729
    %v7912 = vpack.c.b16 %v7732, %v7730
    %v7913 = vpack.c.b16 %v7735, %v7733
    %v7914 = vpack.c.b16 %v7736, %v7734
    %v7915 = vpack.c.b16 %v7739, %v7737
    %v7916 = vpack.c.b16 %v7740, %v7738
    %v7917 = vpack.c.b16 %v7743, %v7741
    %v7918 = vpack.c.b16 %v7744, %v7742
    %v7919 = vpack.c.b16 %v7747, %v7745
    %v7920 = vpack.c.b16 %v7748, %v7746
    %v7921 = vpack.c.b16 %v7751, %v7749
    %v7922 = vpack.c.b16 %v7752, %v7750
    %v7923 = vpack.c.b16 %v7755, %v7753
    %v7924 = vpack.c.b16 %v7756, %v7754
    %v7925 = vpack.c.b16 %v7759, %v7757
    %v7926 = vpack.c.b16 %v7760, %v7758
    %v7927 = vpack.c.b16 %v7763, %v7761
    %v7928 = vpack.c.b16 %v7764, %v7762
    %v7929 = vpack.c.b16 %v7767, %v7765
    %v7930 = vpack.c.b16 %v7768, %v7766
    %v7931 = vpack.c.b16 %v7771, %v7769
    %v7932 = vpack.c.b16 %v7772, %v7770
    %8093 = vmatprep.subr.bf16.mxu0 %v7788
    %8094 = vmatpush1.bf16.msra.mxu0 %v7787
    %8095 = vmatprep.subr.bf16.mxu0 %v7786
    %8096 = vmatpush1.bf16.msra.mxu0 %v7785
    %8097 = vmatprep.subr.bf16.mxu0 %v7784
    %8098 = vmatpush1.bf16.msra.mxu0 %v7783
    %8099 = vmatprep.subr.bf16.mxu0 %v7782
    %8100 = vmatpush1.bf16.msra.mxu0 %v7781
    %8101 = vmatprep.subr.bf16.mxu0 %v7780
    %8102 = vmatpush1.bf16.msra.mxu0 %v7779
    %8103 = vmatprep.subr.bf16.mxu0 %v7778
    %8104 = vmatpush1.bf16.msra.mxu0 %v7777
    %8105 = vmatprep.subr.bf16.mxu0 %v7776
    %8106 = vmatpush1.bf16.msra.mxu0 %v7775
    %8107 = vmatprep.subr.bf16.mxu0 %v7774
    %8108 = vmatpush1.bf16.msra.mxu0 %v7773
    %8109 = vmatprep.subr.bf16.mxu0 %v7804
    %8110 = vmatpush2.bf16.msra.mxu0 %v7803
    %8111 = vmatprep.subr.bf16.mxu0 %v7802
    %8112 = vmatpush2.bf16.msra.mxu0 %v7801
    %8113 = vmatprep.subr.bf16.mxu0 %v7800
    %8114 = vmatpush2.bf16.msra.mxu0 %v7799
    %8115 = vmatprep.subr.bf16.mxu0 %v7798
    %8116 = vmatpush2.bf16.msra.mxu0 %v7797
    %8117 = vmatprep.subr.bf16.mxu0 %v7796
    %8118 = vmatpush2.bf16.msra.mxu0 %v7795
    %8119 = vmatprep.subr.bf16.mxu0 %v7794
    %8120 = vmatpush2.bf16.msra.mxu0 %v7793
    %8121 = vmatprep.subr.bf16.mxu0 %v7792
    %8122 = vmatpush2.bf16.msra.mxu0 %v7791
    %8123 = vmatprep.subr.bf16.mxu0 %v7790
    %8124 = vmatpush2.bf16.msra.mxu0 %v7789
    %8125 = vmatprep.mubr.bf16.mxu0 %v7113
    %8126 = vmatmul.mubr.bf16.gmra.mxu0 %v7112
    %v8127 = vpop.f32.mrf.mxu0
    %v8128 = vadd.f32 %v7286, %v8127
    %v8129 = vpop.f32.mrf.mxu0
    %v8130 = vadd.f32 %v7290, %v8129
    %v8131 = vpop.f32.mrf.mxu0
    %v8132 = vpop.f32.mrf.mxu0
    %8133 = vdwg.mxu0
    %8134 = vmatprep.subr.bf16.mxu0 %v7820
    %8135 = vmatpush1.bf16.msra.mxu0 %v7819
    %8136 = vmatprep.subr.bf16.mxu0 %v7818
    %8137 = vmatpush1.bf16.msra.mxu0 %v7817
    %8138 = vmatprep.subr.bf16.mxu0 %v7816
    %8139 = vmatpush1.bf16.msra.mxu0 %v7815
    %8140 = vmatprep.subr.bf16.mxu0 %v7814
    %8141 = vmatpush1.bf16.msra.mxu0 %v7813
    %8142 = vmatprep.subr.bf16.mxu0 %v7812
    %8143 = vmatpush1.bf16.msra.mxu0 %v7811
    %8144 = vmatprep.subr.bf16.mxu0 %v7810
    %8145 = vmatpush1.bf16.msra.mxu0 %v7809
    %8146 = vmatprep.subr.bf16.mxu0 %v7808
    %8147 = vmatpush1.bf16.msra.mxu0 %v7807
    %8148 = vmatprep.subr.bf16.mxu0 %v7806
    %8149 = vmatpush1.bf16.msra.mxu0 %v7805
    %8150 = vmatprep.subr.bf16.mxu0 %v7836
    %8151 = vmatpush2.bf16.msra.mxu0 %v7835
    %8152 = vmatprep.subr.bf16.mxu0 %v7834
    %8153 = vmatpush2.bf16.msra.mxu0 %v7833
    %8154 = vmatprep.subr.bf16.mxu0 %v7832
    %8155 = vmatpush2.bf16.msra.mxu0 %v7831
    %8156 = vmatprep.subr.bf16.mxu0 %v7830
    %8157 = vmatpush2.bf16.msra.mxu0 %v7829
    %8158 = vmatprep.subr.bf16.mxu0 %v7828
    %8159 = vmatpush2.bf16.msra.mxu0 %v7827
    %8160 = vmatprep.subr.bf16.mxu0 %v7826
    %8161 = vmatpush2.bf16.msra.mxu0 %v7825
    %8162 = vmatprep.subr.bf16.mxu0 %v7824
    %8163 = vmatpush2.bf16.msra.mxu0 %v7823
    %8164 = vmatprep.subr.bf16.mxu0 %v7822
    %8165 = vmatpush2.bf16.msra.mxu0 %v7821
    %8166 = vmatprep.mubr.bf16.mxu0 %v7115
    %8167 = vmatmul.mubr.bf16.gmra.mxu0 %v7114
    %v8168 = vpop.f32.mrf.mxu0
    %v8169 = vadd.f32 %v8128, %v8168
    %v8170 = vpop.f32.mrf.mxu0
    %v8171 = vadd.f32 %v8130, %v8170
    %v8172 = vpop.f32.mrf.mxu0
    %v8173 = vpop.f32.mrf.mxu0
    %8174 = vdwg.mxu0
    %8175 = vmatprep.subr.bf16.mxu0 %v7852
    %8176 = vmatpush1.bf16.msra.mxu0 %v7851
    %8177 = vmatprep.subr.bf16.mxu0 %v7850
    %8178 = vmatpush1.bf16.msra.mxu0 %v7849
    %8179 = vmatprep.subr.bf16.mxu0 %v7848
    %8180 = vmatpush1.bf16.msra.mxu0 %v7847
    %8181 = vmatprep.subr.bf16.mxu0 %v7846
    %8182 = vmatpush1.bf16.msra.mxu0 %v7845
    %8183 = vmatprep.subr.bf16.mxu0 %v7844
    %8184 = vmatpush1.bf16.msra.mxu0 %v7843
    %8185 = vmatprep.subr.bf16.mxu0 %v7842
    %8186 = vmatpush1.bf16.msra.mxu0 %v7841
    %8187 = vmatprep.subr.bf16.mxu0 %v7840
    %8188 = vmatpush1.bf16.msra.mxu0 %v7839
    %8189 = vmatprep.subr.bf16.mxu0 %v7838
    %8190 = vmatpush1.bf16.msra.mxu0 %v7837
    %8191 = vmatprep.subr.bf16.mxu0 %v7868
    %8192 = vmatpush2.bf16.msra.mxu0 %v7867
    %8193 = vmatprep.subr.bf16.mxu0 %v7866
    %8194 = vmatpush2.bf16.msra.mxu0 %v7865
    %8195 = vmatprep.subr.bf16.mxu0 %v7864
    %8196 = vmatpush2.bf16.msra.mxu0 %v7863
    %8197 = vmatprep.subr.bf16.mxu0 %v7862
    %8198 = vmatpush2.bf16.msra.mxu0 %v7861
    %8199 = vmatprep.subr.bf16.mxu0 %v7860
    %8200 = vmatpush2.bf16.msra.mxu0 %v7859
    %8201 = vmatprep.subr.bf16.mxu0 %v7858
    %8202 = vmatpush2.bf16.msra.mxu0 %v7857
    %8203 = vmatprep.subr.bf16.mxu0 %v7856
    %8204 = vmatpush2.bf16.msra.mxu0 %v7855
    %8205 = vmatprep.subr.bf16.mxu0 %v7854
    %8206 = vmatpush2.bf16.msra.mxu0 %v7853
    %8207 = vmatprep.mubr.bf16.mxu0 %v7117
    %8208 = vmatmul.mubr.bf16.gmra.mxu0 %v7116
    %v8209 = vpop.f32.mrf.mxu0
    %v8210 = vadd.f32 %v8169, %v8209
    %v8211 = vpop.f32.mrf.mxu0
    %v8212 = vadd.f32 %v8171, %v8211
    %v8213 = vpop.f32.mrf.mxu0
    %v8214 = vpop.f32.mrf.mxu0
    %8215 = vdwg.mxu0
    %8216 = vmatprep.subr.bf16.mxu0 %v7884
    %8217 = vmatpush1.bf16.msra.mxu0 %v7883
    %8218 = vmatprep.subr.bf16.mxu0 %v7882
    %8219 = vmatpush1.bf16.msra.mxu0 %v7881
    %8220 = vmatprep.subr.bf16.mxu0 %v7880
    %8221 = vmatpush1.bf16.msra.mxu0 %v7879
    %8222 = vmatprep.subr.bf16.mxu0 %v7878
    %8223 = vmatpush1.bf16.msra.mxu0 %v7877
    %8224 = vmatprep.subr.bf16.mxu0 %v7876
    %8225 = vmatpush1.bf16.msra.mxu0 %v7875
    %8226 = vmatprep.subr.bf16.mxu0 %v7874
    %8227 = vmatpush1.bf16.msra.mxu0 %v7873
    %8228 = vmatprep.subr.bf16.mxu0 %v7872
    %8229 = vmatpush1.bf16.msra.mxu0 %v7871
    %8230 = vmatprep.subr.bf16.mxu0 %v7870
    %8231 = vmatpush1.bf16.msra.mxu0 %v7869
    %8232 = vmatprep.subr.bf16.mxu0 %v7900
    %8233 = vmatpush2.bf16.msra.mxu0 %v7899
    %8234 = vmatprep.subr.bf16.mxu0 %v7898
    %8235 = vmatpush2.bf16.msra.mxu0 %v7897
    %8236 = vmatprep.subr.bf16.mxu0 %v7896
    %8237 = vmatpush2.bf16.msra.mxu0 %v7895
    %8238 = vmatprep.subr.bf16.mxu0 %v7894
    %8239 = vmatpush2.bf16.msra.mxu0 %v7893
    %8240 = vmatprep.subr.bf16.mxu0 %v7892
    %8241 = vmatpush2.bf16.msra.mxu0 %v7891
    %8242 = vmatprep.subr.bf16.mxu0 %v7890
    %8243 = vmatpush2.bf16.msra.mxu0 %v7889
    %8244 = vmatprep.subr.bf16.mxu0 %v7888
    %8245 = vmatpush2.bf16.msra.mxu0 %v7887
    %8246 = vmatprep.subr.bf16.mxu0 %v7886
    %8247 = vmatpush2.bf16.msra.mxu0 %v7885
    %8248 = vmatprep.mubr.bf16.mxu0 %v7119
    %8249 = vmatmul.mubr.bf16.gmra.mxu0 %v7118
    %v8250 = vpop.f32.mrf.mxu0
    %v8251 = vadd.f32 %v8210, %v8250
    %v8252 = vpop.f32.mrf.mxu0
    %v8253 = vadd.f32 %v8212, %v8252
    %v8254 = vpop.f32.mrf.mxu0
    %v8255 = vpop.f32.mrf.mxu0
    %8256 = vdwg.mxu0
    %8257 = vmatprep.subr.bf16.mxu0 %v7916
    %8258 = vmatpush1.bf16.msra.mxu0 %v7915
    %8259 = vmatprep.subr.bf16.mxu0 %v7914
    %8260 = vmatpush1.bf16.msra.mxu0 %v7913
    %8261 = vmatprep.subr.bf16.mxu0 %v7912
    %8262 = vmatpush1.bf16.msra.mxu0 %v7911
    %8263 = vmatprep.subr.bf16.mxu0 %v7910
    %8264 = vmatpush1.bf16.msra.mxu0 %v7909
    %8265 = vmatprep.subr.bf16.mxu0 %v7908
    %8266 = vmatpush1.bf16.msra.mxu0 %v7907
    %8267 = vmatprep.subr.bf16.mxu0 %v7906
    %8268 = vmatpush1.bf16.msra.mxu0 %v7905
    %8269 = vmatprep.subr.bf16.mxu0 %v7904
    %8270 = vmatpush1.bf16.msra.mxu0 %v7903
    %8271 = vmatprep.subr.bf16.mxu0 %v7902
    %8272 = vmatpush1.bf16.msra.mxu0 %v7901
    %8273 = vmatprep.subr.bf16.mxu0 %v7932
    %8274 = vmatpush2.bf16.msra.mxu0 %v7931
    %8275 = vmatprep.subr.bf16.mxu0 %v7930
    %8276 = vmatpush2.bf16.msra.mxu0 %v7929
    %8277 = vmatprep.subr.bf16.mxu0 %v7928
    %8278 = vmatpush2.bf16.msra.mxu0 %v7927
    %8279 = vmatprep.subr.bf16.mxu0 %v7926
    %8280 = vmatpush2.bf16.msra.mxu0 %v7925
    %8281 = vmatprep.subr.bf16.mxu0 %v7924
    %8282 = vmatpush2.bf16.msra.mxu0 %v7923
    %8283 = vmatprep.subr.bf16.mxu0 %v7922
    %8284 = vmatpush2.bf16.msra.mxu0 %v7921
    %8285 = vmatprep.subr.bf16.mxu0 %v7920
    %8286 = vmatpush2.bf16.msra.mxu0 %v7919
    %8287 = vmatprep.subr.bf16.mxu0 %v7918
    %8288 = vmatpush2.bf16.msra.mxu0 %v7917
    %8289 = vmatprep.mubr.bf16.mxu0 %v7121
    %8290 = vmatmul.mubr.bf16.gmra.mxu0 %v7120
    %v8291 = vpop.f32.mrf.mxu0
    %v8292 = vadd.f32 %v8251, %v8291
    %v8293 = vpop.f32.mrf.mxu0
    %v8294 = vadd.f32 %v8253, %v8293
    %v8295 = vpop.f32.mrf.mxu0
    %v8296 = vpop.f32.mrf.mxu0
    %8297 = vdwg.mxu0
    %v8298 = vmax.f32 %v8292, 0.0
    %v8299 = vmax.f32 %v8294, 0.0
    %v8300 = vpack.c.bf16 %v8298, %v8298
    %v8301 = vpack.c.bf16 %v8299, %v8299
    %v8302 = vld [vmem:[%s5] sm:$0xff]
    %v8303 = vld [vmem:[%s5 + $0x8] sm:$0xff]
    %v8304 = vld [vmem:[%s5 + $0x10] sm:$0xff]
    %v8305 = vld [vmem:[%s5 + $0x18] sm:$0xff]
    %v8306 = vld [vmem:[%s5 + $0x20] sm:$0xff]
    %v8307 = vld [vmem:[%s5 + $0x28] sm:$0xff]
    %v8308 = vld [vmem:[%s5 + $0x30] sm:$0xff]
    %v8309 = vld [vmem:[%s5 + $0x38] sm:$0xff]
    %v8310 = vld [vmem:[%s5 + $0x40] sm:$0xff]
    %v8311 = vld [vmem:[%s5 + $0x48] sm:$0xff]
    %v8312 = vld [vmem:[%s5 + $0x50] sm:$0xff]
    %v8313 = vld [vmem:[%s5 + $0x58] sm:$0xff]
    %v8314 = vld [vmem:[%s5 + $0x60] sm:$0xff]
    %v8315 = vld [vmem:[%s5 + $0x68] sm:$0xff]
    %v8316 = vld [vmem:[%s5 + $0x70] sm:$0xff]
    %v8317 = vld [vmem:[%s5 + $0x78] sm:$0xff]
    %v8318 = vld [vmem:[%s5 + $0x80] sm:$0xff]
    %v8319 = vld [vmem:[%s5 + $0x88] sm:$0xff]
    %v8320 = vld [vmem:[%s5 + $0x90] sm:$0xff]
    %v8321 = vld [vmem:[%s5 + $0x98] sm:$0xff]
    %v8322 = vld [vmem:[%s5 + $0xa0] sm:$0xff]
    %v8323 = vld [vmem:[%s5 + $0xa8] sm:$0xff]
    %v8324 = vld [vmem:[%s5 + $0xb0] sm:$0xff]
    %v8325 = vld [vmem:[%s5 + $0xb8] sm:$0xff]
    %v8326 = vld [vmem:[%s5 + $0xc0] sm:$0xff]
    %v8327 = vld [vmem:[%s5 + $0xc8] sm:$0xff]
    %v8328 = vld [vmem:[%s5 + $0xd0] sm:$0xff]
    %v8329 = vld [vmem:[%s5 + $0xd8] sm:$0xff]
    %v8330 = vld [vmem:[%s5 + $0xe0] sm:$0xff]
    %v8331 = vld [vmem:[%s5 + $0xe8] sm:$0xff]
    %v8332 = vld [vmem:[%s5 + $0xf0] sm:$0xff]
    %v8333 = vld [vmem:[%s5 + $0xf8] sm:$0xff]
    %v8335 = vlaneseq
    %v8336 = vshrl.u32 %v8335, 7
    %v8337 = vsub.s32 0, %v8336
    %v8338 = vrot.slane %v35, %v8337
    %v8339 = vlaneseq
    %v8340 = vshrl.u32 %v8339, 7
    %v8341 = vsub.s32 1, %v8340
    %v8342 = vrot.slane %v35, %v8341
    %v8377 = vunpack.c.l.b16 %v8302
    %v8378 = vunpack.c.h.b16 %v8302
    %v8379 = vunpack.c.l.b16 %v8303
    %v8380 = vunpack.c.h.b16 %v8303
    %v8381 = vunpack.c.l.b16 %v8304
    %v8382 = vunpack.c.h.b16 %v8304
    %v8383 = vunpack.c.l.b16 %v8305
    %v8384 = vunpack.c.h.b16 %v8305
    %v8385 = vunpack.c.l.b16 %v8306
    %v8386 = vunpack.c.h.b16 %v8306
    %v8387 = vunpack.c.l.b16 %v8307
    %v8388 = vunpack.c.h.b16 %v8307
    %v8389 = vunpack.c.l.b16 %v8308
    %v8390 = vunpack.c.h.b16 %v8308
    %v8391 = vunpack.c.l.b16 %v8309
    %v8392 = vunpack.c.h.b16 %v8309
    %v8393 = vunpack.c.l.b16 %v8310
    %v8394 = vunpack.c.h.b16 %v8310
    %v8395 = vunpack.c.l.b16 %v8311
    %v8396 = vunpack.c.h.b16 %v8311
    %v8397 = vunpack.c.l.b16 %v8312
    %v8398 = vunpack.c.h.b16 %v8312
    %v8399 = vunpack.c.l.b16 %v8313
    %v8400 = vunpack.c.h.b16 %v8313
    %v8401 = vunpack.c.l.b16 %v8314
    %v8402 = vunpack.c.h.b16 %v8314
    %v8403 = vunpack.c.l.b16 %v8315
    %v8404 = vunpack.c.h.b16 %v8315
    %v8405 = vunpack.c.l.b16 %v8316
    %v8406 = vunpack.c.h.b16 %v8316
    %v8407 = vunpack.c.l.b16 %v8317
    %v8408 = vunpack.c.h.b16 %v8317
    %v8409 = vunpack.c.l.b16 %v8318
    %v8410 = vunpack.c.h.b16 %v8318
    %v8411 = vunpack.c.l.b16 %v8319
    %v8412 = vunpack.c.h.b16 %v8319
    %v8413 = vunpack.c.l.b16 %v8320
    %v8414 = vunpack.c.h.b16 %v8320
    %v8415 = vunpack.c.l.b16 %v8321
    %v8416 = vunpack.c.h.b16 %v8321
    %v8417 = vunpack.c.l.b16 %v8322
    %v8418 = vunpack.c.h.b16 %v8322
    %v8419 = vunpack.c.l.b16 %v8323
    %v8420 = vunpack.c.h.b16 %v8323
    %v8421 = vunpack.c.l.b16 %v8324
    %v8422 = vunpack.c.h.b16 %v8324
    %v8423 = vunpack.c.l.b16 %v8325
    %v8424 = vunpack.c.h.b16 %v8325
    %v8425 = vunpack.c.l.b16 %v8326
    %v8426 = vunpack.c.h.b16 %v8326
    %v8427 = vunpack.c.l.b16 %v8327
    %v8428 = vunpack.c.h.b16 %v8327
    %v8429 = vunpack.c.l.b16 %v8328
    %v8430 = vunpack.c.h.b16 %v8328
    %v8431 = vunpack.c.l.b16 %v8329
    %v8432 = vunpack.c.h.b16 %v8329
    %v8433 = vunpack.c.l.b16 %v8330
    %v8434 = vunpack.c.h.b16 %v8330
    %v8435 = vunpack.c.l.b16 %v8331
    %v8436 = vunpack.c.h.b16 %v8331
    %v8437 = vunpack.c.l.b16 %v8332
    %v8438 = vunpack.c.h.b16 %v8332
    %v8439 = vunpack.c.l.b16 %v8333
    %v8440 = vunpack.c.h.b16 %v8333
    %v8441 = vpack.c.b16 %v8379, %v8377
    %v8442 = vpack.c.b16 %v8380, %v8378
    %v8443 = vpack.c.b16 %v8383, %v8381
    %v8444 = vpack.c.b16 %v8384, %v8382
    %v8445 = vpack.c.b16 %v8387, %v8385
    %v8446 = vpack.c.b16 %v8388, %v8386
    %v8447 = vpack.c.b16 %v8391, %v8389
    %v8448 = vpack.c.b16 %v8392, %v8390
    %v8449 = vpack.c.b16 %v8395, %v8393
    %v8450 = vpack.c.b16 %v8396, %v8394
    %v8451 = vpack.c.b16 %v8399, %v8397
    %v8452 = vpack.c.b16 %v8400, %v8398
    %v8453 = vpack.c.b16 %v8403, %v8401
    %v8454 = vpack.c.b16 %v8404, %v8402
    %v8455 = vpack.c.b16 %v8407, %v8405
    %v8456 = vpack.c.b16 %v8408, %v8406
    %v8457 = vpack.c.b16 %v8411, %v8409
    %v8458 = vpack.c.b16 %v8412, %v8410
    %v8459 = vpack.c.b16 %v8415, %v8413
    %v8460 = vpack.c.b16 %v8416, %v8414
    %v8461 = vpack.c.b16 %v8419, %v8417
    %v8462 = vpack.c.b16 %v8420, %v8418
    %v8463 = vpack.c.b16 %v8423, %v8421
    %v8464 = vpack.c.b16 %v8424, %v8422
    %v8465 = vpack.c.b16 %v8427, %v8425
    %v8466 = vpack.c.b16 %v8428, %v8426
    %v8467 = vpack.c.b16 %v8431, %v8429
    %v8468 = vpack.c.b16 %v8432, %v8430
    %v8469 = vpack.c.b16 %v8435, %v8433
    %v8470 = vpack.c.b16 %v8436, %v8434
    %v8471 = vpack.c.b16 %v8439, %v8437
    %v8472 = vpack.c.b16 %v8440, %v8438
    %8505 = vmatprep.subr.bf16.mxu0 %v8456
    %8506 = vmatpush1.bf16.msra.mxu0 %v8455
    %8507 = vmatprep.subr.bf16.mxu0 %v8454
    %8508 = vmatpush1.bf16.msra.mxu0 %v8453
    %8509 = vmatprep.subr.bf16.mxu0 %v8452
    %8510 = vmatpush1.bf16.msra.mxu0 %v8451
    %8511 = vmatprep.subr.bf16.mxu0 %v8450
    %8512 = vmatpush1.bf16.msra.mxu0 %v8449
    %8513 = vmatprep.subr.bf16.mxu0 %v8448
    %8514 = vmatpush1.bf16.msra.mxu0 %v8447
    %8515 = vmatprep.subr.bf16.mxu0 %v8446
    %8516 = vmatpush1.bf16.msra.mxu0 %v8445
    %8517 = vmatprep.subr.bf16.mxu0 %v8444
    %8518 = vmatpush1.bf16.msra.mxu0 %v8443
    %8519 = vmatprep.subr.bf16.mxu0 %v8442
    %8520 = vmatpush1.bf16.msra.mxu0 %v8441
    %8521 = vmatprep.subr.bf16.mxu0 %v8472
    %8522 = vmatpush2.bf16.msra.mxu0 %v8471
    %8523 = vmatprep.subr.bf16.mxu0 %v8470
    %8524 = vmatpush2.bf16.msra.mxu0 %v8469
    %8525 = vmatprep.subr.bf16.mxu0 %v8468
    %8526 = vmatpush2.bf16.msra.mxu0 %v8467
    %8527 = vmatprep.subr.bf16.mxu0 %v8466
    %8528 = vmatpush2.bf16.msra.mxu0 %v8465
    %8529 = vmatprep.subr.bf16.mxu0 %v8464
    %8530 = vmatpush2.bf16.msra.mxu0 %v8463
    %8531 = vmatprep.subr.bf16.mxu0 %v8462
    %8532 = vmatpush2.bf16.msra.mxu0 %v8461
    %8533 = vmatprep.subr.bf16.mxu0 %v8460
    %8534 = vmatpush2.bf16.msra.mxu0 %v8459
    %8535 = vmatprep.subr.bf16.mxu0 %v8458
    %8536 = vmatpush2.bf16.msra.mxu0 %v8457
    %8537 = vmatprep.mubr.bf16.mxu0 %v8301
    %8538 = vmatmul.mubr.bf16.gmra.mxu0 %v8300
    %v8539 = vpop.f32.mrf.mxu0
    %v8540 = vadd.f32 %v8338, %v8539
    %v8541 = vpop.f32.mrf.mxu0
    %v8542 = vadd.f32 %v8342, %v8541
    %v8543 = vpop.f32.mrf.mxu0
    %v8544 = vpop.f32.mrf.mxu0
    %8545 = vdwg.mxu0
    %v8546 = vmax.f32 %v8540, 0.0
    %v8547 = vmax.f32 %v8542, 0.0
    %v8548 = vpack.c.bf16 %v8546, %v8546
    %v8549 = vpack.c.bf16 %v8547, %v8547
    %v8550 = vld [vmem:[%s6] sm:$0xf]
    %v8551 = vld [vmem:[%s6 + $0x4] sm:$0xf]
    %v8552 = vld [vmem:[%s6 + $0x8] sm:$0xf]
    %v8553 = vld [vmem:[%s6 + $0xc] sm:$0xf]
    %v8554 = vld [vmem:[%s6 + $0x10] sm:$0xf]
    %v8555 = vld [vmem:[%s6 + $0x14] sm:$0xf]
    %v8556 = vld [vmem:[%s6 + $0x18] sm:$0xf]
    %v8557 = vld [vmem:[%s6 + $0x1c] sm:$0xf]
    %v8558 = vld [vmem:[%s6 + $0x20] sm:$0xf]
    %v8559 = vld [vmem:[%s6 + $0x24] sm:$0xf]
    %v8560 = vld [vmem:[%s6 + $0x28] sm:$0xf]
    %v8561 = vld [vmem:[%s6 + $0x2c] sm:$0xf]
    %v8562 = vld [vmem:[%s6 + $0x30] sm:$0xf]
    %v8563 = vld [vmem:[%s6 + $0x34] sm:$0xf]
    %v8564 = vld [vmem:[%s6 + $0x38] sm:$0xf]
    %v8565 = vld [vmem:[%s6 + $0x3c] sm:$0xf]
    %v8566 = vld [vmem:[%s6 + $0x40] sm:$0xf]
    %v8567 = vld [vmem:[%s6 + $0x44] sm:$0xf]
    %v8568 = vld [vmem:[%s6 + $0x48] sm:$0xf]
    %v8569 = vld [vmem:[%s6 + $0x4c] sm:$0xf]
    %v8570 = vld [vmem:[%s6 + $0x50] sm:$0xf]
    %v8571 = vld [vmem:[%s6 + $0x54] sm:$0xf]
    %v8572 = vld [vmem:[%s6 + $0x58] sm:$0xf]
    %v8573 = vld [vmem:[%s6 + $0x5c] sm:$0xf]
    %v8574 = vld [vmem:[%s6 + $0x60] sm:$0xf]
    %v8575 = vld [vmem:[%s6 + $0x64] sm:$0xf]
    %v8576 = vld [vmem:[%s6 + $0x68] sm:$0xf]
    %v8577 = vld [vmem:[%s6 + $0x6c] sm:$0xf]
    %v8578 = vld [vmem:[%s6 + $0x70] sm:$0xf]
    %v8579 = vld [vmem:[%s6 + $0x74] sm:$0xf]
    %v8580 = vld [vmem:[%s6 + $0x78] sm:$0xf]
    %v8581 = vld [vmem:[%s6 + $0x7c] sm:$0xf]
    %v8583 = vlaneseq
    %v8584 = vshrl.u32 %v8583, 7
    %v8585 = vsub.s32 0, %v8584
    %v8586 = vrot.slane %v36, %v8585
    %v8620 = vunpack.c.l.b16 %v8550
    %v8621 = vunpack.c.l.b16 %v8551
    %v8622 = vunpack.c.l.b16 %v8552
    %v8623 = vunpack.c.l.b16 %v8553
    %v8624 = vunpack.c.l.b16 %v8554
    %v8625 = vunpack.c.l.b16 %v8555
    %v8626 = vunpack.c.l.b16 %v8556
    %v8627 = vunpack.c.l.b16 %v8557
    %v8628 = vunpack.c.l.b16 %v8558
    %v8629 = vunpack.c.l.b16 %v8559
    %v8630 = vunpack.c.l.b16 %v8560
    %v8631 = vunpack.c.l.b16 %v8561
    %v8632 = vunpack.c.l.b16 %v8562
    %v8633 = vunpack.c.l.b16 %v8563
    %v8634 = vunpack.c.l.b16 %v8564
    %v8635 = vunpack.c.l.b16 %v8565
    %v8636 = vunpack.c.l.b16 %v8566
    %v8637 = vunpack.c.l.b16 %v8567
    %v8638 = vunpack.c.l.b16 %v8568
    %v8639 = vunpack.c.l.b16 %v8569
    %v8640 = vunpack.c.l.b16 %v8570
    %v8641 = vunpack.c.l.b16 %v8571
    %v8642 = vunpack.c.l.b16 %v8572
    %v8643 = vunpack.c.l.b16 %v8573
    %v8644 = vunpack.c.l.b16 %v8574
    %v8645 = vunpack.c.l.b16 %v8575
    %v8646 = vunpack.c.l.b16 %v8576
    %v8647 = vunpack.c.l.b16 %v8577
    %v8648 = vunpack.c.l.b16 %v8578
    %v8649 = vunpack.c.l.b16 %v8579
    %v8650 = vunpack.c.l.b16 %v8580
    %v8651 = vunpack.c.l.b16 %v8581
    %v8652 = vpack.c.b16 %v8621, %v8620
    %v8653 = vpack.c.b16 %v8623, %v8622
    %v8654 = vpack.c.b16 %v8625, %v8624
    %v8655 = vpack.c.b16 %v8627, %v8626
    %v8656 = vpack.c.b16 %v8629, %v8628
    %v8657 = vpack.c.b16 %v8631, %v8630
    %v8658 = vpack.c.b16 %v8633, %v8632
    %v8659 = vpack.c.b16 %v8635, %v8634
    %v8660 = vpack.c.b16 %v8637, %v8636
    %v8661 = vpack.c.b16 %v8639, %v8638
    %v8662 = vpack.c.b16 %v8641, %v8640
    %v8663 = vpack.c.b16 %v8643, %v8642
    %v8664 = vpack.c.b16 %v8645, %v8644
    %v8665 = vpack.c.b16 %v8647, %v8646
    %v8666 = vpack.c.b16 %v8649, %v8648
    %v8667 = vpack.c.b16 %v8651, %v8650
    %8684 = vmatprep.subr.bf16.mxu0 0
    %8685 = vmatpush1.bf16.msra.mxu0 %v8659
    %8686 = vmatprep.subr.bf16.mxu0 0
    %8687 = vmatpush1.bf16.msra.mxu0 %v8658
    %8688 = vmatprep.subr.bf16.mxu0 0
    %8689 = vmatpush1.bf16.msra.mxu0 %v8657
    %8690 = vmatprep.subr.bf16.mxu0 0
    %8691 = vmatpush1.bf16.msra.mxu0 %v8656
    %8692 = vmatprep.subr.bf16.mxu0 0
    %8693 = vmatpush1.bf16.msra.mxu0 %v8655
    %8694 = vmatprep.subr.bf16.mxu0 0
    %8695 = vmatpush1.bf16.msra.mxu0 %v8654
    %8696 = vmatprep.subr.bf16.mxu0 0
    %8697 = vmatpush1.bf16.msra.mxu0 %v8653
    %8698 = vmatprep.subr.bf16.mxu0 0
    %8699 = vmatpush1.bf16.msra.mxu0 %v8652
    %8700 = vmatprep.subr.bf16.mxu0 0
    %8701 = vmatpush2.bf16.msra.mxu0 %v8667
    %8702 = vmatprep.subr.bf16.mxu0 0
    %8703 = vmatpush2.bf16.msra.mxu0 %v8666
    %8704 = vmatprep.subr.bf16.mxu0 0
    %8705 = vmatpush2.bf16.msra.mxu0 %v8665
    %8706 = vmatprep.subr.bf16.mxu0 0
    %8707 = vmatpush2.bf16.msra.mxu0 %v8664
    %8708 = vmatprep.subr.bf16.mxu0 0
    %8709 = vmatpush2.bf16.msra.mxu0 %v8663
    %8710 = vmatprep.subr.bf16.mxu0 0
    %8711 = vmatpush2.bf16.msra.mxu0 %v8662
    %8712 = vmatprep.subr.bf16.mxu0 0
    %8713 = vmatpush2.bf16.msra.mxu0 %v8661
    %8714 = vmatprep.subr.bf16.mxu0 0
    %8715 = vmatpush2.bf16.msra.mxu0 %v8660
    %8716 = vmatprep.mubr.bf16.mxu0 %v8549
    %8717 = vmatmul.mubr.bf16.gmra.mxu0 %v8548
    %v8718 = vpop.f32.mrf.mxu0
    %v8719 = vadd.f32 %v8586, %v8718
    %v8720 = vpop.f32.mrf.mxu0
    %v8721 = vpop.f32.mrf.mxu0
    %v8722 = vpop.f32.mrf.mxu0
    %8723 = vdwg.mxu0
    %8724 = vst [vmem:[#allocation3] sm:$0x3] %v8719
    // Predicated region
    $region34: #{tpu_custom_call.1} parent=1 // pred_check
      _
    $region35: #{tpu_custom_call.1} parent=1 // pred_check_branch
      %8726 = sbr.rel (0) target = $region37
    $region36: #{tpu_custom_call.1} parent=1 // pred_region
      %s8728 = ssub.s32 32, 32
      %8729 = vsyncadd [#allocation4], %s8728
      %s8731 = sshll.u32 [#allocation3], 4
      %s8732 = int_to_ptr.vmem [resolvable:$true] %s8731
      %8734 = dma.vmem_to_hbm [thread:$0]  %s8732, 32, %s8, [#allocation4]
    $region37: #{tpu_custom_call.1} parent=1 // pred_fallthru
      _
    // Predicated region
    $region38: #{tpu_custom_call.1} parent=1 // pred_check
      _
    $region39: #{tpu_custom_call.1} parent=1 // pred_check_branch
      %8736 = sbr.rel (0) target = $region41
    $region40: #{tpu_custom_call.1} parent=1 // pred_region
      %8737 = dma.done [#allocation4], 32
    $region41: #{tpu_custom_call.1} parent=1 // pred_fallthru
      _
    %8738 = vsyncpa [#allocation4], 1

</llo_original>
